<compile_context>
chip_gen: v5e
topology: v5e:2x2
jax: 0.10.0
libtpu: 0.0.40
codegen_flags: <defaults>
</compile_context>

<pallas_src>
import numpy as np
import jax
import jax.numpy as jnp
from jax import lax
from jax.experimental import pallas as pl
from jax.experimental.pallas import tpu as pltpu

_BIG = 3.0e38  # safe f32 sentinel (masked out before any weighted combine)


def _round_up(x, m):
    return (x + m - 1) // m * m


def _pick_node_tile(N, tile_n):
    tn = min(int(tile_n), _round_up(N, 8))
    tn = max(8, _round_up(tn, 8))
    # v7x has 2 TensorCores: make sure the "parallel" node axis has >= 2
    # tiles whenever the graph is big enough to split.
    if _round_up(N, tn) // tn < 2 and N > 8:
        tn = _round_up((_round_up(N, 8) + 1) // 2, 8)
    return tn


def _make_kernel(tn, te, fp, ch):
    n_chunks = te // ch

    def kernel(dst_row_ref, dst_col_ref, m_ref, w_ref, b_ref, o_ref,
               sum_acc, min_acc, max_acc, deg_acc):
        # dst_row_ref: [1, te]  int32  (dst node per edge; -1 => padding)
        # dst_col_ref: [te, 1]  int32  (same values, column-oriented)
        # m_ref:       [te, fp] bf16   (edge features, zero padded)
        # w_ref: [4] f32 SMEM,  b_ref: [1] f32 SMEM
        # o_ref:       [tn, fp] f32
        i = pl.program_id(0)
        k = pl.program_id(1)

        @pl.when(k == 0)
        def _():
            sum_acc[...] = jnp.zeros_like(sum_acc)
            min_acc[...] = jnp.full_like(min_acc, _BIG)
            max_acc[...] = jnp.full_like(max_acc, -_BIG)
            deg_acc[...] = jnp.zeros_like(deg_acc)

        node0 = i * tn

        # ---- sum + degree ------------------------------------------------
        # One-hot incidence for this (node tile, edge tile), built in-kernel:
        # hit[n, e] = (node0 + n == dst[e]).  bf16 is exact for 0/1, so the
        # matmul runs on the fast bf16 MXU path with f32 accumulation.
        node_l = lax.broadcasted_iota(jnp.int32, (tn, te), 0) + node0
        hit = node_l == dst_row_ref[...]                         # [tn, te] bool
        onehot = hit.astype(jnp.bfloat16)
        sum_acc[...] += jnp.dot(onehot, m_ref[...],
                                preferred_element_type=jnp.float32)
        # In-degree = row-sum of the one-hot tile (exact in f32).
        deg_acc[...] += jnp.sum(hit.astype(jnp.float32), axis=1,
                                keepdims=True)

        # ---- chunked masked min / max (f32 elementwise math) --------------
        # Fold `ch` edge rows at a time into the running accumulators so the
        # temporary slab is only [tn, ch, fp] (not [tn, te, fp]).
        node3 = lax.broadcasted_iota(jnp.int32, (tn, ch, 1), 0) + node0
        for c in range(n_chunks):
            dst_c = dst_col_ref[pl.ds(c * ch, ch), :]            # [ch, 1]
            mask_c = node3 == dst_c[None, :, :]                  # [tn, ch, 1]
            m_c = m_ref[pl.ds(c * ch, ch), :].astype(jnp.float32)  # [ch, fp]
            m_b = m_c[None, :, :]                                # [1, ch, fp]
            min_acc[...] = jnp.minimum(
                min_acc[...], jnp.min(jnp.where(mask_c, m_b, _BIG), axis=1))
            max_acc[...] = jnp.maximum(
                max_acc[...], jnp.max(jnp.where(mask_c, m_b, -_BIG), axis=1))

        # ---- finalize: fused Dense(4, 1) epilogue -------------------------
        @pl.when(k == pl.num_programs(1) - 1)
        def _():
            s = sum_acc[...]                                     # [tn, fp]
            deg = deg_acc[...]                                   # [tn, 1]
            has_edge = deg > 0.0
            inv_deg = pl.reciprocal(jnp.maximum(deg, 1.0), approx=True)
            # Mask sentinels BEFORE the weighted combine (zero in-degree rows
            # must see 0 for every aggregation; also avoids w*3e38 overflow).
            mn = jnp.where(has_edge, min_acc[...], 0.0)
            mx = jnp.where(has_edge, max_acc[...], 0.0)
            w0, w1, w2, w3 = w_ref[0], w_ref[1], w_ref[2], w_ref[3]
            out = s * (w0 + w3 * inv_deg) + w1 * mn + w2 * mx + b_ref[0]
            o_ref[...] = out.astype(o_ref.dtype)

    return kernel


def aggregator_all(dst_idx, m, w, b, num_nodes, *,
                   tile_n=512, tile_e=256, chunk=8):
    """mode='all' aggregator.

    dst_idx: [E] int32 destination node per edge (indices outside [0, N) are
             silently dropped, i.e. match no node).
    m:       [E, F] f32 edge features (stored as bf16 for the kernel).
    w, b:    Dense(4, 1) parameters, shapes (4,) and (1,).
    Returns [N, F] f32.
    """
    E, F = m.shape
    N = int(num_nodes)

    Fp = _round_up(F, 128)              # lane-dense output, no +1 degree column

    tn = _pick_node_tile(N, tile_n)
    n_pad = _round_up(N, tn)

    te = _round_up(min(int(tile_e), _round_up(E, 128)), 128)
    e_pad = _round_up(E, te)

    ch = int(chunk)
    assert te % ch == 0

    # bf16 edge features (zero padded); halves the dominant HBM stream, the
    # MXU accumulates in f32.
    m_p = jnp.zeros((e_pad, Fp), jnp.bfloat16)
    m_p = m_p.at[:E, :F].set(m.astype(jnp.bfloat16))

    # Destinations in both orientations (padding edges -> -1, match no node).
    dst32 = dst_idx.astype(jnp.int32)
    dst_row = jnp.full((1, e_pad), -1, jnp.int32).at[0, :E].set(dst32)
    dst_col = jnp.full((e_pad, 1), -1, jnp.int32).at[:E, 0].set(dst32)

    w = jnp.asarray(w, jnp.float32).reshape((4,))
    b = jnp.asarray(b, jnp.float32).reshape((1,))

    grid = (n_pad // tn, e_pad // te)
    kernel = _make_kernel(tn, te, Fp, ch)

    out_p = pl.pallas_call(
        kernel,
        out_shape=jax.ShapeDtypeStruct((n_pad, Fp), jnp.float32),
        grid_spec=pltpu.PrefetchScalarGridSpec(
            num_scalar_prefetch=0,
            grid=grid,
            in_specs=[
                pl.BlockSpec((1, te), lambda i, k: (0, k)),         # dst (row)
                pl.BlockSpec((te, 1), lambda i, k: (k, 0)),         # dst (col)
                pl.BlockSpec((te, Fp), lambda i, k: (k, 0)),        # m (bf16)
                pl.BlockSpec(memory_space=pltpu.MemorySpace.SMEM),  # w
                pl.BlockSpec(memory_space=pltpu.MemorySpace.SMEM),  # b
            ],
            out_specs=pl.BlockSpec((tn, Fp), lambda i, k: (i, 0)),
            scratch_shapes=[
                pltpu.VMEM((tn, Fp), jnp.float32),   # running sum
                pltpu.VMEM((tn, Fp), jnp.float32),   # running min
                pltpu.VMEM((tn, Fp), jnp.float32),   # running max
                pltpu.VMEM((tn, 1), jnp.float32),    # in-degree
            ],
        ),
        compiler_params=pltpu.CompilerParams(
            dimension_semantics=("parallel", "arbitrary"),
            # Generous but v7x-safe (64 MiB physical): buffers + accumulators
            # + chunked min/max temps stay at a few MiB with these tiles.
            vmem_limit_bytes=48 * 1024 * 1024,
        ),
    )(dst_row, dst_col, m_p, w, b)

    return out_p[:N, :F]


if __name__ == "__main__":
    key = jax.random.PRNGKey(0)
    k_m, k_dst = jax.random.split(key)

    N = 32          # nodes
    E = 512         # edges
    F = 32          # edge feature dim

    m = jax.random.normal(k_m, (E, F), dtype=jnp.float32)
    # Leave the last 4 nodes with zero in-degree to exercise that path.
    dst = jax.random.randint(k_dst, (E,), 0, N - 4, dtype=jnp.int32)

    # Deterministic Dense(4, 1) parameters (synthetic; no checkpoint load).
    w = jnp.array([0.40, -0.30, 0.20, 0.70], dtype=jnp.float32)
    b = jnp.array([0.05], dtype=jnp.float32)

    # Small tiles on purpose so the demo exercises a (2, 4) grid.
    out = aggregator_all(dst, m, w, b, N, tile_n=16, tile_e=128)
    out = jax.block_until_ready(out)

    # Reference (same semantics as dgl copy_e_{sum,min,max,mean} + Dense(4,1)).
    # The kernel stores edge features in bf16, so compare against a reference
    # computed on the same bf16-quantized features (isolates kernel numerics;
    # the bf16 storage itself adds ~1e-3 relative error vs. a pure-f32 ref).
    m_np = np.asarray(m.astype(jnp.bfloat16).astype(jnp.float32))
    dst_np = np.asarray(dst)
    ref = np.zeros((N, F), dtype=np.float32)
    for n in range(N):
        sel = m_np[dst_np == n]
        if sel.shape[0] == 0:
            s = mn = mx = me = np.zeros((F,), dtype=np.float32)
        else:
            s, mn, mx, me = sel.sum(0), sel.min(0), sel.max(0), sel.mean(0)
        ref[n] = 0.40 * s - 0.30 * mn + 0.20 * mx + 0.70 * me + 0.05
    np.testing.assert_allclose(np.asarray(out), ref, rtol=5e-3, atol=5e-3)

    print("KERNEL_OK")
</pallas_src>

<mosaic_0001>
module attributes {stable_mosaic.version = 11 : i64} {
  func.func @kernel(%arg0: i32, %arg1: i32, %arg2: memref<1x128xi32, #tpu.memory_space<vmem>>, %arg3: memref<128x1xi32, #tpu.memory_space<vmem>>, %arg4: memref<128x128xbf16, #tpu.memory_space<vmem>>, %arg5: memref<4xf32, #tpu.memory_space<smem>>, %arg6: memref<1xf32, #tpu.memory_space<smem>>, %arg7: memref<16x128xf32, #tpu.memory_space<vmem>>, %arg8: memref<16x128xf32, #tpu.memory_space<vmem>>, %arg9: memref<16x128xf32, #tpu.memory_space<vmem>>, %arg10: memref<16x128xf32, #tpu.memory_space<vmem>>, %arg11: memref<16x1xf32, #tpu.memory_space<vmem>>) attributes {dimension_semantics = [#tpu.dimension_semantics<parallel>, #tpu.dimension_semantics<arbitrary>], iteration_bounds = array<i64: 2, 4>, scalar_prefetch = 0 : i64, scratch_operands = 4 : i64, tpu.core_type = #tpu.core_type<tc>, window_params = [{transform_indices = @transform_0, window_bounds = array<i64: 1, 128>}, {transform_indices = @transform_1, window_bounds = array<i64: 128, 1>}, {transform_indices = @transform_2, window_bounds = array<i64: 128, 128>}, {transform_indices = @transform_3, window_bounds = array<i64: 4>}, {transform_indices = @transform_4, window_bounds = array<i64: 1>}, {transform_indices = @transform_5, window_bounds = array<i64: 16, 128>}]} {
    %c0_i32 = arith.constant 0 : i32
    %0 = arith.cmpi eq, %arg1, %c0_i32 : i32
    %1 = arith.extui %0 : i1 to i32
    %c0_i32_0 = arith.constant 0 : i32
    %2 = arith.cmpi ne, %1, %c0_i32_0 : i32
    scf.if %2 {
      %cst_255 = arith.constant 0.000000e+00 : f32
      %463 = vector.broadcast %cst_255 : f32 to vector<16x128xf32>
      %c0_256 = arith.constant 0 : index
      %c0_257 = arith.constant 0 : index
      %464 = vector.load %arg8[%c0_256, %c0_257] : memref<16x128xf32, #tpu.memory_space<vmem>>, vector<16x128xf32>
      tpu.vector_store %arg8[%c0_256, %c0_257], %463 {strides = array<i32>} : memref<16x128xf32, #tpu.memory_space<vmem>>, vector<16x128xf32>,
      %cst_258 = arith.constant 3.000000e+38 : f32
      %465 = vector.broadcast %cst_258 : f32 to vector<16x128xf32>
      %c0_259 = arith.constant 0 : index
      %c0_260 = arith.constant 0 : index
      %466 = vector.load %arg9[%c0_259, %c0_260] : memref<16x128xf32, #tpu.memory_space<vmem>>, vector<16x128xf32>
      tpu.vector_store %arg9[%c0_259, %c0_260], %465 {strides = array<i32>} : memref<16x128xf32, #tpu.memory_space<vmem>>, vector<16x128xf32>,
      %cst_261 = arith.constant -3.000000e+38 : f32
      %467 = vector.broadcast %cst_261 : f32 to vector<16x128xf32>
      %c0_262 = arith.constant 0 : index
      %c0_263 = arith.constant 0 : index
      %468 = vector.load %arg10[%c0_262, %c0_263] : memref<16x128xf32, #tpu.memory_space<vmem>>, vector<16x128xf32>
      tpu.vector_store %arg10[%c0_262, %c0_263], %467 {strides = array<i32>} : memref<16x128xf32, #tpu.memory_space<vmem>>, vector<16x128xf32>,
      %cst_264 = arith.constant 0.000000e+00 : f32
      %469 = vector.broadcast %cst_264 : f32 to vector<16x1xf32>
      %c0_265 = arith.constant 0 : index
      %c0_266 = arith.constant 0 : index
      %470 = vector.load %arg11[%c0_265, %c0_266] : memref<16x1xf32, #tpu.memory_space<vmem>>, vector<16x1xf32>
      tpu.vector_store %arg11[%c0_265, %c0_266], %469 {strides = array<i32>} : memref<16x1xf32, #tpu.memory_space<vmem>>, vector<16x1xf32>,
    } else {
    }
    %c16_i32 = arith.constant 16 : i32
    %3 = arith.muli %arg0, %c16_i32 : i32
    %4 = tpu.iota {dimensions = array<i32: 0>} : vector<16x128xi32>
    %5 = vector.broadcast %3 : i32 to vector<16x128xi32>
    %6 = arith.addi %4, %5 : vector<16x128xi32>
    %c0 = arith.constant 0 : index
    %c0_1 = arith.constant 0 : index
    %7 = vector.load %arg2[%c0, %c0_1] : memref<1x128xi32, #tpu.memory_space<vmem>>, vector<1x128xi32>
    %8 = vector.broadcast %7 : vector<1x128xi32> to vector<16x128xi32>
    %9 = arith.cmpi eq, %6, %8 : vector<16x128xi32>
    %10 = arith.extui %9 : vector<16x128xi1> to vector<16x128xi32>
    %11 = arith.sitofp %10 : vector<16x128xi32> to vector<16x128xf32>
    %12 = arith.truncf %11 : vector<16x128xf32> to vector<16x128xbf16>
    %c0_2 = arith.constant 0 : index
    %c0_3 = arith.constant 0 : index
    %13 = vector.load %arg8[%c0_2, %c0_3] : memref<16x128xf32, #tpu.memory_space<vmem>>, vector<16x128xf32>
    %c0_4 = arith.constant 0 : index
    %c0_5 = arith.constant 0 : index
    %14 = vector.load %arg4[%c0_4, %c0_5] : memref<128x128xbf16, #tpu.memory_space<vmem>>, vector<128x128xbf16>
    %cst = arith.constant dense<0.000000e+00> : vector<16x128xf32>
    %15 = tpu.matmul %12, %14, %cst {dimension_numbers = #tpu.dot_dimension_numbers<[1], [0], [0], [1], [0, 0, 1, 1], [], []>} : vector<16x128xbf16>, vector<128x128xbf16>, vector<16x128xf32> -> vector<16x128xf32>
    %16 = arith.addf %13, %15 : vector<16x128xf32>
    %c0_6 = arith.constant 0 : index
    %c0_7 = arith.constant 0 : index
    %17 = vector.load %arg8[%c0_6, %c0_7] : memref<16x128xf32, #tpu.memory_space<vmem>>, vector<16x128xf32>
    tpu.vector_store %arg8[%c0_6, %c0_7], %16 {strides = array<i32>} : memref<16x128xf32, #tpu.memory_space<vmem>>, vector<16x128xf32>,
    %c0_8 = arith.constant 0 : index
    %c0_9 = arith.constant 0 : index
    %18 = vector.load %arg11[%c0_8, %c0_9] : memref<16x1xf32, #tpu.memory_space<vmem>>, vector<16x1xf32>
    %19 = arith.extui %9 : vector<16x128xi1> to vector<16x128xi32>
    %20 = arith.sitofp %19 : vector<16x128xi32> to vector<16x128xf32>
    %cst_10 = arith.constant dense<0.000000e+00> : vector<16xf32>
    %21 = vector.multi_reduction <add>, %20, %cst_10 [1] : vector<16x128xf32> to vector<16xf32>
    %22 = vector.shape_cast %21 : vector<16xf32> to vector<16x1xf32>
    %23 = arith.addf %18, %22 : vector<16x1xf32>
    %c0_11 = arith.constant 0 : index
    %c0_12 = arith.constant 0 : index
    %24 = vector.load %arg11[%c0_11, %c0_12] : memref<16x1xf32, #tpu.memory_space<vmem>>, vector<16x1xf32>
    tpu.vector_store %arg11[%c0_11, %c0_12], %23 {strides = array<i32>} : memref<16x1xf32, #tpu.memory_space<vmem>>, vector<16x1xf32>,
    %25 = tpu.iota {dimensions = array<i32: 0>} : vector<16x8x1xi32>
    %26 = vector.broadcast %3 : i32 to vector<16x8x1xi32>
    %27 = arith.addi %25, %26 : vector<16x8x1xi32>
    %c0_13 = arith.constant 0 : index
    %c0_14 = arith.constant 0 : index
    %28 = vector.load %arg3[%c0_13, %c0_14] : memref<128x1xi32, #tpu.memory_space<vmem>>, vector<8x1xi32>
    %29 = vector.shape_cast %28 : vector<8x1xi32> to vector<1x8x1xi32>
    %30 = vector.broadcast %29 : vector<1x8x1xi32> to vector<16x8x1xi32>
    %31 = arith.cmpi eq, %27, %30 : vector<16x8x1xi32>
    %c0_15 = arith.constant 0 : index
    %c0_16 = arith.constant 0 : index
    %32 = vector.load %arg4[%c0_15, %c0_16] : memref<128x128xbf16, #tpu.memory_space<vmem>>, vector<8x128xbf16>
    %33 = arith.extf %32 : vector<8x128xbf16> to vector<8x128xf32>
    %34 = vector.shape_cast %33 : vector<8x128xf32> to vector<1x8x128xf32>
    %c0_17 = arith.constant 0 : index
    %c0_18 = arith.constant 0 : index
    %35 = vector.load %arg9[%c0_17, %c0_18] : memref<16x128xf32, #tpu.memory_space<vmem>>, vector<16x128xf32>
    %cst_19 = arith.constant 3.000000e+38 : f32
    %36 = vector.shape_cast %31 : vector<16x8x1xi1> to vector<16x8x1xi1>
    %37 = vector.broadcast %36 : vector<16x8x1xi1> to vector<16x8x128xi1>
    %38 = vector.shape_cast %34 : vector<1x8x128xf32> to vector<1x8x128xf32>
    %39 = vector.broadcast %38 : vector<1x8x128xf32> to vector<16x8x128xf32>
    %40 = vector.broadcast %cst_19 : f32 to vector<16x8x128xf32>
    %41 = arith.select %37, %39, %40 : vector<16x8x128xi1>, vector<16x8x128xf32>
    %cst_20 = arith.constant dense<0x7F800000> : vector<16x128xf32>
    %42 = vector.multi_reduction <minimumf>, %41, %cst_20 [1] : vector<16x8x128xf32> to vector<16x128xf32>
    %43 = arith.minimumf %35, %42 : vector<16x128xf32>
    %c0_21 = arith.constant 0 : index
    %c0_22 = arith.constant 0 : index
    %44 = vector.load %arg9[%c0_21, %c0_22] : memref<16x128xf32, #tpu.memory_space<vmem>>, vector<16x128xf32>
    tpu.vector_store %arg9[%c0_21, %c0_22], %43 {strides = array<i32>} : memref<16x128xf32, #tpu.memory_space<vmem>>, vector<16x128xf32>,
    %c0_23 = arith.constant 0 : index
    %c0_24 = arith.constant 0 : index
    %45 = vector.load %arg10[%c0_23, %c0_24] : memref<16x128xf32, #tpu.memory_space<vmem>>, vector<16x128xf32>
    %cst_25 = arith.constant -3.000000e+38 : f32
    %46 = vector.shape_cast %31 : vector<16x8x1xi1> to vector<16x8x1xi1>
    %47 = vector.broadcast %46 : vector<16x8x1xi1> to vector<16x8x128xi1>
    %48 = vector.shape_cast %34 : vector<1x8x128xf32> to vector<1x8x128xf32>
    %49 = vector.broadcast %48 : vector<1x8x128xf32> to vector<16x8x128xf32>
    %50 = vector.broadcast %cst_25 : f32 to vector<16x8x128xf32>
    %51 = arith.select %47, %49, %50 : vector<16x8x128xi1>, vector<16x8x128xf32>
    %cst_26 = arith.constant dense<0xFF800000> : vector<16x128xf32>
    %52 = vector.multi_reduction <maximumf>, %51, %cst_26 [1] : vector<16x8x128xf32> to vector<16x128xf32>
    %53 = arith.maximumf %45, %52 : vector<16x128xf32>
    %c0_27 = arith.constant 0 : index
    %c0_28 = arith.constant 0 : index
    %54 = vector.load %arg10[%c0_27, %c0_28] : memref<16x128xf32, #tpu.memory_space<vmem>>, vector<16x128xf32>
    tpu.vector_store %arg10[%c0_27, %c0_28], %53 {strides = array<i32>} : memref<16x128xf32, #tpu.memory_space<vmem>>, vector<16x128xf32>,
    %c8 = arith.constant 8 : index
    %c0_29 = arith.constant 0 : index
    %55 = vector.load %arg3[%c8, %c0_29] : memref<128x1xi32, #tpu.memory_space<vmem>>, vector<8x1xi32>
    %56 = vector.shape_cast %55 : vector<8x1xi32> to vector<1x8x1xi32>
    %57 = vector.broadcast %56 : vector<1x8x1xi32> to vector<16x8x1xi32>
    %58 = arith.cmpi eq, %27, %57 : vector<16x8x1xi32>
    %c8_30 = arith.constant 8 : index
    %c0_31 = arith.constant 0 : index
    %59 = vector.load %arg4[%c8_30, %c0_31] : memref<128x128xbf16, #tpu.memory_space<vmem>>, vector<8x128xbf16>
    %60 = arith.extf %59 : vector<8x128xbf16> to vector<8x128xf32>
    %61 = vector.shape_cast %60 : vector<8x128xf32> to vector<1x8x128xf32>
    %c0_32 = arith.constant 0 : index
    %c0_33 = arith.constant 0 : index
    %62 = vector.load %arg9[%c0_32, %c0_33] : memref<16x128xf32, #tpu.memory_space<vmem>>, vector<16x128xf32>
    %cst_34 = arith.constant 3.000000e+38 : f32
    %63 = vector.shape_cast %58 : vector<16x8x1xi1> to vector<16x8x1xi1>
    %64 = vector.broadcast %63 : vector<16x8x1xi1> to vector<16x8x128xi1>
    %65 = vector.shape_cast %61 : vector<1x8x128xf32> to vector<1x8x128xf32>
    %66 = vector.broadcast %65 : vector<1x8x128xf32> to vector<16x8x128xf32>
    %67 = vector.broadcast %cst_34 : f32 to vector<16x8x128xf32>
    %68 = arith.select %64, %66, %67 : vector<16x8x128xi1>, vector<16x8x128xf32>
    %cst_35 = arith.constant dense<0x7F800000> : vector<16x128xf32>
    %69 = vector.multi_reduction <minimumf>, %68, %cst_35 [1] : vector<16x8x128xf32> to vector<16x128xf32>
    %70 = arith.minimumf %62, %69 : vector<16x128xf32>
    %c0_36 = arith.constant 0 : index
    %c0_37 = arith.constant 0 : index
    %71 = vector.load %arg9[%c0_36, %c0_37] : memref<16x128xf32, #tpu.memory_space<vmem>>, vector<16x128xf32>
    tpu.vector_store %arg9[%c0_36, %c0_37], %70 {strides = array<i32>} : memref<16x128xf32, #tpu.memory_space<vmem>>, vector<16x128xf32>,
    %c0_38 = arith.constant 0 : index
    %c0_39 = arith.constant 0 : index
    %72 = vector.load %arg10[%c0_38, %c0_39] : memref<16x128xf32, #tpu.memory_space<vmem>>, vector<16x128xf32>
    %cst_40 = arith.constant -3.000000e+38 : f32
    %73 = vector.shape_cast %58 : vector<16x8x1xi1> to vector<16x8x1xi1>
    %74 = vector.broadcast %73 : vector<16x8x1xi1> to vector<16x8x128xi1>
    %75 = vector.shape_cast %61 : vector<1x8x128xf32> to vector<1x8x128xf32>
    %76 = vector.broadcast %75 : vector<1x8x128xf32> to vector<16x8x128xf32>
    %77 = vector.broadcast %cst_40 : f32 to vector<16x8x128xf32>
    %78 = arith.select %74, %76, %77 : vector<16x8x128xi1>, vector<16x8x128xf32>
    %cst_41 = arith.constant dense<0xFF800000> : vector<16x128xf32>
    %79 = vector.multi_reduction <maximumf>, %78, %cst_41 [1] : vector<16x8x128xf32> to vector<16x128xf32>
    %80 = arith.maximumf %72, %79 : vector<16x128xf32>
    %c0_42 = arith.constant 0 : index
    %c0_43 = arith.constant 0 : index
    %81 = vector.load %arg10[%c0_42, %c0_43] : memref<16x128xf32, #tpu.memory_space<vmem>>, vector<16x128xf32>
    tpu.vector_store %arg10[%c0_42, %c0_43], %80 {strides = array<i32>} : memref<16x128xf32, #tpu.memory_space<vmem>>, vector<16x128xf32>,
    %c16 = arith.constant 16 : index
    %c0_44 = arith.constant 0 : index
    %82 = vector.load %arg3[%c16, %c0_44] : memref<128x1xi32, #tpu.memory_space<vmem>>, vector<8x1xi32>
    %83 = vector.shape_cast %82 : vector<8x1xi32> to vector<1x8x1xi32>
    %84 = vector.broadcast %83 : vector<1x8x1xi32> to vector<16x8x1xi32>
    %85 = arith.cmpi eq, %27, %84 : vector<16x8x1xi32>
    %c16_45 = arith.constant 16 : index
    %c0_46 = arith.constant 0 : index
    %86 = vector.load %arg4[%c16_45, %c0_46] : memref<128x128xbf16, #tpu.memory_space<vmem>>, vector<8x128xbf16>
    %87 = arith.extf %86 : vector<8x128xbf16> to vector<8x128xf32>
    %88 = vector.shape_cast %87 : vector<8x128xf32> to vector<1x8x128xf32>
    %c0_47 = arith.constant 0 : index
    %c0_48 = arith.constant 0 : index
    %89 = vector.load %arg9[%c0_47, %c0_48] : memref<16x128xf32, #tpu.memory_space<vmem>>, vector<16x128xf32>
    %cst_49 = arith.constant 3.000000e+38 : f32
    %90 = vector.shape_cast %85 : vector<16x8x1xi1> to vector<16x8x1xi1>
    %91 = vector.broadcast %90 : vector<16x8x1xi1> to vector<16x8x128xi1>
    %92 = vector.shape_cast %88 : vector<1x8x128xf32> to vector<1x8x128xf32>
    %93 = vector.broadcast %92 : vector<1x8x128xf32> to vector<16x8x128xf32>
    %94 = vector.broadcast %cst_49 : f32 to vector<16x8x128xf32>
    %95 = arith.select %91, %93, %94 : vector<16x8x128xi1>, vector<16x8x128xf32>
    %cst_50 = arith.constant dense<0x7F800000> : vector<16x128xf32>
    %96 = vector.multi_reduction <minimumf>, %95, %cst_50 [1] : vector<16x8x128xf32> to vector<16x128xf32>
    %97 = arith.minimumf %89, %96 : vector<16x128xf32>
    %c0_51 = arith.constant 0 : index
    %c0_52 = arith.constant 0 : index
    %98 = vector.load %arg9[%c0_51, %c0_52] : memref<16x128xf32, #tpu.memory_space<vmem>>, vector<16x128xf32>
    tpu.vector_store %arg9[%c0_51, %c0_52], %97 {strides = array<i32>} : memref<16x128xf32, #tpu.memory_space<vmem>>, vector<16x128xf32>,
    %c0_53 = arith.constant 0 : index
    %c0_54 = arith.constant 0 : index
    %99 = vector.load %arg10[%c0_53, %c0_54] : memref<16x128xf32, #tpu.memory_space<vmem>>, vector<16x128xf32>
    %cst_55 = arith.constant -3.000000e+38 : f32
    %100 = vector.shape_cast %85 : vector<16x8x1xi1> to vector<16x8x1xi1>
    %101 = vector.broadcast %100 : vector<16x8x1xi1> to vector<16x8x128xi1>
    %102 = vector.shape_cast %88 : vector<1x8x128xf32> to vector<1x8x128xf32>
    %103 = vector.broadcast %102 : vector<1x8x128xf32> to vector<16x8x128xf32>
    %104 = vector.broadcast %cst_55 : f32 to vector<16x8x128xf32>
    %105 = arith.select %101, %103, %104 : vector<16x8x128xi1>, vector<16x8x128xf32>
    %cst_56 = arith.constant dense<0xFF800000> : vector<16x128xf32>
    %106 = vector.multi_reduction <maximumf>, %105, %cst_56 [1] : vector<16x8x128xf32> to vector<16x128xf32>
    %107 = arith.maximumf %99, %106 : vector<16x128xf32>
    %c0_57 = arith.constant 0 : index
    %c0_58 = arith.constant 0 : index
    %108 = vector.load %arg10[%c0_57, %c0_58] : memref<16x128xf32, #tpu.memory_space<vmem>>, vector<16x128xf32>
    tpu.vector_store %arg10[%c0_57, %c0_58], %107 {strides = array<i32>} : memref<16x128xf32, #tpu.memory_space<vmem>>, vector<16x128xf32>,
    %c24 = arith.constant 24 : index
    %c0_59 = arith.constant 0 : index
    %109 = vector.load %arg3[%c24, %c0_59] : memref<128x1xi32, #tpu.memory_space<vmem>>, vector<8x1xi32>
    %110 = vector.shape_cast %109 : vector<8x1xi32> to vector<1x8x1xi32>
    %111 = vector.broadcast %110 : vector<1x8x1xi32> to vector<16x8x1xi32>
    %112 = arith.cmpi eq, %27, %111 : vector<16x8x1xi32>
    %c24_60 = arith.constant 24 : index
    %c0_61 = arith.constant 0 : index
    %113 = vector.load %arg4[%c24_60, %c0_61] : memref<128x128xbf16, #tpu.memory_space<vmem>>, vector<8x128xbf16>
    %114 = arith.extf %113 : vector<8x128xbf16> to vector<8x128xf32>
    %115 = vector.shape_cast %114 : vector<8x128xf32> to vector<1x8x128xf32>
    %c0_62 = arith.constant 0 : index
    %c0_63 = arith.constant 0 : index
    %116 = vector.load %arg9[%c0_62, %c0_63] : memref<16x128xf32, #tpu.memory_space<vmem>>, vector<16x128xf32>
    %cst_64 = arith.constant 3.000000e+38 : f32
    %117 = vector.shape_cast %112 : vector<16x8x1xi1> to vector<16x8x1xi1>
    %118 = vector.broadcast %117 : vector<16x8x1xi1> to vector<16x8x128xi1>
    %119 = vector.shape_cast %115 : vector<1x8x128xf32> to vector<1x8x128xf32>
    %120 = vector.broadcast %119 : vector<1x8x128xf32> to vector<16x8x128xf32>
    %121 = vector.broadcast %cst_64 : f32 to vector<16x8x128xf32>
    %122 = arith.select %118, %120, %121 : vector<16x8x128xi1>, vector<16x8x128xf32>
    %cst_65 = arith.constant dense<0x7F800000> : vector<16x128xf32>
    %123 = vector.multi_reduction <minimumf>, %122, %cst_65 [1] : vector<16x8x128xf32> to vector<16x128xf32>
    %124 = arith.minimumf %116, %123 : vector<16x128xf32>
    %c0_66 = arith.constant 0 : index
    %c0_67 = arith.constant 0 : index
    %125 = vector.load %arg9[%c0_66, %c0_67] : memref<16x128xf32, #tpu.memory_space<vmem>>, vector<16x128xf32>
    tpu.vector_store %arg9[%c0_66, %c0_67], %124 {strides = array<i32>} : memref<16x128xf32, #tpu.memory_space<vmem>>, vector<16x128xf32>,
    %c0_68 = arith.constant 0 : index
    %c0_69 = arith.constant 0 : index
    %126 = vector.load %arg10[%c0_68, %c0_69] : memref<16x128xf32, #tpu.memory_space<vmem>>, vector<16x128xf32>
    %cst_70 = arith.constant -3.000000e+38 : f32
    %127 = vector.shape_cast %112 : vector<16x8x1xi1> to vector<16x8x1xi1>
    %128 = vector.broadcast %127 : vector<16x8x1xi1> to vector<16x8x128xi1>
    %129 = vector.shape_cast %115 : vector<1x8x128xf32> to vector<1x8x128xf32>
    %130 = vector.broadcast %129 : vector<1x8x128xf32> to vector<16x8x128xf32>
    %131 = vector.broadcast %cst_70 : f32 to vector<16x8x128xf32>
    %132 = arith.select %128, %130, %131 : vector<16x8x128xi1>, vector<16x8x128xf32>
    %cst_71 = arith.constant dense<0xFF800000> : vector<16x128xf32>
    %133 = vector.multi_reduction <maximumf>, %132, %cst_71 [1] : vector<16x8x128xf32> to vector<16x128xf32>
    %134 = arith.maximumf %126, %133 : vector<16x128xf32>
    %c0_72 = arith.constant 0 : index
    %c0_73 = arith.constant 0 : index
    %135 = vector.load %arg10[%c0_72, %c0_73] : memref<16x128xf32, #tpu.memory_space<vmem>>, vector<16x128xf32>
    tpu.vector_store %arg10[%c0_72, %c0_73], %134 {strides = array<i32>} : memref<16x128xf32, #tpu.memory_space<vmem>>, vector<16x128xf32>,
    %c32 = arith.constant 32 : index
    %c0_74 = arith.constant 0 : index
    %136 = vector.load %arg3[%c32, %c0_74] : memref<128x1xi32, #tpu.memory_space<vmem>>, vector<8x1xi32>
    %137 = vector.shape_cast %136 : vector<8x1xi32> to vector<1x8x1xi32>
    %138 = vector.broadcast %137 : vector<1x8x1xi32> to vector<16x8x1xi32>
    %139 = arith.cmpi eq, %27, %138 : vector<16x8x1xi32>
    %c32_75 = arith.constant 32 : index
    %c0_76 = arith.constant 0 : index
    %140 = vector.load %arg4[%c32_75, %c0_76] : memref<128x128xbf16, #tpu.memory_space<vmem>>, vector<8x128xbf16>
    %141 = arith.extf %140 : vector<8x128xbf16> to vector<8x128xf32>
    %142 = vector.shape_cast %141 : vector<8x128xf32> to vector<1x8x128xf32>
    %c0_77 = arith.constant 0 : index
    %c0_78 = arith.constant 0 : index
    %143 = vector.load %arg9[%c0_77, %c0_78] : memref<16x128xf32, #tpu.memory_space<vmem>>, vector<16x128xf32>
    %cst_79 = arith.constant 3.000000e+38 : f32
    %144 = vector.shape_cast %139 : vector<16x8x1xi1> to vector<16x8x1xi1>
    %145 = vector.broadcast %144 : vector<16x8x1xi1> to vector<16x8x128xi1>
    %146 = vector.shape_cast %142 : vector<1x8x128xf32> to vector<1x8x128xf32>
    %147 = vector.broadcast %146 : vector<1x8x128xf32> to vector<16x8x128xf32>
    %148 = vector.broadcast %cst_79 : f32 to vector<16x8x128xf32>
    %149 = arith.select %145, %147, %148 : vector<16x8x128xi1>, vector<16x8x128xf32>
    %cst_80 = arith.constant dense<0x7F800000> : vector<16x128xf32>
    %150 = vector.multi_reduction <minimumf>, %149, %cst_80 [1] : vector<16x8x128xf32> to vector<16x128xf32>
    %151 = arith.minimumf %143, %150 : vector<16x128xf32>
    %c0_81 = arith.constant 0 : index
    %c0_82 = arith.constant 0 : index
    %152 = vector.load %arg9[%c0_81, %c0_82] : memref<16x128xf32, #tpu.memory_space<vmem>>, vector<16x128xf32>
    tpu.vector_store %arg9[%c0_81, %c0_82], %151 {strides = array<i32>} : memref<16x128xf32, #tpu.memory_space<vmem>>, vector<16x128xf32>,
    %c0_83 = arith.constant 0 : index
    %c0_84 = arith.constant 0 : index
    %153 = vector.load %arg10[%c0_83, %c0_84] : memref<16x128xf32, #tpu.memory_space<vmem>>, vector<16x128xf32>
    %cst_85 = arith.constant -3.000000e+38 : f32
    %154 = vector.shape_cast %139 : vector<16x8x1xi1> to vector<16x8x1xi1>
    %155 = vector.broadcast %154 : vector<16x8x1xi1> to vector<16x8x128xi1>
    %156 = vector.shape_cast %142 : vector<1x8x128xf32> to vector<1x8x128xf32>
    %157 = vector.broadcast %156 : vector<1x8x128xf32> to vector<16x8x128xf32>
    %158 = vector.broadcast %cst_85 : f32 to vector<16x8x128xf32>
    %159 = arith.select %155, %157, %158 : vector<16x8x128xi1>, vector<16x8x128xf32>
    %cst_86 = arith.constant dense<0xFF800000> : vector<16x128xf32>
    %160 = vector.multi_reduction <maximumf>, %159, %cst_86 [1] : vector<16x8x128xf32> to vector<16x128xf32>
    %161 = arith.maximumf %153, %160 : vector<16x128xf32>
    %c0_87 = arith.constant 0 : index
    %c0_88 = arith.constant 0 : index
    %162 = vector.load %arg10[%c0_87, %c0_88] : memref<16x128xf32, #tpu.memory_space<vmem>>, vector<16x128xf32>
    tpu.vector_store %arg10[%c0_87, %c0_88], %161 {strides = array<i32>} : memref<16x128xf32, #tpu.memory_space<vmem>>, vector<16x128xf32>,
    %c40 = arith.constant 40 : index
    %c0_89 = arith.constant 0 : index
    %163 = vector.load %arg3[%c40, %c0_89] : memref<128x1xi32, #tpu.memory_space<vmem>>, vector<8x1xi32>
    %164 = vector.shape_cast %163 : vector<8x1xi32> to vector<1x8x1xi32>
    %165 = vector.broadcast %164 : vector<1x8x1xi32> to vector<16x8x1xi32>
    %166 = arith.cmpi eq, %27, %165 : vector<16x8x1xi32>
    %c40_90 = arith.constant 40 : index
    %c0_91 = arith.constant 0 : index
    %167 = vector.load %arg4[%c40_90, %c0_91] : memref<128x128xbf16, #tpu.memory_space<vmem>>, vector<8x128xbf16>
    %168 = arith.extf %167 : vector<8x128xbf16> to vector<8x128xf32>
    %169 = vector.shape_cast %168 : vector<8x128xf32> to vector<1x8x128xf32>
    %c0_92 = arith.constant 0 : index
    %c0_93 = arith.constant 0 : index
    %170 = vector.load %arg9[%c0_92, %c0_93] : memref<16x128xf32, #tpu.memory_space<vmem>>, vector<16x128xf32>
    %cst_94 = arith.constant 3.000000e+38 : f32
    %171 = vector.shape_cast %166 : vector<16x8x1xi1> to vector<16x8x1xi1>
    %172 = vector.broadcast %171 : vector<16x8x1xi1> to vector<16x8x128xi1>
    %173 = vector.shape_cast %169 : vector<1x8x128xf32> to vector<1x8x128xf32>
    %174 = vector.broadcast %173 : vector<1x8x128xf32> to vector<16x8x128xf32>
    %175 = vector.broadcast %cst_94 : f32 to vector<16x8x128xf32>
    %176 = arith.select %172, %174, %175 : vector<16x8x128xi1>, vector<16x8x128xf32>
    %cst_95 = arith.constant dense<0x7F800000> : vector<16x128xf32>
    %177 = vector.multi_reduction <minimumf>, %176, %cst_95 [1] : vector<16x8x128xf32> to vector<16x128xf32>
    %178 = arith.minimumf %170, %177 : vector<16x128xf32>
    %c0_96 = arith.constant 0 : index
    %c0_97 = arith.constant 0 : index
    %179 = vector.load %arg9[%c0_96, %c0_97] : memref<16x128xf32, #tpu.memory_space<vmem>>, vector<16x128xf32>
    tpu.vector_store %arg9[%c0_96, %c0_97], %178 {strides = array<i32>} : memref<16x128xf32, #tpu.memory_space<vmem>>, vector<16x128xf32>,
    %c0_98 = arith.constant 0 : index
    %c0_99 = arith.constant 0 : index
    %180 = vector.load %arg10[%c0_98, %c0_99] : memref<16x128xf32, #tpu.memory_space<vmem>>, vector<16x128xf32>
    %cst_100 = arith.constant -3.000000e+38 : f32
    %181 = vector.shape_cast %166 : vector<16x8x1xi1> to vector<16x8x1xi1>
    %182 = vector.broadcast %181 : vector<16x8x1xi1> to vector<16x8x128xi1>
    %183 = vector.shape_cast %169 : vector<1x8x128xf32> to vector<1x8x128xf32>
    %184 = vector.broadcast %183 : vector<1x8x128xf32> to vector<16x8x128xf32>
    %185 = vector.broadcast %cst_100 : f32 to vector<16x8x128xf32>
    %186 = arith.select %182, %184, %185 : vector<16x8x128xi1>, vector<16x8x128xf32>
    %cst_101 = arith.constant dense<0xFF800000> : vector<16x128xf32>
    %187 = vector.multi_reduction <maximumf>, %186, %cst_101 [1] : vector<16x8x128xf32> to vector<16x128xf32>
    %188 = arith.maximumf %180, %187 : vector<16x128xf32>
    %c0_102 = arith.constant 0 : index
    %c0_103 = arith.constant 0 : index
    %189 = vector.load %arg10[%c0_102, %c0_103] : memref<16x128xf32, #tpu.memory_space<vmem>>, vector<16x128xf32>
    tpu.vector_store %arg10[%c0_102, %c0_103], %188 {strides = array<i32>} : memref<16x128xf32, #tpu.memory_space<vmem>>, vector<16x128xf32>,
    %c48 = arith.constant 48 : index
    %c0_104 = arith.constant 0 : index
    %190 = vector.load %arg3[%c48, %c0_104] : memref<128x1xi32, #tpu.memory_space<vmem>>, vector<8x1xi32>
    %191 = vector.shape_cast %190 : vector<8x1xi32> to vector<1x8x1xi32>
    %192 = vector.broadcast %191 : vector<1x8x1xi32> to vector<16x8x1xi32>
    %193 = arith.cmpi eq, %27, %192 : vector<16x8x1xi32>
    %c48_105 = arith.constant 48 : index
    %c0_106 = arith.constant 0 : index
    %194 = vector.load %arg4[%c48_105, %c0_106] : memref<128x128xbf16, #tpu.memory_space<vmem>>, vector<8x128xbf16>
    %195 = arith.extf %194 : vector<8x128xbf16> to vector<8x128xf32>
    %196 = vector.shape_cast %195 : vector<8x128xf32> to vector<1x8x128xf32>
    %c0_107 = arith.constant 0 : index
    %c0_108 = arith.constant 0 : index
    %197 = vector.load %arg9[%c0_107, %c0_108] : memref<16x128xf32, #tpu.memory_space<vmem>>, vector<16x128xf32>
    %cst_109 = arith.constant 3.000000e+38 : f32
    %198 = vector.shape_cast %193 : vector<16x8x1xi1> to vector<16x8x1xi1>
    %199 = vector.broadcast %198 : vector<16x8x1xi1> to vector<16x8x128xi1>
    %200 = vector.shape_cast %196 : vector<1x8x128xf32> to vector<1x8x128xf32>
    %201 = vector.broadcast %200 : vector<1x8x128xf32> to vector<16x8x128xf32>
    %202 = vector.broadcast %cst_109 : f32 to vector<16x8x128xf32>
    %203 = arith.select %199, %201, %202 : vector<16x8x128xi1>, vector<16x8x128xf32>
    %cst_110 = arith.constant dense<0x7F800000> : vector<16x128xf32>
    %204 = vector.multi_reduction <minimumf>, %203, %cst_110 [1] : vector<16x8x128xf32> to vector<16x128xf32>
    %205 = arith.minimumf %197, %204 : vector<16x128xf32>
    %c0_111 = arith.constant 0 : index
    %c0_112 = arith.constant 0 : index
    %206 = vector.load %arg9[%c0_111, %c0_112] : memref<16x128xf32, #tpu.memory_space<vmem>>, vector<16x128xf32>
    tpu.vector_store %arg9[%c0_111, %c0_112], %205 {strides = array<i32>} : memref<16x128xf32, #tpu.memory_space<vmem>>, vector<16x128xf32>,
    %c0_113 = arith.constant 0 : index
    %c0_114 = arith.constant 0 : index
    %207 = vector.load %arg10[%c0_113, %c0_114] : memref<16x128xf32, #tpu.memory_space<vmem>>, vector<16x128xf32>
    %cst_115 = arith.constant -3.000000e+38 : f32
    %208 = vector.shape_cast %193 : vector<16x8x1xi1> to vector<16x8x1xi1>
    %209 = vector.broadcast %208 : vector<16x8x1xi1> to vector<16x8x128xi1>
    %210 = vector.shape_cast %196 : vector<1x8x128xf32> to vector<1x8x128xf32>
    %211 = vector.broadcast %210 : vector<1x8x128xf32> to vector<16x8x128xf32>
    %212 = vector.broadcast %cst_115 : f32 to vector<16x8x128xf32>
    %213 = arith.select %209, %211, %212 : vector<16x8x128xi1>, vector<16x8x128xf32>
    %cst_116 = arith.constant dense<0xFF800000> : vector<16x128xf32>
    %214 = vector.multi_reduction <maximumf>, %213, %cst_116 [1] : vector<16x8x128xf32> to vector<16x128xf32>
    %215 = arith.maximumf %207, %214 : vector<16x128xf32>
    %c0_117 = arith.constant 0 : index
    %c0_118 = arith.constant 0 : index
    %216 = vector.load %arg10[%c0_117, %c0_118] : memref<16x128xf32, #tpu.memory_space<vmem>>, vector<16x128xf32>
    tpu.vector_store %arg10[%c0_117, %c0_118], %215 {strides = array<i32>} : memref<16x128xf32, #tpu.memory_space<vmem>>, vector<16x128xf32>,
    %c56 = arith.constant 56 : index
    %c0_119 = arith.constant 0 : index
    %217 = vector.load %arg3[%c56, %c0_119] : memref<128x1xi32, #tpu.memory_space<vmem>>, vector<8x1xi32>
    %218 = vector.shape_cast %217 : vector<8x1xi32> to vector<1x8x1xi32>
    %219 = vector.broadcast %218 : vector<1x8x1xi32> to vector<16x8x1xi32>
    %220 = arith.cmpi eq, %27, %219 : vector<16x8x1xi32>
    %c56_120 = arith.constant 56 : index
    %c0_121 = arith.constant 0 : index
    %221 = vector.load %arg4[%c56_120, %c0_121] : memref<128x128xbf16, #tpu.memory_space<vmem>>, vector<8x128xbf16>
    %222 = arith.extf %221 : vector<8x128xbf16> to vector<8x128xf32>
    %223 = vector.shape_cast %222 : vector<8x128xf32> to vector<1x8x128xf32>
    %c0_122 = arith.constant 0 : index
    %c0_123 = arith.constant 0 : index
    %224 = vector.load %arg9[%c0_122, %c0_123] : memref<16x128xf32, #tpu.memory_space<vmem>>, vector<16x128xf32>
    %cst_124 = arith.constant 3.000000e+38 : f32
    %225 = vector.shape_cast %220 : vector<16x8x1xi1> to vector<16x8x1xi1>
    %226 = vector.broadcast %225 : vector<16x8x1xi1> to vector<16x8x128xi1>
    %227 = vector.shape_cast %223 : vector<1x8x128xf32> to vector<1x8x128xf32>
    %228 = vector.broadcast %227 : vector<1x8x128xf32> to vector<16x8x128xf32>
    %229 = vector.broadcast %cst_124 : f32 to vector<16x8x128xf32>
    %230 = arith.select %226, %228, %229 : vector<16x8x128xi1>, vector<16x8x128xf32>
    %cst_125 = arith.constant dense<0x7F800000> : vector<16x128xf32>
    %231 = vector.multi_reduction <minimumf>, %230, %cst_125 [1] : vector<16x8x128xf32> to vector<16x128xf32>
    %232 = arith.minimumf %224, %231 : vector<16x128xf32>
    %c0_126 = arith.constant 0 : index
    %c0_127 = arith.constant 0 : index
    %233 = vector.load %arg9[%c0_126, %c0_127] : memref<16x128xf32, #tpu.memory_space<vmem>>, vector<16x128xf32>
    tpu.vector_store %arg9[%c0_126, %c0_127], %232 {strides = array<i32>} : memref<16x128xf32, #tpu.memory_space<vmem>>, vector<16x128xf32>,
    %c0_128 = arith.constant 0 : index
    %c0_129 = arith.constant 0 : index
    %234 = vector.load %arg10[%c0_128, %c0_129] : memref<16x128xf32, #tpu.memory_space<vmem>>, vector<16x128xf32>
    %cst_130 = arith.constant -3.000000e+38 : f32
    %235 = vector.shape_cast %220 : vector<16x8x1xi1> to vector<16x8x1xi1>
    %236 = vector.broadcast %235 : vector<16x8x1xi1> to vector<16x8x128xi1>
    %237 = vector.shape_cast %223 : vector<1x8x128xf32> to vector<1x8x128xf32>
    %238 = vector.broadcast %237 : vector<1x8x128xf32> to vector<16x8x128xf32>
    %239 = vector.broadcast %cst_130 : f32 to vector<16x8x128xf32>
    %240 = arith.select %236, %238, %239 : vector<16x8x128xi1>, vector<16x8x128xf32>
    %cst_131 = arith.constant dense<0xFF800000> : vector<16x128xf32>
    %241 = vector.multi_reduction <maximumf>, %240, %cst_131 [1] : vector<16x8x128xf32> to vector<16x128xf32>
    %242 = arith.maximumf %234, %241 : vector<16x128xf32>
    %c0_132 = arith.constant 0 : index
    %c0_133 = arith.constant 0 : index
    %243 = vector.load %arg10[%c0_132, %c0_133] : memref<16x128xf32, #tpu.memory_space<vmem>>, vector<16x128xf32>
    tpu.vector_store %arg10[%c0_132, %c0_133], %242 {strides = array<i32>} : memref<16x128xf32, #tpu.memory_space<vmem>>, vector<16x128xf32>,
    %c64 = arith.constant 64 : index
    %c0_134 = arith.constant 0 : index
    %244 = vector.load %arg3[%c64, %c0_134] : memref<128x1xi32, #tpu.memory_space<vmem>>, vector<8x1xi32>
    %245 = vector.shape_cast %244 : vector<8x1xi32> to vector<1x8x1xi32>
    %246 = vector.broadcast %245 : vector<1x8x1xi32> to vector<16x8x1xi32>
    %247 = arith.cmpi eq, %27, %246 : vector<16x8x1xi32>
    %c64_135 = arith.constant 64 : index
    %c0_136 = arith.constant 0 : index
    %248 = vector.load %arg4[%c64_135, %c0_136] : memref<128x128xbf16, #tpu.memory_space<vmem>>, vector<8x128xbf16>
    %249 = arith.extf %248 : vector<8x128xbf16> to vector<8x128xf32>
    %250 = vector.shape_cast %249 : vector<8x128xf32> to vector<1x8x128xf32>
    %c0_137 = arith.constant 0 : index
    %c0_138 = arith.constant 0 : index
    %251 = vector.load %arg9[%c0_137, %c0_138] : memref<16x128xf32, #tpu.memory_space<vmem>>, vector<16x128xf32>
    %cst_139 = arith.constant 3.000000e+38 : f32
    %252 = vector.shape_cast %247 : vector<16x8x1xi1> to vector<16x8x1xi1>
    %253 = vector.broadcast %252 : vector<16x8x1xi1> to vector<16x8x128xi1>
    %254 = vector.shape_cast %250 : vector<1x8x128xf32> to vector<1x8x128xf32>
    %255 = vector.broadcast %254 : vector<1x8x128xf32> to vector<16x8x128xf32>
    %256 = vector.broadcast %cst_139 : f32 to vector<16x8x128xf32>
    %257 = arith.select %253, %255, %256 : vector<16x8x128xi1>, vector<16x8x128xf32>
    %cst_140 = arith.constant dense<0x7F800000> : vector<16x128xf32>
    %258 = vector.multi_reduction <minimumf>, %257, %cst_140 [1] : vector<16x8x128xf32> to vector<16x128xf32>
    %259 = arith.minimumf %251, %258 : vector<16x128xf32>
    %c0_141 = arith.constant 0 : index
    %c0_142 = arith.constant 0 : index
    %260 = vector.load %arg9[%c0_141, %c0_142] : memref<16x128xf32, #tpu.memory_space<vmem>>, vector<16x128xf32>
    tpu.vector_store %arg9[%c0_141, %c0_142], %259 {strides = array<i32>} : memref<16x128xf32, #tpu.memory_space<vmem>>, vector<16x128xf32>,
    %c0_143 = arith.constant 0 : index
    %c0_144 = arith.constant 0 : index
    %261 = vector.load %arg10[%c0_143, %c0_144] : memref<16x128xf32, #tpu.memory_space<vmem>>, vector<16x128xf32>
    %cst_145 = arith.constant -3.000000e+38 : f32
    %262 = vector.shape_cast %247 : vector<16x8x1xi1> to vector<16x8x1xi1>
    %263 = vector.broadcast %262 : vector<16x8x1xi1> to vector<16x8x128xi1>
    %264 = vector.shape_cast %250 : vector<1x8x128xf32> to vector<1x8x128xf32>
    %265 = vector.broadcast %264 : vector<1x8x128xf32> to vector<16x8x128xf32>
    %266 = vector.broadcast %cst_145 : f32 to vector<16x8x128xf32>
    %267 = arith.select %263, %265, %266 : vector<16x8x128xi1>, vector<16x8x128xf32>
    %cst_146 = arith.constant dense<0xFF800000> : vector<16x128xf32>
    %268 = vector.multi_reduction <maximumf>, %267, %cst_146 [1] : vector<16x8x128xf32> to vector<16x128xf32>
    %269 = arith.maximumf %261, %268 : vector<16x128xf32>
    %c0_147 = arith.constant 0 : index
    %c0_148 = arith.constant 0 : index
    %270 = vector.load %arg10[%c0_147, %c0_148] : memref<16x128xf32, #tpu.memory_space<vmem>>, vector<16x128xf32>
    tpu.vector_store %arg10[%c0_147, %c0_148], %269 {strides = array<i32>} : memref<16x128xf32, #tpu.memory_space<vmem>>, vector<16x128xf32>,
    %c72 = arith.constant 72 : index
    %c0_149 = arith.constant 0 : index
    %271 = vector.load %arg3[%c72, %c0_149] : memref<128x1xi32, #tpu.memory_space<vmem>>, vector<8x1xi32>
    %272 = vector.shape_cast %271 : vector<8x1xi32> to vector<1x8x1xi32>
    %273 = vector.broadcast %272 : vector<1x8x1xi32> to vector<16x8x1xi32>
    %274 = arith.cmpi eq, %27, %273 : vector<16x8x1xi32>
    %c72_150 = arith.constant 72 : index
    %c0_151 = arith.constant 0 : index
    %275 = vector.load %arg4[%c72_150, %c0_151] : memref<128x128xbf16, #tpu.memory_space<vmem>>, vector<8x128xbf16>
    %276 = arith.extf %275 : vector<8x128xbf16> to vector<8x128xf32>
    %277 = vector.shape_cast %276 : vector<8x128xf32> to vector<1x8x128xf32>
    %c0_152 = arith.constant 0 : index
    %c0_153 = arith.constant 0 : index
    %278 = vector.load %arg9[%c0_152, %c0_153] : memref<16x128xf32, #tpu.memory_space<vmem>>, vector<16x128xf32>
    %cst_154 = arith.constant 3.000000e+38 : f32
    %279 = vector.shape_cast %274 : vector<16x8x1xi1> to vector<16x8x1xi1>
    %280 = vector.broadcast %279 : vector<16x8x1xi1> to vector<16x8x128xi1>
    %281 = vector.shape_cast %277 : vector<1x8x128xf32> to vector<1x8x128xf32>
    %282 = vector.broadcast %281 : vector<1x8x128xf32> to vector<16x8x128xf32>
    %283 = vector.broadcast %cst_154 : f32 to vector<16x8x128xf32>
    %284 = arith.select %280, %282, %283 : vector<16x8x128xi1>, vector<16x8x128xf32>
    %cst_155 = arith.constant dense<0x7F800000> : vector<16x128xf32>
    %285 = vector.multi_reduction <minimumf>, %284, %cst_155 [1] : vector<16x8x128xf32> to vector<16x128xf32>
    %286 = arith.minimumf %278, %285 : vector<16x128xf32>
    %c0_156 = arith.constant 0 : index
    %c0_157 = arith.constant 0 : index
    %287 = vector.load %arg9[%c0_156, %c0_157] : memref<16x128xf32, #tpu.memory_space<vmem>>, vector<16x128xf32>
    tpu.vector_store %arg9[%c0_156, %c0_157], %286 {strides = array<i32>} : memref<16x128xf32, #tpu.memory_space<vmem>>, vector<16x128xf32>,
    %c0_158 = arith.constant 0 : index
    %c0_159 = arith.constant 0 : index
    %288 = vector.load %arg10[%c0_158, %c0_159] : memref<16x128xf32, #tpu.memory_space<vmem>>, vector<16x128xf32>
    %cst_160 = arith.constant -3.000000e+38 : f32
    %289 = vector.shape_cast %274 : vector<16x8x1xi1> to vector<16x8x1xi1>
    %290 = vector.broadcast %289 : vector<16x8x1xi1> to vector<16x8x128xi1>
    %291 = vector.shape_cast %277 : vector<1x8x128xf32> to vector<1x8x128xf32>
    %292 = vector.broadcast %291 : vector<1x8x128xf32> to vector<16x8x128xf32>
    %293 = vector.broadcast %cst_160 : f32 to vector<16x8x128xf32>
    %294 = arith.select %290, %292, %293 : vector<16x8x128xi1>, vector<16x8x128xf32>
    %cst_161 = arith.constant dense<0xFF800000> : vector<16x128xf32>
    %295 = vector.multi_reduction <maximumf>, %294, %cst_161 [1] : vector<16x8x128xf32> to vector<16x128xf32>
    %296 = arith.maximumf %288, %295 : vector<16x128xf32>
    %c0_162 = arith.constant 0 : index
    %c0_163 = arith.constant 0 : index
    %297 = vector.load %arg10[%c0_162, %c0_163] : memref<16x128xf32, #tpu.memory_space<vmem>>, vector<16x128xf32>
    tpu.vector_store %arg10[%c0_162, %c0_163], %296 {strides = array<i32>} : memref<16x128xf32, #tpu.memory_space<vmem>>, vector<16x128xf32>,
    %c80 = arith.constant 80 : index
    %c0_164 = arith.constant 0 : index
    %298 = vector.load %arg3[%c80, %c0_164] : memref<128x1xi32, #tpu.memory_space<vmem>>, vector<8x1xi32>
    %299 = vector.shape_cast %298 : vector<8x1xi32> to vector<1x8x1xi32>
    %300 = vector.broadcast %299 : vector<1x8x1xi32> to vector<16x8x1xi32>
    %301 = arith.cmpi eq, %27, %300 : vector<16x8x1xi32>
    %c80_165 = arith.constant 80 : index
    %c0_166 = arith.constant 0 : index
    %302 = vector.load %arg4[%c80_165, %c0_166] : memref<128x128xbf16, #tpu.memory_space<vmem>>, vector<8x128xbf16>
    %303 = arith.extf %302 : vector<8x128xbf16> to vector<8x128xf32>
    %304 = vector.shape_cast %303 : vector<8x128xf32> to vector<1x8x128xf32>
    %c0_167 = arith.constant 0 : index
    %c0_168 = arith.constant 0 : index
    %305 = vector.load %arg9[%c0_167, %c0_168] : memref<16x128xf32, #tpu.memory_space<vmem>>, vector<16x128xf32>
    %cst_169 = arith.constant 3.000000e+38 : f32
    %306 = vector.shape_cast %301 : vector<16x8x1xi1> to vector<16x8x1xi1>
    %307 = vector.broadcast %306 : vector<16x8x1xi1> to vector<16x8x128xi1>
    %308 = vector.shape_cast %304 : vector<1x8x128xf32> to vector<1x8x128xf32>
    %309 = vector.broadcast %308 : vector<1x8x128xf32> to vector<16x8x128xf32>
    %310 = vector.broadcast %cst_169 : f32 to vector<16x8x128xf32>
    %311 = arith.select %307, %309, %310 : vector<16x8x128xi1>, vector<16x8x128xf32>
    %cst_170 = arith.constant dense<0x7F800000> : vector<16x128xf32>
    %312 = vector.multi_reduction <minimumf>, %311, %cst_170 [1] : vector<16x8x128xf32> to vector<16x128xf32>
    %313 = arith.minimumf %305, %312 : vector<16x128xf32>
    %c0_171 = arith.constant 0 : index
    %c0_172 = arith.constant 0 : index
    %314 = vector.load %arg9[%c0_171, %c0_172] : memref<16x128xf32, #tpu.memory_space<vmem>>, vector<16x128xf32>
    tpu.vector_store %arg9[%c0_171, %c0_172], %313 {strides = array<i32>} : memref<16x128xf32, #tpu.memory_space<vmem>>, vector<16x128xf32>,
    %c0_173 = arith.constant 0 : index
    %c0_174 = arith.constant 0 : index
    %315 = vector.load %arg10[%c0_173, %c0_174] : memref<16x128xf32, #tpu.memory_space<vmem>>, vector<16x128xf32>
    %cst_175 = arith.constant -3.000000e+38 : f32
    %316 = vector.shape_cast %301 : vector<16x8x1xi1> to vector<16x8x1xi1>
    %317 = vector.broadcast %316 : vector<16x8x1xi1> to vector<16x8x128xi1>
    %318 = vector.shape_cast %304 : vector<1x8x128xf32> to vector<1x8x128xf32>
    %319 = vector.broadcast %318 : vector<1x8x128xf32> to vector<16x8x128xf32>
    %320 = vector.broadcast %cst_175 : f32 to vector<16x8x128xf32>
    %321 = arith.select %317, %319, %320 : vector<16x8x128xi1>, vector<16x8x128xf32>
    %cst_176 = arith.constant dense<0xFF800000> : vector<16x128xf32>
    %322 = vector.multi_reduction <maximumf>, %321, %cst_176 [1] : vector<16x8x128xf32> to vector<16x128xf32>
    %323 = arith.maximumf %315, %322 : vector<16x128xf32>
    %c0_177 = arith.constant 0 : index
    %c0_178 = arith.constant 0 : index
    %324 = vector.load %arg10[%c0_177, %c0_178] : memref<16x128xf32, #tpu.memory_space<vmem>>, vector<16x128xf32>
    tpu.vector_store %arg10[%c0_177, %c0_178], %323 {strides = array<i32>} : memref<16x128xf32, #tpu.memory_space<vmem>>, vector<16x128xf32>,
    %c88 = arith.constant 88 : index
    %c0_179 = arith.constant 0 : index
    %325 = vector.load %arg3[%c88, %c0_179] : memref<128x1xi32, #tpu.memory_space<vmem>>, vector<8x1xi32>
    %326 = vector.shape_cast %325 : vector<8x1xi32> to vector<1x8x1xi32>
    %327 = vector.broadcast %326 : vector<1x8x1xi32> to vector<16x8x1xi32>
    %328 = arith.cmpi eq, %27, %327 : vector<16x8x1xi32>
    %c88_180 = arith.constant 88 : index
    %c0_181 = arith.constant 0 : index
    %329 = vector.load %arg4[%c88_180, %c0_181] : memref<128x128xbf16, #tpu.memory_space<vmem>>, vector<8x128xbf16>
    %330 = arith.extf %329 : vector<8x128xbf16> to vector<8x128xf32>
    %331 = vector.shape_cast %330 : vector<8x128xf32> to vector<1x8x128xf32>
    %c0_182 = arith.constant 0 : index
    %c0_183 = arith.constant 0 : index
    %332 = vector.load %arg9[%c0_182, %c0_183] : memref<16x128xf32, #tpu.memory_space<vmem>>, vector<16x128xf32>
    %cst_184 = arith.constant 3.000000e+38 : f32
    %333 = vector.shape_cast %328 : vector<16x8x1xi1> to vector<16x8x1xi1>
    %334 = vector.broadcast %333 : vector<16x8x1xi1> to vector<16x8x128xi1>
    %335 = vector.shape_cast %331 : vector<1x8x128xf32> to vector<1x8x128xf32>
    %336 = vector.broadcast %335 : vector<1x8x128xf32> to vector<16x8x128xf32>
    %337 = vector.broadcast %cst_184 : f32 to vector<16x8x128xf32>
    %338 = arith.select %334, %336, %337 : vector<16x8x128xi1>, vector<16x8x128xf32>
    %cst_185 = arith.constant dense<0x7F800000> : vector<16x128xf32>
    %339 = vector.multi_reduction <minimumf>, %338, %cst_185 [1] : vector<16x8x128xf32> to vector<16x128xf32>
    %340 = arith.minimumf %332, %339 : vector<16x128xf32>
    %c0_186 = arith.constant 0 : index
    %c0_187 = arith.constant 0 : index
    %341 = vector.load %arg9[%c0_186, %c0_187] : memref<16x128xf32, #tpu.memory_space<vmem>>, vector<16x128xf32>
    tpu.vector_store %arg9[%c0_186, %c0_187], %340 {strides = array<i32>} : memref<16x128xf32, #tpu.memory_space<vmem>>, vector<16x128xf32>,
    %c0_188 = arith.constant 0 : index
    %c0_189 = arith.constant 0 : index
    %342 = vector.load %arg10[%c0_188, %c0_189] : memref<16x128xf32, #tpu.memory_space<vmem>>, vector<16x128xf32>
    %cst_190 = arith.constant -3.000000e+38 : f32
    %343 = vector.shape_cast %328 : vector<16x8x1xi1> to vector<16x8x1xi1>
    %344 = vector.broadcast %343 : vector<16x8x1xi1> to vector<16x8x128xi1>
    %345 = vector.shape_cast %331 : vector<1x8x128xf32> to vector<1x8x128xf32>
    %346 = vector.broadcast %345 : vector<1x8x128xf32> to vector<16x8x128xf32>
    %347 = vector.broadcast %cst_190 : f32 to vector<16x8x128xf32>
    %348 = arith.select %344, %346, %347 : vector<16x8x128xi1>, vector<16x8x128xf32>
    %cst_191 = arith.constant dense<0xFF800000> : vector<16x128xf32>
    %349 = vector.multi_reduction <maximumf>, %348, %cst_191 [1] : vector<16x8x128xf32> to vector<16x128xf32>
    %350 = arith.maximumf %342, %349 : vector<16x128xf32>
    %c0_192 = arith.constant 0 : index
    %c0_193 = arith.constant 0 : index
    %351 = vector.load %arg10[%c0_192, %c0_193] : memref<16x128xf32, #tpu.memory_space<vmem>>, vector<16x128xf32>
    tpu.vector_store %arg10[%c0_192, %c0_193], %350 {strides = array<i32>} : memref<16x128xf32, #tpu.memory_space<vmem>>, vector<16x128xf32>,
    %c96 = arith.constant 96 : index
    %c0_194 = arith.constant 0 : index
    %352 = vector.load %arg3[%c96, %c0_194] : memref<128x1xi32, #tpu.memory_space<vmem>>, vector<8x1xi32>
    %353 = vector.shape_cast %352 : vector<8x1xi32> to vector<1x8x1xi32>
    %354 = vector.broadcast %353 : vector<1x8x1xi32> to vector<16x8x1xi32>
    %355 = arith.cmpi eq, %27, %354 : vector<16x8x1xi32>
    %c96_195 = arith.constant 96 : index
    %c0_196 = arith.constant 0 : index
    %356 = vector.load %arg4[%c96_195, %c0_196] : memref<128x128xbf16, #tpu.memory_space<vmem>>, vector<8x128xbf16>
    %357 = arith.extf %356 : vector<8x128xbf16> to vector<8x128xf32>
    %358 = vector.shape_cast %357 : vector<8x128xf32> to vector<1x8x128xf32>
    %c0_197 = arith.constant 0 : index
    %c0_198 = arith.constant 0 : index
    %359 = vector.load %arg9[%c0_197, %c0_198] : memref<16x128xf32, #tpu.memory_space<vmem>>, vector<16x128xf32>
    %cst_199 = arith.constant 3.000000e+38 : f32
    %360 = vector.shape_cast %355 : vector<16x8x1xi1> to vector<16x8x1xi1>
    %361 = vector.broadcast %360 : vector<16x8x1xi1> to vector<16x8x128xi1>
    %362 = vector.shape_cast %358 : vector<1x8x128xf32> to vector<1x8x128xf32>
    %363 = vector.broadcast %362 : vector<1x8x128xf32> to vector<16x8x128xf32>
    %364 = vector.broadcast %cst_199 : f32 to vector<16x8x128xf32>
    %365 = arith.select %361, %363, %364 : vector<16x8x128xi1>, vector<16x8x128xf32>
    %cst_200 = arith.constant dense<0x7F800000> : vector<16x128xf32>
    %366 = vector.multi_reduction <minimumf>, %365, %cst_200 [1] : vector<16x8x128xf32> to vector<16x128xf32>
    %367 = arith.minimumf %359, %366 : vector<16x128xf32>
    %c0_201 = arith.constant 0 : index
    %c0_202 = arith.constant 0 : index
    %368 = vector.load %arg9[%c0_201, %c0_202] : memref<16x128xf32, #tpu.memory_space<vmem>>, vector<16x128xf32>
    tpu.vector_store %arg9[%c0_201, %c0_202], %367 {strides = array<i32>} : memref<16x128xf32, #tpu.memory_space<vmem>>, vector<16x128xf32>,
    %c0_203 = arith.constant 0 : index
    %c0_204 = arith.constant 0 : index
    %369 = vector.load %arg10[%c0_203, %c0_204] : memref<16x128xf32, #tpu.memory_space<vmem>>, vector<16x128xf32>
    %cst_205 = arith.constant -3.000000e+38 : f32
    %370 = vector.shape_cast %355 : vector<16x8x1xi1> to vector<16x8x1xi1>
    %371 = vector.broadcast %370 : vector<16x8x1xi1> to vector<16x8x128xi1>
    %372 = vector.shape_cast %358 : vector<1x8x128xf32> to vector<1x8x128xf32>
    %373 = vector.broadcast %372 : vector<1x8x128xf32> to vector<16x8x128xf32>
    %374 = vector.broadcast %cst_205 : f32 to vector<16x8x128xf32>
    %375 = arith.select %371, %373, %374 : vector<16x8x128xi1>, vector<16x8x128xf32>
    %cst_206 = arith.constant dense<0xFF800000> : vector<16x128xf32>
    %376 = vector.multi_reduction <maximumf>, %375, %cst_206 [1] : vector<16x8x128xf32> to vector<16x128xf32>
    %377 = arith.maximumf %369, %376 : vector<16x128xf32>
    %c0_207 = arith.constant 0 : index
    %c0_208 = arith.constant 0 : index
    %378 = vector.load %arg10[%c0_207, %c0_208] : memref<16x128xf32, #tpu.memory_space<vmem>>, vector<16x128xf32>
    tpu.vector_store %arg10[%c0_207, %c0_208], %377 {strides = array<i32>} : memref<16x128xf32, #tpu.memory_space<vmem>>, vector<16x128xf32>,
    %c104 = arith.constant 104 : index
    %c0_209 = arith.constant 0 : index
    %379 = vector.load %arg3[%c104, %c0_209] : memref<128x1xi32, #tpu.memory_space<vmem>>, vector<8x1xi32>
    %380 = vector.shape_cast %379 : vector<8x1xi32> to vector<1x8x1xi32>
    %381 = vector.broadcast %380 : vector<1x8x1xi32> to vector<16x8x1xi32>
    %382 = arith.cmpi eq, %27, %381 : vector<16x8x1xi32>
    %c104_210 = arith.constant 104 : index
    %c0_211 = arith.constant 0 : index
    %383 = vector.load %arg4[%c104_210, %c0_211] : memref<128x128xbf16, #tpu.memory_space<vmem>>, vector<8x128xbf16>
    %384 = arith.extf %383 : vector<8x128xbf16> to vector<8x128xf32>
    %385 = vector.shape_cast %384 : vector<8x128xf32> to vector<1x8x128xf32>
    %c0_212 = arith.constant 0 : index
    %c0_213 = arith.constant 0 : index
    %386 = vector.load %arg9[%c0_212, %c0_213] : memref<16x128xf32, #tpu.memory_space<vmem>>, vector<16x128xf32>
    %cst_214 = arith.constant 3.000000e+38 : f32
    %387 = vector.shape_cast %382 : vector<16x8x1xi1> to vector<16x8x1xi1>
    %388 = vector.broadcast %387 : vector<16x8x1xi1> to vector<16x8x128xi1>
    %389 = vector.shape_cast %385 : vector<1x8x128xf32> to vector<1x8x128xf32>
    %390 = vector.broadcast %389 : vector<1x8x128xf32> to vector<16x8x128xf32>
    %391 = vector.broadcast %cst_214 : f32 to vector<16x8x128xf32>
    %392 = arith.select %388, %390, %391 : vector<16x8x128xi1>, vector<16x8x128xf32>
    %cst_215 = arith.constant dense<0x7F800000> : vector<16x128xf32>
    %393 = vector.multi_reduction <minimumf>, %392, %cst_215 [1] : vector<16x8x128xf32> to vector<16x128xf32>
    %394 = arith.minimumf %386, %393 : vector<16x128xf32>
    %c0_216 = arith.constant 0 : index
    %c0_217 = arith.constant 0 : index
    %395 = vector.load %arg9[%c0_216, %c0_217] : memref<16x128xf32, #tpu.memory_space<vmem>>, vector<16x128xf32>
    tpu.vector_store %arg9[%c0_216, %c0_217], %394 {strides = array<i32>} : memref<16x128xf32, #tpu.memory_space<vmem>>, vector<16x128xf32>,
    %c0_218 = arith.constant 0 : index
    %c0_219 = arith.constant 0 : index
    %396 = vector.load %arg10[%c0_218, %c0_219] : memref<16x128xf32, #tpu.memory_space<vmem>>, vector<16x128xf32>
    %cst_220 = arith.constant -3.000000e+38 : f32
    %397 = vector.shape_cast %382 : vector<16x8x1xi1> to vector<16x8x1xi1>
    %398 = vector.broadcast %397 : vector<16x8x1xi1> to vector<16x8x128xi1>
    %399 = vector.shape_cast %385 : vector<1x8x128xf32> to vector<1x8x128xf32>
    %400 = vector.broadcast %399 : vector<1x8x128xf32> to vector<16x8x128xf32>
    %401 = vector.broadcast %cst_220 : f32 to vector<16x8x128xf32>
    %402 = arith.select %398, %400, %401 : vector<16x8x128xi1>, vector<16x8x128xf32>
    %cst_221 = arith.constant dense<0xFF800000> : vector<16x128xf32>
    %403 = vector.multi_reduction <maximumf>, %402, %cst_221 [1] : vector<16x8x128xf32> to vector<16x128xf32>
    %404 = arith.maximumf %396, %403 : vector<16x128xf32>
    %c0_222 = arith.constant 0 : index
    %c0_223 = arith.constant 0 : index
    %405 = vector.load %arg10[%c0_222, %c0_223] : memref<16x128xf32, #tpu.memory_space<vmem>>, vector<16x128xf32>
    tpu.vector_store %arg10[%c0_222, %c0_223], %404 {strides = array<i32>} : memref<16x128xf32, #tpu.memory_space<vmem>>, vector<16x128xf32>,
    %c112 = arith.constant 112 : index
    %c0_224 = arith.constant 0 : index
    %406 = vector.load %arg3[%c112, %c0_224] : memref<128x1xi32, #tpu.memory_space<vmem>>, vector<8x1xi32>
    %407 = vector.shape_cast %406 : vector<8x1xi32> to vector<1x8x1xi32>
    %408 = vector.broadcast %407 : vector<1x8x1xi32> to vector<16x8x1xi32>
    %409 = arith.cmpi eq, %27, %408 : vector<16x8x1xi32>
    %c112_225 = arith.constant 112 : index
    %c0_226 = arith.constant 0 : index
    %410 = vector.load %arg4[%c112_225, %c0_226] : memref<128x128xbf16, #tpu.memory_space<vmem>>, vector<8x128xbf16>
    %411 = arith.extf %410 : vector<8x128xbf16> to vector<8x128xf32>
    %412 = vector.shape_cast %411 : vector<8x128xf32> to vector<1x8x128xf32>
    %c0_227 = arith.constant 0 : index
    %c0_228 = arith.constant 0 : index
    %413 = vector.load %arg9[%c0_227, %c0_228] : memref<16x128xf32, #tpu.memory_space<vmem>>, vector<16x128xf32>
    %cst_229 = arith.constant 3.000000e+38 : f32
    %414 = vector.shape_cast %409 : vector<16x8x1xi1> to vector<16x8x1xi1>
    %415 = vector.broadcast %414 : vector<16x8x1xi1> to vector<16x8x128xi1>
    %416 = vector.shape_cast %412 : vector<1x8x128xf32> to vector<1x8x128xf32>
    %417 = vector.broadcast %416 : vector<1x8x128xf32> to vector<16x8x128xf32>
    %418 = vector.broadcast %cst_229 : f32 to vector<16x8x128xf32>
    %419 = arith.select %415, %417, %418 : vector<16x8x128xi1>, vector<16x8x128xf32>
    %cst_230 = arith.constant dense<0x7F800000> : vector<16x128xf32>
    %420 = vector.multi_reduction <minimumf>, %419, %cst_230 [1] : vector<16x8x128xf32> to vector<16x128xf32>
    %421 = arith.minimumf %413, %420 : vector<16x128xf32>
    %c0_231 = arith.constant 0 : index
    %c0_232 = arith.constant 0 : index
    %422 = vector.load %arg9[%c0_231, %c0_232] : memref<16x128xf32, #tpu.memory_space<vmem>>, vector<16x128xf32>
    tpu.vector_store %arg9[%c0_231, %c0_232], %421 {strides = array<i32>} : memref<16x128xf32, #tpu.memory_space<vmem>>, vector<16x128xf32>,
    %c0_233 = arith.constant 0 : index
    %c0_234 = arith.constant 0 : index
    %423 = vector.load %arg10[%c0_233, %c0_234] : memref<16x128xf32, #tpu.memory_space<vmem>>, vector<16x128xf32>
    %cst_235 = arith.constant -3.000000e+38 : f32
    %424 = vector.shape_cast %409 : vector<16x8x1xi1> to vector<16x8x1xi1>
    %425 = vector.broadcast %424 : vector<16x8x1xi1> to vector<16x8x128xi1>
    %426 = vector.shape_cast %412 : vector<1x8x128xf32> to vector<1x8x128xf32>
    %427 = vector.broadcast %426 : vector<1x8x128xf32> to vector<16x8x128xf32>
    %428 = vector.broadcast %cst_235 : f32 to vector<16x8x128xf32>
    %429 = arith.select %425, %427, %428 : vector<16x8x128xi1>, vector<16x8x128xf32>
    %cst_236 = arith.constant dense<0xFF800000> : vector<16x128xf32>
    %430 = vector.multi_reduction <maximumf>, %429, %cst_236 [1] : vector<16x8x128xf32> to vector<16x128xf32>
    %431 = arith.maximumf %423, %430 : vector<16x128xf32>
    %c0_237 = arith.constant 0 : index
    %c0_238 = arith.constant 0 : index
    %432 = vector.load %arg10[%c0_237, %c0_238] : memref<16x128xf32, #tpu.memory_space<vmem>>, vector<16x128xf32>
    tpu.vector_store %arg10[%c0_237, %c0_238], %431 {strides = array<i32>} : memref<16x128xf32, #tpu.memory_space<vmem>>, vector<16x128xf32>,
    %c120 = arith.constant 120 : index
    %c0_239 = arith.constant 0 : index
    %433 = vector.load %arg3[%c120, %c0_239] : memref<128x1xi32, #tpu.memory_space<vmem>>, vector<8x1xi32>
    %434 = vector.shape_cast %433 : vector<8x1xi32> to vector<1x8x1xi32>
    %435 = vector.broadcast %434 : vector<1x8x1xi32> to vector<16x8x1xi32>
    %436 = arith.cmpi eq, %27, %435 : vector<16x8x1xi32>
    %c120_240 = arith.constant 120 : index
    %c0_241 = arith.constant 0 : index
    %437 = vector.load %arg4[%c120_240, %c0_241] : memref<128x128xbf16, #tpu.memory_space<vmem>>, vector<8x128xbf16>
    %438 = arith.extf %437 : vector<8x128xbf16> to vector<8x128xf32>
    %439 = vector.shape_cast %438 : vector<8x128xf32> to vector<1x8x128xf32>
    %c0_242 = arith.constant 0 : index
    %c0_243 = arith.constant 0 : index
    %440 = vector.load %arg9[%c0_242, %c0_243] : memref<16x128xf32, #tpu.memory_space<vmem>>, vector<16x128xf32>
    %cst_244 = arith.constant 3.000000e+38 : f32
    %441 = vector.shape_cast %436 : vector<16x8x1xi1> to vector<16x8x1xi1>
    %442 = vector.broadcast %441 : vector<16x8x1xi1> to vector<16x8x128xi1>
    %443 = vector.shape_cast %439 : vector<1x8x128xf32> to vector<1x8x128xf32>
    %444 = vector.broadcast %443 : vector<1x8x128xf32> to vector<16x8x128xf32>
    %445 = vector.broadcast %cst_244 : f32 to vector<16x8x128xf32>
    %446 = arith.select %442, %444, %445 : vector<16x8x128xi1>, vector<16x8x128xf32>
    %cst_245 = arith.constant dense<0x7F800000> : vector<16x128xf32>
    %447 = vector.multi_reduction <minimumf>, %446, %cst_245 [1] : vector<16x8x128xf32> to vector<16x128xf32>
    %448 = arith.minimumf %440, %447 : vector<16x128xf32>
    %c0_246 = arith.constant 0 : index
    %c0_247 = arith.constant 0 : index
    %449 = vector.load %arg9[%c0_246, %c0_247] : memref<16x128xf32, #tpu.memory_space<vmem>>, vector<16x128xf32>
    tpu.vector_store %arg9[%c0_246, %c0_247], %448 {strides = array<i32>} : memref<16x128xf32, #tpu.memory_space<vmem>>, vector<16x128xf32>,
    %c0_248 = arith.constant 0 : index
    %c0_249 = arith.constant 0 : index
    %450 = vector.load %arg10[%c0_248, %c0_249] : memref<16x128xf32, #tpu.memory_space<vmem>>, vector<16x128xf32>
    %cst_250 = arith.constant -3.000000e+38 : f32
    %451 = vector.shape_cast %436 : vector<16x8x1xi1> to vector<16x8x1xi1>
    %452 = vector.broadcast %451 : vector<16x8x1xi1> to vector<16x8x128xi1>
    %453 = vector.shape_cast %439 : vector<1x8x128xf32> to vector<1x8x128xf32>
    %454 = vector.broadcast %453 : vector<1x8x128xf32> to vector<16x8x128xf32>
    %455 = vector.broadcast %cst_250 : f32 to vector<16x8x128xf32>
    %456 = arith.select %452, %454, %455 : vector<16x8x128xi1>, vector<16x8x128xf32>
    %cst_251 = arith.constant dense<0xFF800000> : vector<16x128xf32>
    %457 = vector.multi_reduction <maximumf>, %456, %cst_251 [1] : vector<16x8x128xf32> to vector<16x128xf32>
    %458 = arith.maximumf %450, %457 : vector<16x128xf32>
    %c0_252 = arith.constant 0 : index
    %c0_253 = arith.constant 0 : index
    %459 = vector.load %arg10[%c0_252, %c0_253] : memref<16x128xf32, #tpu.memory_space<vmem>>, vector<16x128xf32>
    tpu.vector_store %arg10[%c0_252, %c0_253], %458 {strides = array<i32>} : memref<16x128xf32, #tpu.memory_space<vmem>>, vector<16x128xf32>,
    %c3_i32 = arith.constant 3 : i32
    %460 = arith.cmpi eq, %arg1, %c3_i32 : i32
    %461 = arith.extui %460 : i1 to i32
    %c0_i32_254 = arith.constant 0 : i32
    %462 = arith.cmpi ne, %461, %c0_i32_254 : i32
    scf.if %462 {
      %c0_255 = arith.constant 0 : index
      %c0_256 = arith.constant 0 : index
      %463 = vector.load %arg8[%c0_255, %c0_256] : memref<16x128xf32, #tpu.memory_space<vmem>>, vector<16x128xf32>
      %c0_257 = arith.constant 0 : index
      %c0_258 = arith.constant 0 : index
      %464 = vector.load %arg11[%c0_257, %c0_258] : memref<16x1xf32, #tpu.memory_space<vmem>>, vector<16x1xf32>
      %cst_259 = arith.constant 0.000000e+00 : f32
      %465 = vector.broadcast %cst_259 : f32 to vector<16x1xf32>
      %466 = arith.cmpf ogt, %464, %465 : vector<16x1xf32>
      %cst_260 = arith.constant 1.000000e+00 : f32
      %467 = vector.broadcast %cst_260 : f32 to vector<16x1xf32>
      %468 = arith.maximumf %464, %467 : vector<16x1xf32>
      %469 = tpu.reciprocal %468 {approx = true} : vector<16x1xf32> -> vector<16x1xf32>
      %c0_261 = arith.constant 0 : index
      %c0_262 = arith.constant 0 : index
      %470 = vector.load %arg9[%c0_261, %c0_262] : memref<16x128xf32, #tpu.memory_space<vmem>>, vector<16x128xf32>
      %cst_263 = arith.constant 0.000000e+00 : f32
      %471 = vector.shape_cast %466 : vector<16x1xi1> to vector<16x1xi1>
      %472 = vector.broadcast %471 : vector<16x1xi1> to vector<16x128xi1>
      %473 = vector.broadcast %cst_263 : f32 to vector<16x128xf32>
      %474 = arith.select %472, %470, %473 : vector<16x128xi1>, vector<16x128xf32>
      %c0_264 = arith.constant 0 : index
      %c0_265 = arith.constant 0 : index
      %475 = vector.load %arg10[%c0_264, %c0_265] : memref<16x128xf32, #tpu.memory_space<vmem>>, vector<16x128xf32>
      %cst_266 = arith.constant 0.000000e+00 : f32
      %476 = vector.shape_cast %466 : vector<16x1xi1> to vector<16x1xi1>
      %477 = vector.broadcast %476 : vector<16x1xi1> to vector<16x128xi1>
      %478 = vector.broadcast %cst_266 : f32 to vector<16x128xf32>
      %479 = arith.select %477, %475, %478 : vector<16x128xi1>, vector<16x128xf32>
      %c0_267 = arith.constant 0 : index
      %480 = memref.load %arg5[%c0_267] : memref<4xf32, #tpu.memory_space<smem>>
      %c1 = arith.constant 1 : index
      %481 = memref.load %arg5[%c1] : memref<4xf32, #tpu.memory_space<smem>>
      %c2 = arith.constant 2 : index
      %482 = memref.load %arg5[%c2] : memref<4xf32, #tpu.memory_space<smem>>
      %c3 = arith.constant 3 : index
      %483 = memref.load %arg5[%c3] : memref<4xf32, #tpu.memory_space<smem>>
      %484 = vector.broadcast %483 : f32 to vector<16x1xf32>
      %485 = arith.mulf %484, %469 : vector<16x1xf32>
      %486 = vector.broadcast %480 : f32 to vector<16x1xf32>
      %487 = arith.addf %486, %485 : vector<16x1xf32>
      %488 = vector.broadcast %487 : vector<16x1xf32> to vector<16x128xf32>
      %489 = arith.mulf %463, %488 : vector<16x128xf32>
      %490 = vector.broadcast %481 : f32 to vector<16x128xf32>
      %491 = arith.mulf %490, %474 : vector<16x128xf32>
      %492 = arith.addf %489, %491 : vector<16x128xf32>
      %493 = vector.broadcast %482 : f32 to vector<16x128xf32>
      %494 = arith.mulf %493, %479 : vector<16x128xf32>
      %495 = arith.addf %492, %494 : vector<16x128xf32>
      %c0_268 = arith.constant 0 : index
      %496 = memref.load %arg6[%c0_268] : memref<1xf32, #tpu.memory_space<smem>>
      %497 = vector.broadcast %496 : f32 to vector<16x128xf32>
      %498 = arith.addf %495, %497 : vector<16x128xf32>
      %c0_269 = arith.constant 0 : index
      %c0_270 = arith.constant 0 : index
      %499 = vector.load %arg7[%c0_269, %c0_270] : memref<16x128xf32, #tpu.memory_space<vmem>>, vector<16x128xf32>
      tpu.vector_store %arg7[%c0_269, %c0_270], %498 {strides = array<i32>} : memref<16x128xf32, #tpu.memory_space<vmem>>, vector<16x128xf32>,
    } else {
    }
    return
  }
  func.func @transform_0(%arg0: i32, %arg1: i32) -> (i32, i32) {
    %c0_i32 = arith.constant 0 : i32
    %c0_i32_0 = arith.constant 0 : i32
    return %c0_i32, %arg1 : i32, i32
  }
  func.func @transform_1(%arg0: i32, %arg1: i32) -> (i32, i32) {
    %c0_i32 = arith.constant 0 : i32
    %c0_i32_0 = arith.constant 0 : i32
    return %arg1, %c0_i32 : i32, i32
  }
  func.func @transform_2(%arg0: i32, %arg1: i32) -> (i32, i32) {
    %c0_i32 = arith.constant 0 : i32
    %c0_i32_0 = arith.constant 0 : i32
    return %arg1, %c0_i32 : i32, i32
  }
  func.func @transform_3(%arg0: i32, %arg1: i32) -> i32 {
    %c0_i32 = arith.constant 0 : i32
    %c0_i32_0 = arith.constant 0 : i32
    return %c0_i32 : i32
  }
  func.func @transform_4(%arg0: i32, %arg1: i32) -> i32 {
    %c0_i32 = arith.constant 0 : i32
    %c0_i32_0 = arith.constant 0 : i32
    return %c0_i32 : i32
  }
  func.func @transform_5(%arg0: i32, %arg1: i32) -> (i32, i32) {
    %c0_i32 = arith.constant 0 : i32
    %c0_i32_0 = arith.constant 0 : i32
    return %arg0, %c0_i32 : i32, i32
  }
}

</mosaic_0001>

<llo_original>
// kernel: tpu_custom_call.1
$region0: #{tpu_custom_call.1}
  #allocation0 [shape = 'u32[]', space=smem, size = 0x4, offset = 0x4, fixed_abs, tag = 'smem constant byte address 0x4 - core index']
  #allocation1 [shape = 'u32[72,128]{1,0:T(1,128)}', space=vmem, size = 0x9000, scoped, tag = 'internal scratch']
  #allocation2 [shape = 'f32[16,128]{1,0:T(8,128)}', space=vmem, size = 0x2000, scoped, tag = 'scratch operand']
  #allocation3 [shape = 'f32[16,128]{1,0:T(8,128)}', space=vmem, size = 0x2000, scoped, tag = 'scratch operand']
  #allocation4 [shape = 'f32[16,128]{1,0:T(8,128)}', space=vmem, size = 0x2000, scoped, tag = 'scratch operand']
  #allocation5 [shape = 'f32[16,1]{1,0:T(8,128)}', space=vmem, size = 0x2000, scoped, tag = 'scratch operand']
  #allocation6 [shape = 'f32[1]{0:T(128)S(6)}', space=smem, size = 0x200, scoped, tag = 'scoped memory for tpu_custom_call.1']
  %s0 = inlined_call_operand.vmem [shape: s32[1,512], index: 0, kind: input, shape index: {}]
  %s1 = inlined_call_operand.vmem [shape: s32[512,1], index: 1, kind: input, shape index: {}]
  %s2 = inlined_call_operand.vmem [shape: bf16[512,128], index: 2, kind: input, shape index: {}]
  %s3 = inlined_call_operand.vmem [shape: f32[4], index: 3, kind: input, shape index: {}]
  %s4 = inlined_call_operand.<no memory space> [shape: f32[1], index: 4, kind: input, shape index: {}]
  %s5 = inlined_call_operand.hbm [shape: f32[32,128], index: 5, kind: output, shape index: {}]
  %s6 = sld [smem:[#allocation0]]
  $region65: #{tpu_custom_call.1} parent=0
    _
  %s8 = ssub.s32 1, %s6
  %s9 = scalar_select 0, %s8, %s6
  %10 = sst [smem:[#allocation6]] %s4
  $region1: #{tpu_custom_call.1} parent=0
    #allocation7 [shape = 'u8[512]{0}', space=smem, size = 0x200, scoped, tag = 'input window, operand 3, single buffered']
    #allocation8 [shape = 's32[2]{0}', space=sflag, size = 0x8, scoped, tag = 'scoped memory for tpu_custom_call.1']
    #allocation9 [shape = 's32[2]{0}', space=sflag, size = 0x8, scoped, tag = 'scoped memory for tpu_custom_call.1']
    #allocation10 [shape = 'u8[16384]{0}', space=vmem, size = 0x4000, scoped, tag = 'output window, operand 0']
    %11 = vsyncpa [#allocation9], 0
    %12 = vsyncpa [#allocation8], 0
    %s13 = scalar_lea.sflag [#allocation8], 1
    %14 = vsyncpa %s13, 0
    loop: start=0, step=1, limit=10
    $region2: #{tpu_custom_call.1} parent=1 // loop_pre_header
      _
    $region3: #{tpu_custom_call.1} parent=1 // loop_header
      %s16 = sphi 0, %s20
      %p17 = scmp.ge.s32.totalorder %s16, 10
      %s23 = sphi 0, %s35
      %s24 = sphi 0, %s31
      %s25 = sphi 0, %s23
      %s26 = sphi 0, %s24
      %s27 = sphi 0, %s25
      %s28 = sphi 0, %s26
      %s38 = sphi 0, %s40
      %s41 = sphi 0, %s38
      %s42 = sphi 0, %s41
      %s58 = sphi 0, %s42
      %s64 = sphi 0, %s66
      %s67 = sphi 0, %s64
      %s68 = sphi 0, %s67
      %s84 = sphi 0, %s68
      %s90 = sphi 0, %s92
      %s93 = sphi 0, %s90
      %s94 = sphi 0, %s93
      %s110 = sphi 0, %s94
      %s114 = sphi 0, %s114
      %s116 = sphi 0, %s114
      %s117 = sphi 0, %s116
      %s131 = sphi 0, %s117
      %s135 = sphi 0, %s135
      %s137 = sphi 0, %s135
      %s138 = sphi 0, %s137
      %s152 = sphi 0, %s138
      %s158 = sphi 0, %s160
      %s161 = sphi 0, %s158
      %s162 = sphi 0, %s161
      %s178 = sphi 0, %s162
    $region4: #{tpu_custom_call.1} parent=1 // loop_header_branch
      %19 = sbr.rel (%p17) target = $region8
    $region5: #{tpu_custom_call.1} parent=1 // loop_body
      %s21 = ssub.s32 %s16, 1
      %s22 = ssub.s32 %s16, 2
      %s29 = sadd.s32 1, %s24
      %p30 = scmp.ge.s32.totalorder %s29, 4
      %s31 = scalar_select %p30, 0, %s29
      %s32 = sadd.s32 1, %s23
      %s33 = scalar_select %p30, %s32, %s23
      %p34 = scmp.ge.s32.totalorder %s33, 2
      %s35 = scalar_select %p34, 0, %s33
      %s36 = ssub.s32 %s24, %s31
      %p37 = scmp.eq.s32.totalorder %s36, 0
      %s39 = sadd.s32 %s38, 1
      %s40 = scalar_select %p37, %s38, %s39
      %p43 = pneg %p37
      %p44 = scmp.eq.s32.totalorder %s16, 7
      %p45 = por %p43, %p44
      %p46 = scmp.ne.s32.totalorder %s38, %s41
      %p47 = scmp.eq.s32.totalorder %s16, 0
      %p48 = por %p46, %p47
      %p49 = scmp.ne.s32.totalorder %s38, %s41
      %p50 = scmp.eq.s32.totalorder %s21, 7
      %p51 = por %p49, %p50
      %p52 = scmp.ne.s32.totalorder %s41, %s42
      %p53 = scmp.eq.s32.totalorder %s21, 0
      %p54 = por %p52, %p53
      %p55 = scmp.ne.s32.totalorder %s41, %s42
      %p56 = scmp.eq.s32.totalorder %s22, 7
      %p57 = por %p55, %p56
      %p59 = scmp.ne.s32.totalorder %s42, %s58
      %p60 = scmp.eq.s32.totalorder %s22, 0
      %p61 = por %p59, %p60
      %s62 = ssub.s32 %s24, %s31
      %p63 = scmp.eq.s32.totalorder %s62, 0
      %s65 = sadd.s32 %s64, 1
      %s66 = scalar_select %p63, %s64, %s65
      %p69 = pneg %p63
      %p70 = scmp.eq.s32.totalorder %s16, 7
      %p71 = por %p69, %p70
      %p72 = scmp.ne.s32.totalorder %s64, %s67
      %p73 = scmp.eq.s32.totalorder %s16, 0
      %p74 = por %p72, %p73
      %p75 = scmp.ne.s32.totalorder %s64, %s67
      %p76 = scmp.eq.s32.totalorder %s21, 7
      %p77 = por %p75, %p76
      %p78 = scmp.ne.s32.totalorder %s67, %s68
      %p79 = scmp.eq.s32.totalorder %s21, 0
      %p80 = por %p78, %p79
      %p81 = scmp.ne.s32.totalorder %s67, %s68
      %p82 = scmp.eq.s32.totalorder %s22, 7
      %p83 = por %p81, %p82
      %p85 = scmp.ne.s32.totalorder %s68, %s84
      %p86 = scmp.eq.s32.totalorder %s22, 0
      %p87 = por %p85, %p86
      %s88 = ssub.s32 %s24, %s31
      %p89 = scmp.eq.s32.totalorder %s88, 0
      %s91 = sadd.s32 %s90, 1
      %s92 = scalar_select %p89, %s90, %s91
      %p95 = pneg %p89
      %p96 = scmp.eq.s32.totalorder %s16, 7
      %p97 = por %p95, %p96
      %p98 = scmp.ne.s32.totalorder %s90, %s93
      %p99 = scmp.eq.s32.totalorder %s16, 0
      %p100 = por %p98, %p99
      %p101 = scmp.ne.s32.totalorder %s90, %s93
      %p102 = scmp.eq.s32.totalorder %s21, 7
      %p103 = por %p101, %p102
      %p104 = scmp.ne.s32.totalorder %s93, %s94
      %p105 = scmp.eq.s32.totalorder %s21, 0
      %p106 = por %p104, %p105
      %p107 = scmp.ne.s32.totalorder %s93, %s94
      %p108 = scmp.eq.s32.totalorder %s22, 7
      %p109 = por %p107, %p108
      %p111 = scmp.ne.s32.totalorder %s94, %s110
      %p112 = scmp.eq.s32.totalorder %s22, 0
      %p113 = por %p111, %p112
      %s115 = sadd.s32 %s114, 1
      %p118 = scmp.eq.s32.totalorder %s16, 7
      %p119 = scmp.ne.s32.totalorder %s114, %s116
      %p120 = scmp.eq.s32.totalorder %s16, 0
      %p121 = por %p119, %p120
      %p122 = scmp.ne.s32.totalorder %s114, %s116
      %p123 = scmp.eq.s32.totalorder %s21, 7
      %p124 = por %p122, %p123
      %p125 = scmp.ne.s32.totalorder %s116, %s117
      %p126 = scmp.eq.s32.totalorder %s21, 0
      %p127 = por %p125, %p126
      %p128 = scmp.ne.s32.totalorder %s116, %s117
      %p129 = scmp.eq.s32.totalorder %s22, 7
      %p130 = por %p128, %p129
      %p132 = scmp.ne.s32.totalorder %s117, %s131
      %p133 = scmp.eq.s32.totalorder %s22, 0
      %p134 = por %p132, %p133
      %s136 = sadd.s32 %s135, 1
      %p139 = scmp.eq.s32.totalorder %s16, 7
      %p140 = scmp.ne.s32.totalorder %s135, %s137
      %p141 = scmp.eq.s32.totalorder %s16, 0
      %p142 = por %p140, %p141
      %p143 = scmp.ne.s32.totalorder %s135, %s137
      %p144 = scmp.eq.s32.totalorder %s21, 7
      %p145 = por %p143, %p144
      %p146 = scmp.ne.s32.totalorder %s137, %s138
      %p147 = scmp.eq.s32.totalorder %s21, 0
      %p148 = por %p146, %p147
      %p149 = scmp.ne.s32.totalorder %s137, %s138
      %p150 = scmp.eq.s32.totalorder %s22, 7
      %p151 = por %p149, %p150
      %p153 = scmp.ne.s32.totalorder %s138, %s152
      %p154 = scmp.eq.s32.totalorder %s22, 0
      %p155 = por %p153, %p154
      %s156 = ssub.s32 %s23, %s35
      %p157 = scmp.eq.s32.totalorder %s156, 0
      %s159 = sadd.s32 %s158, 1
      %s160 = scalar_select %p157, %s158, %s159
      %p163 = pneg %p157
      %p164 = scmp.eq.s32.totalorder %s16, 7
      %p165 = por %p163, %p164
      %p166 = scmp.ne.s32.totalorder %s158, %s161
      %p167 = scmp.eq.s32.totalorder %s16, 0
      %p168 = por %p166, %p167
      %p169 = scmp.ne.s32.totalorder %s158, %s161
      %p170 = scmp.eq.s32.totalorder %s21, 7
      %p171 = por %p169, %p170
      %p172 = scmp.ne.s32.totalorder %s161, %s162
      %p173 = scmp.eq.s32.totalorder %s21, 0
      %p174 = por %p172, %p173
      %p175 = scmp.ne.s32.totalorder %s161, %s162
      %p176 = scmp.eq.s32.totalorder %s22, 7
      %p177 = por %p175, %p176
      %p179 = scmp.ne.s32.totalorder %s162, %s178
      %p180 = scmp.eq.s32.totalorder %s22, 0
      %p181 = por %p179, %p180
      %p182 = scmp.le.s32.totalorder 1, %s16
      %p183 = scmp.lt.s32.totalorder %s16, 9
      %p184 = pnand %p182, %p183
      %p185 = pneg %p184
      // Predicated region
      $region9: #{tpu_custom_call.1} parent=5 // pred_check
        _
      $region10: #{tpu_custom_call.1} parent=5 // pred_check_branch
        %187 = sbr.rel (%p184) target = $region12
      $region11: #{tpu_custom_call.1} parent=5 // pred_region
        %s188 = ssub.s32 %s16, 1
        // Predicated region
        $region13: #{tpu_custom_call.1} parent=11 // pred_check
          %p189 = pneg %p127
        $region14: #{tpu_custom_call.1} parent=11 // pred_check_branch
          %191 = sbr.rel (%p189) target = $region16
        $region15: #{tpu_custom_call.1} parent=11 // pred_region
          %193 = vsyncadd [#allocation9], 0
          %s195 = sshll.u32 %s3, 4
          %s196 = int_to_ptr.vmem [resolvable:$true] %s195
          %198 = dma.vmem_to_smem %s196, 16, [#allocation7], [#allocation9]
        $region16: #{tpu_custom_call.1} parent=11 // pred_fallthru
          _
        // Predicated region
        $region17: #{tpu_custom_call.1} parent=11 // pred_check
          %p199 = pneg %p148
        $region18: #{tpu_custom_call.1} parent=11 // pred_check_branch
          %201 = sbr.rel (%p199) target = $region20
        $region19: #{tpu_custom_call.1} parent=11 // pred_region
          _
        $region20: #{tpu_custom_call.1} parent=11 // pred_fallthru
          _
      $region12: #{tpu_custom_call.1} parent=5 // pred_fallthru
        _
      %p202 = scmp.lt.s32.totalorder %s16, 8
      // Predicated region
      $region21: #{tpu_custom_call.1} parent=5 // pred_check
        %p203 = pneg %p202
      $region22: #{tpu_custom_call.1} parent=5 // pred_check_branch
        %205 = sbr.rel (%p203) target = $region24
      $region23: #{tpu_custom_call.1} parent=5 // pred_region
        // Predicated region
        $region25: #{tpu_custom_call.1} parent=23 // pred_check
          %p206 = pneg %p48
        $region26: #{tpu_custom_call.1} parent=23 // pred_check_branch
          %208 = sbr.rel (%p206) target = $region28
        $region27: #{tpu_custom_call.1} parent=23 // pred_region
          %p209 = scmp.lt.s32.totalorder %s24, 3
          %s210 = scalar_select %p209, %s24, 3
          %s211 = scalar_lea.vmem %s0, %s210
        $region28: #{tpu_custom_call.1} parent=23 // pred_fallthru
          _
        // Predicated region
        $region29: #{tpu_custom_call.1} parent=23 // pred_check
          %p212 = pneg %p74
        $region30: #{tpu_custom_call.1} parent=23 // pred_check_branch
          %214 = sbr.rel (%p212) target = $region32
        $region31: #{tpu_custom_call.1} parent=23 // pred_region
          %s215 = smul.u32 16, %s24
          %p216 = scmp.lt.s32.totalorder %s215, 63
          %s217 = scalar_select %p216, %s215, 63
          %s218 = smul.addr %s217, 8
          %s219 = scalar_lea.vmem %s1, %s218
          %s220 = smul.u32 16, %s24
        $region32: #{tpu_custom_call.1} parent=23 // pred_fallthru
          _
        // Predicated region
        $region33: #{tpu_custom_call.1} parent=23 // pred_check
          %p221 = pneg %p100
        $region34: #{tpu_custom_call.1} parent=23 // pred_check_branch
          %223 = sbr.rel (%p221) target = $region36
        $region35: #{tpu_custom_call.1} parent=23 // pred_region
          %s224 = smul.u32 16, %s24
          %p225 = scmp.lt.s32.totalorder %s224, 63
          %s226 = scalar_select %p225, %s224, 63
          %s227 = smul.addr %s226, 4
          %s228 = scalar_lea.vmem %s2, %s227
          %s229 = smul.u32 16, %s24
        $region36: #{tpu_custom_call.1} parent=23 // pred_fallthru
          _
      $region24: #{tpu_custom_call.1} parent=5 // pred_fallthru
        _
      %p230 = scmp.le.s32.totalorder 1, %s16
      %p231 = scmp.lt.s32.totalorder %s16, 9
      %p232 = pnand %p230, %p231
      %p233 = pneg %p232
      // Predicated region
      $region37: #{tpu_custom_call.1} parent=5 // pred_check
        _
      $region38: #{tpu_custom_call.1} parent=5 // pred_check_branch
        %235 = sbr.rel (%p232) target = $region40
      $region39: #{tpu_custom_call.1} parent=5 // pred_region
        %s236 = ssub.s32 %s16, 1
        // Predicated region
        $region41: #{tpu_custom_call.1} parent=39 // pred_check
          %p237 = pneg %p127
        $region42: #{tpu_custom_call.1} parent=39 // pred_check_branch
          %239 = sbr.rel (%p237) target = $region44
        $region43: #{tpu_custom_call.1} parent=39 // pred_region
          %241 = dma.done [#allocation9], 16
        $region44: #{tpu_custom_call.1} parent=39 // pred_fallthru
          _
        %242 = sfence
        %p243 = scmp.lt.s32.totalorder %s26, 3
        %s244 = scalar_select %p243, %s26, 3
        %s245 = scalar_lea.vmem %s0, %s244
        %p246 = pneg %p54
        %p247 = pneg %p51
        %s248 = smul.u32 16, %s26
        %p249 = scmp.lt.s32.totalorder %s248, 63
        %s250 = scalar_select %p249, %s248, 63
        %s251 = smul.addr %s250, 8
        %s252 = scalar_lea.vmem %s1, %s251
        %p253 = pneg %p80
        %p254 = pneg %p77
        %s255 = smul.u32 16, %s26
        %p256 = scmp.lt.s32.totalorder %s255, 63
        %s257 = scalar_select %p256, %s255, 63
        %s258 = smul.addr %s257, 4
        %s259 = scalar_lea.vmem %s2, %s258
        %p260 = pneg %p106
        %p261 = pneg %p103
        %p262 = pneg %p127
        %p263 = pneg %p124
        %p264 = pneg %p148
        %p265 = pneg %p145
        %p266 = pneg %p174
        %p267 = pneg %p171
        %s268 = sand.u32 %s161, 1
        %s269 = scalar_lea.sflag [#allocation8], %s268
        %s270 = sand.u32 %s161, 1
        %s271 = smul.addr %s270, 16
        %s272 = scalar_lea.vmem [#allocation10], %s271
        %p273 = scmp.lt.s32.totalorder %s26, 3
        %s274 = scalar_select %p273, %s26, 3
        %s275 = scalar_lea.vmem %s0, %s274
        %s276 = smul.u32 16, %s26
        %p277 = scmp.lt.s32.totalorder %s276, 63
        %s278 = scalar_select %p277, %s276, 63
        %s279 = smul.addr %s278, 8
        %s280 = scalar_lea.vmem %s1, %s279
        %s281 = smul.u32 16, %s26
        %s282 = smul.u32 16, %s26
        %p283 = scmp.lt.s32.totalorder %s282, 63
        %s284 = scalar_select %p283, %s282, 63
        %s285 = smul.addr %s284, 4
        %s286 = scalar_lea.vmem %s2, %s285
        %s287 = smul.u32 16, %s26
        %s288 = smul.u32 2, %s25
        %p289 = scmp.eq.s32.totalorder %s26, 0
        // Predicated region
        $region45: #{tpu_custom_call.1} parent=39 // pred_check
          %p290 = pneg %p289
        $region46: #{tpu_custom_call.1} parent=39 // pred_check_branch
          %292 = sbr.rel (%p290) target = $region48
        $region47: #{tpu_custom_call.1} parent=39 // pred_region
          %293 = vst [vmem:[#allocation2] sm:$0xff] 0.0
          %294 = vst [vmem:[#allocation2 + $0x8] sm:$0xff] 0.0
          %295 = vst [vmem:[#allocation3] sm:$0xff] 3e+38
          %296 = vst [vmem:[#allocation3 + $0x8] sm:$0xff] 3e+38
          %297 = vst [vmem:[#allocation4] sm:$0xff] -3e+38
          %298 = vst [vmem:[#allocation4 + $0x8] sm:$0xff] -3e+38
          %vm299 = vcmask 7168
          %300 = vst.msk [vmem:[#allocation5] sm:$0xff] %vm299, 0.0
          %301 = vst.msk [vmem:[#allocation5 + $0x8] sm:$0xff] %vm299, 0.0
        $region48: #{tpu_custom_call.1} parent=39 // pred_fallthru
          _
        %s302 = smul.u32 %s25, 16
        %v303 = vlaneseq
        %v304 = vshrl.u32 %v303, 7
        %v305 = vadd.s32 %v304, 8
        %v306 = vstv %s302
        %v307 = vadd.s32 %v304, %v306
        %v308 = vadd.s32 %v305, %v306
        %v309 = vld [vmem:[%s275] sm:$0x1]
        %v310 = vperm.slane %v309, 0
        %vm311 = vcmp.eq.s32.totalorder %v307, %v310
        %vm312 = vcmp.eq.s32.totalorder %v308, %v310
        %v313 = vsel %vm311, 1, 0
        %v314 = vsel %vm312, 1, 0
        %v315 = vcvt.s32.f32 %v313
        %v316 = vcvt.s32.f32 %v314
        %v317 = vpack.c.bf16 %v316, %v315
        %v318 = vld [vmem:[#allocation2] sm:$0xff]
        %v319 = vld [vmem:[#allocation2 + $0x8] sm:$0xff]
        %v320 = vld [vmem:[%s286] sm:$0xf]
        %v321 = vld [vmem:[%s286 + $0x4] sm:$0xf]
        %v322 = vld [vmem:[%s286 + $0x8] sm:$0xf]
        %v323 = vld [vmem:[%s286 + $0xc] sm:$0xf]
        %v324 = vld [vmem:[%s286 + $0x10] sm:$0xf]
        %v325 = vld [vmem:[%s286 + $0x14] sm:$0xf]
        %v326 = vld [vmem:[%s286 + $0x18] sm:$0xf]
        %v327 = vld [vmem:[%s286 + $0x1c] sm:$0xf]
        %v328 = vld [vmem:[%s286 + $0x20] sm:$0xf]
        %v329 = vld [vmem:[%s286 + $0x24] sm:$0xf]
        %v330 = vld [vmem:[%s286 + $0x28] sm:$0xf]
        %v331 = vld [vmem:[%s286 + $0x2c] sm:$0xf]
        %v332 = vld [vmem:[%s286 + $0x30] sm:$0xf]
        %v333 = vld [vmem:[%s286 + $0x34] sm:$0xf]
        %v334 = vld [vmem:[%s286 + $0x38] sm:$0xf]
        %v335 = vld [vmem:[%s286 + $0x3c] sm:$0xf]
        %v352 = vunpack.c.l.b16 %v320
        %v353 = vunpack.c.l.b16 %v321
        %v354 = vunpack.c.l.b16 %v322
        %v355 = vunpack.c.l.b16 %v323
        %v356 = vunpack.c.l.b16 %v324
        %v357 = vunpack.c.l.b16 %v325
        %v358 = vunpack.c.l.b16 %v326
        %v359 = vunpack.c.l.b16 %v327
        %v360 = vunpack.c.l.b16 %v328
        %v361 = vunpack.c.l.b16 %v329
        %v362 = vunpack.c.l.b16 %v330
        %v363 = vunpack.c.l.b16 %v331
        %v364 = vunpack.c.l.b16 %v332
        %v365 = vunpack.c.l.b16 %v333
        %v366 = vunpack.c.l.b16 %v334
        %v367 = vunpack.c.l.b16 %v335
        %v368 = vpack.c.b16 %v353, %v352
        %v369 = vpack.c.b16 %v355, %v354
        %v370 = vpack.c.b16 %v357, %v356
        %v371 = vpack.c.b16 %v359, %v358
        %v372 = vpack.c.b16 %v361, %v360
        %v373 = vpack.c.b16 %v363, %v362
        %v374 = vpack.c.b16 %v365, %v364
        %v375 = vpack.c.b16 %v367, %v366
        %384 = vmatpush.bf16.msra.mxu0 %v375
        %385 = vmatpush.bf16.msra.mxu0 %v374
        %386 = vmatpush.bf16.msra.mxu0 %v373
        %387 = vmatpush.bf16.msra.mxu0 %v372
        %388 = vmatpush.bf16.msra.mxu0 %v371
        %389 = vmatpush.bf16.msra.mxu0 %v370
        %390 = vmatpush.bf16.msra.mxu0 %v369
        %391 = vmatpush.bf16.msra.mxu0 %v368
        %392 = vmatmul.bf16.gmra.mxu0 %v317
        %v393 = vpop.f32.mrf.mxu0
        %v394 = vadd.f32 0.0, %v393
        %v395 = vpop.f32.mrf.mxu0
        %v396 = vadd.f32 0.0, %v395
        %397 = vdwg.mxu0
        %v398 = vadd.f32 %v318, %v394
        %v399 = vadd.f32 %v319, %v396
        %400 = vst [vmem:[#allocation2] sm:$0xff] %v398
        %401 = vst [vmem:[#allocation2 + $0x8] sm:$0xff] %v399
        %v402 = vld [vmem:[#allocation5] sm:$0xff]
        %v403 = vld [vmem:[#allocation5 + $0x8] sm:$0xff]
        %404 = vadd.xlane.f32.xlu0 %v315
        %v405 = vpop.xlane.xlu0 %404
        %406 = vadd.xlane.f32.xlu0 %v316
        %v407 = vpop.xlane.xlu0 %406
        %v408 = vadd.f32 %v402, %v405
        %v409 = vadd.f32 %v403, %v407
        %vm410 = vcmask 7168
        %411 = vst.msk [vmem:[#allocation5] sm:$0xff] %vm410, %v408
        %412 = vst.msk [vmem:[#allocation5 + $0x8] sm:$0xff] %vm410, %v409
        %v413 = vadd.s32 %v306, 1
        %v414 = vadd.s32 %v306, 2
        %v415 = vadd.s32 %v306, 3
        %v416 = vadd.s32 %v306, 4
        %v417 = vadd.s32 %v306, 5
        %v418 = vadd.s32 %v306, 6
        %v419 = vadd.s32 %v306, 7
        %v420 = vadd.s32 %v306, 8
        %v421 = vadd.s32 %v306, 9
        %v422 = vadd.s32 %v306, 10
        %v423 = vadd.s32 %v306, 11
        %v424 = vadd.s32 %v306, 12
        %v425 = vadd.s32 %v306, 13
        %v426 = vadd.s32 %v306, 14
        %v427 = vadd.s32 %v306, 15
        %v428 = vld [vmem:[%s280] sm:$0xff]
        %vm429 = vcmp.eq.s32.totalorder %v306, %v428
        %vm430 = vcmp.eq.s32.totalorder %v413, %v428
        %vm431 = vcmp.eq.s32.totalorder %v414, %v428
        %vm432 = vcmp.eq.s32.totalorder %v415, %v428
        %vm433 = vcmp.eq.s32.totalorder %v416, %v428
        %vm434 = vcmp.eq.s32.totalorder %v417, %v428
        %vm435 = vcmp.eq.s32.totalorder %v418, %v428
        %vm436 = vcmp.eq.s32.totalorder %v419, %v428
        %vm437 = vcmp.eq.s32.totalorder %v420, %v428
        %vm438 = vcmp.eq.s32.totalorder %v421, %v428
        %vm439 = vcmp.eq.s32.totalorder %v422, %v428
        %vm440 = vcmp.eq.s32.totalorder %v423, %v428
        %vm441 = vcmp.eq.s32.totalorder %v424, %v428
        %vm442 = vcmp.eq.s32.totalorder %v425, %v428
        %vm443 = vcmp.eq.s32.totalorder %v426, %v428
        %vm444 = vcmp.eq.s32.totalorder %v427, %v428
        %v445 = vld [vmem:[%s286] sm:$0xf]
        %v446 = vunpack.c.l.bf16 %v445
        %v447 = vld [vmem:[#allocation3] sm:$0xff]
        %v448 = vld [vmem:[#allocation3 + $0x8] sm:$0xff]
        %v449 = vsel %vm429, 1, 0
        %v450 = vsel %vm430, 1, 0
        %v451 = vsel %vm431, 1, 0
        %v452 = vsel %vm432, 1, 0
        %v453 = vsel %vm433, 1, 0
        %v454 = vsel %vm434, 1, 0
        %v455 = vsel %vm435, 1, 0
        %v456 = vsel %vm436, 1, 0
        %v457 = vsel %vm437, 1, 0
        %v458 = vsel %vm438, 1, 0
        %v459 = vsel %vm439, 1, 0
        %v460 = vsel %vm440, 1, 0
        %v461 = vsel %vm441, 1, 0
        %v462 = vsel %vm442, 1, 0
        %v463 = vsel %vm443, 1, 0
        %v464 = vsel %vm444, 1, 0
        %465 = vset.pattern.permute.xlu0 0
        %466 = vperm.xlu0 %465, %v449
        %v467 = vpop.permute.xlu0 %466
        %468 = vset.pattern.permute.xlu0 0
        %469 = vperm.xlu0 %468, %v450
        %v470 = vpop.permute.xlu0 %469
        %471 = vset.pattern.permute.xlu0 0
        %472 = vperm.xlu0 %471, %v451
        %v473 = vpop.permute.xlu0 %472
        %474 = vset.pattern.permute.xlu0 0
        %475 = vperm.xlu0 %474, %v452
        %v476 = vpop.permute.xlu0 %475
        %477 = vset.pattern.permute.xlu0 0
        %478 = vperm.xlu0 %477, %v453
        %v479 = vpop.permute.xlu0 %478
        %480 = vset.pattern.permute.xlu0 0
        %481 = vperm.xlu0 %480, %v454
        %v482 = vpop.permute.xlu0 %481
        %483 = vset.pattern.permute.xlu0 0
        %484 = vperm.xlu0 %483, %v455
        %v485 = vpop.permute.xlu0 %484
        %486 = vset.pattern.permute.xlu0 0
        %487 = vperm.xlu0 %486, %v456
        %v488 = vpop.permute.xlu0 %487
        %489 = vset.pattern.permute.xlu0 0
        %490 = vperm.xlu0 %489, %v457
        %v491 = vpop.permute.xlu0 %490
        %492 = vset.pattern.permute.xlu0 0
        %493 = vperm.xlu0 %492, %v458
        %v494 = vpop.permute.xlu0 %493
        %495 = vset.pattern.permute.xlu0 0
        %496 = vperm.xlu0 %495, %v459
        %v497 = vpop.permute.xlu0 %496
        %498 = vset.pattern.permute.xlu0 0
        %499 = vperm.xlu0 %498, %v460
        %v500 = vpop.permute.xlu0 %499
        %501 = vset.pattern.permute.xlu0 0
        %502 = vperm.xlu0 %501, %v461
        %v503 = vpop.permute.xlu0 %502
        %504 = vset.pattern.permute.xlu0 0
        %505 = vperm.xlu0 %504, %v462
        %v506 = vpop.permute.xlu0 %505
        %507 = vset.pattern.permute.xlu0 0
        %508 = vperm.xlu0 %507, %v463
        %v509 = vpop.permute.xlu0 %508
        %510 = vset.pattern.permute.xlu0 0
        %511 = vperm.xlu0 %510, %v464
        %v512 = vpop.permute.xlu0 %511
        %vm513 = vcmp.eq.s32.totalorder %v467, 1
        %vm514 = vcmp.eq.s32.totalorder %v470, 1
        %vm515 = vcmp.eq.s32.totalorder %v473, 1
        %vm516 = vcmp.eq.s32.totalorder %v476, 1
        %vm517 = vcmp.eq.s32.totalorder %v479, 1
        %vm518 = vcmp.eq.s32.totalorder %v482, 1
        %vm519 = vcmp.eq.s32.totalorder %v485, 1
        %vm520 = vcmp.eq.s32.totalorder %v488, 1
        %vm521 = vcmp.eq.s32.totalorder %v491, 1
        %vm522 = vcmp.eq.s32.totalorder %v494, 1
        %vm523 = vcmp.eq.s32.totalorder %v497, 1
        %vm524 = vcmp.eq.s32.totalorder %v500, 1
        %vm525 = vcmp.eq.s32.totalorder %v503, 1
        %vm526 = vcmp.eq.s32.totalorder %v506, 1
        %vm527 = vcmp.eq.s32.totalorder %v509, 1
        %vm528 = vcmp.eq.s32.totalorder %v512, 1
        %v529 = vsel %vm513, %v446, 3e+38
        %v530 = vsel %vm514, %v446, 3e+38
        %v531 = vsel %vm515, %v446, 3e+38
        %v532 = vsel %vm516, %v446, 3e+38
        %v533 = vsel %vm517, %v446, 3e+38
        %v534 = vsel %vm518, %v446, 3e+38
        %v535 = vsel %vm519, %v446, 3e+38
        %v536 = vsel %vm520, %v446, 3e+38
        %v537 = vsel %vm521, %v446, 3e+38
        %v538 = vsel %vm522, %v446, 3e+38
        %v539 = vsel %vm523, %v446, 3e+38
        %v540 = vsel %vm524, %v446, 3e+38
        %v541 = vsel %vm525, %v446, 3e+38
        %v542 = vsel %vm526, %v446, 3e+38
        %v543 = vsel %vm527, %v446, 3e+38
        %v544 = vsel %vm528, %v446, 3e+38
        %v545 = vrot.slane %v529, 4
        %v546 = vmin.f32 %v529, %v545
        %v547 = vrot.slane %v546, 2
        %v548 = vmin.f32 %v546, %v547
        %v549 = vrot.slane %v548, 1
        %v550 = vmin.f32 %v548, %v549
        %v551 = vrot.slane %v530, 4
        %v552 = vmin.f32 %v530, %v551
        %v553 = vrot.slane %v552, 2
        %v554 = vmin.f32 %v552, %v553
        %v555 = vrot.slane %v554, 1
        %v556 = vmin.f32 %v554, %v555
        %v557 = vrot.slane %v531, 4
        %v558 = vmin.f32 %v531, %v557
        %v559 = vrot.slane %v558, 2
        %v560 = vmin.f32 %v558, %v559
        %v561 = vrot.slane %v560, 1
        %v562 = vmin.f32 %v560, %v561
        %v563 = vrot.slane %v532, 4
        %v564 = vmin.f32 %v532, %v563
        %v565 = vrot.slane %v564, 2
        %v566 = vmin.f32 %v564, %v565
        %v567 = vrot.slane %v566, 1
        %v568 = vmin.f32 %v566, %v567
        %v569 = vrot.slane %v533, 4
        %v570 = vmin.f32 %v533, %v569
        %v571 = vrot.slane %v570, 2
        %v572 = vmin.f32 %v570, %v571
        %v573 = vrot.slane %v572, 1
        %v574 = vmin.f32 %v572, %v573
        %v575 = vrot.slane %v534, 4
        %v576 = vmin.f32 %v534, %v575
        %v577 = vrot.slane %v576, 2
        %v578 = vmin.f32 %v576, %v577
        %v579 = vrot.slane %v578, 1
        %v580 = vmin.f32 %v578, %v579
        %v581 = vrot.slane %v535, 4
        %v582 = vmin.f32 %v535, %v581
        %v583 = vrot.slane %v582, 2
        %v584 = vmin.f32 %v582, %v583
        %v585 = vrot.slane %v584, 1
        %v586 = vmin.f32 %v584, %v585
        %v587 = vrot.slane %v536, 4
        %v588 = vmin.f32 %v536, %v587
        %v589 = vrot.slane %v588, 2
        %v590 = vmin.f32 %v588, %v589
        %v591 = vrot.slane %v590, 1
        %v592 = vmin.f32 %v590, %v591
        %v593 = vrot.slane %v537, 4
        %v594 = vmin.f32 %v537, %v593
        %v595 = vrot.slane %v594, 2
        %v596 = vmin.f32 %v594, %v595
        %v597 = vrot.slane %v596, 1
        %v598 = vmin.f32 %v596, %v597
        %v599 = vrot.slane %v538, 4
        %v600 = vmin.f32 %v538, %v599
        %v601 = vrot.slane %v600, 2
        %v602 = vmin.f32 %v600, %v601
        %v603 = vrot.slane %v602, 1
        %v604 = vmin.f32 %v602, %v603
        %v605 = vrot.slane %v539, 4
        %v606 = vmin.f32 %v539, %v605
        %v607 = vrot.slane %v606, 2
        %v608 = vmin.f32 %v606, %v607
        %v609 = vrot.slane %v608, 1
        %v610 = vmin.f32 %v608, %v609
        %v611 = vrot.slane %v540, 4
        %v612 = vmin.f32 %v540, %v611
        %v613 = vrot.slane %v612, 2
        %v614 = vmin.f32 %v612, %v613
        %v615 = vrot.slane %v614, 1
        %v616 = vmin.f32 %v614, %v615
        %v617 = vrot.slane %v541, 4
        %v618 = vmin.f32 %v541, %v617
        %v619 = vrot.slane %v618, 2
        %v620 = vmin.f32 %v618, %v619
        %v621 = vrot.slane %v620, 1
        %v622 = vmin.f32 %v620, %v621
        %v623 = vrot.slane %v542, 4
        %v624 = vmin.f32 %v542, %v623
        %v625 = vrot.slane %v624, 2
        %v626 = vmin.f32 %v624, %v625
        %v627 = vrot.slane %v626, 1
        %v628 = vmin.f32 %v626, %v627
        %v629 = vrot.slane %v543, 4
        %v630 = vmin.f32 %v543, %v629
        %v631 = vrot.slane %v630, 2
        %v632 = vmin.f32 %v630, %v631
        %v633 = vrot.slane %v632, 1
        %v634 = vmin.f32 %v632, %v633
        %v635 = vrot.slane %v544, 4
        %v636 = vmin.f32 %v544, %v635
        %v637 = vrot.slane %v636, 2
        %v638 = vmin.f32 %v636, %v637
        %v639 = vrot.slane %v638, 1
        %v640 = vmin.f32 %v638, %v639
        %vm657 = vcmask 1041409
        %v658 = vsel %vm657, %v556, %v550
        %vm659 = vcmask 1042434
        %v660 = vsel %vm659, %v562, %v658
        %vm661 = vcmask 1043459
        %v662 = vsel %vm661, %v568, %v660
        %vm663 = vcmask 1044484
        %v664 = vsel %vm663, %v574, %v662
        %vm665 = vcmask 1045509
        %v666 = vsel %vm665, %v580, %v664
        %vm667 = vcmask 1046534
        %v668 = vsel %vm667, %v586, %v666
        %vm669 = vcmask 1047559
        %v670 = vsel %vm669, %v592, %v668
        %v671 = vsel %vm657, %v604, %v598
        %v672 = vsel %vm659, %v610, %v671
        %v673 = vsel %vm661, %v616, %v672
        %v674 = vsel %vm663, %v622, %v673
        %v675 = vsel %vm665, %v628, %v674
        %v676 = vsel %vm667, %v634, %v675
        %v677 = vsel %vm669, %v640, %v676
        %v680 = vmin.f32 %v447, %v670
        %v681 = vmin.f32 %v448, %v677
        %682 = vst [vmem:[#allocation3] sm:$0xff] %v680
        %683 = vst [vmem:[#allocation3 + $0x8] sm:$0xff] %v681
        %v684 = vld [vmem:[#allocation4] sm:$0xff]
        %v685 = vld [vmem:[#allocation4 + $0x8] sm:$0xff]
        %v686 = vsel %vm513, %v446, -3e+38
        %v687 = vsel %vm514, %v446, -3e+38
        %v688 = vsel %vm515, %v446, -3e+38
        %v689 = vsel %vm516, %v446, -3e+38
        %v690 = vsel %vm517, %v446, -3e+38
        %v691 = vsel %vm518, %v446, -3e+38
        %v692 = vsel %vm519, %v446, -3e+38
        %v693 = vsel %vm520, %v446, -3e+38
        %v694 = vsel %vm521, %v446, -3e+38
        %v695 = vsel %vm522, %v446, -3e+38
        %v696 = vsel %vm523, %v446, -3e+38
        %v697 = vsel %vm524, %v446, -3e+38
        %v698 = vsel %vm525, %v446, -3e+38
        %v699 = vsel %vm526, %v446, -3e+38
        %v700 = vsel %vm527, %v446, -3e+38
        %v701 = vsel %vm528, %v446, -3e+38
        %v702 = vrot.slane %v686, 4
        %v703 = vmax.f32 %v686, %v702
        %v704 = vrot.slane %v703, 2
        %v705 = vmax.f32 %v703, %v704
        %v706 = vrot.slane %v705, 1
        %v707 = vmax.f32 %v705, %v706
        %v708 = vrot.slane %v687, 4
        %v709 = vmax.f32 %v687, %v708
        %v710 = vrot.slane %v709, 2
        %v711 = vmax.f32 %v709, %v710
        %v712 = vrot.slane %v711, 1
        %v713 = vmax.f32 %v711, %v712
        %v714 = vrot.slane %v688, 4
        %v715 = vmax.f32 %v688, %v714
        %v716 = vrot.slane %v715, 2
        %v717 = vmax.f32 %v715, %v716
        %v718 = vrot.slane %v717, 1
        %v719 = vmax.f32 %v717, %v718
        %v720 = vrot.slane %v689, 4
        %v721 = vmax.f32 %v689, %v720
        %v722 = vrot.slane %v721, 2
        %v723 = vmax.f32 %v721, %v722
        %v724 = vrot.slane %v723, 1
        %v725 = vmax.f32 %v723, %v724
        %v726 = vrot.slane %v690, 4
        %v727 = vmax.f32 %v690, %v726
        %v728 = vrot.slane %v727, 2
        %v729 = vmax.f32 %v727, %v728
        %v730 = vrot.slane %v729, 1
        %v731 = vmax.f32 %v729, %v730
        %v732 = vrot.slane %v691, 4
        %v733 = vmax.f32 %v691, %v732
        %v734 = vrot.slane %v733, 2
        %v735 = vmax.f32 %v733, %v734
        %v736 = vrot.slane %v735, 1
        %v737 = vmax.f32 %v735, %v736
        %v738 = vrot.slane %v692, 4
        %v739 = vmax.f32 %v692, %v738
        %v740 = vrot.slane %v739, 2
        %v741 = vmax.f32 %v739, %v740
        %v742 = vrot.slane %v741, 1
        %v743 = vmax.f32 %v741, %v742
        %v744 = vrot.slane %v693, 4
        %v745 = vmax.f32 %v693, %v744
        %v746 = vrot.slane %v745, 2
        %v747 = vmax.f32 %v745, %v746
        %v748 = vrot.slane %v747, 1
        %v749 = vmax.f32 %v747, %v748
        %v750 = vrot.slane %v694, 4
        %v751 = vmax.f32 %v694, %v750
        %v752 = vrot.slane %v751, 2
        %v753 = vmax.f32 %v751, %v752
        %v754 = vrot.slane %v753, 1
        %v755 = vmax.f32 %v753, %v754
        %v756 = vrot.slane %v695, 4
        %v757 = vmax.f32 %v695, %v756
        %v758 = vrot.slane %v757, 2
        %v759 = vmax.f32 %v757, %v758
        %v760 = vrot.slane %v759, 1
        %v761 = vmax.f32 %v759, %v760
        %v762 = vrot.slane %v696, 4
        %v763 = vmax.f32 %v696, %v762
        %v764 = vrot.slane %v763, 2
        %v765 = vmax.f32 %v763, %v764
        %v766 = vrot.slane %v765, 1
        %v767 = vmax.f32 %v765, %v766
        %v768 = vrot.slane %v697, 4
        %v769 = vmax.f32 %v697, %v768
        %v770 = vrot.slane %v769, 2
        %v771 = vmax.f32 %v769, %v770
        %v772 = vrot.slane %v771, 1
        %v773 = vmax.f32 %v771, %v772
        %v774 = vrot.slane %v698, 4
        %v775 = vmax.f32 %v698, %v774
        %v776 = vrot.slane %v775, 2
        %v777 = vmax.f32 %v775, %v776
        %v778 = vrot.slane %v777, 1
        %v779 = vmax.f32 %v777, %v778
        %v780 = vrot.slane %v699, 4
        %v781 = vmax.f32 %v699, %v780
        %v782 = vrot.slane %v781, 2
        %v783 = vmax.f32 %v781, %v782
        %v784 = vrot.slane %v783, 1
        %v785 = vmax.f32 %v783, %v784
        %v786 = vrot.slane %v700, 4
        %v787 = vmax.f32 %v700, %v786
        %v788 = vrot.slane %v787, 2
        %v789 = vmax.f32 %v787, %v788
        %v790 = vrot.slane %v789, 1
        %v791 = vmax.f32 %v789, %v790
        %v792 = vrot.slane %v701, 4
        %v793 = vmax.f32 %v701, %v792
        %v794 = vrot.slane %v793, 2
        %v795 = vmax.f32 %v793, %v794
        %v796 = vrot.slane %v795, 1
        %v797 = vmax.f32 %v795, %v796
        %v814 = vsel %vm657, %v713, %v707
        %v815 = vsel %vm659, %v719, %v814
        %v816 = vsel %vm661, %v725, %v815
        %v817 = vsel %vm663, %v731, %v816
        %v818 = vsel %vm665, %v737, %v817
        %v819 = vsel %vm667, %v743, %v818
        %v820 = vsel %vm669, %v749, %v819
        %v821 = vsel %vm657, %v761, %v755
        %v822 = vsel %vm659, %v767, %v821
        %v823 = vsel %vm661, %v773, %v822
        %v824 = vsel %vm663, %v779, %v823
        %v825 = vsel %vm665, %v785, %v824
        %v826 = vsel %vm667, %v791, %v825
        %v827 = vsel %vm669, %v797, %v826
        %v830 = vmax.f32 %v684, %v820
        %v831 = vmax.f32 %v685, %v827
        %832 = vst [vmem:[#allocation4] sm:$0xff] %v830
        %833 = vst [vmem:[#allocation4 + $0x8] sm:$0xff] %v831
        %v834 = vld [vmem:[%s280 + $0x8] sm:$0xff]
        %vm835 = vcmp.eq.s32.totalorder %v306, %v834
        %vm836 = vcmp.eq.s32.totalorder %v413, %v834
        %vm837 = vcmp.eq.s32.totalorder %v414, %v834
        %vm838 = vcmp.eq.s32.totalorder %v415, %v834
        %vm839 = vcmp.eq.s32.totalorder %v416, %v834
        %vm840 = vcmp.eq.s32.totalorder %v417, %v834
        %vm841 = vcmp.eq.s32.totalorder %v418, %v834
        %vm842 = vcmp.eq.s32.totalorder %v419, %v834
        %vm843 = vcmp.eq.s32.totalorder %v420, %v834
        %vm844 = vcmp.eq.s32.totalorder %v421, %v834
        %vm845 = vcmp.eq.s32.totalorder %v422, %v834
        %vm846 = vcmp.eq.s32.totalorder %v423, %v834
        %vm847 = vcmp.eq.s32.totalorder %v424, %v834
        %vm848 = vcmp.eq.s32.totalorder %v425, %v834
        %vm849 = vcmp.eq.s32.totalorder %v426, %v834
        %vm850 = vcmp.eq.s32.totalorder %v427, %v834
        %v851 = vld [vmem:[%s286 + $0x4] sm:$0xf]
        %v852 = vunpack.c.l.bf16 %v851
        %v853 = vld [vmem:[#allocation3] sm:$0xff]
        %v854 = vld [vmem:[#allocation3 + $0x8] sm:$0xff]
        %v855 = vsel %vm835, 1, 0
        %v856 = vsel %vm836, 1, 0
        %v857 = vsel %vm837, 1, 0
        %v858 = vsel %vm838, 1, 0
        %v859 = vsel %vm839, 1, 0
        %v860 = vsel %vm840, 1, 0
        %v861 = vsel %vm841, 1, 0
        %v862 = vsel %vm842, 1, 0
        %v863 = vsel %vm843, 1, 0
        %v864 = vsel %vm844, 1, 0
        %v865 = vsel %vm845, 1, 0
        %v866 = vsel %vm846, 1, 0
        %v867 = vsel %vm847, 1, 0
        %v868 = vsel %vm848, 1, 0
        %v869 = vsel %vm849, 1, 0
        %v870 = vsel %vm850, 1, 0
        %871 = vset.pattern.permute.xlu0 0
        %872 = vperm.xlu0 %871, %v855
        %v873 = vpop.permute.xlu0 %872
        %874 = vset.pattern.permute.xlu0 0
        %875 = vperm.xlu0 %874, %v856
        %v876 = vpop.permute.xlu0 %875
        %877 = vset.pattern.permute.xlu0 0
        %878 = vperm.xlu0 %877, %v857
        %v879 = vpop.permute.xlu0 %878
        %880 = vset.pattern.permute.xlu0 0
        %881 = vperm.xlu0 %880, %v858
        %v882 = vpop.permute.xlu0 %881
        %883 = vset.pattern.permute.xlu0 0
        %884 = vperm.xlu0 %883, %v859
        %v885 = vpop.permute.xlu0 %884
        %886 = vset.pattern.permute.xlu0 0
        %887 = vperm.xlu0 %886, %v860
        %v888 = vpop.permute.xlu0 %887
        %889 = vset.pattern.permute.xlu0 0
        %890 = vperm.xlu0 %889, %v861
        %v891 = vpop.permute.xlu0 %890
        %892 = vset.pattern.permute.xlu0 0
        %893 = vperm.xlu0 %892, %v862
        %v894 = vpop.permute.xlu0 %893
        %895 = vset.pattern.permute.xlu0 0
        %896 = vperm.xlu0 %895, %v863
        %v897 = vpop.permute.xlu0 %896
        %898 = vset.pattern.permute.xlu0 0
        %899 = vperm.xlu0 %898, %v864
        %v900 = vpop.permute.xlu0 %899
        %901 = vset.pattern.permute.xlu0 0
        %902 = vperm.xlu0 %901, %v865
        %v903 = vpop.permute.xlu0 %902
        %904 = vset.pattern.permute.xlu0 0
        %905 = vperm.xlu0 %904, %v866
        %v906 = vpop.permute.xlu0 %905
        %907 = vset.pattern.permute.xlu0 0
        %908 = vperm.xlu0 %907, %v867
        %v909 = vpop.permute.xlu0 %908
        %910 = vset.pattern.permute.xlu0 0
        %911 = vperm.xlu0 %910, %v868
        %v912 = vpop.permute.xlu0 %911
        %913 = vset.pattern.permute.xlu0 0
        %914 = vperm.xlu0 %913, %v869
        %v915 = vpop.permute.xlu0 %914
        %916 = vset.pattern.permute.xlu0 0
        %917 = vperm.xlu0 %916, %v870
        %v918 = vpop.permute.xlu0 %917
        %vm919 = vcmp.eq.s32.totalorder %v873, 1
        %vm920 = vcmp.eq.s32.totalorder %v876, 1
        %vm921 = vcmp.eq.s32.totalorder %v879, 1
        %vm922 = vcmp.eq.s32.totalorder %v882, 1
        %vm923 = vcmp.eq.s32.totalorder %v885, 1
        %vm924 = vcmp.eq.s32.totalorder %v888, 1
        %vm925 = vcmp.eq.s32.totalorder %v891, 1
        %vm926 = vcmp.eq.s32.totalorder %v894, 1
        %vm927 = vcmp.eq.s32.totalorder %v897, 1
        %vm928 = vcmp.eq.s32.totalorder %v900, 1
        %vm929 = vcmp.eq.s32.totalorder %v903, 1
        %vm930 = vcmp.eq.s32.totalorder %v906, 1
        %vm931 = vcmp.eq.s32.totalorder %v909, 1
        %vm932 = vcmp.eq.s32.totalorder %v912, 1
        %vm933 = vcmp.eq.s32.totalorder %v915, 1
        %vm934 = vcmp.eq.s32.totalorder %v918, 1
        %v935 = vsel %vm919, %v852, 3e+38
        %v936 = vsel %vm920, %v852, 3e+38
        %v937 = vsel %vm921, %v852, 3e+38
        %v938 = vsel %vm922, %v852, 3e+38
        %v939 = vsel %vm923, %v852, 3e+38
        %v940 = vsel %vm924, %v852, 3e+38
        %v941 = vsel %vm925, %v852, 3e+38
        %v942 = vsel %vm926, %v852, 3e+38
        %v943 = vsel %vm927, %v852, 3e+38
        %v944 = vsel %vm928, %v852, 3e+38
        %v945 = vsel %vm929, %v852, 3e+38
        %v946 = vsel %vm930, %v852, 3e+38
        %v947 = vsel %vm931, %v852, 3e+38
        %v948 = vsel %vm932, %v852, 3e+38
        %v949 = vsel %vm933, %v852, 3e+38
        %v950 = vsel %vm934, %v852, 3e+38
        %v951 = vrot.slane %v935, 4
        %v952 = vmin.f32 %v935, %v951
        %v953 = vrot.slane %v952, 2
        %v954 = vmin.f32 %v952, %v953
        %v955 = vrot.slane %v954, 1
        %v956 = vmin.f32 %v954, %v955
        %v957 = vrot.slane %v936, 4
        %v958 = vmin.f32 %v936, %v957
        %v959 = vrot.slane %v958, 2
        %v960 = vmin.f32 %v958, %v959
        %v961 = vrot.slane %v960, 1
        %v962 = vmin.f32 %v960, %v961
        %v963 = vrot.slane %v937, 4
        %v964 = vmin.f32 %v937, %v963
        %v965 = vrot.slane %v964, 2
        %v966 = vmin.f32 %v964, %v965
        %v967 = vrot.slane %v966, 1
        %v968 = vmin.f32 %v966, %v967
        %v969 = vrot.slane %v938, 4
        %v970 = vmin.f32 %v938, %v969
        %v971 = vrot.slane %v970, 2
        %v972 = vmin.f32 %v970, %v971
        %v973 = vrot.slane %v972, 1
        %v974 = vmin.f32 %v972, %v973
        %v975 = vrot.slane %v939, 4
        %v976 = vmin.f32 %v939, %v975
        %v977 = vrot.slane %v976, 2
        %v978 = vmin.f32 %v976, %v977
        %v979 = vrot.slane %v978, 1
        %v980 = vmin.f32 %v978, %v979
        %v981 = vrot.slane %v940, 4
        %v982 = vmin.f32 %v940, %v981
        %v983 = vrot.slane %v982, 2
        %v984 = vmin.f32 %v982, %v983
        %v985 = vrot.slane %v984, 1
        %v986 = vmin.f32 %v984, %v985
        %v987 = vrot.slane %v941, 4
        %v988 = vmin.f32 %v941, %v987
        %v989 = vrot.slane %v988, 2
        %v990 = vmin.f32 %v988, %v989
        %v991 = vrot.slane %v990, 1
        %v992 = vmin.f32 %v990, %v991
        %v993 = vrot.slane %v942, 4
        %v994 = vmin.f32 %v942, %v993
        %v995 = vrot.slane %v994, 2
        %v996 = vmin.f32 %v994, %v995
        %v997 = vrot.slane %v996, 1
        %v998 = vmin.f32 %v996, %v997
        %v999 = vrot.slane %v943, 4
        %v1000 = vmin.f32 %v943, %v999
        %v1001 = vrot.slane %v1000, 2
        %v1002 = vmin.f32 %v1000, %v1001
        %v1003 = vrot.slane %v1002, 1
        %v1004 = vmin.f32 %v1002, %v1003
        %v1005 = vrot.slane %v944, 4
        %v1006 = vmin.f32 %v944, %v1005
        %v1007 = vrot.slane %v1006, 2
        %v1008 = vmin.f32 %v1006, %v1007
        %v1009 = vrot.slane %v1008, 1
        %v1010 = vmin.f32 %v1008, %v1009
        %v1011 = vrot.slane %v945, 4
        %v1012 = vmin.f32 %v945, %v1011
        %v1013 = vrot.slane %v1012, 2
        %v1014 = vmin.f32 %v1012, %v1013
        %v1015 = vrot.slane %v1014, 1
        %v1016 = vmin.f32 %v1014, %v1015
        %v1017 = vrot.slane %v946, 4
        %v1018 = vmin.f32 %v946, %v1017
        %v1019 = vrot.slane %v1018, 2
        %v1020 = vmin.f32 %v1018, %v1019
        %v1021 = vrot.slane %v1020, 1
        %v1022 = vmin.f32 %v1020, %v1021
        %v1023 = vrot.slane %v947, 4
        %v1024 = vmin.f32 %v947, %v1023
        %v1025 = vrot.slane %v1024, 2
        %v1026 = vmin.f32 %v1024, %v1025
        %v1027 = vrot.slane %v1026, 1
        %v1028 = vmin.f32 %v1026, %v1027
        %v1029 = vrot.slane %v948, 4
        %v1030 = vmin.f32 %v948, %v1029
        %v1031 = vrot.slane %v1030, 2
        %v1032 = vmin.f32 %v1030, %v1031
        %v1033 = vrot.slane %v1032, 1
        %v1034 = vmin.f32 %v1032, %v1033
        %v1035 = vrot.slane %v949, 4
        %v1036 = vmin.f32 %v949, %v1035
        %v1037 = vrot.slane %v1036, 2
        %v1038 = vmin.f32 %v1036, %v1037
        %v1039 = vrot.slane %v1038, 1
        %v1040 = vmin.f32 %v1038, %v1039
        %v1041 = vrot.slane %v950, 4
        %v1042 = vmin.f32 %v950, %v1041
        %v1043 = vrot.slane %v1042, 2
        %v1044 = vmin.f32 %v1042, %v1043
        %v1045 = vrot.slane %v1044, 1
        %v1046 = vmin.f32 %v1044, %v1045
        %v1063 = vsel %vm657, %v962, %v956
        %v1064 = vsel %vm659, %v968, %v1063
        %v1065 = vsel %vm661, %v974, %v1064
        %v1066 = vsel %vm663, %v980, %v1065
        %v1067 = vsel %vm665, %v986, %v1066
        %v1068 = vsel %vm667, %v992, %v1067
        %v1069 = vsel %vm669, %v998, %v1068
        %v1070 = vsel %vm657, %v1010, %v1004
        %v1071 = vsel %vm659, %v1016, %v1070
        %v1072 = vsel %vm661, %v1022, %v1071
        %v1073 = vsel %vm663, %v1028, %v1072
        %v1074 = vsel %vm665, %v1034, %v1073
        %v1075 = vsel %vm667, %v1040, %v1074
        %v1076 = vsel %vm669, %v1046, %v1075
        %v1079 = vmin.f32 %v853, %v1069
        %v1080 = vmin.f32 %v854, %v1076
        %1081 = vst [vmem:[#allocation3] sm:$0xff] %v1079
        %1082 = vst [vmem:[#allocation3 + $0x8] sm:$0xff] %v1080
        %v1083 = vld [vmem:[#allocation4] sm:$0xff]
        %v1084 = vld [vmem:[#allocation4 + $0x8] sm:$0xff]
        %v1085 = vsel %vm919, %v852, -3e+38
        %v1086 = vsel %vm920, %v852, -3e+38
        %v1087 = vsel %vm921, %v852, -3e+38
        %v1088 = vsel %vm922, %v852, -3e+38
        %v1089 = vsel %vm923, %v852, -3e+38
        %v1090 = vsel %vm924, %v852, -3e+38
        %v1091 = vsel %vm925, %v852, -3e+38
        %v1092 = vsel %vm926, %v852, -3e+38
        %v1093 = vsel %vm927, %v852, -3e+38
        %v1094 = vsel %vm928, %v852, -3e+38
        %v1095 = vsel %vm929, %v852, -3e+38
        %v1096 = vsel %vm930, %v852, -3e+38
        %v1097 = vsel %vm931, %v852, -3e+38
        %v1098 = vsel %vm932, %v852, -3e+38
        %v1099 = vsel %vm933, %v852, -3e+38
        %v1100 = vsel %vm934, %v852, -3e+38
        %v1101 = vrot.slane %v1085, 4
        %v1102 = vmax.f32 %v1085, %v1101
        %v1103 = vrot.slane %v1102, 2
        %v1104 = vmax.f32 %v1102, %v1103
        %v1105 = vrot.slane %v1104, 1
        %v1106 = vmax.f32 %v1104, %v1105
        %v1107 = vrot.slane %v1086, 4
        %v1108 = vmax.f32 %v1086, %v1107
        %v1109 = vrot.slane %v1108, 2
        %v1110 = vmax.f32 %v1108, %v1109
        %v1111 = vrot.slane %v1110, 1
        %v1112 = vmax.f32 %v1110, %v1111
        %v1113 = vrot.slane %v1087, 4
        %v1114 = vmax.f32 %v1087, %v1113
        %v1115 = vrot.slane %v1114, 2
        %v1116 = vmax.f32 %v1114, %v1115
        %v1117 = vrot.slane %v1116, 1
        %v1118 = vmax.f32 %v1116, %v1117
        %v1119 = vrot.slane %v1088, 4
        %v1120 = vmax.f32 %v1088, %v1119
        %v1121 = vrot.slane %v1120, 2
        %v1122 = vmax.f32 %v1120, %v1121
        %v1123 = vrot.slane %v1122, 1
        %v1124 = vmax.f32 %v1122, %v1123
        %v1125 = vrot.slane %v1089, 4
        %v1126 = vmax.f32 %v1089, %v1125
        %v1127 = vrot.slane %v1126, 2
        %v1128 = vmax.f32 %v1126, %v1127
        %v1129 = vrot.slane %v1128, 1
        %v1130 = vmax.f32 %v1128, %v1129
        %v1131 = vrot.slane %v1090, 4
        %v1132 = vmax.f32 %v1090, %v1131
        %v1133 = vrot.slane %v1132, 2
        %v1134 = vmax.f32 %v1132, %v1133
        %v1135 = vrot.slane %v1134, 1
        %v1136 = vmax.f32 %v1134, %v1135
        %v1137 = vrot.slane %v1091, 4
        %v1138 = vmax.f32 %v1091, %v1137
        %v1139 = vrot.slane %v1138, 2
        %v1140 = vmax.f32 %v1138, %v1139
        %v1141 = vrot.slane %v1140, 1
        %v1142 = vmax.f32 %v1140, %v1141
        %v1143 = vrot.slane %v1092, 4
        %v1144 = vmax.f32 %v1092, %v1143
        %v1145 = vrot.slane %v1144, 2
        %v1146 = vmax.f32 %v1144, %v1145
        %v1147 = vrot.slane %v1146, 1
        %v1148 = vmax.f32 %v1146, %v1147
        %v1149 = vrot.slane %v1093, 4
        %v1150 = vmax.f32 %v1093, %v1149
        %v1151 = vrot.slane %v1150, 2
        %v1152 = vmax.f32 %v1150, %v1151
        %v1153 = vrot.slane %v1152, 1
        %v1154 = vmax.f32 %v1152, %v1153
        %v1155 = vrot.slane %v1094, 4
        %v1156 = vmax.f32 %v1094, %v1155
        %v1157 = vrot.slane %v1156, 2
        %v1158 = vmax.f32 %v1156, %v1157
        %v1159 = vrot.slane %v1158, 1
        %v1160 = vmax.f32 %v1158, %v1159
        %v1161 = vrot.slane %v1095, 4
        %v1162 = vmax.f32 %v1095, %v1161
        %v1163 = vrot.slane %v1162, 2
        %v1164 = vmax.f32 %v1162, %v1163
        %v1165 = vrot.slane %v1164, 1
        %v1166 = vmax.f32 %v1164, %v1165
        %v1167 = vrot.slane %v1096, 4
        %v1168 = vmax.f32 %v1096, %v1167
        %v1169 = vrot.slane %v1168, 2
        %v1170 = vmax.f32 %v1168, %v1169
        %v1171 = vrot.slane %v1170, 1
        %v1172 = vmax.f32 %v1170, %v1171
        %v1173 = vrot.slane %v1097, 4
        %v1174 = vmax.f32 %v1097, %v1173
        %v1175 = vrot.slane %v1174, 2
        %v1176 = vmax.f32 %v1174, %v1175
        %v1177 = vrot.slane %v1176, 1
        %v1178 = vmax.f32 %v1176, %v1177
        %v1179 = vrot.slane %v1098, 4
        %v1180 = vmax.f32 %v1098, %v1179
        %v1181 = vrot.slane %v1180, 2
        %v1182 = vmax.f32 %v1180, %v1181
        %v1183 = vrot.slane %v1182, 1
        %v1184 = vmax.f32 %v1182, %v1183
        %v1185 = vrot.slane %v1099, 4
        %v1186 = vmax.f32 %v1099, %v1185
        %v1187 = vrot.slane %v1186, 2
        %v1188 = vmax.f32 %v1186, %v1187
        %v1189 = vrot.slane %v1188, 1
        %v1190 = vmax.f32 %v1188, %v1189
        %v1191 = vrot.slane %v1100, 4
        %v1192 = vmax.f32 %v1100, %v1191
        %v1193 = vrot.slane %v1192, 2
        %v1194 = vmax.f32 %v1192, %v1193
        %v1195 = vrot.slane %v1194, 1
        %v1196 = vmax.f32 %v1194, %v1195
        %v1213 = vsel %vm657, %v1112, %v1106
        %v1214 = vsel %vm659, %v1118, %v1213
        %v1215 = vsel %vm661, %v1124, %v1214
        %v1216 = vsel %vm663, %v1130, %v1215
        %v1217 = vsel %vm665, %v1136, %v1216
        %v1218 = vsel %vm667, %v1142, %v1217
        %v1219 = vsel %vm669, %v1148, %v1218
        %v1220 = vsel %vm657, %v1160, %v1154
        %v1221 = vsel %vm659, %v1166, %v1220
        %v1222 = vsel %vm661, %v1172, %v1221
        %v1223 = vsel %vm663, %v1178, %v1222
        %v1224 = vsel %vm665, %v1184, %v1223
        %v1225 = vsel %vm667, %v1190, %v1224
        %v1226 = vsel %vm669, %v1196, %v1225
        %v1229 = vmax.f32 %v1083, %v1219
        %v1230 = vmax.f32 %v1084, %v1226
        %1231 = vst [vmem:[#allocation4] sm:$0xff] %v1229
        %1232 = vst [vmem:[#allocation4 + $0x8] sm:$0xff] %v1230
        %v1233 = vld [vmem:[%s280 + $0x10] sm:$0xff]
        %vm1234 = vcmp.eq.s32.totalorder %v306, %v1233
        %vm1235 = vcmp.eq.s32.totalorder %v413, %v1233
        %vm1236 = vcmp.eq.s32.totalorder %v414, %v1233
        %vm1237 = vcmp.eq.s32.totalorder %v415, %v1233
        %vm1238 = vcmp.eq.s32.totalorder %v416, %v1233
        %vm1239 = vcmp.eq.s32.totalorder %v417, %v1233
        %vm1240 = vcmp.eq.s32.totalorder %v418, %v1233
        %vm1241 = vcmp.eq.s32.totalorder %v419, %v1233
        %vm1242 = vcmp.eq.s32.totalorder %v420, %v1233
        %vm1243 = vcmp.eq.s32.totalorder %v421, %v1233
        %vm1244 = vcmp.eq.s32.totalorder %v422, %v1233
        %vm1245 = vcmp.eq.s32.totalorder %v423, %v1233
        %vm1246 = vcmp.eq.s32.totalorder %v424, %v1233
        %vm1247 = vcmp.eq.s32.totalorder %v425, %v1233
        %vm1248 = vcmp.eq.s32.totalorder %v426, %v1233
        %vm1249 = vcmp.eq.s32.totalorder %v427, %v1233
        %v1250 = vld [vmem:[%s286 + $0x8] sm:$0xf]
        %v1251 = vunpack.c.l.bf16 %v1250
        %v1252 = vld [vmem:[#allocation3] sm:$0xff]
        %v1253 = vld [vmem:[#allocation3 + $0x8] sm:$0xff]
        %v1254 = vsel %vm1234, 1, 0
        %v1255 = vsel %vm1235, 1, 0
        %v1256 = vsel %vm1236, 1, 0
        %v1257 = vsel %vm1237, 1, 0
        %v1258 = vsel %vm1238, 1, 0
        %v1259 = vsel %vm1239, 1, 0
        %v1260 = vsel %vm1240, 1, 0
        %v1261 = vsel %vm1241, 1, 0
        %v1262 = vsel %vm1242, 1, 0
        %v1263 = vsel %vm1243, 1, 0
        %v1264 = vsel %vm1244, 1, 0
        %v1265 = vsel %vm1245, 1, 0
        %v1266 = vsel %vm1246, 1, 0
        %v1267 = vsel %vm1247, 1, 0
        %v1268 = vsel %vm1248, 1, 0
        %v1269 = vsel %vm1249, 1, 0
        %1270 = vset.pattern.permute.xlu0 0
        %1271 = vperm.xlu0 %1270, %v1254
        %v1272 = vpop.permute.xlu0 %1271
        %1273 = vset.pattern.permute.xlu0 0
        %1274 = vperm.xlu0 %1273, %v1255
        %v1275 = vpop.permute.xlu0 %1274
        %1276 = vset.pattern.permute.xlu0 0
        %1277 = vperm.xlu0 %1276, %v1256
        %v1278 = vpop.permute.xlu0 %1277
        %1279 = vset.pattern.permute.xlu0 0
        %1280 = vperm.xlu0 %1279, %v1257
        %v1281 = vpop.permute.xlu0 %1280
        %1282 = vset.pattern.permute.xlu0 0
        %1283 = vperm.xlu0 %1282, %v1258
        %v1284 = vpop.permute.xlu0 %1283
        %1285 = vset.pattern.permute.xlu0 0
        %1286 = vperm.xlu0 %1285, %v1259
        %v1287 = vpop.permute.xlu0 %1286
        %1288 = vset.pattern.permute.xlu0 0
        %1289 = vperm.xlu0 %1288, %v1260
        %v1290 = vpop.permute.xlu0 %1289
        %1291 = vset.pattern.permute.xlu0 0
        %1292 = vperm.xlu0 %1291, %v1261
        %v1293 = vpop.permute.xlu0 %1292
        %1294 = vset.pattern.permute.xlu0 0
        %1295 = vperm.xlu0 %1294, %v1262
        %v1296 = vpop.permute.xlu0 %1295
        %1297 = vset.pattern.permute.xlu0 0
        %1298 = vperm.xlu0 %1297, %v1263
        %v1299 = vpop.permute.xlu0 %1298
        %1300 = vset.pattern.permute.xlu0 0
        %1301 = vperm.xlu0 %1300, %v1264
        %v1302 = vpop.permute.xlu0 %1301
        %1303 = vset.pattern.permute.xlu0 0
        %1304 = vperm.xlu0 %1303, %v1265
        %v1305 = vpop.permute.xlu0 %1304
        %1306 = vset.pattern.permute.xlu0 0
        %1307 = vperm.xlu0 %1306, %v1266
        %v1308 = vpop.permute.xlu0 %1307
        %1309 = vset.pattern.permute.xlu0 0
        %1310 = vperm.xlu0 %1309, %v1267
        %v1311 = vpop.permute.xlu0 %1310
        %1312 = vset.pattern.permute.xlu0 0
        %1313 = vperm.xlu0 %1312, %v1268
        %v1314 = vpop.permute.xlu0 %1313
        %1315 = vset.pattern.permute.xlu0 0
        %1316 = vperm.xlu0 %1315, %v1269
        %v1317 = vpop.permute.xlu0 %1316
        %vm1318 = vcmp.eq.s32.totalorder %v1272, 1
        %vm1319 = vcmp.eq.s32.totalorder %v1275, 1
        %vm1320 = vcmp.eq.s32.totalorder %v1278, 1
        %vm1321 = vcmp.eq.s32.totalorder %v1281, 1
        %vm1322 = vcmp.eq.s32.totalorder %v1284, 1
        %vm1323 = vcmp.eq.s32.totalorder %v1287, 1
        %vm1324 = vcmp.eq.s32.totalorder %v1290, 1
        %vm1325 = vcmp.eq.s32.totalorder %v1293, 1
        %vm1326 = vcmp.eq.s32.totalorder %v1296, 1
        %vm1327 = vcmp.eq.s32.totalorder %v1299, 1
        %vm1328 = vcmp.eq.s32.totalorder %v1302, 1
        %vm1329 = vcmp.eq.s32.totalorder %v1305, 1
        %vm1330 = vcmp.eq.s32.totalorder %v1308, 1
        %vm1331 = vcmp.eq.s32.totalorder %v1311, 1
        %vm1332 = vcmp.eq.s32.totalorder %v1314, 1
        %vm1333 = vcmp.eq.s32.totalorder %v1317, 1
        %v1334 = vsel %vm1318, %v1251, 3e+38
        %v1335 = vsel %vm1319, %v1251, 3e+38
        %v1336 = vsel %vm1320, %v1251, 3e+38
        %v1337 = vsel %vm1321, %v1251, 3e+38
        %v1338 = vsel %vm1322, %v1251, 3e+38
        %v1339 = vsel %vm1323, %v1251, 3e+38
        %v1340 = vsel %vm1324, %v1251, 3e+38
        %v1341 = vsel %vm1325, %v1251, 3e+38
        %v1342 = vsel %vm1326, %v1251, 3e+38
        %v1343 = vsel %vm1327, %v1251, 3e+38
        %v1344 = vsel %vm1328, %v1251, 3e+38
        %v1345 = vsel %vm1329, %v1251, 3e+38
        %v1346 = vsel %vm1330, %v1251, 3e+38
        %v1347 = vsel %vm1331, %v1251, 3e+38
        %v1348 = vsel %vm1332, %v1251, 3e+38
        %v1349 = vsel %vm1333, %v1251, 3e+38
        %v1350 = vrot.slane %v1334, 4
        %v1351 = vmin.f32 %v1334, %v1350
        %v1352 = vrot.slane %v1351, 2
        %v1353 = vmin.f32 %v1351, %v1352
        %v1354 = vrot.slane %v1353, 1
        %v1355 = vmin.f32 %v1353, %v1354
        %v1356 = vrot.slane %v1335, 4
        %v1357 = vmin.f32 %v1335, %v1356
        %v1358 = vrot.slane %v1357, 2
        %v1359 = vmin.f32 %v1357, %v1358
        %v1360 = vrot.slane %v1359, 1
        %v1361 = vmin.f32 %v1359, %v1360
        %v1362 = vrot.slane %v1336, 4
        %v1363 = vmin.f32 %v1336, %v1362
        %v1364 = vrot.slane %v1363, 2
        %v1365 = vmin.f32 %v1363, %v1364
        %v1366 = vrot.slane %v1365, 1
        %v1367 = vmin.f32 %v1365, %v1366
        %v1368 = vrot.slane %v1337, 4
        %v1369 = vmin.f32 %v1337, %v1368
        %v1370 = vrot.slane %v1369, 2
        %v1371 = vmin.f32 %v1369, %v1370
        %v1372 = vrot.slane %v1371, 1
        %v1373 = vmin.f32 %v1371, %v1372
        %v1374 = vrot.slane %v1338, 4
        %v1375 = vmin.f32 %v1338, %v1374
        %v1376 = vrot.slane %v1375, 2
        %v1377 = vmin.f32 %v1375, %v1376
        %v1378 = vrot.slane %v1377, 1
        %v1379 = vmin.f32 %v1377, %v1378
        %v1380 = vrot.slane %v1339, 4
        %v1381 = vmin.f32 %v1339, %v1380
        %v1382 = vrot.slane %v1381, 2
        %v1383 = vmin.f32 %v1381, %v1382
        %v1384 = vrot.slane %v1383, 1
        %v1385 = vmin.f32 %v1383, %v1384
        %v1386 = vrot.slane %v1340, 4
        %v1387 = vmin.f32 %v1340, %v1386
        %v1388 = vrot.slane %v1387, 2
        %v1389 = vmin.f32 %v1387, %v1388
        %v1390 = vrot.slane %v1389, 1
        %v1391 = vmin.f32 %v1389, %v1390
        %v1392 = vrot.slane %v1341, 4
        %v1393 = vmin.f32 %v1341, %v1392
        %v1394 = vrot.slane %v1393, 2
        %v1395 = vmin.f32 %v1393, %v1394
        %v1396 = vrot.slane %v1395, 1
        %v1397 = vmin.f32 %v1395, %v1396
        %v1398 = vrot.slane %v1342, 4
        %v1399 = vmin.f32 %v1342, %v1398
        %v1400 = vrot.slane %v1399, 2
        %v1401 = vmin.f32 %v1399, %v1400
        %v1402 = vrot.slane %v1401, 1
        %v1403 = vmin.f32 %v1401, %v1402
        %v1404 = vrot.slane %v1343, 4
        %v1405 = vmin.f32 %v1343, %v1404
        %v1406 = vrot.slane %v1405, 2
        %v1407 = vmin.f32 %v1405, %v1406
        %v1408 = vrot.slane %v1407, 1
        %v1409 = vmin.f32 %v1407, %v1408
        %v1410 = vrot.slane %v1344, 4
        %v1411 = vmin.f32 %v1344, %v1410
        %v1412 = vrot.slane %v1411, 2
        %v1413 = vmin.f32 %v1411, %v1412
        %v1414 = vrot.slane %v1413, 1
        %v1415 = vmin.f32 %v1413, %v1414
        %v1416 = vrot.slane %v1345, 4
        %v1417 = vmin.f32 %v1345, %v1416
        %v1418 = vrot.slane %v1417, 2
        %v1419 = vmin.f32 %v1417, %v1418
        %v1420 = vrot.slane %v1419, 1
        %v1421 = vmin.f32 %v1419, %v1420
        %v1422 = vrot.slane %v1346, 4
        %v1423 = vmin.f32 %v1346, %v1422
        %v1424 = vrot.slane %v1423, 2
        %v1425 = vmin.f32 %v1423, %v1424
        %v1426 = vrot.slane %v1425, 1
        %v1427 = vmin.f32 %v1425, %v1426
        %v1428 = vrot.slane %v1347, 4
        %v1429 = vmin.f32 %v1347, %v1428
        %v1430 = vrot.slane %v1429, 2
        %v1431 = vmin.f32 %v1429, %v1430
        %v1432 = vrot.slane %v1431, 1
        %v1433 = vmin.f32 %v1431, %v1432
        %v1434 = vrot.slane %v1348, 4
        %v1435 = vmin.f32 %v1348, %v1434
        %v1436 = vrot.slane %v1435, 2
        %v1437 = vmin.f32 %v1435, %v1436
        %v1438 = vrot.slane %v1437, 1
        %v1439 = vmin.f32 %v1437, %v1438
        %v1440 = vrot.slane %v1349, 4
        %v1441 = vmin.f32 %v1349, %v1440
        %v1442 = vrot.slane %v1441, 2
        %v1443 = vmin.f32 %v1441, %v1442
        %v1444 = vrot.slane %v1443, 1
        %v1445 = vmin.f32 %v1443, %v1444
        %v1462 = vsel %vm657, %v1361, %v1355
        %v1463 = vsel %vm659, %v1367, %v1462
        %v1464 = vsel %vm661, %v1373, %v1463
        %v1465 = vsel %vm663, %v1379, %v1464
        %v1466 = vsel %vm665, %v1385, %v1465
        %v1467 = vsel %vm667, %v1391, %v1466
        %v1468 = vsel %vm669, %v1397, %v1467
        %v1469 = vsel %vm657, %v1409, %v1403
        %v1470 = vsel %vm659, %v1415, %v1469
        %v1471 = vsel %vm661, %v1421, %v1470
        %v1472 = vsel %vm663, %v1427, %v1471
        %v1473 = vsel %vm665, %v1433, %v1472
        %v1474 = vsel %vm667, %v1439, %v1473
        %v1475 = vsel %vm669, %v1445, %v1474
        %v1478 = vmin.f32 %v1252, %v1468
        %v1479 = vmin.f32 %v1253, %v1475
        %1480 = vst [vmem:[#allocation3] sm:$0xff] %v1478
        %1481 = vst [vmem:[#allocation3 + $0x8] sm:$0xff] %v1479
        %v1482 = vld [vmem:[#allocation4] sm:$0xff]
        %v1483 = vld [vmem:[#allocation4 + $0x8] sm:$0xff]
        %v1484 = vsel %vm1318, %v1251, -3e+38
        %v1485 = vsel %vm1319, %v1251, -3e+38
        %v1486 = vsel %vm1320, %v1251, -3e+38
        %v1487 = vsel %vm1321, %v1251, -3e+38
        %v1488 = vsel %vm1322, %v1251, -3e+38
        %v1489 = vsel %vm1323, %v1251, -3e+38
        %v1490 = vsel %vm1324, %v1251, -3e+38
        %v1491 = vsel %vm1325, %v1251, -3e+38
        %v1492 = vsel %vm1326, %v1251, -3e+38
        %v1493 = vsel %vm1327, %v1251, -3e+38
        %v1494 = vsel %vm1328, %v1251, -3e+38
        %v1495 = vsel %vm1329, %v1251, -3e+38
        %v1496 = vsel %vm1330, %v1251, -3e+38
        %v1497 = vsel %vm1331, %v1251, -3e+38
        %v1498 = vsel %vm1332, %v1251, -3e+38
        %v1499 = vsel %vm1333, %v1251, -3e+38
        %v1500 = vrot.slane %v1484, 4
        %v1501 = vmax.f32 %v1484, %v1500
        %v1502 = vrot.slane %v1501, 2
        %v1503 = vmax.f32 %v1501, %v1502
        %v1504 = vrot.slane %v1503, 1
        %v1505 = vmax.f32 %v1503, %v1504
        %v1506 = vrot.slane %v1485, 4
        %v1507 = vmax.f32 %v1485, %v1506
        %v1508 = vrot.slane %v1507, 2
        %v1509 = vmax.f32 %v1507, %v1508
        %v1510 = vrot.slane %v1509, 1
        %v1511 = vmax.f32 %v1509, %v1510
        %v1512 = vrot.slane %v1486, 4
        %v1513 = vmax.f32 %v1486, %v1512
        %v1514 = vrot.slane %v1513, 2
        %v1515 = vmax.f32 %v1513, %v1514
        %v1516 = vrot.slane %v1515, 1
        %v1517 = vmax.f32 %v1515, %v1516
        %v1518 = vrot.slane %v1487, 4
        %v1519 = vmax.f32 %v1487, %v1518
        %v1520 = vrot.slane %v1519, 2
        %v1521 = vmax.f32 %v1519, %v1520
        %v1522 = vrot.slane %v1521, 1
        %v1523 = vmax.f32 %v1521, %v1522
        %v1524 = vrot.slane %v1488, 4
        %v1525 = vmax.f32 %v1488, %v1524
        %v1526 = vrot.slane %v1525, 2
        %v1527 = vmax.f32 %v1525, %v1526
        %v1528 = vrot.slane %v1527, 1
        %v1529 = vmax.f32 %v1527, %v1528
        %v1530 = vrot.slane %v1489, 4
        %v1531 = vmax.f32 %v1489, %v1530
        %v1532 = vrot.slane %v1531, 2
        %v1533 = vmax.f32 %v1531, %v1532
        %v1534 = vrot.slane %v1533, 1
        %v1535 = vmax.f32 %v1533, %v1534
        %v1536 = vrot.slane %v1490, 4
        %v1537 = vmax.f32 %v1490, %v1536
        %v1538 = vrot.slane %v1537, 2
        %v1539 = vmax.f32 %v1537, %v1538
        %v1540 = vrot.slane %v1539, 1
        %v1541 = vmax.f32 %v1539, %v1540
        %v1542 = vrot.slane %v1491, 4
        %v1543 = vmax.f32 %v1491, %v1542
        %v1544 = vrot.slane %v1543, 2
        %v1545 = vmax.f32 %v1543, %v1544
        %v1546 = vrot.slane %v1545, 1
        %v1547 = vmax.f32 %v1545, %v1546
        %v1548 = vrot.slane %v1492, 4
        %v1549 = vmax.f32 %v1492, %v1548
        %v1550 = vrot.slane %v1549, 2
        %v1551 = vmax.f32 %v1549, %v1550
        %v1552 = vrot.slane %v1551, 1
        %v1553 = vmax.f32 %v1551, %v1552
        %v1554 = vrot.slane %v1493, 4
        %v1555 = vmax.f32 %v1493, %v1554
        %v1556 = vrot.slane %v1555, 2
        %v1557 = vmax.f32 %v1555, %v1556
        %v1558 = vrot.slane %v1557, 1
        %v1559 = vmax.f32 %v1557, %v1558
        %v1560 = vrot.slane %v1494, 4
        %v1561 = vmax.f32 %v1494, %v1560
        %v1562 = vrot.slane %v1561, 2
        %v1563 = vmax.f32 %v1561, %v1562
        %v1564 = vrot.slane %v1563, 1
        %v1565 = vmax.f32 %v1563, %v1564
        %v1566 = vrot.slane %v1495, 4
        %v1567 = vmax.f32 %v1495, %v1566
        %v1568 = vrot.slane %v1567, 2
        %v1569 = vmax.f32 %v1567, %v1568
        %v1570 = vrot.slane %v1569, 1
        %v1571 = vmax.f32 %v1569, %v1570
        %v1572 = vrot.slane %v1496, 4
        %v1573 = vmax.f32 %v1496, %v1572
        %v1574 = vrot.slane %v1573, 2
        %v1575 = vmax.f32 %v1573, %v1574
        %v1576 = vrot.slane %v1575, 1
        %v1577 = vmax.f32 %v1575, %v1576
        %v1578 = vrot.slane %v1497, 4
        %v1579 = vmax.f32 %v1497, %v1578
        %v1580 = vrot.slane %v1579, 2
        %v1581 = vmax.f32 %v1579, %v1580
        %v1582 = vrot.slane %v1581, 1
        %v1583 = vmax.f32 %v1581, %v1582
        %v1584 = vrot.slane %v1498, 4
        %v1585 = vmax.f32 %v1498, %v1584
        %v1586 = vrot.slane %v1585, 2
        %v1587 = vmax.f32 %v1585, %v1586
        %v1588 = vrot.slane %v1587, 1
        %v1589 = vmax.f32 %v1587, %v1588
        %v1590 = vrot.slane %v1499, 4
        %v1591 = vmax.f32 %v1499, %v1590
        %v1592 = vrot.slane %v1591, 2
        %v1593 = vmax.f32 %v1591, %v1592
        %v1594 = vrot.slane %v1593, 1
        %v1595 = vmax.f32 %v1593, %v1594
        %v1612 = vsel %vm657, %v1511, %v1505
        %v1613 = vsel %vm659, %v1517, %v1612
        %v1614 = vsel %vm661, %v1523, %v1613
        %v1615 = vsel %vm663, %v1529, %v1614
        %v1616 = vsel %vm665, %v1535, %v1615
        %v1617 = vsel %vm667, %v1541, %v1616
        %v1618 = vsel %vm669, %v1547, %v1617
        %v1619 = vsel %vm657, %v1559, %v1553
        %v1620 = vsel %vm659, %v1565, %v1619
        %v1621 = vsel %vm661, %v1571, %v1620
        %v1622 = vsel %vm663, %v1577, %v1621
        %v1623 = vsel %vm665, %v1583, %v1622
        %v1624 = vsel %vm667, %v1589, %v1623
        %v1625 = vsel %vm669, %v1595, %v1624
        %v1628 = vmax.f32 %v1482, %v1618
        %v1629 = vmax.f32 %v1483, %v1625
        %1630 = vst [vmem:[#allocation4] sm:$0xff] %v1628
        %1631 = vst [vmem:[#allocation4 + $0x8] sm:$0xff] %v1629
        %v1632 = vld [vmem:[%s280 + $0x18] sm:$0xff]
        %vm1633 = vcmp.eq.s32.totalorder %v306, %v1632
        %vm1634 = vcmp.eq.s32.totalorder %v413, %v1632
        %vm1635 = vcmp.eq.s32.totalorder %v414, %v1632
        %vm1636 = vcmp.eq.s32.totalorder %v415, %v1632
        %vm1637 = vcmp.eq.s32.totalorder %v416, %v1632
        %vm1638 = vcmp.eq.s32.totalorder %v417, %v1632
        %vm1639 = vcmp.eq.s32.totalorder %v418, %v1632
        %vm1640 = vcmp.eq.s32.totalorder %v419, %v1632
        %vm1641 = vcmp.eq.s32.totalorder %v420, %v1632
        %vm1642 = vcmp.eq.s32.totalorder %v421, %v1632
        %vm1643 = vcmp.eq.s32.totalorder %v422, %v1632
        %vm1644 = vcmp.eq.s32.totalorder %v423, %v1632
        %vm1645 = vcmp.eq.s32.totalorder %v424, %v1632
        %vm1646 = vcmp.eq.s32.totalorder %v425, %v1632
        %vm1647 = vcmp.eq.s32.totalorder %v426, %v1632
        %vm1648 = vcmp.eq.s32.totalorder %v427, %v1632
        %v1649 = vld [vmem:[%s286 + $0xc] sm:$0xf]
        %v1650 = vunpack.c.l.bf16 %v1649
        %v1651 = vld [vmem:[#allocation3] sm:$0xff]
        %v1652 = vld [vmem:[#allocation3 + $0x8] sm:$0xff]
        %v1653 = vsel %vm1633, 1, 0
        %v1654 = vsel %vm1634, 1, 0
        %v1655 = vsel %vm1635, 1, 0
        %v1656 = vsel %vm1636, 1, 0
        %v1657 = vsel %vm1637, 1, 0
        %v1658 = vsel %vm1638, 1, 0
        %v1659 = vsel %vm1639, 1, 0
        %v1660 = vsel %vm1640, 1, 0
        %v1661 = vsel %vm1641, 1, 0
        %v1662 = vsel %vm1642, 1, 0
        %v1663 = vsel %vm1643, 1, 0
        %v1664 = vsel %vm1644, 1, 0
        %v1665 = vsel %vm1645, 1, 0
        %v1666 = vsel %vm1646, 1, 0
        %v1667 = vsel %vm1647, 1, 0
        %v1668 = vsel %vm1648, 1, 0
        %1669 = vset.pattern.permute.xlu0 0
        %1670 = vperm.xlu0 %1669, %v1653
        %v1671 = vpop.permute.xlu0 %1670
        %1672 = vset.pattern.permute.xlu0 0
        %1673 = vperm.xlu0 %1672, %v1654
        %v1674 = vpop.permute.xlu0 %1673
        %1675 = vset.pattern.permute.xlu0 0
        %1676 = vperm.xlu0 %1675, %v1655
        %v1677 = vpop.permute.xlu0 %1676
        %1678 = vset.pattern.permute.xlu0 0
        %1679 = vperm.xlu0 %1678, %v1656
        %v1680 = vpop.permute.xlu0 %1679
        %1681 = vset.pattern.permute.xlu0 0
        %1682 = vperm.xlu0 %1681, %v1657
        %v1683 = vpop.permute.xlu0 %1682
        %1684 = vset.pattern.permute.xlu0 0
        %1685 = vperm.xlu0 %1684, %v1658
        %v1686 = vpop.permute.xlu0 %1685
        %1687 = vset.pattern.permute.xlu0 0
        %1688 = vperm.xlu0 %1687, %v1659
        %v1689 = vpop.permute.xlu0 %1688
        %1690 = vset.pattern.permute.xlu0 0
        %1691 = vperm.xlu0 %1690, %v1660
        %v1692 = vpop.permute.xlu0 %1691
        %1693 = vset.pattern.permute.xlu0 0
        %1694 = vperm.xlu0 %1693, %v1661
        %v1695 = vpop.permute.xlu0 %1694
        %1696 = vset.pattern.permute.xlu0 0
        %1697 = vperm.xlu0 %1696, %v1662
        %v1698 = vpop.permute.xlu0 %1697
        %1699 = vset.pattern.permute.xlu0 0
        %1700 = vperm.xlu0 %1699, %v1663
        %v1701 = vpop.permute.xlu0 %1700
        %1702 = vset.pattern.permute.xlu0 0
        %1703 = vperm.xlu0 %1702, %v1664
        %v1704 = vpop.permute.xlu0 %1703
        %1705 = vset.pattern.permute.xlu0 0
        %1706 = vperm.xlu0 %1705, %v1665
        %v1707 = vpop.permute.xlu0 %1706
        %1708 = vset.pattern.permute.xlu0 0
        %1709 = vperm.xlu0 %1708, %v1666
        %v1710 = vpop.permute.xlu0 %1709
        %1711 = vset.pattern.permute.xlu0 0
        %1712 = vperm.xlu0 %1711, %v1667
        %v1713 = vpop.permute.xlu0 %1712
        %1714 = vset.pattern.permute.xlu0 0
        %1715 = vperm.xlu0 %1714, %v1668
        %v1716 = vpop.permute.xlu0 %1715
        %vm1717 = vcmp.eq.s32.totalorder %v1671, 1
        %vm1718 = vcmp.eq.s32.totalorder %v1674, 1
        %vm1719 = vcmp.eq.s32.totalorder %v1677, 1
        %vm1720 = vcmp.eq.s32.totalorder %v1680, 1
        %vm1721 = vcmp.eq.s32.totalorder %v1683, 1
        %vm1722 = vcmp.eq.s32.totalorder %v1686, 1
        %vm1723 = vcmp.eq.s32.totalorder %v1689, 1
        %vm1724 = vcmp.eq.s32.totalorder %v1692, 1
        %vm1725 = vcmp.eq.s32.totalorder %v1695, 1
        %vm1726 = vcmp.eq.s32.totalorder %v1698, 1
        %vm1727 = vcmp.eq.s32.totalorder %v1701, 1
        %vm1728 = vcmp.eq.s32.totalorder %v1704, 1
        %vm1729 = vcmp.eq.s32.totalorder %v1707, 1
        %vm1730 = vcmp.eq.s32.totalorder %v1710, 1
        %vm1731 = vcmp.eq.s32.totalorder %v1713, 1
        %vm1732 = vcmp.eq.s32.totalorder %v1716, 1
        %v1733 = vsel %vm1717, %v1650, 3e+38
        %v1734 = vsel %vm1718, %v1650, 3e+38
        %v1735 = vsel %vm1719, %v1650, 3e+38
        %v1736 = vsel %vm1720, %v1650, 3e+38
        %v1737 = vsel %vm1721, %v1650, 3e+38
        %v1738 = vsel %vm1722, %v1650, 3e+38
        %v1739 = vsel %vm1723, %v1650, 3e+38
        %v1740 = vsel %vm1724, %v1650, 3e+38
        %v1741 = vsel %vm1725, %v1650, 3e+38
        %v1742 = vsel %vm1726, %v1650, 3e+38
        %v1743 = vsel %vm1727, %v1650, 3e+38
        %v1744 = vsel %vm1728, %v1650, 3e+38
        %v1745 = vsel %vm1729, %v1650, 3e+38
        %v1746 = vsel %vm1730, %v1650, 3e+38
        %v1747 = vsel %vm1731, %v1650, 3e+38
        %v1748 = vsel %vm1732, %v1650, 3e+38
        %v1749 = vrot.slane %v1733, 4
        %v1750 = vmin.f32 %v1733, %v1749
        %v1751 = vrot.slane %v1750, 2
        %v1752 = vmin.f32 %v1750, %v1751
        %v1753 = vrot.slane %v1752, 1
        %v1754 = vmin.f32 %v1752, %v1753
        %v1755 = vrot.slane %v1734, 4
        %v1756 = vmin.f32 %v1734, %v1755
        %v1757 = vrot.slane %v1756, 2
        %v1758 = vmin.f32 %v1756, %v1757
        %v1759 = vrot.slane %v1758, 1
        %v1760 = vmin.f32 %v1758, %v1759
        %v1761 = vrot.slane %v1735, 4
        %v1762 = vmin.f32 %v1735, %v1761
        %v1763 = vrot.slane %v1762, 2
        %v1764 = vmin.f32 %v1762, %v1763
        %v1765 = vrot.slane %v1764, 1
        %v1766 = vmin.f32 %v1764, %v1765
        %v1767 = vrot.slane %v1736, 4
        %v1768 = vmin.f32 %v1736, %v1767
        %v1769 = vrot.slane %v1768, 2
        %v1770 = vmin.f32 %v1768, %v1769
        %v1771 = vrot.slane %v1770, 1
        %v1772 = vmin.f32 %v1770, %v1771
        %v1773 = vrot.slane %v1737, 4
        %v1774 = vmin.f32 %v1737, %v1773
        %v1775 = vrot.slane %v1774, 2
        %v1776 = vmin.f32 %v1774, %v1775
        %v1777 = vrot.slane %v1776, 1
        %v1778 = vmin.f32 %v1776, %v1777
        %v1779 = vrot.slane %v1738, 4
        %v1780 = vmin.f32 %v1738, %v1779
        %v1781 = vrot.slane %v1780, 2
        %v1782 = vmin.f32 %v1780, %v1781
        %v1783 = vrot.slane %v1782, 1
        %v1784 = vmin.f32 %v1782, %v1783
        %v1785 = vrot.slane %v1739, 4
        %v1786 = vmin.f32 %v1739, %v1785
        %v1787 = vrot.slane %v1786, 2
        %v1788 = vmin.f32 %v1786, %v1787
        %v1789 = vrot.slane %v1788, 1
        %v1790 = vmin.f32 %v1788, %v1789
        %v1791 = vrot.slane %v1740, 4
        %v1792 = vmin.f32 %v1740, %v1791
        %v1793 = vrot.slane %v1792, 2
        %v1794 = vmin.f32 %v1792, %v1793
        %v1795 = vrot.slane %v1794, 1
        %v1796 = vmin.f32 %v1794, %v1795
        %v1797 = vrot.slane %v1741, 4
        %v1798 = vmin.f32 %v1741, %v1797
        %v1799 = vrot.slane %v1798, 2
        %v1800 = vmin.f32 %v1798, %v1799
        %v1801 = vrot.slane %v1800, 1
        %v1802 = vmin.f32 %v1800, %v1801
        %v1803 = vrot.slane %v1742, 4
        %v1804 = vmin.f32 %v1742, %v1803
        %v1805 = vrot.slane %v1804, 2
        %v1806 = vmin.f32 %v1804, %v1805
        %v1807 = vrot.slane %v1806, 1
        %v1808 = vmin.f32 %v1806, %v1807
        %v1809 = vrot.slane %v1743, 4
        %v1810 = vmin.f32 %v1743, %v1809
        %v1811 = vrot.slane %v1810, 2
        %v1812 = vmin.f32 %v1810, %v1811
        %v1813 = vrot.slane %v1812, 1
        %v1814 = vmin.f32 %v1812, %v1813
        %v1815 = vrot.slane %v1744, 4
        %v1816 = vmin.f32 %v1744, %v1815
        %v1817 = vrot.slane %v1816, 2
        %v1818 = vmin.f32 %v1816, %v1817
        %v1819 = vrot.slane %v1818, 1
        %v1820 = vmin.f32 %v1818, %v1819
        %v1821 = vrot.slane %v1745, 4
        %v1822 = vmin.f32 %v1745, %v1821
        %v1823 = vrot.slane %v1822, 2
        %v1824 = vmin.f32 %v1822, %v1823
        %v1825 = vrot.slane %v1824, 1
        %v1826 = vmin.f32 %v1824, %v1825
        %v1827 = vrot.slane %v1746, 4
        %v1828 = vmin.f32 %v1746, %v1827
        %v1829 = vrot.slane %v1828, 2
        %v1830 = vmin.f32 %v1828, %v1829
        %v1831 = vrot.slane %v1830, 1
        %v1832 = vmin.f32 %v1830, %v1831
        %v1833 = vrot.slane %v1747, 4
        %v1834 = vmin.f32 %v1747, %v1833
        %v1835 = vrot.slane %v1834, 2
        %v1836 = vmin.f32 %v1834, %v1835
        %v1837 = vrot.slane %v1836, 1
        %v1838 = vmin.f32 %v1836, %v1837
        %v1839 = vrot.slane %v1748, 4
        %v1840 = vmin.f32 %v1748, %v1839
        %v1841 = vrot.slane %v1840, 2
        %v1842 = vmin.f32 %v1840, %v1841
        %v1843 = vrot.slane %v1842, 1
        %v1844 = vmin.f32 %v1842, %v1843
        %v1861 = vsel %vm657, %v1760, %v1754
        %v1862 = vsel %vm659, %v1766, %v1861
        %v1863 = vsel %vm661, %v1772, %v1862
        %v1864 = vsel %vm663, %v1778, %v1863
        %v1865 = vsel %vm665, %v1784, %v1864
        %v1866 = vsel %vm667, %v1790, %v1865
        %v1867 = vsel %vm669, %v1796, %v1866
        %v1868 = vsel %vm657, %v1808, %v1802
        %v1869 = vsel %vm659, %v1814, %v1868
        %v1870 = vsel %vm661, %v1820, %v1869
        %v1871 = vsel %vm663, %v1826, %v1870
        %v1872 = vsel %vm665, %v1832, %v1871
        %v1873 = vsel %vm667, %v1838, %v1872
        %v1874 = vsel %vm669, %v1844, %v1873
        %v1877 = vmin.f32 %v1651, %v1867
        %v1878 = vmin.f32 %v1652, %v1874
        %1879 = vst [vmem:[#allocation3] sm:$0xff] %v1877
        %1880 = vst [vmem:[#allocation3 + $0x8] sm:$0xff] %v1878
        %v1881 = vld [vmem:[#allocation4] sm:$0xff]
        %v1882 = vld [vmem:[#allocation4 + $0x8] sm:$0xff]
        %v1883 = vsel %vm1717, %v1650, -3e+38
        %v1884 = vsel %vm1718, %v1650, -3e+38
        %v1885 = vsel %vm1719, %v1650, -3e+38
        %v1886 = vsel %vm1720, %v1650, -3e+38
        %v1887 = vsel %vm1721, %v1650, -3e+38
        %v1888 = vsel %vm1722, %v1650, -3e+38
        %v1889 = vsel %vm1723, %v1650, -3e+38
        %v1890 = vsel %vm1724, %v1650, -3e+38
        %v1891 = vsel %vm1725, %v1650, -3e+38
        %v1892 = vsel %vm1726, %v1650, -3e+38
        %v1893 = vsel %vm1727, %v1650, -3e+38
        %v1894 = vsel %vm1728, %v1650, -3e+38
        %v1895 = vsel %vm1729, %v1650, -3e+38
        %v1896 = vsel %vm1730, %v1650, -3e+38
        %v1897 = vsel %vm1731, %v1650, -3e+38
        %v1898 = vsel %vm1732, %v1650, -3e+38
        %v1899 = vrot.slane %v1883, 4
        %v1900 = vmax.f32 %v1883, %v1899
        %v1901 = vrot.slane %v1900, 2
        %v1902 = vmax.f32 %v1900, %v1901
        %v1903 = vrot.slane %v1902, 1
        %v1904 = vmax.f32 %v1902, %v1903
        %v1905 = vrot.slane %v1884, 4
        %v1906 = vmax.f32 %v1884, %v1905
        %v1907 = vrot.slane %v1906, 2
        %v1908 = vmax.f32 %v1906, %v1907
        %v1909 = vrot.slane %v1908, 1
        %v1910 = vmax.f32 %v1908, %v1909
        %v1911 = vrot.slane %v1885, 4
        %v1912 = vmax.f32 %v1885, %v1911
        %v1913 = vrot.slane %v1912, 2
        %v1914 = vmax.f32 %v1912, %v1913
        %v1915 = vrot.slane %v1914, 1
        %v1916 = vmax.f32 %v1914, %v1915
        %v1917 = vrot.slane %v1886, 4
        %v1918 = vmax.f32 %v1886, %v1917
        %v1919 = vrot.slane %v1918, 2
        %v1920 = vmax.f32 %v1918, %v1919
        %v1921 = vrot.slane %v1920, 1
        %v1922 = vmax.f32 %v1920, %v1921
        %v1923 = vrot.slane %v1887, 4
        %v1924 = vmax.f32 %v1887, %v1923
        %v1925 = vrot.slane %v1924, 2
        %v1926 = vmax.f32 %v1924, %v1925
        %v1927 = vrot.slane %v1926, 1
        %v1928 = vmax.f32 %v1926, %v1927
        %v1929 = vrot.slane %v1888, 4
        %v1930 = vmax.f32 %v1888, %v1929
        %v1931 = vrot.slane %v1930, 2
        %v1932 = vmax.f32 %v1930, %v1931
        %v1933 = vrot.slane %v1932, 1
        %v1934 = vmax.f32 %v1932, %v1933
        %v1935 = vrot.slane %v1889, 4
        %v1936 = vmax.f32 %v1889, %v1935
        %v1937 = vrot.slane %v1936, 2
        %v1938 = vmax.f32 %v1936, %v1937
        %v1939 = vrot.slane %v1938, 1
        %v1940 = vmax.f32 %v1938, %v1939
        %v1941 = vrot.slane %v1890, 4
        %v1942 = vmax.f32 %v1890, %v1941
        %v1943 = vrot.slane %v1942, 2
        %v1944 = vmax.f32 %v1942, %v1943
        %v1945 = vrot.slane %v1944, 1
        %v1946 = vmax.f32 %v1944, %v1945
        %v1947 = vrot.slane %v1891, 4
        %v1948 = vmax.f32 %v1891, %v1947
        %v1949 = vrot.slane %v1948, 2
        %v1950 = vmax.f32 %v1948, %v1949
        %v1951 = vrot.slane %v1950, 1
        %v1952 = vmax.f32 %v1950, %v1951
        %v1953 = vrot.slane %v1892, 4
        %v1954 = vmax.f32 %v1892, %v1953
        %v1955 = vrot.slane %v1954, 2
        %v1956 = vmax.f32 %v1954, %v1955
        %v1957 = vrot.slane %v1956, 1
        %v1958 = vmax.f32 %v1956, %v1957
        %v1959 = vrot.slane %v1893, 4
        %v1960 = vmax.f32 %v1893, %v1959
        %v1961 = vrot.slane %v1960, 2
        %v1962 = vmax.f32 %v1960, %v1961
        %v1963 = vrot.slane %v1962, 1
        %v1964 = vmax.f32 %v1962, %v1963
        %v1965 = vrot.slane %v1894, 4
        %v1966 = vmax.f32 %v1894, %v1965
        %v1967 = vrot.slane %v1966, 2
        %v1968 = vmax.f32 %v1966, %v1967
        %v1969 = vrot.slane %v1968, 1
        %v1970 = vmax.f32 %v1968, %v1969
        %v1971 = vrot.slane %v1895, 4
        %v1972 = vmax.f32 %v1895, %v1971
        %v1973 = vrot.slane %v1972, 2
        %v1974 = vmax.f32 %v1972, %v1973
        %v1975 = vrot.slane %v1974, 1
        %v1976 = vmax.f32 %v1974, %v1975
        %v1977 = vrot.slane %v1896, 4
        %v1978 = vmax.f32 %v1896, %v1977
        %v1979 = vrot.slane %v1978, 2
        %v1980 = vmax.f32 %v1978, %v1979
        %v1981 = vrot.slane %v1980, 1
        %v1982 = vmax.f32 %v1980, %v1981
        %v1983 = vrot.slane %v1897, 4
        %v1984 = vmax.f32 %v1897, %v1983
        %v1985 = vrot.slane %v1984, 2
        %v1986 = vmax.f32 %v1984, %v1985
        %v1987 = vrot.slane %v1986, 1
        %v1988 = vmax.f32 %v1986, %v1987
        %v1989 = vrot.slane %v1898, 4
        %v1990 = vmax.f32 %v1898, %v1989
        %v1991 = vrot.slane %v1990, 2
        %v1992 = vmax.f32 %v1990, %v1991
        %v1993 = vrot.slane %v1992, 1
        %v1994 = vmax.f32 %v1992, %v1993
        %v2011 = vsel %vm657, %v1910, %v1904
        %v2012 = vsel %vm659, %v1916, %v2011
        %v2013 = vsel %vm661, %v1922, %v2012
        %v2014 = vsel %vm663, %v1928, %v2013
        %v2015 = vsel %vm665, %v1934, %v2014
        %v2016 = vsel %vm667, %v1940, %v2015
        %v2017 = vsel %vm669, %v1946, %v2016
        %v2018 = vsel %vm657, %v1958, %v1952
        %v2019 = vsel %vm659, %v1964, %v2018
        %v2020 = vsel %vm661, %v1970, %v2019
        %v2021 = vsel %vm663, %v1976, %v2020
        %v2022 = vsel %vm665, %v1982, %v2021
        %v2023 = vsel %vm667, %v1988, %v2022
        %v2024 = vsel %vm669, %v1994, %v2023
        %v2027 = vmax.f32 %v1881, %v2017
        %v2028 = vmax.f32 %v1882, %v2024
        %2029 = vst [vmem:[#allocation4] sm:$0xff] %v2027
        %2030 = vst [vmem:[#allocation4 + $0x8] sm:$0xff] %v2028
        %v2031 = vld [vmem:[%s280 + $0x20] sm:$0xff]
        %vm2032 = vcmp.eq.s32.totalorder %v306, %v2031
        %vm2033 = vcmp.eq.s32.totalorder %v413, %v2031
        %vm2034 = vcmp.eq.s32.totalorder %v414, %v2031
        %vm2035 = vcmp.eq.s32.totalorder %v415, %v2031
        %vm2036 = vcmp.eq.s32.totalorder %v416, %v2031
        %vm2037 = vcmp.eq.s32.totalorder %v417, %v2031
        %vm2038 = vcmp.eq.s32.totalorder %v418, %v2031
        %vm2039 = vcmp.eq.s32.totalorder %v419, %v2031
        %vm2040 = vcmp.eq.s32.totalorder %v420, %v2031
        %vm2041 = vcmp.eq.s32.totalorder %v421, %v2031
        %vm2042 = vcmp.eq.s32.totalorder %v422, %v2031
        %vm2043 = vcmp.eq.s32.totalorder %v423, %v2031
        %vm2044 = vcmp.eq.s32.totalorder %v424, %v2031
        %vm2045 = vcmp.eq.s32.totalorder %v425, %v2031
        %vm2046 = vcmp.eq.s32.totalorder %v426, %v2031
        %vm2047 = vcmp.eq.s32.totalorder %v427, %v2031
        %v2048 = vld [vmem:[%s286 + $0x10] sm:$0xf]
        %v2049 = vunpack.c.l.bf16 %v2048
        %v2050 = vld [vmem:[#allocation3] sm:$0xff]
        %v2051 = vld [vmem:[#allocation3 + $0x8] sm:$0xff]
        %v2052 = vsel %vm2032, 1, 0
        %v2053 = vsel %vm2033, 1, 0
        %v2054 = vsel %vm2034, 1, 0
        %v2055 = vsel %vm2035, 1, 0
        %v2056 = vsel %vm2036, 1, 0
        %v2057 = vsel %vm2037, 1, 0
        %v2058 = vsel %vm2038, 1, 0
        %v2059 = vsel %vm2039, 1, 0
        %v2060 = vsel %vm2040, 1, 0
        %v2061 = vsel %vm2041, 1, 0
        %v2062 = vsel %vm2042, 1, 0
        %v2063 = vsel %vm2043, 1, 0
        %v2064 = vsel %vm2044, 1, 0
        %v2065 = vsel %vm2045, 1, 0
        %v2066 = vsel %vm2046, 1, 0
        %v2067 = vsel %vm2047, 1, 0
        %2068 = vset.pattern.permute.xlu0 0
        %2069 = vperm.xlu0 %2068, %v2052
        %v2070 = vpop.permute.xlu0 %2069
        %2071 = vset.pattern.permute.xlu0 0
        %2072 = vperm.xlu0 %2071, %v2053
        %v2073 = vpop.permute.xlu0 %2072
        %2074 = vset.pattern.permute.xlu0 0
        %2075 = vperm.xlu0 %2074, %v2054
        %v2076 = vpop.permute.xlu0 %2075
        %2077 = vset.pattern.permute.xlu0 0
        %2078 = vperm.xlu0 %2077, %v2055
        %v2079 = vpop.permute.xlu0 %2078
        %2080 = vset.pattern.permute.xlu0 0
        %2081 = vperm.xlu0 %2080, %v2056
        %v2082 = vpop.permute.xlu0 %2081
        %2083 = vset.pattern.permute.xlu0 0
        %2084 = vperm.xlu0 %2083, %v2057
        %v2085 = vpop.permute.xlu0 %2084
        %2086 = vset.pattern.permute.xlu0 0
        %2087 = vperm.xlu0 %2086, %v2058
        %v2088 = vpop.permute.xlu0 %2087
        %2089 = vset.pattern.permute.xlu0 0
        %2090 = vperm.xlu0 %2089, %v2059
        %v2091 = vpop.permute.xlu0 %2090
        %2092 = vset.pattern.permute.xlu0 0
        %2093 = vperm.xlu0 %2092, %v2060
        %v2094 = vpop.permute.xlu0 %2093
        %2095 = vset.pattern.permute.xlu0 0
        %2096 = vperm.xlu0 %2095, %v2061
        %v2097 = vpop.permute.xlu0 %2096
        %2098 = vset.pattern.permute.xlu0 0
        %2099 = vperm.xlu0 %2098, %v2062
        %v2100 = vpop.permute.xlu0 %2099
        %2101 = vset.pattern.permute.xlu0 0
        %2102 = vperm.xlu0 %2101, %v2063
        %v2103 = vpop.permute.xlu0 %2102
        %2104 = vset.pattern.permute.xlu0 0
        %2105 = vperm.xlu0 %2104, %v2064
        %v2106 = vpop.permute.xlu0 %2105
        %2107 = vset.pattern.permute.xlu0 0
        %2108 = vperm.xlu0 %2107, %v2065
        %v2109 = vpop.permute.xlu0 %2108
        %2110 = vset.pattern.permute.xlu0 0
        %2111 = vperm.xlu0 %2110, %v2066
        %v2112 = vpop.permute.xlu0 %2111
        %2113 = vset.pattern.permute.xlu0 0
        %2114 = vperm.xlu0 %2113, %v2067
        %v2115 = vpop.permute.xlu0 %2114
        %vm2116 = vcmp.eq.s32.totalorder %v2070, 1
        %vm2117 = vcmp.eq.s32.totalorder %v2073, 1
        %vm2118 = vcmp.eq.s32.totalorder %v2076, 1
        %vm2119 = vcmp.eq.s32.totalorder %v2079, 1
        %vm2120 = vcmp.eq.s32.totalorder %v2082, 1
        %vm2121 = vcmp.eq.s32.totalorder %v2085, 1
        %vm2122 = vcmp.eq.s32.totalorder %v2088, 1
        %vm2123 = vcmp.eq.s32.totalorder %v2091, 1
        %vm2124 = vcmp.eq.s32.totalorder %v2094, 1
        %vm2125 = vcmp.eq.s32.totalorder %v2097, 1
        %vm2126 = vcmp.eq.s32.totalorder %v2100, 1
        %vm2127 = vcmp.eq.s32.totalorder %v2103, 1
        %vm2128 = vcmp.eq.s32.totalorder %v2106, 1
        %vm2129 = vcmp.eq.s32.totalorder %v2109, 1
        %vm2130 = vcmp.eq.s32.totalorder %v2112, 1
        %vm2131 = vcmp.eq.s32.totalorder %v2115, 1
        %v2132 = vsel %vm2116, %v2049, 3e+38
        %v2133 = vsel %vm2117, %v2049, 3e+38
        %v2134 = vsel %vm2118, %v2049, 3e+38
        %v2135 = vsel %vm2119, %v2049, 3e+38
        %v2136 = vsel %vm2120, %v2049, 3e+38
        %v2137 = vsel %vm2121, %v2049, 3e+38
        %v2138 = vsel %vm2122, %v2049, 3e+38
        %v2139 = vsel %vm2123, %v2049, 3e+38
        %v2140 = vsel %vm2124, %v2049, 3e+38
        %v2141 = vsel %vm2125, %v2049, 3e+38
        %v2142 = vsel %vm2126, %v2049, 3e+38
        %v2143 = vsel %vm2127, %v2049, 3e+38
        %v2144 = vsel %vm2128, %v2049, 3e+38
        %v2145 = vsel %vm2129, %v2049, 3e+38
        %v2146 = vsel %vm2130, %v2049, 3e+38
        %v2147 = vsel %vm2131, %v2049, 3e+38
        %v2148 = vrot.slane %v2132, 4
        %v2149 = vmin.f32 %v2132, %v2148
        %v2150 = vrot.slane %v2149, 2
        %v2151 = vmin.f32 %v2149, %v2150
        %v2152 = vrot.slane %v2151, 1
        %v2153 = vmin.f32 %v2151, %v2152
        %v2154 = vrot.slane %v2133, 4
        %v2155 = vmin.f32 %v2133, %v2154
        %v2156 = vrot.slane %v2155, 2
        %v2157 = vmin.f32 %v2155, %v2156
        %v2158 = vrot.slane %v2157, 1
        %v2159 = vmin.f32 %v2157, %v2158
        %v2160 = vrot.slane %v2134, 4
        %v2161 = vmin.f32 %v2134, %v2160
        %v2162 = vrot.slane %v2161, 2
        %v2163 = vmin.f32 %v2161, %v2162
        %v2164 = vrot.slane %v2163, 1
        %v2165 = vmin.f32 %v2163, %v2164
        %v2166 = vrot.slane %v2135, 4
        %v2167 = vmin.f32 %v2135, %v2166
        %v2168 = vrot.slane %v2167, 2
        %v2169 = vmin.f32 %v2167, %v2168
        %v2170 = vrot.slane %v2169, 1
        %v2171 = vmin.f32 %v2169, %v2170
        %v2172 = vrot.slane %v2136, 4
        %v2173 = vmin.f32 %v2136, %v2172
        %v2174 = vrot.slane %v2173, 2
        %v2175 = vmin.f32 %v2173, %v2174
        %v2176 = vrot.slane %v2175, 1
        %v2177 = vmin.f32 %v2175, %v2176
        %v2178 = vrot.slane %v2137, 4
        %v2179 = vmin.f32 %v2137, %v2178
        %v2180 = vrot.slane %v2179, 2
        %v2181 = vmin.f32 %v2179, %v2180
        %v2182 = vrot.slane %v2181, 1
        %v2183 = vmin.f32 %v2181, %v2182
        %v2184 = vrot.slane %v2138, 4
        %v2185 = vmin.f32 %v2138, %v2184
        %v2186 = vrot.slane %v2185, 2
        %v2187 = vmin.f32 %v2185, %v2186
        %v2188 = vrot.slane %v2187, 1
        %v2189 = vmin.f32 %v2187, %v2188
        %v2190 = vrot.slane %v2139, 4
        %v2191 = vmin.f32 %v2139, %v2190
        %v2192 = vrot.slane %v2191, 2
        %v2193 = vmin.f32 %v2191, %v2192
        %v2194 = vrot.slane %v2193, 1
        %v2195 = vmin.f32 %v2193, %v2194
        %v2196 = vrot.slane %v2140, 4
        %v2197 = vmin.f32 %v2140, %v2196
        %v2198 = vrot.slane %v2197, 2
        %v2199 = vmin.f32 %v2197, %v2198
        %v2200 = vrot.slane %v2199, 1
        %v2201 = vmin.f32 %v2199, %v2200
        %v2202 = vrot.slane %v2141, 4
        %v2203 = vmin.f32 %v2141, %v2202
        %v2204 = vrot.slane %v2203, 2
        %v2205 = vmin.f32 %v2203, %v2204
        %v2206 = vrot.slane %v2205, 1
        %v2207 = vmin.f32 %v2205, %v2206
        %v2208 = vrot.slane %v2142, 4
        %v2209 = vmin.f32 %v2142, %v2208
        %v2210 = vrot.slane %v2209, 2
        %v2211 = vmin.f32 %v2209, %v2210
        %v2212 = vrot.slane %v2211, 1
        %v2213 = vmin.f32 %v2211, %v2212
        %v2214 = vrot.slane %v2143, 4
        %v2215 = vmin.f32 %v2143, %v2214
        %v2216 = vrot.slane %v2215, 2
        %v2217 = vmin.f32 %v2215, %v2216
        %v2218 = vrot.slane %v2217, 1
        %v2219 = vmin.f32 %v2217, %v2218
        %v2220 = vrot.slane %v2144, 4
        %v2221 = vmin.f32 %v2144, %v2220
        %v2222 = vrot.slane %v2221, 2
        %v2223 = vmin.f32 %v2221, %v2222
        %v2224 = vrot.slane %v2223, 1
        %v2225 = vmin.f32 %v2223, %v2224
        %v2226 = vrot.slane %v2145, 4
        %v2227 = vmin.f32 %v2145, %v2226
        %v2228 = vrot.slane %v2227, 2
        %v2229 = vmin.f32 %v2227, %v2228
        %v2230 = vrot.slane %v2229, 1
        %v2231 = vmin.f32 %v2229, %v2230
        %v2232 = vrot.slane %v2146, 4
        %v2233 = vmin.f32 %v2146, %v2232
        %v2234 = vrot.slane %v2233, 2
        %v2235 = vmin.f32 %v2233, %v2234
        %v2236 = vrot.slane %v2235, 1
        %v2237 = vmin.f32 %v2235, %v2236
        %v2238 = vrot.slane %v2147, 4
        %v2239 = vmin.f32 %v2147, %v2238
        %v2240 = vrot.slane %v2239, 2
        %v2241 = vmin.f32 %v2239, %v2240
        %v2242 = vrot.slane %v2241, 1
        %v2243 = vmin.f32 %v2241, %v2242
        %v2260 = vsel %vm657, %v2159, %v2153
        %v2261 = vsel %vm659, %v2165, %v2260
        %v2262 = vsel %vm661, %v2171, %v2261
        %v2263 = vsel %vm663, %v2177, %v2262
        %v2264 = vsel %vm665, %v2183, %v2263
        %v2265 = vsel %vm667, %v2189, %v2264
        %v2266 = vsel %vm669, %v2195, %v2265
        %v2267 = vsel %vm657, %v2207, %v2201
        %v2268 = vsel %vm659, %v2213, %v2267
        %v2269 = vsel %vm661, %v2219, %v2268
        %v2270 = vsel %vm663, %v2225, %v2269
        %v2271 = vsel %vm665, %v2231, %v2270
        %v2272 = vsel %vm667, %v2237, %v2271
        %v2273 = vsel %vm669, %v2243, %v2272
        %v2276 = vmin.f32 %v2050, %v2266
        %v2277 = vmin.f32 %v2051, %v2273
        %2278 = vst [vmem:[#allocation3] sm:$0xff] %v2276
        %2279 = vst [vmem:[#allocation3 + $0x8] sm:$0xff] %v2277
        %v2280 = vld [vmem:[#allocation4] sm:$0xff]
        %v2281 = vld [vmem:[#allocation4 + $0x8] sm:$0xff]
        %v2282 = vsel %vm2116, %v2049, -3e+38
        %v2283 = vsel %vm2117, %v2049, -3e+38
        %v2284 = vsel %vm2118, %v2049, -3e+38
        %v2285 = vsel %vm2119, %v2049, -3e+38
        %v2286 = vsel %vm2120, %v2049, -3e+38
        %v2287 = vsel %vm2121, %v2049, -3e+38
        %v2288 = vsel %vm2122, %v2049, -3e+38
        %v2289 = vsel %vm2123, %v2049, -3e+38
        %v2290 = vsel %vm2124, %v2049, -3e+38
        %v2291 = vsel %vm2125, %v2049, -3e+38
        %v2292 = vsel %vm2126, %v2049, -3e+38
        %v2293 = vsel %vm2127, %v2049, -3e+38
        %v2294 = vsel %vm2128, %v2049, -3e+38
        %v2295 = vsel %vm2129, %v2049, -3e+38
        %v2296 = vsel %vm2130, %v2049, -3e+38
        %v2297 = vsel %vm2131, %v2049, -3e+38
        %v2298 = vrot.slane %v2282, 4
        %v2299 = vmax.f32 %v2282, %v2298
        %v2300 = vrot.slane %v2299, 2
        %v2301 = vmax.f32 %v2299, %v2300
        %v2302 = vrot.slane %v2301, 1
        %v2303 = vmax.f32 %v2301, %v2302
        %v2304 = vrot.slane %v2283, 4
        %v2305 = vmax.f32 %v2283, %v2304
        %v2306 = vrot.slane %v2305, 2
        %v2307 = vmax.f32 %v2305, %v2306
        %v2308 = vrot.slane %v2307, 1
        %v2309 = vmax.f32 %v2307, %v2308
        %v2310 = vrot.slane %v2284, 4
        %v2311 = vmax.f32 %v2284, %v2310
        %v2312 = vrot.slane %v2311, 2
        %v2313 = vmax.f32 %v2311, %v2312
        %v2314 = vrot.slane %v2313, 1
        %v2315 = vmax.f32 %v2313, %v2314
        %v2316 = vrot.slane %v2285, 4
        %v2317 = vmax.f32 %v2285, %v2316
        %v2318 = vrot.slane %v2317, 2
        %v2319 = vmax.f32 %v2317, %v2318
        %v2320 = vrot.slane %v2319, 1
        %v2321 = vmax.f32 %v2319, %v2320
        %v2322 = vrot.slane %v2286, 4
        %v2323 = vmax.f32 %v2286, %v2322
        %v2324 = vrot.slane %v2323, 2
        %v2325 = vmax.f32 %v2323, %v2324
        %v2326 = vrot.slane %v2325, 1
        %v2327 = vmax.f32 %v2325, %v2326
        %v2328 = vrot.slane %v2287, 4
        %v2329 = vmax.f32 %v2287, %v2328
        %v2330 = vrot.slane %v2329, 2
        %v2331 = vmax.f32 %v2329, %v2330
        %v2332 = vrot.slane %v2331, 1
        %v2333 = vmax.f32 %v2331, %v2332
        %v2334 = vrot.slane %v2288, 4
        %v2335 = vmax.f32 %v2288, %v2334
        %v2336 = vrot.slane %v2335, 2
        %v2337 = vmax.f32 %v2335, %v2336
        %v2338 = vrot.slane %v2337, 1
        %v2339 = vmax.f32 %v2337, %v2338
        %v2340 = vrot.slane %v2289, 4
        %v2341 = vmax.f32 %v2289, %v2340
        %v2342 = vrot.slane %v2341, 2
        %v2343 = vmax.f32 %v2341, %v2342
        %v2344 = vrot.slane %v2343, 1
        %v2345 = vmax.f32 %v2343, %v2344
        %v2346 = vrot.slane %v2290, 4
        %v2347 = vmax.f32 %v2290, %v2346
        %v2348 = vrot.slane %v2347, 2
        %v2349 = vmax.f32 %v2347, %v2348
        %v2350 = vrot.slane %v2349, 1
        %v2351 = vmax.f32 %v2349, %v2350
        %v2352 = vrot.slane %v2291, 4
        %v2353 = vmax.f32 %v2291, %v2352
        %v2354 = vrot.slane %v2353, 2
        %v2355 = vmax.f32 %v2353, %v2354
        %v2356 = vrot.slane %v2355, 1
        %v2357 = vmax.f32 %v2355, %v2356
        %v2358 = vrot.slane %v2292, 4
        %v2359 = vmax.f32 %v2292, %v2358
        %v2360 = vrot.slane %v2359, 2
        %v2361 = vmax.f32 %v2359, %v2360
        %v2362 = vrot.slane %v2361, 1
        %v2363 = vmax.f32 %v2361, %v2362
        %v2364 = vrot.slane %v2293, 4
        %v2365 = vmax.f32 %v2293, %v2364
        %v2366 = vrot.slane %v2365, 2
        %v2367 = vmax.f32 %v2365, %v2366
        %v2368 = vrot.slane %v2367, 1
        %v2369 = vmax.f32 %v2367, %v2368
        %v2370 = vrot.slane %v2294, 4
        %v2371 = vmax.f32 %v2294, %v2370
        %v2372 = vrot.slane %v2371, 2
        %v2373 = vmax.f32 %v2371, %v2372
        %v2374 = vrot.slane %v2373, 1
        %v2375 = vmax.f32 %v2373, %v2374
        %v2376 = vrot.slane %v2295, 4
        %v2377 = vmax.f32 %v2295, %v2376
        %v2378 = vrot.slane %v2377, 2
        %v2379 = vmax.f32 %v2377, %v2378
        %v2380 = vrot.slane %v2379, 1
        %v2381 = vmax.f32 %v2379, %v2380
        %v2382 = vrot.slane %v2296, 4
        %v2383 = vmax.f32 %v2296, %v2382
        %v2384 = vrot.slane %v2383, 2
        %v2385 = vmax.f32 %v2383, %v2384
        %v2386 = vrot.slane %v2385, 1
        %v2387 = vmax.f32 %v2385, %v2386
        %v2388 = vrot.slane %v2297, 4
        %v2389 = vmax.f32 %v2297, %v2388
        %v2390 = vrot.slane %v2389, 2
        %v2391 = vmax.f32 %v2389, %v2390
        %v2392 = vrot.slane %v2391, 1
        %v2393 = vmax.f32 %v2391, %v2392
        %v2410 = vsel %vm657, %v2309, %v2303
        %v2411 = vsel %vm659, %v2315, %v2410
        %v2412 = vsel %vm661, %v2321, %v2411
        %v2413 = vsel %vm663, %v2327, %v2412
        %v2414 = vsel %vm665, %v2333, %v2413
        %v2415 = vsel %vm667, %v2339, %v2414
        %v2416 = vsel %vm669, %v2345, %v2415
        %v2417 = vsel %vm657, %v2357, %v2351
        %v2418 = vsel %vm659, %v2363, %v2417
        %v2419 = vsel %vm661, %v2369, %v2418
        %v2420 = vsel %vm663, %v2375, %v2419
        %v2421 = vsel %vm665, %v2381, %v2420
        %v2422 = vsel %vm667, %v2387, %v2421
        %v2423 = vsel %vm669, %v2393, %v2422
        %v2426 = vmax.f32 %v2280, %v2416
        %v2427 = vmax.f32 %v2281, %v2423
        %2428 = vst [vmem:[#allocation4] sm:$0xff] %v2426
        %2429 = vst [vmem:[#allocation4 + $0x8] sm:$0xff] %v2427
        %v2430 = vld [vmem:[%s280 + $0x28] sm:$0xff]
        %vm2431 = vcmp.eq.s32.totalorder %v306, %v2430
        %vm2432 = vcmp.eq.s32.totalorder %v413, %v2430
        %vm2433 = vcmp.eq.s32.totalorder %v414, %v2430
        %vm2434 = vcmp.eq.s32.totalorder %v415, %v2430
        %vm2435 = vcmp.eq.s32.totalorder %v416, %v2430
        %vm2436 = vcmp.eq.s32.totalorder %v417, %v2430
        %vm2437 = vcmp.eq.s32.totalorder %v418, %v2430
        %vm2438 = vcmp.eq.s32.totalorder %v419, %v2430
        %vm2439 = vcmp.eq.s32.totalorder %v420, %v2430
        %vm2440 = vcmp.eq.s32.totalorder %v421, %v2430
        %vm2441 = vcmp.eq.s32.totalorder %v422, %v2430
        %vm2442 = vcmp.eq.s32.totalorder %v423, %v2430
        %vm2443 = vcmp.eq.s32.totalorder %v424, %v2430
        %vm2444 = vcmp.eq.s32.totalorder %v425, %v2430
        %vm2445 = vcmp.eq.s32.totalorder %v426, %v2430
        %vm2446 = vcmp.eq.s32.totalorder %v427, %v2430
        %v2447 = vld [vmem:[%s286 + $0x14] sm:$0xf]
        %v2448 = vunpack.c.l.bf16 %v2447
        %v2449 = vld [vmem:[#allocation3] sm:$0xff]
        %v2450 = vld [vmem:[#allocation3 + $0x8] sm:$0xff]
        %v2451 = vsel %vm2431, 1, 0
        %v2452 = vsel %vm2432, 1, 0
        %v2453 = vsel %vm2433, 1, 0
        %v2454 = vsel %vm2434, 1, 0
        %v2455 = vsel %vm2435, 1, 0
        %v2456 = vsel %vm2436, 1, 0
        %v2457 = vsel %vm2437, 1, 0
        %v2458 = vsel %vm2438, 1, 0
        %v2459 = vsel %vm2439, 1, 0
        %v2460 = vsel %vm2440, 1, 0
        %v2461 = vsel %vm2441, 1, 0
        %v2462 = vsel %vm2442, 1, 0
        %v2463 = vsel %vm2443, 1, 0
        %v2464 = vsel %vm2444, 1, 0
        %v2465 = vsel %vm2445, 1, 0
        %v2466 = vsel %vm2446, 1, 0
        %2467 = vset.pattern.permute.xlu0 0
        %2468 = vperm.xlu0 %2467, %v2451
        %v2469 = vpop.permute.xlu0 %2468
        %2470 = vset.pattern.permute.xlu0 0
        %2471 = vperm.xlu0 %2470, %v2452
        %v2472 = vpop.permute.xlu0 %2471
        %2473 = vset.pattern.permute.xlu0 0
        %2474 = vperm.xlu0 %2473, %v2453
        %v2475 = vpop.permute.xlu0 %2474
        %2476 = vset.pattern.permute.xlu0 0
        %2477 = vperm.xlu0 %2476, %v2454
        %v2478 = vpop.permute.xlu0 %2477
        %2479 = vset.pattern.permute.xlu0 0
        %2480 = vperm.xlu0 %2479, %v2455
        %v2481 = vpop.permute.xlu0 %2480
        %2482 = vset.pattern.permute.xlu0 0
        %2483 = vperm.xlu0 %2482, %v2456
        %v2484 = vpop.permute.xlu0 %2483
        %2485 = vset.pattern.permute.xlu0 0
        %2486 = vperm.xlu0 %2485, %v2457
        %v2487 = vpop.permute.xlu0 %2486
        %2488 = vset.pattern.permute.xlu0 0
        %2489 = vperm.xlu0 %2488, %v2458
        %v2490 = vpop.permute.xlu0 %2489
        %2491 = vset.pattern.permute.xlu0 0
        %2492 = vperm.xlu0 %2491, %v2459
        %v2493 = vpop.permute.xlu0 %2492
        %2494 = vset.pattern.permute.xlu0 0
        %2495 = vperm.xlu0 %2494, %v2460
        %v2496 = vpop.permute.xlu0 %2495
        %2497 = vset.pattern.permute.xlu0 0
        %2498 = vperm.xlu0 %2497, %v2461
        %v2499 = vpop.permute.xlu0 %2498
        %2500 = vset.pattern.permute.xlu0 0
        %2501 = vperm.xlu0 %2500, %v2462
        %v2502 = vpop.permute.xlu0 %2501
        %2503 = vset.pattern.permute.xlu0 0
        %2504 = vperm.xlu0 %2503, %v2463
        %v2505 = vpop.permute.xlu0 %2504
        %2506 = vset.pattern.permute.xlu0 0
        %2507 = vperm.xlu0 %2506, %v2464
        %v2508 = vpop.permute.xlu0 %2507
        %2509 = vset.pattern.permute.xlu0 0
        %2510 = vperm.xlu0 %2509, %v2465
        %v2511 = vpop.permute.xlu0 %2510
        %2512 = vset.pattern.permute.xlu0 0
        %2513 = vperm.xlu0 %2512, %v2466
        %v2514 = vpop.permute.xlu0 %2513
        %vm2515 = vcmp.eq.s32.totalorder %v2469, 1
        %vm2516 = vcmp.eq.s32.totalorder %v2472, 1
        %vm2517 = vcmp.eq.s32.totalorder %v2475, 1
        %vm2518 = vcmp.eq.s32.totalorder %v2478, 1
        %vm2519 = vcmp.eq.s32.totalorder %v2481, 1
        %vm2520 = vcmp.eq.s32.totalorder %v2484, 1
        %vm2521 = vcmp.eq.s32.totalorder %v2487, 1
        %vm2522 = vcmp.eq.s32.totalorder %v2490, 1
        %vm2523 = vcmp.eq.s32.totalorder %v2493, 1
        %vm2524 = vcmp.eq.s32.totalorder %v2496, 1
        %vm2525 = vcmp.eq.s32.totalorder %v2499, 1
        %vm2526 = vcmp.eq.s32.totalorder %v2502, 1
        %vm2527 = vcmp.eq.s32.totalorder %v2505, 1
        %vm2528 = vcmp.eq.s32.totalorder %v2508, 1
        %vm2529 = vcmp.eq.s32.totalorder %v2511, 1
        %vm2530 = vcmp.eq.s32.totalorder %v2514, 1
        %v2531 = vsel %vm2515, %v2448, 3e+38
        %v2532 = vsel %vm2516, %v2448, 3e+38
        %v2533 = vsel %vm2517, %v2448, 3e+38
        %v2534 = vsel %vm2518, %v2448, 3e+38
        %v2535 = vsel %vm2519, %v2448, 3e+38
        %v2536 = vsel %vm2520, %v2448, 3e+38
        %v2537 = vsel %vm2521, %v2448, 3e+38
        %v2538 = vsel %vm2522, %v2448, 3e+38
        %v2539 = vsel %vm2523, %v2448, 3e+38
        %v2540 = vsel %vm2524, %v2448, 3e+38
        %v2541 = vsel %vm2525, %v2448, 3e+38
        %v2542 = vsel %vm2526, %v2448, 3e+38
        %v2543 = vsel %vm2527, %v2448, 3e+38
        %v2544 = vsel %vm2528, %v2448, 3e+38
        %v2545 = vsel %vm2529, %v2448, 3e+38
        %v2546 = vsel %vm2530, %v2448, 3e+38
        %v2547 = vrot.slane %v2531, 4
        %v2548 = vmin.f32 %v2531, %v2547
        %v2549 = vrot.slane %v2548, 2
        %v2550 = vmin.f32 %v2548, %v2549
        %v2551 = vrot.slane %v2550, 1
        %v2552 = vmin.f32 %v2550, %v2551
        %v2553 = vrot.slane %v2532, 4
        %v2554 = vmin.f32 %v2532, %v2553
        %v2555 = vrot.slane %v2554, 2
        %v2556 = vmin.f32 %v2554, %v2555
        %v2557 = vrot.slane %v2556, 1
        %v2558 = vmin.f32 %v2556, %v2557
        %v2559 = vrot.slane %v2533, 4
        %v2560 = vmin.f32 %v2533, %v2559
        %v2561 = vrot.slane %v2560, 2
        %v2562 = vmin.f32 %v2560, %v2561
        %v2563 = vrot.slane %v2562, 1
        %v2564 = vmin.f32 %v2562, %v2563
        %v2565 = vrot.slane %v2534, 4
        %v2566 = vmin.f32 %v2534, %v2565
        %v2567 = vrot.slane %v2566, 2
        %v2568 = vmin.f32 %v2566, %v2567
        %v2569 = vrot.slane %v2568, 1
        %v2570 = vmin.f32 %v2568, %v2569
        %v2571 = vrot.slane %v2535, 4
        %v2572 = vmin.f32 %v2535, %v2571
        %v2573 = vrot.slane %v2572, 2
        %v2574 = vmin.f32 %v2572, %v2573
        %v2575 = vrot.slane %v2574, 1
        %v2576 = vmin.f32 %v2574, %v2575
        %v2577 = vrot.slane %v2536, 4
        %v2578 = vmin.f32 %v2536, %v2577
        %v2579 = vrot.slane %v2578, 2
        %v2580 = vmin.f32 %v2578, %v2579
        %v2581 = vrot.slane %v2580, 1
        %v2582 = vmin.f32 %v2580, %v2581
        %v2583 = vrot.slane %v2537, 4
        %v2584 = vmin.f32 %v2537, %v2583
        %v2585 = vrot.slane %v2584, 2
        %v2586 = vmin.f32 %v2584, %v2585
        %v2587 = vrot.slane %v2586, 1
        %v2588 = vmin.f32 %v2586, %v2587
        %v2589 = vrot.slane %v2538, 4
        %v2590 = vmin.f32 %v2538, %v2589
        %v2591 = vrot.slane %v2590, 2
        %v2592 = vmin.f32 %v2590, %v2591
        %v2593 = vrot.slane %v2592, 1
        %v2594 = vmin.f32 %v2592, %v2593
        %v2595 = vrot.slane %v2539, 4
        %v2596 = vmin.f32 %v2539, %v2595
        %v2597 = vrot.slane %v2596, 2
        %v2598 = vmin.f32 %v2596, %v2597
        %v2599 = vrot.slane %v2598, 1
        %v2600 = vmin.f32 %v2598, %v2599
        %v2601 = vrot.slane %v2540, 4
        %v2602 = vmin.f32 %v2540, %v2601
        %v2603 = vrot.slane %v2602, 2
        %v2604 = vmin.f32 %v2602, %v2603
        %v2605 = vrot.slane %v2604, 1
        %v2606 = vmin.f32 %v2604, %v2605
        %v2607 = vrot.slane %v2541, 4
        %v2608 = vmin.f32 %v2541, %v2607
        %v2609 = vrot.slane %v2608, 2
        %v2610 = vmin.f32 %v2608, %v2609
        %v2611 = vrot.slane %v2610, 1
        %v2612 = vmin.f32 %v2610, %v2611
        %v2613 = vrot.slane %v2542, 4
        %v2614 = vmin.f32 %v2542, %v2613
        %v2615 = vrot.slane %v2614, 2
        %v2616 = vmin.f32 %v2614, %v2615
        %v2617 = vrot.slane %v2616, 1
        %v2618 = vmin.f32 %v2616, %v2617
        %v2619 = vrot.slane %v2543, 4
        %v2620 = vmin.f32 %v2543, %v2619
        %v2621 = vrot.slane %v2620, 2
        %v2622 = vmin.f32 %v2620, %v2621
        %v2623 = vrot.slane %v2622, 1
        %v2624 = vmin.f32 %v2622, %v2623
        %v2625 = vrot.slane %v2544, 4
        %v2626 = vmin.f32 %v2544, %v2625
        %v2627 = vrot.slane %v2626, 2
        %v2628 = vmin.f32 %v2626, %v2627
        %v2629 = vrot.slane %v2628, 1
        %v2630 = vmin.f32 %v2628, %v2629
        %v2631 = vrot.slane %v2545, 4
        %v2632 = vmin.f32 %v2545, %v2631
        %v2633 = vrot.slane %v2632, 2
        %v2634 = vmin.f32 %v2632, %v2633
        %v2635 = vrot.slane %v2634, 1
        %v2636 = vmin.f32 %v2634, %v2635
        %v2637 = vrot.slane %v2546, 4
        %v2638 = vmin.f32 %v2546, %v2637
        %v2639 = vrot.slane %v2638, 2
        %v2640 = vmin.f32 %v2638, %v2639
        %v2641 = vrot.slane %v2640, 1
        %v2642 = vmin.f32 %v2640, %v2641
        %v2659 = vsel %vm657, %v2558, %v2552
        %v2660 = vsel %vm659, %v2564, %v2659
        %v2661 = vsel %vm661, %v2570, %v2660
        %v2662 = vsel %vm663, %v2576, %v2661
        %v2663 = vsel %vm665, %v2582, %v2662
        %v2664 = vsel %vm667, %v2588, %v2663
        %v2665 = vsel %vm669, %v2594, %v2664
        %v2666 = vsel %vm657, %v2606, %v2600
        %v2667 = vsel %vm659, %v2612, %v2666
        %v2668 = vsel %vm661, %v2618, %v2667
        %v2669 = vsel %vm663, %v2624, %v2668
        %v2670 = vsel %vm665, %v2630, %v2669
        %v2671 = vsel %vm667, %v2636, %v2670
        %v2672 = vsel %vm669, %v2642, %v2671
        %v2675 = vmin.f32 %v2449, %v2665
        %v2676 = vmin.f32 %v2450, %v2672
        %2677 = vst [vmem:[#allocation3] sm:$0xff] %v2675
        %2678 = vst [vmem:[#allocation3 + $0x8] sm:$0xff] %v2676
        %v2679 = vld [vmem:[#allocation4] sm:$0xff]
        %v2680 = vld [vmem:[#allocation4 + $0x8] sm:$0xff]
        %v2681 = vsel %vm2515, %v2448, -3e+38
        %v2682 = vsel %vm2516, %v2448, -3e+38
        %v2683 = vsel %vm2517, %v2448, -3e+38
        %v2684 = vsel %vm2518, %v2448, -3e+38
        %v2685 = vsel %vm2519, %v2448, -3e+38
        %v2686 = vsel %vm2520, %v2448, -3e+38
        %v2687 = vsel %vm2521, %v2448, -3e+38
        %v2688 = vsel %vm2522, %v2448, -3e+38
        %v2689 = vsel %vm2523, %v2448, -3e+38
        %v2690 = vsel %vm2524, %v2448, -3e+38
        %v2691 = vsel %vm2525, %v2448, -3e+38
        %v2692 = vsel %vm2526, %v2448, -3e+38
        %v2693 = vsel %vm2527, %v2448, -3e+38
        %v2694 = vsel %vm2528, %v2448, -3e+38
        %v2695 = vsel %vm2529, %v2448, -3e+38
        %v2696 = vsel %vm2530, %v2448, -3e+38
        %v2697 = vrot.slane %v2681, 4
        %v2698 = vmax.f32 %v2681, %v2697
        %v2699 = vrot.slane %v2698, 2
        %v2700 = vmax.f32 %v2698, %v2699
        %v2701 = vrot.slane %v2700, 1
        %v2702 = vmax.f32 %v2700, %v2701
        %v2703 = vrot.slane %v2682, 4
        %v2704 = vmax.f32 %v2682, %v2703
        %v2705 = vrot.slane %v2704, 2
        %v2706 = vmax.f32 %v2704, %v2705
        %v2707 = vrot.slane %v2706, 1
        %v2708 = vmax.f32 %v2706, %v2707
        %v2709 = vrot.slane %v2683, 4
        %v2710 = vmax.f32 %v2683, %v2709
        %v2711 = vrot.slane %v2710, 2
        %v2712 = vmax.f32 %v2710, %v2711
        %v2713 = vrot.slane %v2712, 1
        %v2714 = vmax.f32 %v2712, %v2713
        %v2715 = vrot.slane %v2684, 4
        %v2716 = vmax.f32 %v2684, %v2715
        %v2717 = vrot.slane %v2716, 2
        %v2718 = vmax.f32 %v2716, %v2717
        %v2719 = vrot.slane %v2718, 1
        %v2720 = vmax.f32 %v2718, %v2719
        %v2721 = vrot.slane %v2685, 4
        %v2722 = vmax.f32 %v2685, %v2721
        %v2723 = vrot.slane %v2722, 2
        %v2724 = vmax.f32 %v2722, %v2723
        %v2725 = vrot.slane %v2724, 1
        %v2726 = vmax.f32 %v2724, %v2725
        %v2727 = vrot.slane %v2686, 4
        %v2728 = vmax.f32 %v2686, %v2727
        %v2729 = vrot.slane %v2728, 2
        %v2730 = vmax.f32 %v2728, %v2729
        %v2731 = vrot.slane %v2730, 1
        %v2732 = vmax.f32 %v2730, %v2731
        %v2733 = vrot.slane %v2687, 4
        %v2734 = vmax.f32 %v2687, %v2733
        %v2735 = vrot.slane %v2734, 2
        %v2736 = vmax.f32 %v2734, %v2735
        %v2737 = vrot.slane %v2736, 1
        %v2738 = vmax.f32 %v2736, %v2737
        %v2739 = vrot.slane %v2688, 4
        %v2740 = vmax.f32 %v2688, %v2739
        %v2741 = vrot.slane %v2740, 2
        %v2742 = vmax.f32 %v2740, %v2741
        %v2743 = vrot.slane %v2742, 1
        %v2744 = vmax.f32 %v2742, %v2743
        %v2745 = vrot.slane %v2689, 4
        %v2746 = vmax.f32 %v2689, %v2745
        %v2747 = vrot.slane %v2746, 2
        %v2748 = vmax.f32 %v2746, %v2747
        %v2749 = vrot.slane %v2748, 1
        %v2750 = vmax.f32 %v2748, %v2749
        %v2751 = vrot.slane %v2690, 4
        %v2752 = vmax.f32 %v2690, %v2751
        %v2753 = vrot.slane %v2752, 2
        %v2754 = vmax.f32 %v2752, %v2753
        %v2755 = vrot.slane %v2754, 1
        %v2756 = vmax.f32 %v2754, %v2755
        %v2757 = vrot.slane %v2691, 4
        %v2758 = vmax.f32 %v2691, %v2757
        %v2759 = vrot.slane %v2758, 2
        %v2760 = vmax.f32 %v2758, %v2759
        %v2761 = vrot.slane %v2760, 1
        %v2762 = vmax.f32 %v2760, %v2761
        %v2763 = vrot.slane %v2692, 4
        %v2764 = vmax.f32 %v2692, %v2763
        %v2765 = vrot.slane %v2764, 2
        %v2766 = vmax.f32 %v2764, %v2765
        %v2767 = vrot.slane %v2766, 1
        %v2768 = vmax.f32 %v2766, %v2767
        %v2769 = vrot.slane %v2693, 4
        %v2770 = vmax.f32 %v2693, %v2769
        %v2771 = vrot.slane %v2770, 2
        %v2772 = vmax.f32 %v2770, %v2771
        %v2773 = vrot.slane %v2772, 1
        %v2774 = vmax.f32 %v2772, %v2773
        %v2775 = vrot.slane %v2694, 4
        %v2776 = vmax.f32 %v2694, %v2775
        %v2777 = vrot.slane %v2776, 2
        %v2778 = vmax.f32 %v2776, %v2777
        %v2779 = vrot.slane %v2778, 1
        %v2780 = vmax.f32 %v2778, %v2779
        %v2781 = vrot.slane %v2695, 4
        %v2782 = vmax.f32 %v2695, %v2781
        %v2783 = vrot.slane %v2782, 2
        %v2784 = vmax.f32 %v2782, %v2783
        %v2785 = vrot.slane %v2784, 1
        %v2786 = vmax.f32 %v2784, %v2785
        %v2787 = vrot.slane %v2696, 4
        %v2788 = vmax.f32 %v2696, %v2787
        %v2789 = vrot.slane %v2788, 2
        %v2790 = vmax.f32 %v2788, %v2789
        %v2791 = vrot.slane %v2790, 1
        %v2792 = vmax.f32 %v2790, %v2791
        %v2809 = vsel %vm657, %v2708, %v2702
        %v2810 = vsel %vm659, %v2714, %v2809
        %v2811 = vsel %vm661, %v2720, %v2810
        %v2812 = vsel %vm663, %v2726, %v2811
        %v2813 = vsel %vm665, %v2732, %v2812
        %v2814 = vsel %vm667, %v2738, %v2813
        %v2815 = vsel %vm669, %v2744, %v2814
        %v2816 = vsel %vm657, %v2756, %v2750
        %v2817 = vsel %vm659, %v2762, %v2816
        %v2818 = vsel %vm661, %v2768, %v2817
        %v2819 = vsel %vm663, %v2774, %v2818
        %v2820 = vsel %vm665, %v2780, %v2819
        %v2821 = vsel %vm667, %v2786, %v2820
        %v2822 = vsel %vm669, %v2792, %v2821
        %v2825 = vmax.f32 %v2679, %v2815
        %v2826 = vmax.f32 %v2680, %v2822
        %2827 = vst [vmem:[#allocation4] sm:$0xff] %v2825
        %2828 = vst [vmem:[#allocation4 + $0x8] sm:$0xff] %v2826
        %v2829 = vld [vmem:[%s280 + $0x30] sm:$0xff]
        %vm2830 = vcmp.eq.s32.totalorder %v306, %v2829
        %vm2831 = vcmp.eq.s32.totalorder %v413, %v2829
        %vm2832 = vcmp.eq.s32.totalorder %v414, %v2829
        %vm2833 = vcmp.eq.s32.totalorder %v415, %v2829
        %vm2834 = vcmp.eq.s32.totalorder %v416, %v2829
        %vm2835 = vcmp.eq.s32.totalorder %v417, %v2829
        %vm2836 = vcmp.eq.s32.totalorder %v418, %v2829
        %vm2837 = vcmp.eq.s32.totalorder %v419, %v2829
        %vm2838 = vcmp.eq.s32.totalorder %v420, %v2829
        %vm2839 = vcmp.eq.s32.totalorder %v421, %v2829
        %vm2840 = vcmp.eq.s32.totalorder %v422, %v2829
        %vm2841 = vcmp.eq.s32.totalorder %v423, %v2829
        %vm2842 = vcmp.eq.s32.totalorder %v424, %v2829
        %vm2843 = vcmp.eq.s32.totalorder %v425, %v2829
        %vm2844 = vcmp.eq.s32.totalorder %v426, %v2829
        %vm2845 = vcmp.eq.s32.totalorder %v427, %v2829
        %v2846 = vld [vmem:[%s286 + $0x18] sm:$0xf]
        %v2847 = vunpack.c.l.bf16 %v2846
        %v2848 = vld [vmem:[#allocation3] sm:$0xff]
        %v2849 = vld [vmem:[#allocation3 + $0x8] sm:$0xff]
        %v2850 = vsel %vm2830, 1, 0
        %v2851 = vsel %vm2831, 1, 0
        %v2852 = vsel %vm2832, 1, 0
        %v2853 = vsel %vm2833, 1, 0
        %v2854 = vsel %vm2834, 1, 0
        %v2855 = vsel %vm2835, 1, 0
        %v2856 = vsel %vm2836, 1, 0
        %v2857 = vsel %vm2837, 1, 0
        %v2858 = vsel %vm2838, 1, 0
        %v2859 = vsel %vm2839, 1, 0
        %v2860 = vsel %vm2840, 1, 0
        %v2861 = vsel %vm2841, 1, 0
        %v2862 = vsel %vm2842, 1, 0
        %v2863 = vsel %vm2843, 1, 0
        %v2864 = vsel %vm2844, 1, 0
        %v2865 = vsel %vm2845, 1, 0
        %2866 = vset.pattern.permute.xlu0 0
        %2867 = vperm.xlu0 %2866, %v2850
        %v2868 = vpop.permute.xlu0 %2867
        %2869 = vset.pattern.permute.xlu0 0
        %2870 = vperm.xlu0 %2869, %v2851
        %v2871 = vpop.permute.xlu0 %2870
        %2872 = vset.pattern.permute.xlu0 0
        %2873 = vperm.xlu0 %2872, %v2852
        %v2874 = vpop.permute.xlu0 %2873
        %2875 = vset.pattern.permute.xlu0 0
        %2876 = vperm.xlu0 %2875, %v2853
        %v2877 = vpop.permute.xlu0 %2876
        %2878 = vset.pattern.permute.xlu0 0
        %2879 = vperm.xlu0 %2878, %v2854
        %v2880 = vpop.permute.xlu0 %2879
        %2881 = vset.pattern.permute.xlu0 0
        %2882 = vperm.xlu0 %2881, %v2855
        %v2883 = vpop.permute.xlu0 %2882
        %2884 = vset.pattern.permute.xlu0 0
        %2885 = vperm.xlu0 %2884, %v2856
        %v2886 = vpop.permute.xlu0 %2885
        %2887 = vset.pattern.permute.xlu0 0
        %2888 = vperm.xlu0 %2887, %v2857
        %v2889 = vpop.permute.xlu0 %2888
        %2890 = vset.pattern.permute.xlu0 0
        %2891 = vperm.xlu0 %2890, %v2858
        %v2892 = vpop.permute.xlu0 %2891
        %2893 = vset.pattern.permute.xlu0 0
        %2894 = vperm.xlu0 %2893, %v2859
        %v2895 = vpop.permute.xlu0 %2894
        %2896 = vset.pattern.permute.xlu0 0
        %2897 = vperm.xlu0 %2896, %v2860
        %v2898 = vpop.permute.xlu0 %2897
        %2899 = vset.pattern.permute.xlu0 0
        %2900 = vperm.xlu0 %2899, %v2861
        %v2901 = vpop.permute.xlu0 %2900
        %2902 = vset.pattern.permute.xlu0 0
        %2903 = vperm.xlu0 %2902, %v2862
        %v2904 = vpop.permute.xlu0 %2903
        %2905 = vset.pattern.permute.xlu0 0
        %2906 = vperm.xlu0 %2905, %v2863
        %v2907 = vpop.permute.xlu0 %2906
        %2908 = vset.pattern.permute.xlu0 0
        %2909 = vperm.xlu0 %2908, %v2864
        %v2910 = vpop.permute.xlu0 %2909
        %2911 = vset.pattern.permute.xlu0 0
        %2912 = vperm.xlu0 %2911, %v2865
        %v2913 = vpop.permute.xlu0 %2912
        %vm2914 = vcmp.eq.s32.totalorder %v2868, 1
        %vm2915 = vcmp.eq.s32.totalorder %v2871, 1
        %vm2916 = vcmp.eq.s32.totalorder %v2874, 1
        %vm2917 = vcmp.eq.s32.totalorder %v2877, 1
        %vm2918 = vcmp.eq.s32.totalorder %v2880, 1
        %vm2919 = vcmp.eq.s32.totalorder %v2883, 1
        %vm2920 = vcmp.eq.s32.totalorder %v2886, 1
        %vm2921 = vcmp.eq.s32.totalorder %v2889, 1
        %vm2922 = vcmp.eq.s32.totalorder %v2892, 1
        %vm2923 = vcmp.eq.s32.totalorder %v2895, 1
        %vm2924 = vcmp.eq.s32.totalorder %v2898, 1
        %vm2925 = vcmp.eq.s32.totalorder %v2901, 1
        %vm2926 = vcmp.eq.s32.totalorder %v2904, 1
        %vm2927 = vcmp.eq.s32.totalorder %v2907, 1
        %vm2928 = vcmp.eq.s32.totalorder %v2910, 1
        %vm2929 = vcmp.eq.s32.totalorder %v2913, 1
        %v2930 = vsel %vm2914, %v2847, 3e+38
        %v2931 = vsel %vm2915, %v2847, 3e+38
        %v2932 = vsel %vm2916, %v2847, 3e+38
        %v2933 = vsel %vm2917, %v2847, 3e+38
        %v2934 = vsel %vm2918, %v2847, 3e+38
        %v2935 = vsel %vm2919, %v2847, 3e+38
        %v2936 = vsel %vm2920, %v2847, 3e+38
        %v2937 = vsel %vm2921, %v2847, 3e+38
        %v2938 = vsel %vm2922, %v2847, 3e+38
        %v2939 = vsel %vm2923, %v2847, 3e+38
        %v2940 = vsel %vm2924, %v2847, 3e+38
        %v2941 = vsel %vm2925, %v2847, 3e+38
        %v2942 = vsel %vm2926, %v2847, 3e+38
        %v2943 = vsel %vm2927, %v2847, 3e+38
        %v2944 = vsel %vm2928, %v2847, 3e+38
        %v2945 = vsel %vm2929, %v2847, 3e+38
        %v2946 = vrot.slane %v2930, 4
        %v2947 = vmin.f32 %v2930, %v2946
        %v2948 = vrot.slane %v2947, 2
        %v2949 = vmin.f32 %v2947, %v2948
        %v2950 = vrot.slane %v2949, 1
        %v2951 = vmin.f32 %v2949, %v2950
        %v2952 = vrot.slane %v2931, 4
        %v2953 = vmin.f32 %v2931, %v2952
        %v2954 = vrot.slane %v2953, 2
        %v2955 = vmin.f32 %v2953, %v2954
        %v2956 = vrot.slane %v2955, 1
        %v2957 = vmin.f32 %v2955, %v2956
        %v2958 = vrot.slane %v2932, 4
        %v2959 = vmin.f32 %v2932, %v2958
        %v2960 = vrot.slane %v2959, 2
        %v2961 = vmin.f32 %v2959, %v2960
        %v2962 = vrot.slane %v2961, 1
        %v2963 = vmin.f32 %v2961, %v2962
        %v2964 = vrot.slane %v2933, 4
        %v2965 = vmin.f32 %v2933, %v2964
        %v2966 = vrot.slane %v2965, 2
        %v2967 = vmin.f32 %v2965, %v2966
        %v2968 = vrot.slane %v2967, 1
        %v2969 = vmin.f32 %v2967, %v2968
        %v2970 = vrot.slane %v2934, 4
        %v2971 = vmin.f32 %v2934, %v2970
        %v2972 = vrot.slane %v2971, 2
        %v2973 = vmin.f32 %v2971, %v2972
        %v2974 = vrot.slane %v2973, 1
        %v2975 = vmin.f32 %v2973, %v2974
        %v2976 = vrot.slane %v2935, 4
        %v2977 = vmin.f32 %v2935, %v2976
        %v2978 = vrot.slane %v2977, 2
        %v2979 = vmin.f32 %v2977, %v2978
        %v2980 = vrot.slane %v2979, 1
        %v2981 = vmin.f32 %v2979, %v2980
        %v2982 = vrot.slane %v2936, 4
        %v2983 = vmin.f32 %v2936, %v2982
        %v2984 = vrot.slane %v2983, 2
        %v2985 = vmin.f32 %v2983, %v2984
        %v2986 = vrot.slane %v2985, 1
        %v2987 = vmin.f32 %v2985, %v2986
        %v2988 = vrot.slane %v2937, 4
        %v2989 = vmin.f32 %v2937, %v2988
        %v2990 = vrot.slane %v2989, 2
        %v2991 = vmin.f32 %v2989, %v2990
        %v2992 = vrot.slane %v2991, 1
        %v2993 = vmin.f32 %v2991, %v2992
        %v2994 = vrot.slane %v2938, 4
        %v2995 = vmin.f32 %v2938, %v2994
        %v2996 = vrot.slane %v2995, 2
        %v2997 = vmin.f32 %v2995, %v2996
        %v2998 = vrot.slane %v2997, 1
        %v2999 = vmin.f32 %v2997, %v2998
        %v3000 = vrot.slane %v2939, 4
        %v3001 = vmin.f32 %v2939, %v3000
        %v3002 = vrot.slane %v3001, 2
        %v3003 = vmin.f32 %v3001, %v3002
        %v3004 = vrot.slane %v3003, 1
        %v3005 = vmin.f32 %v3003, %v3004
        %v3006 = vrot.slane %v2940, 4
        %v3007 = vmin.f32 %v2940, %v3006
        %v3008 = vrot.slane %v3007, 2
        %v3009 = vmin.f32 %v3007, %v3008
        %v3010 = vrot.slane %v3009, 1
        %v3011 = vmin.f32 %v3009, %v3010
        %v3012 = vrot.slane %v2941, 4
        %v3013 = vmin.f32 %v2941, %v3012
        %v3014 = vrot.slane %v3013, 2
        %v3015 = vmin.f32 %v3013, %v3014
        %v3016 = vrot.slane %v3015, 1
        %v3017 = vmin.f32 %v3015, %v3016
        %v3018 = vrot.slane %v2942, 4
        %v3019 = vmin.f32 %v2942, %v3018
        %v3020 = vrot.slane %v3019, 2
        %v3021 = vmin.f32 %v3019, %v3020
        %v3022 = vrot.slane %v3021, 1
        %v3023 = vmin.f32 %v3021, %v3022
        %v3024 = vrot.slane %v2943, 4
        %v3025 = vmin.f32 %v2943, %v3024
        %v3026 = vrot.slane %v3025, 2
        %v3027 = vmin.f32 %v3025, %v3026
        %v3028 = vrot.slane %v3027, 1
        %v3029 = vmin.f32 %v3027, %v3028
        %v3030 = vrot.slane %v2944, 4
        %v3031 = vmin.f32 %v2944, %v3030
        %v3032 = vrot.slane %v3031, 2
        %v3033 = vmin.f32 %v3031, %v3032
        %v3034 = vrot.slane %v3033, 1
        %v3035 = vmin.f32 %v3033, %v3034
        %v3036 = vrot.slane %v2945, 4
        %v3037 = vmin.f32 %v2945, %v3036
        %v3038 = vrot.slane %v3037, 2
        %v3039 = vmin.f32 %v3037, %v3038
        %v3040 = vrot.slane %v3039, 1
        %v3041 = vmin.f32 %v3039, %v3040
        %v3058 = vsel %vm657, %v2957, %v2951
        %v3059 = vsel %vm659, %v2963, %v3058
        %v3060 = vsel %vm661, %v2969, %v3059
        %v3061 = vsel %vm663, %v2975, %v3060
        %v3062 = vsel %vm665, %v2981, %v3061
        %v3063 = vsel %vm667, %v2987, %v3062
        %v3064 = vsel %vm669, %v2993, %v3063
        %v3065 = vsel %vm657, %v3005, %v2999
        %v3066 = vsel %vm659, %v3011, %v3065
        %v3067 = vsel %vm661, %v3017, %v3066
        %v3068 = vsel %vm663, %v3023, %v3067
        %v3069 = vsel %vm665, %v3029, %v3068
        %v3070 = vsel %vm667, %v3035, %v3069
        %v3071 = vsel %vm669, %v3041, %v3070
        %v3074 = vmin.f32 %v2848, %v3064
        %v3075 = vmin.f32 %v2849, %v3071
        %3076 = vst [vmem:[#allocation3] sm:$0xff] %v3074
        %3077 = vst [vmem:[#allocation3 + $0x8] sm:$0xff] %v3075
        %v3078 = vld [vmem:[#allocation4] sm:$0xff]
        %v3079 = vld [vmem:[#allocation4 + $0x8] sm:$0xff]
        %v3080 = vsel %vm2914, %v2847, -3e+38
        %v3081 = vsel %vm2915, %v2847, -3e+38
        %v3082 = vsel %vm2916, %v2847, -3e+38
        %v3083 = vsel %vm2917, %v2847, -3e+38
        %v3084 = vsel %vm2918, %v2847, -3e+38
        %v3085 = vsel %vm2919, %v2847, -3e+38
        %v3086 = vsel %vm2920, %v2847, -3e+38
        %v3087 = vsel %vm2921, %v2847, -3e+38
        %v3088 = vsel %vm2922, %v2847, -3e+38
        %v3089 = vsel %vm2923, %v2847, -3e+38
        %v3090 = vsel %vm2924, %v2847, -3e+38
        %v3091 = vsel %vm2925, %v2847, -3e+38
        %v3092 = vsel %vm2926, %v2847, -3e+38
        %v3093 = vsel %vm2927, %v2847, -3e+38
        %v3094 = vsel %vm2928, %v2847, -3e+38
        %v3095 = vsel %vm2929, %v2847, -3e+38
        %v3096 = vrot.slane %v3080, 4
        %v3097 = vmax.f32 %v3080, %v3096
        %v3098 = vrot.slane %v3097, 2
        %v3099 = vmax.f32 %v3097, %v3098
        %v3100 = vrot.slane %v3099, 1
        %v3101 = vmax.f32 %v3099, %v3100
        %v3102 = vrot.slane %v3081, 4
        %v3103 = vmax.f32 %v3081, %v3102
        %v3104 = vrot.slane %v3103, 2
        %v3105 = vmax.f32 %v3103, %v3104
        %v3106 = vrot.slane %v3105, 1
        %v3107 = vmax.f32 %v3105, %v3106
        %v3108 = vrot.slane %v3082, 4
        %v3109 = vmax.f32 %v3082, %v3108
        %v3110 = vrot.slane %v3109, 2
        %v3111 = vmax.f32 %v3109, %v3110
        %v3112 = vrot.slane %v3111, 1
        %v3113 = vmax.f32 %v3111, %v3112
        %v3114 = vrot.slane %v3083, 4
        %v3115 = vmax.f32 %v3083, %v3114
        %v3116 = vrot.slane %v3115, 2
        %v3117 = vmax.f32 %v3115, %v3116
        %v3118 = vrot.slane %v3117, 1
        %v3119 = vmax.f32 %v3117, %v3118
        %v3120 = vrot.slane %v3084, 4
        %v3121 = vmax.f32 %v3084, %v3120
        %v3122 = vrot.slane %v3121, 2
        %v3123 = vmax.f32 %v3121, %v3122
        %v3124 = vrot.slane %v3123, 1
        %v3125 = vmax.f32 %v3123, %v3124
        %v3126 = vrot.slane %v3085, 4
        %v3127 = vmax.f32 %v3085, %v3126
        %v3128 = vrot.slane %v3127, 2
        %v3129 = vmax.f32 %v3127, %v3128
        %v3130 = vrot.slane %v3129, 1
        %v3131 = vmax.f32 %v3129, %v3130
        %v3132 = vrot.slane %v3086, 4
        %v3133 = vmax.f32 %v3086, %v3132
        %v3134 = vrot.slane %v3133, 2
        %v3135 = vmax.f32 %v3133, %v3134
        %v3136 = vrot.slane %v3135, 1
        %v3137 = vmax.f32 %v3135, %v3136
        %v3138 = vrot.slane %v3087, 4
        %v3139 = vmax.f32 %v3087, %v3138
        %v3140 = vrot.slane %v3139, 2
        %v3141 = vmax.f32 %v3139, %v3140
        %v3142 = vrot.slane %v3141, 1
        %v3143 = vmax.f32 %v3141, %v3142
        %v3144 = vrot.slane %v3088, 4
        %v3145 = vmax.f32 %v3088, %v3144
        %v3146 = vrot.slane %v3145, 2
        %v3147 = vmax.f32 %v3145, %v3146
        %v3148 = vrot.slane %v3147, 1
        %v3149 = vmax.f32 %v3147, %v3148
        %v3150 = vrot.slane %v3089, 4
        %v3151 = vmax.f32 %v3089, %v3150
        %v3152 = vrot.slane %v3151, 2
        %v3153 = vmax.f32 %v3151, %v3152
        %v3154 = vrot.slane %v3153, 1
        %v3155 = vmax.f32 %v3153, %v3154
        %v3156 = vrot.slane %v3090, 4
        %v3157 = vmax.f32 %v3090, %v3156
        %v3158 = vrot.slane %v3157, 2
        %v3159 = vmax.f32 %v3157, %v3158
        %v3160 = vrot.slane %v3159, 1
        %v3161 = vmax.f32 %v3159, %v3160
        %v3162 = vrot.slane %v3091, 4
        %v3163 = vmax.f32 %v3091, %v3162
        %v3164 = vrot.slane %v3163, 2
        %v3165 = vmax.f32 %v3163, %v3164
        %v3166 = vrot.slane %v3165, 1
        %v3167 = vmax.f32 %v3165, %v3166
        %v3168 = vrot.slane %v3092, 4
        %v3169 = vmax.f32 %v3092, %v3168
        %v3170 = vrot.slane %v3169, 2
        %v3171 = vmax.f32 %v3169, %v3170
        %v3172 = vrot.slane %v3171, 1
        %v3173 = vmax.f32 %v3171, %v3172
        %v3174 = vrot.slane %v3093, 4
        %v3175 = vmax.f32 %v3093, %v3174
        %v3176 = vrot.slane %v3175, 2
        %v3177 = vmax.f32 %v3175, %v3176
        %v3178 = vrot.slane %v3177, 1
        %v3179 = vmax.f32 %v3177, %v3178
        %v3180 = vrot.slane %v3094, 4
        %v3181 = vmax.f32 %v3094, %v3180
        %v3182 = vrot.slane %v3181, 2
        %v3183 = vmax.f32 %v3181, %v3182
        %v3184 = vrot.slane %v3183, 1
        %v3185 = vmax.f32 %v3183, %v3184
        %v3186 = vrot.slane %v3095, 4
        %v3187 = vmax.f32 %v3095, %v3186
        %v3188 = vrot.slane %v3187, 2
        %v3189 = vmax.f32 %v3187, %v3188
        %v3190 = vrot.slane %v3189, 1
        %v3191 = vmax.f32 %v3189, %v3190
        %v3208 = vsel %vm657, %v3107, %v3101
        %v3209 = vsel %vm659, %v3113, %v3208
        %v3210 = vsel %vm661, %v3119, %v3209
        %v3211 = vsel %vm663, %v3125, %v3210
        %v3212 = vsel %vm665, %v3131, %v3211
        %v3213 = vsel %vm667, %v3137, %v3212
        %v3214 = vsel %vm669, %v3143, %v3213
        %v3215 = vsel %vm657, %v3155, %v3149
        %v3216 = vsel %vm659, %v3161, %v3215
        %v3217 = vsel %vm661, %v3167, %v3216
        %v3218 = vsel %vm663, %v3173, %v3217
        %v3219 = vsel %vm665, %v3179, %v3218
        %v3220 = vsel %vm667, %v3185, %v3219
        %v3221 = vsel %vm669, %v3191, %v3220
        %v3224 = vmax.f32 %v3078, %v3214
        %v3225 = vmax.f32 %v3079, %v3221
        %3226 = vst [vmem:[#allocation4] sm:$0xff] %v3224
        %3227 = vst [vmem:[#allocation4 + $0x8] sm:$0xff] %v3225
        %v3228 = vld [vmem:[%s280 + $0x38] sm:$0xff]
        %vm3229 = vcmp.eq.s32.totalorder %v306, %v3228
        %vm3230 = vcmp.eq.s32.totalorder %v413, %v3228
        %vm3231 = vcmp.eq.s32.totalorder %v414, %v3228
        %vm3232 = vcmp.eq.s32.totalorder %v415, %v3228
        %vm3233 = vcmp.eq.s32.totalorder %v416, %v3228
        %vm3234 = vcmp.eq.s32.totalorder %v417, %v3228
        %vm3235 = vcmp.eq.s32.totalorder %v418, %v3228
        %vm3236 = vcmp.eq.s32.totalorder %v419, %v3228
        %vm3237 = vcmp.eq.s32.totalorder %v420, %v3228
        %vm3238 = vcmp.eq.s32.totalorder %v421, %v3228
        %vm3239 = vcmp.eq.s32.totalorder %v422, %v3228
        %vm3240 = vcmp.eq.s32.totalorder %v423, %v3228
        %vm3241 = vcmp.eq.s32.totalorder %v424, %v3228
        %vm3242 = vcmp.eq.s32.totalorder %v425, %v3228
        %vm3243 = vcmp.eq.s32.totalorder %v426, %v3228
        %vm3244 = vcmp.eq.s32.totalorder %v427, %v3228
        %v3245 = vld [vmem:[%s286 + $0x1c] sm:$0xf]
        %v3246 = vunpack.c.l.bf16 %v3245
        %v3247 = vld [vmem:[#allocation3] sm:$0xff]
        %v3248 = vld [vmem:[#allocation3 + $0x8] sm:$0xff]
        %v3249 = vsel %vm3229, 1, 0
        %v3250 = vsel %vm3230, 1, 0
        %v3251 = vsel %vm3231, 1, 0
        %v3252 = vsel %vm3232, 1, 0
        %v3253 = vsel %vm3233, 1, 0
        %v3254 = vsel %vm3234, 1, 0
        %v3255 = vsel %vm3235, 1, 0
        %v3256 = vsel %vm3236, 1, 0
        %v3257 = vsel %vm3237, 1, 0
        %v3258 = vsel %vm3238, 1, 0
        %v3259 = vsel %vm3239, 1, 0
        %v3260 = vsel %vm3240, 1, 0
        %v3261 = vsel %vm3241, 1, 0
        %v3262 = vsel %vm3242, 1, 0
        %v3263 = vsel %vm3243, 1, 0
        %v3264 = vsel %vm3244, 1, 0
        %3265 = vset.pattern.permute.xlu0 0
        %3266 = vperm.xlu0 %3265, %v3249
        %v3267 = vpop.permute.xlu0 %3266
        %3268 = vset.pattern.permute.xlu0 0
        %3269 = vperm.xlu0 %3268, %v3250
        %v3270 = vpop.permute.xlu0 %3269
        %3271 = vset.pattern.permute.xlu0 0
        %3272 = vperm.xlu0 %3271, %v3251
        %v3273 = vpop.permute.xlu0 %3272
        %3274 = vset.pattern.permute.xlu0 0
        %3275 = vperm.xlu0 %3274, %v3252
        %v3276 = vpop.permute.xlu0 %3275
        %3277 = vset.pattern.permute.xlu0 0
        %3278 = vperm.xlu0 %3277, %v3253
        %v3279 = vpop.permute.xlu0 %3278
        %3280 = vset.pattern.permute.xlu0 0
        %3281 = vperm.xlu0 %3280, %v3254
        %v3282 = vpop.permute.xlu0 %3281
        %3283 = vset.pattern.permute.xlu0 0
        %3284 = vperm.xlu0 %3283, %v3255
        %v3285 = vpop.permute.xlu0 %3284
        %3286 = vset.pattern.permute.xlu0 0
        %3287 = vperm.xlu0 %3286, %v3256
        %v3288 = vpop.permute.xlu0 %3287
        %3289 = vset.pattern.permute.xlu0 0
        %3290 = vperm.xlu0 %3289, %v3257
        %v3291 = vpop.permute.xlu0 %3290
        %3292 = vset.pattern.permute.xlu0 0
        %3293 = vperm.xlu0 %3292, %v3258
        %v3294 = vpop.permute.xlu0 %3293
        %3295 = vset.pattern.permute.xlu0 0
        %3296 = vperm.xlu0 %3295, %v3259
        %v3297 = vpop.permute.xlu0 %3296
        %3298 = vset.pattern.permute.xlu0 0
        %3299 = vperm.xlu0 %3298, %v3260
        %v3300 = vpop.permute.xlu0 %3299
        %3301 = vset.pattern.permute.xlu0 0
        %3302 = vperm.xlu0 %3301, %v3261
        %v3303 = vpop.permute.xlu0 %3302
        %3304 = vset.pattern.permute.xlu0 0
        %3305 = vperm.xlu0 %3304, %v3262
        %v3306 = vpop.permute.xlu0 %3305
        %3307 = vset.pattern.permute.xlu0 0
        %3308 = vperm.xlu0 %3307, %v3263
        %v3309 = vpop.permute.xlu0 %3308
        %3310 = vset.pattern.permute.xlu0 0
        %3311 = vperm.xlu0 %3310, %v3264
        %v3312 = vpop.permute.xlu0 %3311
        %vm3313 = vcmp.eq.s32.totalorder %v3267, 1
        %vm3314 = vcmp.eq.s32.totalorder %v3270, 1
        %vm3315 = vcmp.eq.s32.totalorder %v3273, 1
        %vm3316 = vcmp.eq.s32.totalorder %v3276, 1
        %vm3317 = vcmp.eq.s32.totalorder %v3279, 1
        %vm3318 = vcmp.eq.s32.totalorder %v3282, 1
        %vm3319 = vcmp.eq.s32.totalorder %v3285, 1
        %vm3320 = vcmp.eq.s32.totalorder %v3288, 1
        %vm3321 = vcmp.eq.s32.totalorder %v3291, 1
        %vm3322 = vcmp.eq.s32.totalorder %v3294, 1
        %vm3323 = vcmp.eq.s32.totalorder %v3297, 1
        %vm3324 = vcmp.eq.s32.totalorder %v3300, 1
        %vm3325 = vcmp.eq.s32.totalorder %v3303, 1
        %vm3326 = vcmp.eq.s32.totalorder %v3306, 1
        %vm3327 = vcmp.eq.s32.totalorder %v3309, 1
        %vm3328 = vcmp.eq.s32.totalorder %v3312, 1
        %v3329 = vsel %vm3313, %v3246, 3e+38
        %v3330 = vsel %vm3314, %v3246, 3e+38
        %v3331 = vsel %vm3315, %v3246, 3e+38
        %v3332 = vsel %vm3316, %v3246, 3e+38
        %v3333 = vsel %vm3317, %v3246, 3e+38
        %v3334 = vsel %vm3318, %v3246, 3e+38
        %v3335 = vsel %vm3319, %v3246, 3e+38
        %v3336 = vsel %vm3320, %v3246, 3e+38
        %v3337 = vsel %vm3321, %v3246, 3e+38
        %v3338 = vsel %vm3322, %v3246, 3e+38
        %v3339 = vsel %vm3323, %v3246, 3e+38
        %v3340 = vsel %vm3324, %v3246, 3e+38
        %v3341 = vsel %vm3325, %v3246, 3e+38
        %v3342 = vsel %vm3326, %v3246, 3e+38
        %v3343 = vsel %vm3327, %v3246, 3e+38
        %v3344 = vsel %vm3328, %v3246, 3e+38
        %v3345 = vrot.slane %v3329, 4
        %v3346 = vmin.f32 %v3329, %v3345
        %v3347 = vrot.slane %v3346, 2
        %v3348 = vmin.f32 %v3346, %v3347
        %v3349 = vrot.slane %v3348, 1
        %v3350 = vmin.f32 %v3348, %v3349
        %v3351 = vrot.slane %v3330, 4
        %v3352 = vmin.f32 %v3330, %v3351
        %v3353 = vrot.slane %v3352, 2
        %v3354 = vmin.f32 %v3352, %v3353
        %v3355 = vrot.slane %v3354, 1
        %v3356 = vmin.f32 %v3354, %v3355
        %v3357 = vrot.slane %v3331, 4
        %v3358 = vmin.f32 %v3331, %v3357
        %v3359 = vrot.slane %v3358, 2
        %v3360 = vmin.f32 %v3358, %v3359
        %v3361 = vrot.slane %v3360, 1
        %v3362 = vmin.f32 %v3360, %v3361
        %v3363 = vrot.slane %v3332, 4
        %v3364 = vmin.f32 %v3332, %v3363
        %v3365 = vrot.slane %v3364, 2
        %v3366 = vmin.f32 %v3364, %v3365
        %v3367 = vrot.slane %v3366, 1
        %v3368 = vmin.f32 %v3366, %v3367
        %v3369 = vrot.slane %v3333, 4
        %v3370 = vmin.f32 %v3333, %v3369
        %v3371 = vrot.slane %v3370, 2
        %v3372 = vmin.f32 %v3370, %v3371
        %v3373 = vrot.slane %v3372, 1
        %v3374 = vmin.f32 %v3372, %v3373
        %v3375 = vrot.slane %v3334, 4
        %v3376 = vmin.f32 %v3334, %v3375
        %v3377 = vrot.slane %v3376, 2
        %v3378 = vmin.f32 %v3376, %v3377
        %v3379 = vrot.slane %v3378, 1
        %v3380 = vmin.f32 %v3378, %v3379
        %v3381 = vrot.slane %v3335, 4
        %v3382 = vmin.f32 %v3335, %v3381
        %v3383 = vrot.slane %v3382, 2
        %v3384 = vmin.f32 %v3382, %v3383
        %v3385 = vrot.slane %v3384, 1
        %v3386 = vmin.f32 %v3384, %v3385
        %v3387 = vrot.slane %v3336, 4
        %v3388 = vmin.f32 %v3336, %v3387
        %v3389 = vrot.slane %v3388, 2
        %v3390 = vmin.f32 %v3388, %v3389
        %v3391 = vrot.slane %v3390, 1
        %v3392 = vmin.f32 %v3390, %v3391
        %v3393 = vrot.slane %v3337, 4
        %v3394 = vmin.f32 %v3337, %v3393
        %v3395 = vrot.slane %v3394, 2
        %v3396 = vmin.f32 %v3394, %v3395
        %v3397 = vrot.slane %v3396, 1
        %v3398 = vmin.f32 %v3396, %v3397
        %v3399 = vrot.slane %v3338, 4
        %v3400 = vmin.f32 %v3338, %v3399
        %v3401 = vrot.slane %v3400, 2
        %v3402 = vmin.f32 %v3400, %v3401
        %v3403 = vrot.slane %v3402, 1
        %v3404 = vmin.f32 %v3402, %v3403
        %v3405 = vrot.slane %v3339, 4
        %v3406 = vmin.f32 %v3339, %v3405
        %v3407 = vrot.slane %v3406, 2
        %v3408 = vmin.f32 %v3406, %v3407
        %v3409 = vrot.slane %v3408, 1
        %v3410 = vmin.f32 %v3408, %v3409
        %v3411 = vrot.slane %v3340, 4
        %v3412 = vmin.f32 %v3340, %v3411
        %v3413 = vrot.slane %v3412, 2
        %v3414 = vmin.f32 %v3412, %v3413
        %v3415 = vrot.slane %v3414, 1
        %v3416 = vmin.f32 %v3414, %v3415
        %v3417 = vrot.slane %v3341, 4
        %v3418 = vmin.f32 %v3341, %v3417
        %v3419 = vrot.slane %v3418, 2
        %v3420 = vmin.f32 %v3418, %v3419
        %v3421 = vrot.slane %v3420, 1
        %v3422 = vmin.f32 %v3420, %v3421
        %v3423 = vrot.slane %v3342, 4
        %v3424 = vmin.f32 %v3342, %v3423
        %v3425 = vrot.slane %v3424, 2
        %v3426 = vmin.f32 %v3424, %v3425
        %v3427 = vrot.slane %v3426, 1
        %v3428 = vmin.f32 %v3426, %v3427
        %v3429 = vrot.slane %v3343, 4
        %v3430 = vmin.f32 %v3343, %v3429
        %v3431 = vrot.slane %v3430, 2
        %v3432 = vmin.f32 %v3430, %v3431
        %v3433 = vrot.slane %v3432, 1
        %v3434 = vmin.f32 %v3432, %v3433
        %v3435 = vrot.slane %v3344, 4
        %v3436 = vmin.f32 %v3344, %v3435
        %v3437 = vrot.slane %v3436, 2
        %v3438 = vmin.f32 %v3436, %v3437
        %v3439 = vrot.slane %v3438, 1
        %v3440 = vmin.f32 %v3438, %v3439
        %v3457 = vsel %vm657, %v3356, %v3350
        %v3458 = vsel %vm659, %v3362, %v3457
        %v3459 = vsel %vm661, %v3368, %v3458
        %v3460 = vsel %vm663, %v3374, %v3459
        %v3461 = vsel %vm665, %v3380, %v3460
        %v3462 = vsel %vm667, %v3386, %v3461
        %v3463 = vsel %vm669, %v3392, %v3462
        %v3464 = vsel %vm657, %v3404, %v3398
        %v3465 = vsel %vm659, %v3410, %v3464
        %v3466 = vsel %vm661, %v3416, %v3465
        %v3467 = vsel %vm663, %v3422, %v3466
        %v3468 = vsel %vm665, %v3428, %v3467
        %v3469 = vsel %vm667, %v3434, %v3468
        %v3470 = vsel %vm669, %v3440, %v3469
        %v3473 = vmin.f32 %v3247, %v3463
        %v3474 = vmin.f32 %v3248, %v3470
        %3475 = vst [vmem:[#allocation3] sm:$0xff] %v3473
        %3476 = vst [vmem:[#allocation3 + $0x8] sm:$0xff] %v3474
        %v3477 = vld [vmem:[#allocation4] sm:$0xff]
        %v3478 = vld [vmem:[#allocation4 + $0x8] sm:$0xff]
        %v3479 = vsel %vm3313, %v3246, -3e+38
        %v3480 = vsel %vm3314, %v3246, -3e+38
        %v3481 = vsel %vm3315, %v3246, -3e+38
        %v3482 = vsel %vm3316, %v3246, -3e+38
        %v3483 = vsel %vm3317, %v3246, -3e+38
        %v3484 = vsel %vm3318, %v3246, -3e+38
        %v3485 = vsel %vm3319, %v3246, -3e+38
        %v3486 = vsel %vm3320, %v3246, -3e+38
        %v3487 = vsel %vm3321, %v3246, -3e+38
        %v3488 = vsel %vm3322, %v3246, -3e+38
        %v3489 = vsel %vm3323, %v3246, -3e+38
        %v3490 = vsel %vm3324, %v3246, -3e+38
        %v3491 = vsel %vm3325, %v3246, -3e+38
        %v3492 = vsel %vm3326, %v3246, -3e+38
        %v3493 = vsel %vm3327, %v3246, -3e+38
        %v3494 = vsel %vm3328, %v3246, -3e+38
        %v3495 = vrot.slane %v3479, 4
        %v3496 = vmax.f32 %v3479, %v3495
        %v3497 = vrot.slane %v3496, 2
        %v3498 = vmax.f32 %v3496, %v3497
        %v3499 = vrot.slane %v3498, 1
        %v3500 = vmax.f32 %v3498, %v3499
        %v3501 = vrot.slane %v3480, 4
        %v3502 = vmax.f32 %v3480, %v3501
        %v3503 = vrot.slane %v3502, 2
        %v3504 = vmax.f32 %v3502, %v3503
        %v3505 = vrot.slane %v3504, 1
        %v3506 = vmax.f32 %v3504, %v3505
        %v3507 = vrot.slane %v3481, 4
        %v3508 = vmax.f32 %v3481, %v3507
        %v3509 = vrot.slane %v3508, 2
        %v3510 = vmax.f32 %v3508, %v3509
        %v3511 = vrot.slane %v3510, 1
        %v3512 = vmax.f32 %v3510, %v3511
        %v3513 = vrot.slane %v3482, 4
        %v3514 = vmax.f32 %v3482, %v3513
        %v3515 = vrot.slane %v3514, 2
        %v3516 = vmax.f32 %v3514, %v3515
        %v3517 = vrot.slane %v3516, 1
        %v3518 = vmax.f32 %v3516, %v3517
        %v3519 = vrot.slane %v3483, 4
        %v3520 = vmax.f32 %v3483, %v3519
        %v3521 = vrot.slane %v3520, 2
        %v3522 = vmax.f32 %v3520, %v3521
        %v3523 = vrot.slane %v3522, 1
        %v3524 = vmax.f32 %v3522, %v3523
        %v3525 = vrot.slane %v3484, 4
        %v3526 = vmax.f32 %v3484, %v3525
        %v3527 = vrot.slane %v3526, 2
        %v3528 = vmax.f32 %v3526, %v3527
        %v3529 = vrot.slane %v3528, 1
        %v3530 = vmax.f32 %v3528, %v3529
        %v3531 = vrot.slane %v3485, 4
        %v3532 = vmax.f32 %v3485, %v3531
        %v3533 = vrot.slane %v3532, 2
        %v3534 = vmax.f32 %v3532, %v3533
        %v3535 = vrot.slane %v3534, 1
        %v3536 = vmax.f32 %v3534, %v3535
        %v3537 = vrot.slane %v3486, 4
        %v3538 = vmax.f32 %v3486, %v3537
        %v3539 = vrot.slane %v3538, 2
        %v3540 = vmax.f32 %v3538, %v3539
        %v3541 = vrot.slane %v3540, 1
        %v3542 = vmax.f32 %v3540, %v3541
        %v3543 = vrot.slane %v3487, 4
        %v3544 = vmax.f32 %v3487, %v3543
        %v3545 = vrot.slane %v3544, 2
        %v3546 = vmax.f32 %v3544, %v3545
        %v3547 = vrot.slane %v3546, 1
        %v3548 = vmax.f32 %v3546, %v3547
        %v3549 = vrot.slane %v3488, 4
        %v3550 = vmax.f32 %v3488, %v3549
        %v3551 = vrot.slane %v3550, 2
        %v3552 = vmax.f32 %v3550, %v3551
        %v3553 = vrot.slane %v3552, 1
        %v3554 = vmax.f32 %v3552, %v3553
        %v3555 = vrot.slane %v3489, 4
        %v3556 = vmax.f32 %v3489, %v3555
        %v3557 = vrot.slane %v3556, 2
        %v3558 = vmax.f32 %v3556, %v3557
        %v3559 = vrot.slane %v3558, 1
        %v3560 = vmax.f32 %v3558, %v3559
        %v3561 = vrot.slane %v3490, 4
        %v3562 = vmax.f32 %v3490, %v3561
        %v3563 = vrot.slane %v3562, 2
        %v3564 = vmax.f32 %v3562, %v3563
        %v3565 = vrot.slane %v3564, 1
        %v3566 = vmax.f32 %v3564, %v3565
        %v3567 = vrot.slane %v3491, 4
        %v3568 = vmax.f32 %v3491, %v3567
        %v3569 = vrot.slane %v3568, 2
        %v3570 = vmax.f32 %v3568, %v3569
        %v3571 = vrot.slane %v3570, 1
        %v3572 = vmax.f32 %v3570, %v3571
        %v3573 = vrot.slane %v3492, 4
        %v3574 = vmax.f32 %v3492, %v3573
        %v3575 = vrot.slane %v3574, 2
        %v3576 = vmax.f32 %v3574, %v3575
        %v3577 = vrot.slane %v3576, 1
        %v3578 = vmax.f32 %v3576, %v3577
        %v3579 = vrot.slane %v3493, 4
        %v3580 = vmax.f32 %v3493, %v3579
        %v3581 = vrot.slane %v3580, 2
        %v3582 = vmax.f32 %v3580, %v3581
        %v3583 = vrot.slane %v3582, 1
        %v3584 = vmax.f32 %v3582, %v3583
        %v3585 = vrot.slane %v3494, 4
        %v3586 = vmax.f32 %v3494, %v3585
        %v3587 = vrot.slane %v3586, 2
        %v3588 = vmax.f32 %v3586, %v3587
        %v3589 = vrot.slane %v3588, 1
        %v3590 = vmax.f32 %v3588, %v3589
        %v3607 = vsel %vm657, %v3506, %v3500
        %v3608 = vsel %vm659, %v3512, %v3607
        %v3609 = vsel %vm661, %v3518, %v3608
        %v3610 = vsel %vm663, %v3524, %v3609
        %v3611 = vsel %vm665, %v3530, %v3610
        %v3612 = vsel %vm667, %v3536, %v3611
        %v3613 = vsel %vm669, %v3542, %v3612
        %v3614 = vsel %vm657, %v3554, %v3548
        %v3615 = vsel %vm659, %v3560, %v3614
        %v3616 = vsel %vm661, %v3566, %v3615
        %v3617 = vsel %vm663, %v3572, %v3616
        %v3618 = vsel %vm665, %v3578, %v3617
        %v3619 = vsel %vm667, %v3584, %v3618
        %v3620 = vsel %vm669, %v3590, %v3619
        %v3623 = vmax.f32 %v3477, %v3613
        %v3624 = vmax.f32 %v3478, %v3620
        %3625 = vst [vmem:[#allocation4] sm:$0xff] %v3623
        %3626 = vst [vmem:[#allocation4 + $0x8] sm:$0xff] %v3624
        %v3627 = vld [vmem:[%s280 + $0x40] sm:$0xff]
        %vm3628 = vcmp.eq.s32.totalorder %v306, %v3627
        %vm3629 = vcmp.eq.s32.totalorder %v413, %v3627
        %vm3630 = vcmp.eq.s32.totalorder %v414, %v3627
        %vm3631 = vcmp.eq.s32.totalorder %v415, %v3627
        %vm3632 = vcmp.eq.s32.totalorder %v416, %v3627
        %vm3633 = vcmp.eq.s32.totalorder %v417, %v3627
        %vm3634 = vcmp.eq.s32.totalorder %v418, %v3627
        %vm3635 = vcmp.eq.s32.totalorder %v419, %v3627
        %vm3636 = vcmp.eq.s32.totalorder %v420, %v3627
        %vm3637 = vcmp.eq.s32.totalorder %v421, %v3627
        %vm3638 = vcmp.eq.s32.totalorder %v422, %v3627
        %vm3639 = vcmp.eq.s32.totalorder %v423, %v3627
        %vm3640 = vcmp.eq.s32.totalorder %v424, %v3627
        %vm3641 = vcmp.eq.s32.totalorder %v425, %v3627
        %vm3642 = vcmp.eq.s32.totalorder %v426, %v3627
        %vm3643 = vcmp.eq.s32.totalorder %v427, %v3627
        %v3644 = vld [vmem:[%s286 + $0x20] sm:$0xf]
        %v3645 = vunpack.c.l.bf16 %v3644
        %v3646 = vld [vmem:[#allocation3] sm:$0xff]
        %v3647 = vld [vmem:[#allocation3 + $0x8] sm:$0xff]
        %v3648 = vsel %vm3628, 1, 0
        %v3649 = vsel %vm3629, 1, 0
        %v3650 = vsel %vm3630, 1, 0
        %v3651 = vsel %vm3631, 1, 0
        %v3652 = vsel %vm3632, 1, 0
        %v3653 = vsel %vm3633, 1, 0
        %v3654 = vsel %vm3634, 1, 0
        %v3655 = vsel %vm3635, 1, 0
        %v3656 = vsel %vm3636, 1, 0
        %v3657 = vsel %vm3637, 1, 0
        %v3658 = vsel %vm3638, 1, 0
        %v3659 = vsel %vm3639, 1, 0
        %v3660 = vsel %vm3640, 1, 0
        %v3661 = vsel %vm3641, 1, 0
        %v3662 = vsel %vm3642, 1, 0
        %v3663 = vsel %vm3643, 1, 0
        %3664 = vset.pattern.permute.xlu0 0
        %3665 = vperm.xlu0 %3664, %v3648
        %v3666 = vpop.permute.xlu0 %3665
        %3667 = vset.pattern.permute.xlu0 0
        %3668 = vperm.xlu0 %3667, %v3649
        %v3669 = vpop.permute.xlu0 %3668
        %3670 = vset.pattern.permute.xlu0 0
        %3671 = vperm.xlu0 %3670, %v3650
        %v3672 = vpop.permute.xlu0 %3671
        %3673 = vset.pattern.permute.xlu0 0
        %3674 = vperm.xlu0 %3673, %v3651
        %v3675 = vpop.permute.xlu0 %3674
        %3676 = vset.pattern.permute.xlu0 0
        %3677 = vperm.xlu0 %3676, %v3652
        %v3678 = vpop.permute.xlu0 %3677
        %3679 = vset.pattern.permute.xlu0 0
        %3680 = vperm.xlu0 %3679, %v3653
        %v3681 = vpop.permute.xlu0 %3680
        %3682 = vset.pattern.permute.xlu0 0
        %3683 = vperm.xlu0 %3682, %v3654
        %v3684 = vpop.permute.xlu0 %3683
        %3685 = vset.pattern.permute.xlu0 0
        %3686 = vperm.xlu0 %3685, %v3655
        %v3687 = vpop.permute.xlu0 %3686
        %3688 = vset.pattern.permute.xlu0 0
        %3689 = vperm.xlu0 %3688, %v3656
        %v3690 = vpop.permute.xlu0 %3689
        %3691 = vset.pattern.permute.xlu0 0
        %3692 = vperm.xlu0 %3691, %v3657
        %v3693 = vpop.permute.xlu0 %3692
        %3694 = vset.pattern.permute.xlu0 0
        %3695 = vperm.xlu0 %3694, %v3658
        %v3696 = vpop.permute.xlu0 %3695
        %3697 = vset.pattern.permute.xlu0 0
        %3698 = vperm.xlu0 %3697, %v3659
        %v3699 = vpop.permute.xlu0 %3698
        %3700 = vset.pattern.permute.xlu0 0
        %3701 = vperm.xlu0 %3700, %v3660
        %v3702 = vpop.permute.xlu0 %3701
        %3703 = vset.pattern.permute.xlu0 0
        %3704 = vperm.xlu0 %3703, %v3661
        %v3705 = vpop.permute.xlu0 %3704
        %3706 = vset.pattern.permute.xlu0 0
        %3707 = vperm.xlu0 %3706, %v3662
        %v3708 = vpop.permute.xlu0 %3707
        %3709 = vset.pattern.permute.xlu0 0
        %3710 = vperm.xlu0 %3709, %v3663
        %v3711 = vpop.permute.xlu0 %3710
        %vm3712 = vcmp.eq.s32.totalorder %v3666, 1
        %vm3713 = vcmp.eq.s32.totalorder %v3669, 1
        %vm3714 = vcmp.eq.s32.totalorder %v3672, 1
        %vm3715 = vcmp.eq.s32.totalorder %v3675, 1
        %vm3716 = vcmp.eq.s32.totalorder %v3678, 1
        %vm3717 = vcmp.eq.s32.totalorder %v3681, 1
        %vm3718 = vcmp.eq.s32.totalorder %v3684, 1
        %vm3719 = vcmp.eq.s32.totalorder %v3687, 1
        %vm3720 = vcmp.eq.s32.totalorder %v3690, 1
        %vm3721 = vcmp.eq.s32.totalorder %v3693, 1
        %vm3722 = vcmp.eq.s32.totalorder %v3696, 1
        %vm3723 = vcmp.eq.s32.totalorder %v3699, 1
        %vm3724 = vcmp.eq.s32.totalorder %v3702, 1
        %vm3725 = vcmp.eq.s32.totalorder %v3705, 1
        %vm3726 = vcmp.eq.s32.totalorder %v3708, 1
        %vm3727 = vcmp.eq.s32.totalorder %v3711, 1
        %v3728 = vsel %vm3712, %v3645, 3e+38
        %v3729 = vsel %vm3713, %v3645, 3e+38
        %v3730 = vsel %vm3714, %v3645, 3e+38
        %v3731 = vsel %vm3715, %v3645, 3e+38
        %v3732 = vsel %vm3716, %v3645, 3e+38
        %v3733 = vsel %vm3717, %v3645, 3e+38
        %v3734 = vsel %vm3718, %v3645, 3e+38
        %v3735 = vsel %vm3719, %v3645, 3e+38
        %v3736 = vsel %vm3720, %v3645, 3e+38
        %v3737 = vsel %vm3721, %v3645, 3e+38
        %v3738 = vsel %vm3722, %v3645, 3e+38
        %v3739 = vsel %vm3723, %v3645, 3e+38
        %v3740 = vsel %vm3724, %v3645, 3e+38
        %v3741 = vsel %vm3725, %v3645, 3e+38
        %v3742 = vsel %vm3726, %v3645, 3e+38
        %v3743 = vsel %vm3727, %v3645, 3e+38
        %v3744 = vrot.slane %v3728, 4
        %v3745 = vmin.f32 %v3728, %v3744
        %v3746 = vrot.slane %v3745, 2
        %v3747 = vmin.f32 %v3745, %v3746
        %v3748 = vrot.slane %v3747, 1
        %v3749 = vmin.f32 %v3747, %v3748
        %v3750 = vrot.slane %v3729, 4
        %v3751 = vmin.f32 %v3729, %v3750
        %v3752 = vrot.slane %v3751, 2
        %v3753 = vmin.f32 %v3751, %v3752
        %v3754 = vrot.slane %v3753, 1
        %v3755 = vmin.f32 %v3753, %v3754
        %v3756 = vrot.slane %v3730, 4
        %v3757 = vmin.f32 %v3730, %v3756
        %v3758 = vrot.slane %v3757, 2
        %v3759 = vmin.f32 %v3757, %v3758
        %v3760 = vrot.slane %v3759, 1
        %v3761 = vmin.f32 %v3759, %v3760
        %v3762 = vrot.slane %v3731, 4
        %v3763 = vmin.f32 %v3731, %v3762
        %v3764 = vrot.slane %v3763, 2
        %v3765 = vmin.f32 %v3763, %v3764
        %v3766 = vrot.slane %v3765, 1
        %v3767 = vmin.f32 %v3765, %v3766
        %v3768 = vrot.slane %v3732, 4
        %v3769 = vmin.f32 %v3732, %v3768
        %v3770 = vrot.slane %v3769, 2
        %v3771 = vmin.f32 %v3769, %v3770
        %v3772 = vrot.slane %v3771, 1
        %v3773 = vmin.f32 %v3771, %v3772
        %v3774 = vrot.slane %v3733, 4
        %v3775 = vmin.f32 %v3733, %v3774
        %v3776 = vrot.slane %v3775, 2
        %v3777 = vmin.f32 %v3775, %v3776
        %v3778 = vrot.slane %v3777, 1
        %v3779 = vmin.f32 %v3777, %v3778
        %v3780 = vrot.slane %v3734, 4
        %v3781 = vmin.f32 %v3734, %v3780
        %v3782 = vrot.slane %v3781, 2
        %v3783 = vmin.f32 %v3781, %v3782
        %v3784 = vrot.slane %v3783, 1
        %v3785 = vmin.f32 %v3783, %v3784
        %v3786 = vrot.slane %v3735, 4
        %v3787 = vmin.f32 %v3735, %v3786
        %v3788 = vrot.slane %v3787, 2
        %v3789 = vmin.f32 %v3787, %v3788
        %v3790 = vrot.slane %v3789, 1
        %v3791 = vmin.f32 %v3789, %v3790
        %v3792 = vrot.slane %v3736, 4
        %v3793 = vmin.f32 %v3736, %v3792
        %v3794 = vrot.slane %v3793, 2
        %v3795 = vmin.f32 %v3793, %v3794
        %v3796 = vrot.slane %v3795, 1
        %v3797 = vmin.f32 %v3795, %v3796
        %v3798 = vrot.slane %v3737, 4
        %v3799 = vmin.f32 %v3737, %v3798
        %v3800 = vrot.slane %v3799, 2
        %v3801 = vmin.f32 %v3799, %v3800
        %v3802 = vrot.slane %v3801, 1
        %v3803 = vmin.f32 %v3801, %v3802
        %v3804 = vrot.slane %v3738, 4
        %v3805 = vmin.f32 %v3738, %v3804
        %v3806 = vrot.slane %v3805, 2
        %v3807 = vmin.f32 %v3805, %v3806
        %v3808 = vrot.slane %v3807, 1
        %v3809 = vmin.f32 %v3807, %v3808
        %v3810 = vrot.slane %v3739, 4
        %v3811 = vmin.f32 %v3739, %v3810
        %v3812 = vrot.slane %v3811, 2
        %v3813 = vmin.f32 %v3811, %v3812
        %v3814 = vrot.slane %v3813, 1
        %v3815 = vmin.f32 %v3813, %v3814
        %v3816 = vrot.slane %v3740, 4
        %v3817 = vmin.f32 %v3740, %v3816
        %v3818 = vrot.slane %v3817, 2
        %v3819 = vmin.f32 %v3817, %v3818
        %v3820 = vrot.slane %v3819, 1
        %v3821 = vmin.f32 %v3819, %v3820
        %v3822 = vrot.slane %v3741, 4
        %v3823 = vmin.f32 %v3741, %v3822
        %v3824 = vrot.slane %v3823, 2
        %v3825 = vmin.f32 %v3823, %v3824
        %v3826 = vrot.slane %v3825, 1
        %v3827 = vmin.f32 %v3825, %v3826
        %v3828 = vrot.slane %v3742, 4
        %v3829 = vmin.f32 %v3742, %v3828
        %v3830 = vrot.slane %v3829, 2
        %v3831 = vmin.f32 %v3829, %v3830
        %v3832 = vrot.slane %v3831, 1
        %v3833 = vmin.f32 %v3831, %v3832
        %v3834 = vrot.slane %v3743, 4
        %v3835 = vmin.f32 %v3743, %v3834
        %v3836 = vrot.slane %v3835, 2
        %v3837 = vmin.f32 %v3835, %v3836
        %v3838 = vrot.slane %v3837, 1
        %v3839 = vmin.f32 %v3837, %v3838
        %v3856 = vsel %vm657, %v3755, %v3749
        %v3857 = vsel %vm659, %v3761, %v3856
        %v3858 = vsel %vm661, %v3767, %v3857
        %v3859 = vsel %vm663, %v3773, %v3858
        %v3860 = vsel %vm665, %v3779, %v3859
        %v3861 = vsel %vm667, %v3785, %v3860
        %v3862 = vsel %vm669, %v3791, %v3861
        %v3863 = vsel %vm657, %v3803, %v3797
        %v3864 = vsel %vm659, %v3809, %v3863
        %v3865 = vsel %vm661, %v3815, %v3864
        %v3866 = vsel %vm663, %v3821, %v3865
        %v3867 = vsel %vm665, %v3827, %v3866
        %v3868 = vsel %vm667, %v3833, %v3867
        %v3869 = vsel %vm669, %v3839, %v3868
        %v3872 = vmin.f32 %v3646, %v3862
        %v3873 = vmin.f32 %v3647, %v3869
        %3874 = vst [vmem:[#allocation3] sm:$0xff] %v3872
        %3875 = vst [vmem:[#allocation3 + $0x8] sm:$0xff] %v3873
        %v3876 = vld [vmem:[#allocation4] sm:$0xff]
        %v3877 = vld [vmem:[#allocation4 + $0x8] sm:$0xff]
        %v3878 = vsel %vm3712, %v3645, -3e+38
        %v3879 = vsel %vm3713, %v3645, -3e+38
        %v3880 = vsel %vm3714, %v3645, -3e+38
        %v3881 = vsel %vm3715, %v3645, -3e+38
        %v3882 = vsel %vm3716, %v3645, -3e+38
        %v3883 = vsel %vm3717, %v3645, -3e+38
        %v3884 = vsel %vm3718, %v3645, -3e+38
        %v3885 = vsel %vm3719, %v3645, -3e+38
        %v3886 = vsel %vm3720, %v3645, -3e+38
        %v3887 = vsel %vm3721, %v3645, -3e+38
        %v3888 = vsel %vm3722, %v3645, -3e+38
        %v3889 = vsel %vm3723, %v3645, -3e+38
        %v3890 = vsel %vm3724, %v3645, -3e+38
        %v3891 = vsel %vm3725, %v3645, -3e+38
        %v3892 = vsel %vm3726, %v3645, -3e+38
        %v3893 = vsel %vm3727, %v3645, -3e+38
        %v3894 = vrot.slane %v3878, 4
        %v3895 = vmax.f32 %v3878, %v3894
        %v3896 = vrot.slane %v3895, 2
        %v3897 = vmax.f32 %v3895, %v3896
        %v3898 = vrot.slane %v3897, 1
        %v3899 = vmax.f32 %v3897, %v3898
        %v3900 = vrot.slane %v3879, 4
        %v3901 = vmax.f32 %v3879, %v3900
        %v3902 = vrot.slane %v3901, 2
        %v3903 = vmax.f32 %v3901, %v3902
        %v3904 = vrot.slane %v3903, 1
        %v3905 = vmax.f32 %v3903, %v3904
        %v3906 = vrot.slane %v3880, 4
        %v3907 = vmax.f32 %v3880, %v3906
        %v3908 = vrot.slane %v3907, 2
        %v3909 = vmax.f32 %v3907, %v3908
        %v3910 = vrot.slane %v3909, 1
        %v3911 = vmax.f32 %v3909, %v3910
        %v3912 = vrot.slane %v3881, 4
        %v3913 = vmax.f32 %v3881, %v3912
        %v3914 = vrot.slane %v3913, 2
        %v3915 = vmax.f32 %v3913, %v3914
        %v3916 = vrot.slane %v3915, 1
        %v3917 = vmax.f32 %v3915, %v3916
        %v3918 = vrot.slane %v3882, 4
        %v3919 = vmax.f32 %v3882, %v3918
        %v3920 = vrot.slane %v3919, 2
        %v3921 = vmax.f32 %v3919, %v3920
        %v3922 = vrot.slane %v3921, 1
        %v3923 = vmax.f32 %v3921, %v3922
        %v3924 = vrot.slane %v3883, 4
        %v3925 = vmax.f32 %v3883, %v3924
        %v3926 = vrot.slane %v3925, 2
        %v3927 = vmax.f32 %v3925, %v3926
        %v3928 = vrot.slane %v3927, 1
        %v3929 = vmax.f32 %v3927, %v3928
        %v3930 = vrot.slane %v3884, 4
        %v3931 = vmax.f32 %v3884, %v3930
        %v3932 = vrot.slane %v3931, 2
        %v3933 = vmax.f32 %v3931, %v3932
        %v3934 = vrot.slane %v3933, 1
        %v3935 = vmax.f32 %v3933, %v3934
        %v3936 = vrot.slane %v3885, 4
        %v3937 = vmax.f32 %v3885, %v3936
        %v3938 = vrot.slane %v3937, 2
        %v3939 = vmax.f32 %v3937, %v3938
        %v3940 = vrot.slane %v3939, 1
        %v3941 = vmax.f32 %v3939, %v3940
        %v3942 = vrot.slane %v3886, 4
        %v3943 = vmax.f32 %v3886, %v3942
        %v3944 = vrot.slane %v3943, 2
        %v3945 = vmax.f32 %v3943, %v3944
        %v3946 = vrot.slane %v3945, 1
        %v3947 = vmax.f32 %v3945, %v3946
        %v3948 = vrot.slane %v3887, 4
        %v3949 = vmax.f32 %v3887, %v3948
        %v3950 = vrot.slane %v3949, 2
        %v3951 = vmax.f32 %v3949, %v3950
        %v3952 = vrot.slane %v3951, 1
        %v3953 = vmax.f32 %v3951, %v3952
        %v3954 = vrot.slane %v3888, 4
        %v3955 = vmax.f32 %v3888, %v3954
        %v3956 = vrot.slane %v3955, 2
        %v3957 = vmax.f32 %v3955, %v3956
        %v3958 = vrot.slane %v3957, 1
        %v3959 = vmax.f32 %v3957, %v3958
        %v3960 = vrot.slane %v3889, 4
        %v3961 = vmax.f32 %v3889, %v3960
        %v3962 = vrot.slane %v3961, 2
        %v3963 = vmax.f32 %v3961, %v3962
        %v3964 = vrot.slane %v3963, 1
        %v3965 = vmax.f32 %v3963, %v3964
        %v3966 = vrot.slane %v3890, 4
        %v3967 = vmax.f32 %v3890, %v3966
        %v3968 = vrot.slane %v3967, 2
        %v3969 = vmax.f32 %v3967, %v3968
        %v3970 = vrot.slane %v3969, 1
        %v3971 = vmax.f32 %v3969, %v3970
        %v3972 = vrot.slane %v3891, 4
        %v3973 = vmax.f32 %v3891, %v3972
        %v3974 = vrot.slane %v3973, 2
        %v3975 = vmax.f32 %v3973, %v3974
        %v3976 = vrot.slane %v3975, 1
        %v3977 = vmax.f32 %v3975, %v3976
        %v3978 = vrot.slane %v3892, 4
        %v3979 = vmax.f32 %v3892, %v3978
        %v3980 = vrot.slane %v3979, 2
        %v3981 = vmax.f32 %v3979, %v3980
        %v3982 = vrot.slane %v3981, 1
        %v3983 = vmax.f32 %v3981, %v3982
        %v3984 = vrot.slane %v3893, 4
        %v3985 = vmax.f32 %v3893, %v3984
        %v3986 = vrot.slane %v3985, 2
        %v3987 = vmax.f32 %v3985, %v3986
        %v3988 = vrot.slane %v3987, 1
        %v3989 = vmax.f32 %v3987, %v3988
        %v4006 = vsel %vm657, %v3905, %v3899
        %v4007 = vsel %vm659, %v3911, %v4006
        %v4008 = vsel %vm661, %v3917, %v4007
        %v4009 = vsel %vm663, %v3923, %v4008
        %v4010 = vsel %vm665, %v3929, %v4009
        %v4011 = vsel %vm667, %v3935, %v4010
        %v4012 = vsel %vm669, %v3941, %v4011
        %v4013 = vsel %vm657, %v3953, %v3947
        %v4014 = vsel %vm659, %v3959, %v4013
        %v4015 = vsel %vm661, %v3965, %v4014
        %v4016 = vsel %vm663, %v3971, %v4015
        %v4017 = vsel %vm665, %v3977, %v4016
        %v4018 = vsel %vm667, %v3983, %v4017
        %v4019 = vsel %vm669, %v3989, %v4018
        %v4022 = vmax.f32 %v3876, %v4012
        %v4023 = vmax.f32 %v3877, %v4019
        %4024 = vst [vmem:[#allocation4] sm:$0xff] %v4022
        %4025 = vst [vmem:[#allocation4 + $0x8] sm:$0xff] %v4023
        %v4026 = vld [vmem:[%s280 + $0x48] sm:$0xff]
        %vm4027 = vcmp.eq.s32.totalorder %v306, %v4026
        %vm4028 = vcmp.eq.s32.totalorder %v413, %v4026
        %vm4029 = vcmp.eq.s32.totalorder %v414, %v4026
        %vm4030 = vcmp.eq.s32.totalorder %v415, %v4026
        %vm4031 = vcmp.eq.s32.totalorder %v416, %v4026
        %vm4032 = vcmp.eq.s32.totalorder %v417, %v4026
        %vm4033 = vcmp.eq.s32.totalorder %v418, %v4026
        %vm4034 = vcmp.eq.s32.totalorder %v419, %v4026
        %vm4035 = vcmp.eq.s32.totalorder %v420, %v4026
        %vm4036 = vcmp.eq.s32.totalorder %v421, %v4026
        %vm4037 = vcmp.eq.s32.totalorder %v422, %v4026
        %vm4038 = vcmp.eq.s32.totalorder %v423, %v4026
        %vm4039 = vcmp.eq.s32.totalorder %v424, %v4026
        %vm4040 = vcmp.eq.s32.totalorder %v425, %v4026
        %vm4041 = vcmp.eq.s32.totalorder %v426, %v4026
        %vm4042 = vcmp.eq.s32.totalorder %v427, %v4026
        %v4043 = vld [vmem:[%s286 + $0x24] sm:$0xf]
        %v4044 = vunpack.c.l.bf16 %v4043
        %v4045 = vld [vmem:[#allocation3] sm:$0xff]
        %v4046 = vld [vmem:[#allocation3 + $0x8] sm:$0xff]
        %v4047 = vsel %vm4027, 1, 0
        %v4048 = vsel %vm4028, 1, 0
        %v4049 = vsel %vm4029, 1, 0
        %v4050 = vsel %vm4030, 1, 0
        %v4051 = vsel %vm4031, 1, 0
        %v4052 = vsel %vm4032, 1, 0
        %v4053 = vsel %vm4033, 1, 0
        %v4054 = vsel %vm4034, 1, 0
        %v4055 = vsel %vm4035, 1, 0
        %v4056 = vsel %vm4036, 1, 0
        %v4057 = vsel %vm4037, 1, 0
        %v4058 = vsel %vm4038, 1, 0
        %v4059 = vsel %vm4039, 1, 0
        %v4060 = vsel %vm4040, 1, 0
        %v4061 = vsel %vm4041, 1, 0
        %v4062 = vsel %vm4042, 1, 0
        %4063 = vset.pattern.permute.xlu0 0
        %4064 = vperm.xlu0 %4063, %v4047
        %v4065 = vpop.permute.xlu0 %4064
        %4066 = vset.pattern.permute.xlu0 0
        %4067 = vperm.xlu0 %4066, %v4048
        %v4068 = vpop.permute.xlu0 %4067
        %4069 = vset.pattern.permute.xlu0 0
        %4070 = vperm.xlu0 %4069, %v4049
        %v4071 = vpop.permute.xlu0 %4070
        %4072 = vset.pattern.permute.xlu0 0
        %4073 = vperm.xlu0 %4072, %v4050
        %v4074 = vpop.permute.xlu0 %4073
        %4075 = vset.pattern.permute.xlu0 0
        %4076 = vperm.xlu0 %4075, %v4051
        %v4077 = vpop.permute.xlu0 %4076
        %4078 = vset.pattern.permute.xlu0 0
        %4079 = vperm.xlu0 %4078, %v4052
        %v4080 = vpop.permute.xlu0 %4079
        %4081 = vset.pattern.permute.xlu0 0
        %4082 = vperm.xlu0 %4081, %v4053
        %v4083 = vpop.permute.xlu0 %4082
        %4084 = vset.pattern.permute.xlu0 0
        %4085 = vperm.xlu0 %4084, %v4054
        %v4086 = vpop.permute.xlu0 %4085
        %4087 = vset.pattern.permute.xlu0 0
        %4088 = vperm.xlu0 %4087, %v4055
        %v4089 = vpop.permute.xlu0 %4088
        %4090 = vset.pattern.permute.xlu0 0
        %4091 = vperm.xlu0 %4090, %v4056
        %v4092 = vpop.permute.xlu0 %4091
        %4093 = vset.pattern.permute.xlu0 0
        %4094 = vperm.xlu0 %4093, %v4057
        %v4095 = vpop.permute.xlu0 %4094
        %4096 = vset.pattern.permute.xlu0 0
        %4097 = vperm.xlu0 %4096, %v4058
        %v4098 = vpop.permute.xlu0 %4097
        %4099 = vset.pattern.permute.xlu0 0
        %4100 = vperm.xlu0 %4099, %v4059
        %v4101 = vpop.permute.xlu0 %4100
        %4102 = vset.pattern.permute.xlu0 0
        %4103 = vperm.xlu0 %4102, %v4060
        %v4104 = vpop.permute.xlu0 %4103
        %4105 = vset.pattern.permute.xlu0 0
        %4106 = vperm.xlu0 %4105, %v4061
        %v4107 = vpop.permute.xlu0 %4106
        %4108 = vset.pattern.permute.xlu0 0
        %4109 = vperm.xlu0 %4108, %v4062
        %v4110 = vpop.permute.xlu0 %4109
        %vm4111 = vcmp.eq.s32.totalorder %v4065, 1
        %vm4112 = vcmp.eq.s32.totalorder %v4068, 1
        %vm4113 = vcmp.eq.s32.totalorder %v4071, 1
        %vm4114 = vcmp.eq.s32.totalorder %v4074, 1
        %vm4115 = vcmp.eq.s32.totalorder %v4077, 1
        %vm4116 = vcmp.eq.s32.totalorder %v4080, 1
        %vm4117 = vcmp.eq.s32.totalorder %v4083, 1
        %vm4118 = vcmp.eq.s32.totalorder %v4086, 1
        %vm4119 = vcmp.eq.s32.totalorder %v4089, 1
        %vm4120 = vcmp.eq.s32.totalorder %v4092, 1
        %vm4121 = vcmp.eq.s32.totalorder %v4095, 1
        %vm4122 = vcmp.eq.s32.totalorder %v4098, 1
        %vm4123 = vcmp.eq.s32.totalorder %v4101, 1
        %vm4124 = vcmp.eq.s32.totalorder %v4104, 1
        %vm4125 = vcmp.eq.s32.totalorder %v4107, 1
        %vm4126 = vcmp.eq.s32.totalorder %v4110, 1
        %v4127 = vsel %vm4111, %v4044, 3e+38
        %v4128 = vsel %vm4112, %v4044, 3e+38
        %v4129 = vsel %vm4113, %v4044, 3e+38
        %v4130 = vsel %vm4114, %v4044, 3e+38
        %v4131 = vsel %vm4115, %v4044, 3e+38
        %v4132 = vsel %vm4116, %v4044, 3e+38
        %v4133 = vsel %vm4117, %v4044, 3e+38
        %v4134 = vsel %vm4118, %v4044, 3e+38
        %v4135 = vsel %vm4119, %v4044, 3e+38
        %v4136 = vsel %vm4120, %v4044, 3e+38
        %v4137 = vsel %vm4121, %v4044, 3e+38
        %v4138 = vsel %vm4122, %v4044, 3e+38
        %v4139 = vsel %vm4123, %v4044, 3e+38
        %v4140 = vsel %vm4124, %v4044, 3e+38
        %v4141 = vsel %vm4125, %v4044, 3e+38
        %v4142 = vsel %vm4126, %v4044, 3e+38
        %v4143 = vrot.slane %v4127, 4
        %v4144 = vmin.f32 %v4127, %v4143
        %v4145 = vrot.slane %v4144, 2
        %v4146 = vmin.f32 %v4144, %v4145
        %v4147 = vrot.slane %v4146, 1
        %v4148 = vmin.f32 %v4146, %v4147
        %v4149 = vrot.slane %v4128, 4
        %v4150 = vmin.f32 %v4128, %v4149
        %v4151 = vrot.slane %v4150, 2
        %v4152 = vmin.f32 %v4150, %v4151
        %v4153 = vrot.slane %v4152, 1
        %v4154 = vmin.f32 %v4152, %v4153
        %v4155 = vrot.slane %v4129, 4
        %v4156 = vmin.f32 %v4129, %v4155
        %v4157 = vrot.slane %v4156, 2
        %v4158 = vmin.f32 %v4156, %v4157
        %v4159 = vrot.slane %v4158, 1
        %v4160 = vmin.f32 %v4158, %v4159
        %v4161 = vrot.slane %v4130, 4
        %v4162 = vmin.f32 %v4130, %v4161
        %v4163 = vrot.slane %v4162, 2
        %v4164 = vmin.f32 %v4162, %v4163
        %v4165 = vrot.slane %v4164, 1
        %v4166 = vmin.f32 %v4164, %v4165
        %v4167 = vrot.slane %v4131, 4
        %v4168 = vmin.f32 %v4131, %v4167
        %v4169 = vrot.slane %v4168, 2
        %v4170 = vmin.f32 %v4168, %v4169
        %v4171 = vrot.slane %v4170, 1
        %v4172 = vmin.f32 %v4170, %v4171
        %v4173 = vrot.slane %v4132, 4
        %v4174 = vmin.f32 %v4132, %v4173
        %v4175 = vrot.slane %v4174, 2
        %v4176 = vmin.f32 %v4174, %v4175
        %v4177 = vrot.slane %v4176, 1
        %v4178 = vmin.f32 %v4176, %v4177
        %v4179 = vrot.slane %v4133, 4
        %v4180 = vmin.f32 %v4133, %v4179
        %v4181 = vrot.slane %v4180, 2
        %v4182 = vmin.f32 %v4180, %v4181
        %v4183 = vrot.slane %v4182, 1
        %v4184 = vmin.f32 %v4182, %v4183
        %v4185 = vrot.slane %v4134, 4
        %v4186 = vmin.f32 %v4134, %v4185
        %v4187 = vrot.slane %v4186, 2
        %v4188 = vmin.f32 %v4186, %v4187
        %v4189 = vrot.slane %v4188, 1
        %v4190 = vmin.f32 %v4188, %v4189
        %v4191 = vrot.slane %v4135, 4
        %v4192 = vmin.f32 %v4135, %v4191
        %v4193 = vrot.slane %v4192, 2
        %v4194 = vmin.f32 %v4192, %v4193
        %v4195 = vrot.slane %v4194, 1
        %v4196 = vmin.f32 %v4194, %v4195
        %v4197 = vrot.slane %v4136, 4
        %v4198 = vmin.f32 %v4136, %v4197
        %v4199 = vrot.slane %v4198, 2
        %v4200 = vmin.f32 %v4198, %v4199
        %v4201 = vrot.slane %v4200, 1
        %v4202 = vmin.f32 %v4200, %v4201
        %v4203 = vrot.slane %v4137, 4
        %v4204 = vmin.f32 %v4137, %v4203
        %v4205 = vrot.slane %v4204, 2
        %v4206 = vmin.f32 %v4204, %v4205
        %v4207 = vrot.slane %v4206, 1
        %v4208 = vmin.f32 %v4206, %v4207
        %v4209 = vrot.slane %v4138, 4
        %v4210 = vmin.f32 %v4138, %v4209
        %v4211 = vrot.slane %v4210, 2
        %v4212 = vmin.f32 %v4210, %v4211
        %v4213 = vrot.slane %v4212, 1
        %v4214 = vmin.f32 %v4212, %v4213
        %v4215 = vrot.slane %v4139, 4
        %v4216 = vmin.f32 %v4139, %v4215
        %v4217 = vrot.slane %v4216, 2
        %v4218 = vmin.f32 %v4216, %v4217
        %v4219 = vrot.slane %v4218, 1
        %v4220 = vmin.f32 %v4218, %v4219
        %v4221 = vrot.slane %v4140, 4
        %v4222 = vmin.f32 %v4140, %v4221
        %v4223 = vrot.slane %v4222, 2
        %v4224 = vmin.f32 %v4222, %v4223
        %v4225 = vrot.slane %v4224, 1
        %v4226 = vmin.f32 %v4224, %v4225
        %v4227 = vrot.slane %v4141, 4
        %v4228 = vmin.f32 %v4141, %v4227
        %v4229 = vrot.slane %v4228, 2
        %v4230 = vmin.f32 %v4228, %v4229
        %v4231 = vrot.slane %v4230, 1
        %v4232 = vmin.f32 %v4230, %v4231
        %v4233 = vrot.slane %v4142, 4
        %v4234 = vmin.f32 %v4142, %v4233
        %v4235 = vrot.slane %v4234, 2
        %v4236 = vmin.f32 %v4234, %v4235
        %v4237 = vrot.slane %v4236, 1
        %v4238 = vmin.f32 %v4236, %v4237
        %v4255 = vsel %vm657, %v4154, %v4148
        %v4256 = vsel %vm659, %v4160, %v4255
        %v4257 = vsel %vm661, %v4166, %v4256
        %v4258 = vsel %vm663, %v4172, %v4257
        %v4259 = vsel %vm665, %v4178, %v4258
        %v4260 = vsel %vm667, %v4184, %v4259
        %v4261 = vsel %vm669, %v4190, %v4260
        %v4262 = vsel %vm657, %v4202, %v4196
        %v4263 = vsel %vm659, %v4208, %v4262
        %v4264 = vsel %vm661, %v4214, %v4263
        %v4265 = vsel %vm663, %v4220, %v4264
        %v4266 = vsel %vm665, %v4226, %v4265
        %v4267 = vsel %vm667, %v4232, %v4266
        %v4268 = vsel %vm669, %v4238, %v4267
        %v4271 = vmin.f32 %v4045, %v4261
        %v4272 = vmin.f32 %v4046, %v4268
        %4273 = vst [vmem:[#allocation3] sm:$0xff] %v4271
        %4274 = vst [vmem:[#allocation3 + $0x8] sm:$0xff] %v4272
        %v4275 = vld [vmem:[#allocation4] sm:$0xff]
        %v4276 = vld [vmem:[#allocation4 + $0x8] sm:$0xff]
        %v4277 = vsel %vm4111, %v4044, -3e+38
        %v4278 = vsel %vm4112, %v4044, -3e+38
        %v4279 = vsel %vm4113, %v4044, -3e+38
        %v4280 = vsel %vm4114, %v4044, -3e+38
        %v4281 = vsel %vm4115, %v4044, -3e+38
        %v4282 = vsel %vm4116, %v4044, -3e+38
        %v4283 = vsel %vm4117, %v4044, -3e+38
        %v4284 = vsel %vm4118, %v4044, -3e+38
        %v4285 = vsel %vm4119, %v4044, -3e+38
        %v4286 = vsel %vm4120, %v4044, -3e+38
        %v4287 = vsel %vm4121, %v4044, -3e+38
        %v4288 = vsel %vm4122, %v4044, -3e+38
        %v4289 = vsel %vm4123, %v4044, -3e+38
        %v4290 = vsel %vm4124, %v4044, -3e+38
        %v4291 = vsel %vm4125, %v4044, -3e+38
        %v4292 = vsel %vm4126, %v4044, -3e+38
        %v4293 = vrot.slane %v4277, 4
        %v4294 = vmax.f32 %v4277, %v4293
        %v4295 = vrot.slane %v4294, 2
        %v4296 = vmax.f32 %v4294, %v4295
        %v4297 = vrot.slane %v4296, 1
        %v4298 = vmax.f32 %v4296, %v4297
        %v4299 = vrot.slane %v4278, 4
        %v4300 = vmax.f32 %v4278, %v4299
        %v4301 = vrot.slane %v4300, 2
        %v4302 = vmax.f32 %v4300, %v4301
        %v4303 = vrot.slane %v4302, 1
        %v4304 = vmax.f32 %v4302, %v4303
        %v4305 = vrot.slane %v4279, 4
        %v4306 = vmax.f32 %v4279, %v4305
        %v4307 = vrot.slane %v4306, 2
        %v4308 = vmax.f32 %v4306, %v4307
        %v4309 = vrot.slane %v4308, 1
        %v4310 = vmax.f32 %v4308, %v4309
        %v4311 = vrot.slane %v4280, 4
        %v4312 = vmax.f32 %v4280, %v4311
        %v4313 = vrot.slane %v4312, 2
        %v4314 = vmax.f32 %v4312, %v4313
        %v4315 = vrot.slane %v4314, 1
        %v4316 = vmax.f32 %v4314, %v4315
        %v4317 = vrot.slane %v4281, 4
        %v4318 = vmax.f32 %v4281, %v4317
        %v4319 = vrot.slane %v4318, 2
        %v4320 = vmax.f32 %v4318, %v4319
        %v4321 = vrot.slane %v4320, 1
        %v4322 = vmax.f32 %v4320, %v4321
        %v4323 = vrot.slane %v4282, 4
        %v4324 = vmax.f32 %v4282, %v4323
        %v4325 = vrot.slane %v4324, 2
        %v4326 = vmax.f32 %v4324, %v4325
        %v4327 = vrot.slane %v4326, 1
        %v4328 = vmax.f32 %v4326, %v4327
        %v4329 = vrot.slane %v4283, 4
        %v4330 = vmax.f32 %v4283, %v4329
        %v4331 = vrot.slane %v4330, 2
        %v4332 = vmax.f32 %v4330, %v4331
        %v4333 = vrot.slane %v4332, 1
        %v4334 = vmax.f32 %v4332, %v4333
        %v4335 = vrot.slane %v4284, 4
        %v4336 = vmax.f32 %v4284, %v4335
        %v4337 = vrot.slane %v4336, 2
        %v4338 = vmax.f32 %v4336, %v4337
        %v4339 = vrot.slane %v4338, 1
        %v4340 = vmax.f32 %v4338, %v4339
        %v4341 = vrot.slane %v4285, 4
        %v4342 = vmax.f32 %v4285, %v4341
        %v4343 = vrot.slane %v4342, 2
        %v4344 = vmax.f32 %v4342, %v4343
        %v4345 = vrot.slane %v4344, 1
        %v4346 = vmax.f32 %v4344, %v4345
        %v4347 = vrot.slane %v4286, 4
        %v4348 = vmax.f32 %v4286, %v4347
        %v4349 = vrot.slane %v4348, 2
        %v4350 = vmax.f32 %v4348, %v4349
        %v4351 = vrot.slane %v4350, 1
        %v4352 = vmax.f32 %v4350, %v4351
        %v4353 = vrot.slane %v4287, 4
        %v4354 = vmax.f32 %v4287, %v4353
        %v4355 = vrot.slane %v4354, 2
        %v4356 = vmax.f32 %v4354, %v4355
        %v4357 = vrot.slane %v4356, 1
        %v4358 = vmax.f32 %v4356, %v4357
        %v4359 = vrot.slane %v4288, 4
        %v4360 = vmax.f32 %v4288, %v4359
        %v4361 = vrot.slane %v4360, 2
        %v4362 = vmax.f32 %v4360, %v4361
        %v4363 = vrot.slane %v4362, 1
        %v4364 = vmax.f32 %v4362, %v4363
        %v4365 = vrot.slane %v4289, 4
        %v4366 = vmax.f32 %v4289, %v4365
        %v4367 = vrot.slane %v4366, 2
        %v4368 = vmax.f32 %v4366, %v4367
        %v4369 = vrot.slane %v4368, 1
        %v4370 = vmax.f32 %v4368, %v4369
        %v4371 = vrot.slane %v4290, 4
        %v4372 = vmax.f32 %v4290, %v4371
        %v4373 = vrot.slane %v4372, 2
        %v4374 = vmax.f32 %v4372, %v4373
        %v4375 = vrot.slane %v4374, 1
        %v4376 = vmax.f32 %v4374, %v4375
        %v4377 = vrot.slane %v4291, 4
        %v4378 = vmax.f32 %v4291, %v4377
        %v4379 = vrot.slane %v4378, 2
        %v4380 = vmax.f32 %v4378, %v4379
        %v4381 = vrot.slane %v4380, 1
        %v4382 = vmax.f32 %v4380, %v4381
        %v4383 = vrot.slane %v4292, 4
        %v4384 = vmax.f32 %v4292, %v4383
        %v4385 = vrot.slane %v4384, 2
        %v4386 = vmax.f32 %v4384, %v4385
        %v4387 = vrot.slane %v4386, 1
        %v4388 = vmax.f32 %v4386, %v4387
        %v4405 = vsel %vm657, %v4304, %v4298
        %v4406 = vsel %vm659, %v4310, %v4405
        %v4407 = vsel %vm661, %v4316, %v4406
        %v4408 = vsel %vm663, %v4322, %v4407
        %v4409 = vsel %vm665, %v4328, %v4408
        %v4410 = vsel %vm667, %v4334, %v4409
        %v4411 = vsel %vm669, %v4340, %v4410
        %v4412 = vsel %vm657, %v4352, %v4346
        %v4413 = vsel %vm659, %v4358, %v4412
        %v4414 = vsel %vm661, %v4364, %v4413
        %v4415 = vsel %vm663, %v4370, %v4414
        %v4416 = vsel %vm665, %v4376, %v4415
        %v4417 = vsel %vm667, %v4382, %v4416
        %v4418 = vsel %vm669, %v4388, %v4417
        %v4421 = vmax.f32 %v4275, %v4411
        %v4422 = vmax.f32 %v4276, %v4418
        %4423 = vst [vmem:[#allocation4] sm:$0xff] %v4421
        %4424 = vst [vmem:[#allocation4 + $0x8] sm:$0xff] %v4422
        %v4425 = vld [vmem:[%s280 + $0x50] sm:$0xff]
        %vm4426 = vcmp.eq.s32.totalorder %v306, %v4425
        %vm4427 = vcmp.eq.s32.totalorder %v413, %v4425
        %vm4428 = vcmp.eq.s32.totalorder %v414, %v4425
        %vm4429 = vcmp.eq.s32.totalorder %v415, %v4425
        %vm4430 = vcmp.eq.s32.totalorder %v416, %v4425
        %vm4431 = vcmp.eq.s32.totalorder %v417, %v4425
        %vm4432 = vcmp.eq.s32.totalorder %v418, %v4425
        %vm4433 = vcmp.eq.s32.totalorder %v419, %v4425
        %vm4434 = vcmp.eq.s32.totalorder %v420, %v4425
        %vm4435 = vcmp.eq.s32.totalorder %v421, %v4425
        %vm4436 = vcmp.eq.s32.totalorder %v422, %v4425
        %vm4437 = vcmp.eq.s32.totalorder %v423, %v4425
        %vm4438 = vcmp.eq.s32.totalorder %v424, %v4425
        %vm4439 = vcmp.eq.s32.totalorder %v425, %v4425
        %vm4440 = vcmp.eq.s32.totalorder %v426, %v4425
        %vm4441 = vcmp.eq.s32.totalorder %v427, %v4425
        %v4442 = vld [vmem:[%s286 + $0x28] sm:$0xf]
        %v4443 = vunpack.c.l.bf16 %v4442
        %v4444 = vld [vmem:[#allocation3] sm:$0xff]
        %v4445 = vld [vmem:[#allocation3 + $0x8] sm:$0xff]
        %v4446 = vsel %vm4426, 1, 0
        %v4447 = vsel %vm4427, 1, 0
        %v4448 = vsel %vm4428, 1, 0
        %v4449 = vsel %vm4429, 1, 0
        %v4450 = vsel %vm4430, 1, 0
        %v4451 = vsel %vm4431, 1, 0
        %v4452 = vsel %vm4432, 1, 0
        %v4453 = vsel %vm4433, 1, 0
        %v4454 = vsel %vm4434, 1, 0
        %v4455 = vsel %vm4435, 1, 0
        %v4456 = vsel %vm4436, 1, 0
        %v4457 = vsel %vm4437, 1, 0
        %v4458 = vsel %vm4438, 1, 0
        %v4459 = vsel %vm4439, 1, 0
        %v4460 = vsel %vm4440, 1, 0
        %v4461 = vsel %vm4441, 1, 0
        %4462 = vset.pattern.permute.xlu0 0
        %4463 = vperm.xlu0 %4462, %v4446
        %v4464 = vpop.permute.xlu0 %4463
        %4465 = vset.pattern.permute.xlu0 0
        %4466 = vperm.xlu0 %4465, %v4447
        %v4467 = vpop.permute.xlu0 %4466
        %4468 = vset.pattern.permute.xlu0 0
        %4469 = vperm.xlu0 %4468, %v4448
        %v4470 = vpop.permute.xlu0 %4469
        %4471 = vset.pattern.permute.xlu0 0
        %4472 = vperm.xlu0 %4471, %v4449
        %v4473 = vpop.permute.xlu0 %4472
        %4474 = vset.pattern.permute.xlu0 0
        %4475 = vperm.xlu0 %4474, %v4450
        %v4476 = vpop.permute.xlu0 %4475
        %4477 = vset.pattern.permute.xlu0 0
        %4478 = vperm.xlu0 %4477, %v4451
        %v4479 = vpop.permute.xlu0 %4478
        %4480 = vset.pattern.permute.xlu0 0
        %4481 = vperm.xlu0 %4480, %v4452
        %v4482 = vpop.permute.xlu0 %4481
        %4483 = vset.pattern.permute.xlu0 0
        %4484 = vperm.xlu0 %4483, %v4453
        %v4485 = vpop.permute.xlu0 %4484
        %4486 = vset.pattern.permute.xlu0 0
        %4487 = vperm.xlu0 %4486, %v4454
        %v4488 = vpop.permute.xlu0 %4487
        %4489 = vset.pattern.permute.xlu0 0
        %4490 = vperm.xlu0 %4489, %v4455
        %v4491 = vpop.permute.xlu0 %4490
        %4492 = vset.pattern.permute.xlu0 0
        %4493 = vperm.xlu0 %4492, %v4456
        %v4494 = vpop.permute.xlu0 %4493
        %4495 = vset.pattern.permute.xlu0 0
        %4496 = vperm.xlu0 %4495, %v4457
        %v4497 = vpop.permute.xlu0 %4496
        %4498 = vset.pattern.permute.xlu0 0
        %4499 = vperm.xlu0 %4498, %v4458
        %v4500 = vpop.permute.xlu0 %4499
        %4501 = vset.pattern.permute.xlu0 0
        %4502 = vperm.xlu0 %4501, %v4459
        %v4503 = vpop.permute.xlu0 %4502
        %4504 = vset.pattern.permute.xlu0 0
        %4505 = vperm.xlu0 %4504, %v4460
        %v4506 = vpop.permute.xlu0 %4505
        %4507 = vset.pattern.permute.xlu0 0
        %4508 = vperm.xlu0 %4507, %v4461
        %v4509 = vpop.permute.xlu0 %4508
        %vm4510 = vcmp.eq.s32.totalorder %v4464, 1
        %vm4511 = vcmp.eq.s32.totalorder %v4467, 1
        %vm4512 = vcmp.eq.s32.totalorder %v4470, 1
        %vm4513 = vcmp.eq.s32.totalorder %v4473, 1
        %vm4514 = vcmp.eq.s32.totalorder %v4476, 1
        %vm4515 = vcmp.eq.s32.totalorder %v4479, 1
        %vm4516 = vcmp.eq.s32.totalorder %v4482, 1
        %vm4517 = vcmp.eq.s32.totalorder %v4485, 1
        %vm4518 = vcmp.eq.s32.totalorder %v4488, 1
        %vm4519 = vcmp.eq.s32.totalorder %v4491, 1
        %vm4520 = vcmp.eq.s32.totalorder %v4494, 1
        %vm4521 = vcmp.eq.s32.totalorder %v4497, 1
        %vm4522 = vcmp.eq.s32.totalorder %v4500, 1
        %vm4523 = vcmp.eq.s32.totalorder %v4503, 1
        %vm4524 = vcmp.eq.s32.totalorder %v4506, 1
        %vm4525 = vcmp.eq.s32.totalorder %v4509, 1
        %v4526 = vsel %vm4510, %v4443, 3e+38
        %v4527 = vsel %vm4511, %v4443, 3e+38
        %v4528 = vsel %vm4512, %v4443, 3e+38
        %v4529 = vsel %vm4513, %v4443, 3e+38
        %v4530 = vsel %vm4514, %v4443, 3e+38
        %v4531 = vsel %vm4515, %v4443, 3e+38
        %v4532 = vsel %vm4516, %v4443, 3e+38
        %v4533 = vsel %vm4517, %v4443, 3e+38
        %v4534 = vsel %vm4518, %v4443, 3e+38
        %v4535 = vsel %vm4519, %v4443, 3e+38
        %v4536 = vsel %vm4520, %v4443, 3e+38
        %v4537 = vsel %vm4521, %v4443, 3e+38
        %v4538 = vsel %vm4522, %v4443, 3e+38
        %v4539 = vsel %vm4523, %v4443, 3e+38
        %v4540 = vsel %vm4524, %v4443, 3e+38
        %v4541 = vsel %vm4525, %v4443, 3e+38
        %v4542 = vrot.slane %v4526, 4
        %v4543 = vmin.f32 %v4526, %v4542
        %v4544 = vrot.slane %v4543, 2
        %v4545 = vmin.f32 %v4543, %v4544
        %v4546 = vrot.slane %v4545, 1
        %v4547 = vmin.f32 %v4545, %v4546
        %v4548 = vrot.slane %v4527, 4
        %v4549 = vmin.f32 %v4527, %v4548
        %v4550 = vrot.slane %v4549, 2
        %v4551 = vmin.f32 %v4549, %v4550
        %v4552 = vrot.slane %v4551, 1
        %v4553 = vmin.f32 %v4551, %v4552
        %v4554 = vrot.slane %v4528, 4
        %v4555 = vmin.f32 %v4528, %v4554
        %v4556 = vrot.slane %v4555, 2
        %v4557 = vmin.f32 %v4555, %v4556
        %v4558 = vrot.slane %v4557, 1
        %v4559 = vmin.f32 %v4557, %v4558
        %v4560 = vrot.slane %v4529, 4
        %v4561 = vmin.f32 %v4529, %v4560
        %v4562 = vrot.slane %v4561, 2
        %v4563 = vmin.f32 %v4561, %v4562
        %v4564 = vrot.slane %v4563, 1
        %v4565 = vmin.f32 %v4563, %v4564
        %v4566 = vrot.slane %v4530, 4
        %v4567 = vmin.f32 %v4530, %v4566
        %v4568 = vrot.slane %v4567, 2
        %v4569 = vmin.f32 %v4567, %v4568
        %v4570 = vrot.slane %v4569, 1
        %v4571 = vmin.f32 %v4569, %v4570
        %v4572 = vrot.slane %v4531, 4
        %v4573 = vmin.f32 %v4531, %v4572
        %v4574 = vrot.slane %v4573, 2
        %v4575 = vmin.f32 %v4573, %v4574
        %v4576 = vrot.slane %v4575, 1
        %v4577 = vmin.f32 %v4575, %v4576
        %v4578 = vrot.slane %v4532, 4
        %v4579 = vmin.f32 %v4532, %v4578
        %v4580 = vrot.slane %v4579, 2
        %v4581 = vmin.f32 %v4579, %v4580
        %v4582 = vrot.slane %v4581, 1
        %v4583 = vmin.f32 %v4581, %v4582
        %v4584 = vrot.slane %v4533, 4
        %v4585 = vmin.f32 %v4533, %v4584
        %v4586 = vrot.slane %v4585, 2
        %v4587 = vmin.f32 %v4585, %v4586
        %v4588 = vrot.slane %v4587, 1
        %v4589 = vmin.f32 %v4587, %v4588
        %v4590 = vrot.slane %v4534, 4
        %v4591 = vmin.f32 %v4534, %v4590
        %v4592 = vrot.slane %v4591, 2
        %v4593 = vmin.f32 %v4591, %v4592
        %v4594 = vrot.slane %v4593, 1
        %v4595 = vmin.f32 %v4593, %v4594
        %v4596 = vrot.slane %v4535, 4
        %v4597 = vmin.f32 %v4535, %v4596
        %v4598 = vrot.slane %v4597, 2
        %v4599 = vmin.f32 %v4597, %v4598
        %v4600 = vrot.slane %v4599, 1
        %v4601 = vmin.f32 %v4599, %v4600
        %v4602 = vrot.slane %v4536, 4
        %v4603 = vmin.f32 %v4536, %v4602
        %v4604 = vrot.slane %v4603, 2
        %v4605 = vmin.f32 %v4603, %v4604
        %v4606 = vrot.slane %v4605, 1
        %v4607 = vmin.f32 %v4605, %v4606
        %v4608 = vrot.slane %v4537, 4
        %v4609 = vmin.f32 %v4537, %v4608
        %v4610 = vrot.slane %v4609, 2
        %v4611 = vmin.f32 %v4609, %v4610
        %v4612 = vrot.slane %v4611, 1
        %v4613 = vmin.f32 %v4611, %v4612
        %v4614 = vrot.slane %v4538, 4
        %v4615 = vmin.f32 %v4538, %v4614
        %v4616 = vrot.slane %v4615, 2
        %v4617 = vmin.f32 %v4615, %v4616
        %v4618 = vrot.slane %v4617, 1
        %v4619 = vmin.f32 %v4617, %v4618
        %v4620 = vrot.slane %v4539, 4
        %v4621 = vmin.f32 %v4539, %v4620
        %v4622 = vrot.slane %v4621, 2
        %v4623 = vmin.f32 %v4621, %v4622
        %v4624 = vrot.slane %v4623, 1
        %v4625 = vmin.f32 %v4623, %v4624
        %v4626 = vrot.slane %v4540, 4
        %v4627 = vmin.f32 %v4540, %v4626
        %v4628 = vrot.slane %v4627, 2
        %v4629 = vmin.f32 %v4627, %v4628
        %v4630 = vrot.slane %v4629, 1
        %v4631 = vmin.f32 %v4629, %v4630
        %v4632 = vrot.slane %v4541, 4
        %v4633 = vmin.f32 %v4541, %v4632
        %v4634 = vrot.slane %v4633, 2
        %v4635 = vmin.f32 %v4633, %v4634
        %v4636 = vrot.slane %v4635, 1
        %v4637 = vmin.f32 %v4635, %v4636
        %v4654 = vsel %vm657, %v4553, %v4547
        %v4655 = vsel %vm659, %v4559, %v4654
        %v4656 = vsel %vm661, %v4565, %v4655
        %v4657 = vsel %vm663, %v4571, %v4656
        %v4658 = vsel %vm665, %v4577, %v4657
        %v4659 = vsel %vm667, %v4583, %v4658
        %v4660 = vsel %vm669, %v4589, %v4659
        %v4661 = vsel %vm657, %v4601, %v4595
        %v4662 = vsel %vm659, %v4607, %v4661
        %v4663 = vsel %vm661, %v4613, %v4662
        %v4664 = vsel %vm663, %v4619, %v4663
        %v4665 = vsel %vm665, %v4625, %v4664
        %v4666 = vsel %vm667, %v4631, %v4665
        %v4667 = vsel %vm669, %v4637, %v4666
        %v4670 = vmin.f32 %v4444, %v4660
        %v4671 = vmin.f32 %v4445, %v4667
        %4672 = vst [vmem:[#allocation3] sm:$0xff] %v4670
        %4673 = vst [vmem:[#allocation3 + $0x8] sm:$0xff] %v4671
        %v4674 = vld [vmem:[#allocation4] sm:$0xff]
        %v4675 = vld [vmem:[#allocation4 + $0x8] sm:$0xff]
        %v4676 = vsel %vm4510, %v4443, -3e+38
        %v4677 = vsel %vm4511, %v4443, -3e+38
        %v4678 = vsel %vm4512, %v4443, -3e+38
        %v4679 = vsel %vm4513, %v4443, -3e+38
        %v4680 = vsel %vm4514, %v4443, -3e+38
        %v4681 = vsel %vm4515, %v4443, -3e+38
        %v4682 = vsel %vm4516, %v4443, -3e+38
        %v4683 = vsel %vm4517, %v4443, -3e+38
        %v4684 = vsel %vm4518, %v4443, -3e+38
        %v4685 = vsel %vm4519, %v4443, -3e+38
        %v4686 = vsel %vm4520, %v4443, -3e+38
        %v4687 = vsel %vm4521, %v4443, -3e+38
        %v4688 = vsel %vm4522, %v4443, -3e+38
        %v4689 = vsel %vm4523, %v4443, -3e+38
        %v4690 = vsel %vm4524, %v4443, -3e+38
        %v4691 = vsel %vm4525, %v4443, -3e+38
        %v4692 = vrot.slane %v4676, 4
        %v4693 = vmax.f32 %v4676, %v4692
        %v4694 = vrot.slane %v4693, 2
        %v4695 = vmax.f32 %v4693, %v4694
        %v4696 = vrot.slane %v4695, 1
        %v4697 = vmax.f32 %v4695, %v4696
        %v4698 = vrot.slane %v4677, 4
        %v4699 = vmax.f32 %v4677, %v4698
        %v4700 = vrot.slane %v4699, 2
        %v4701 = vmax.f32 %v4699, %v4700
        %v4702 = vrot.slane %v4701, 1
        %v4703 = vmax.f32 %v4701, %v4702
        %v4704 = vrot.slane %v4678, 4
        %v4705 = vmax.f32 %v4678, %v4704
        %v4706 = vrot.slane %v4705, 2
        %v4707 = vmax.f32 %v4705, %v4706
        %v4708 = vrot.slane %v4707, 1
        %v4709 = vmax.f32 %v4707, %v4708
        %v4710 = vrot.slane %v4679, 4
        %v4711 = vmax.f32 %v4679, %v4710
        %v4712 = vrot.slane %v4711, 2
        %v4713 = vmax.f32 %v4711, %v4712
        %v4714 = vrot.slane %v4713, 1
        %v4715 = vmax.f32 %v4713, %v4714
        %v4716 = vrot.slane %v4680, 4
        %v4717 = vmax.f32 %v4680, %v4716
        %v4718 = vrot.slane %v4717, 2
        %v4719 = vmax.f32 %v4717, %v4718
        %v4720 = vrot.slane %v4719, 1
        %v4721 = vmax.f32 %v4719, %v4720
        %v4722 = vrot.slane %v4681, 4
        %v4723 = vmax.f32 %v4681, %v4722
        %v4724 = vrot.slane %v4723, 2
        %v4725 = vmax.f32 %v4723, %v4724
        %v4726 = vrot.slane %v4725, 1
        %v4727 = vmax.f32 %v4725, %v4726
        %v4728 = vrot.slane %v4682, 4
        %v4729 = vmax.f32 %v4682, %v4728
        %v4730 = vrot.slane %v4729, 2
        %v4731 = vmax.f32 %v4729, %v4730
        %v4732 = vrot.slane %v4731, 1
        %v4733 = vmax.f32 %v4731, %v4732
        %v4734 = vrot.slane %v4683, 4
        %v4735 = vmax.f32 %v4683, %v4734
        %v4736 = vrot.slane %v4735, 2
        %v4737 = vmax.f32 %v4735, %v4736
        %v4738 = vrot.slane %v4737, 1
        %v4739 = vmax.f32 %v4737, %v4738
        %v4740 = vrot.slane %v4684, 4
        %v4741 = vmax.f32 %v4684, %v4740
        %v4742 = vrot.slane %v4741, 2
        %v4743 = vmax.f32 %v4741, %v4742
        %v4744 = vrot.slane %v4743, 1
        %v4745 = vmax.f32 %v4743, %v4744
        %v4746 = vrot.slane %v4685, 4
        %v4747 = vmax.f32 %v4685, %v4746
        %v4748 = vrot.slane %v4747, 2
        %v4749 = vmax.f32 %v4747, %v4748
        %v4750 = vrot.slane %v4749, 1
        %v4751 = vmax.f32 %v4749, %v4750
        %v4752 = vrot.slane %v4686, 4
        %v4753 = vmax.f32 %v4686, %v4752
        %v4754 = vrot.slane %v4753, 2
        %v4755 = vmax.f32 %v4753, %v4754
        %v4756 = vrot.slane %v4755, 1
        %v4757 = vmax.f32 %v4755, %v4756
        %v4758 = vrot.slane %v4687, 4
        %v4759 = vmax.f32 %v4687, %v4758
        %v4760 = vrot.slane %v4759, 2
        %v4761 = vmax.f32 %v4759, %v4760
        %v4762 = vrot.slane %v4761, 1
        %v4763 = vmax.f32 %v4761, %v4762
        %v4764 = vrot.slane %v4688, 4
        %v4765 = vmax.f32 %v4688, %v4764
        %v4766 = vrot.slane %v4765, 2
        %v4767 = vmax.f32 %v4765, %v4766
        %v4768 = vrot.slane %v4767, 1
        %v4769 = vmax.f32 %v4767, %v4768
        %v4770 = vrot.slane %v4689, 4
        %v4771 = vmax.f32 %v4689, %v4770
        %v4772 = vrot.slane %v4771, 2
        %v4773 = vmax.f32 %v4771, %v4772
        %v4774 = vrot.slane %v4773, 1
        %v4775 = vmax.f32 %v4773, %v4774
        %v4776 = vrot.slane %v4690, 4
        %v4777 = vmax.f32 %v4690, %v4776
        %v4778 = vrot.slane %v4777, 2
        %v4779 = vmax.f32 %v4777, %v4778
        %v4780 = vrot.slane %v4779, 1
        %v4781 = vmax.f32 %v4779, %v4780
        %v4782 = vrot.slane %v4691, 4
        %v4783 = vmax.f32 %v4691, %v4782
        %v4784 = vrot.slane %v4783, 2
        %v4785 = vmax.f32 %v4783, %v4784
        %v4786 = vrot.slane %v4785, 1
        %v4787 = vmax.f32 %v4785, %v4786
        %v4804 = vsel %vm657, %v4703, %v4697
        %v4805 = vsel %vm659, %v4709, %v4804
        %v4806 = vsel %vm661, %v4715, %v4805
        %v4807 = vsel %vm663, %v4721, %v4806
        %v4808 = vsel %vm665, %v4727, %v4807
        %v4809 = vsel %vm667, %v4733, %v4808
        %v4810 = vsel %vm669, %v4739, %v4809
        %v4811 = vsel %vm657, %v4751, %v4745
        %v4812 = vsel %vm659, %v4757, %v4811
        %v4813 = vsel %vm661, %v4763, %v4812
        %v4814 = vsel %vm663, %v4769, %v4813
        %v4815 = vsel %vm665, %v4775, %v4814
        %v4816 = vsel %vm667, %v4781, %v4815
        %v4817 = vsel %vm669, %v4787, %v4816
        %v4820 = vmax.f32 %v4674, %v4810
        %v4821 = vmax.f32 %v4675, %v4817
        %4822 = vst [vmem:[#allocation4] sm:$0xff] %v4820
        %4823 = vst [vmem:[#allocation4 + $0x8] sm:$0xff] %v4821
        %v4824 = vld [vmem:[%s280 + $0x58] sm:$0xff]
        %vm4825 = vcmp.eq.s32.totalorder %v306, %v4824
        %vm4826 = vcmp.eq.s32.totalorder %v413, %v4824
        %vm4827 = vcmp.eq.s32.totalorder %v414, %v4824
        %vm4828 = vcmp.eq.s32.totalorder %v415, %v4824
        %vm4829 = vcmp.eq.s32.totalorder %v416, %v4824
        %vm4830 = vcmp.eq.s32.totalorder %v417, %v4824
        %vm4831 = vcmp.eq.s32.totalorder %v418, %v4824
        %vm4832 = vcmp.eq.s32.totalorder %v419, %v4824
        %vm4833 = vcmp.eq.s32.totalorder %v420, %v4824
        %vm4834 = vcmp.eq.s32.totalorder %v421, %v4824
        %vm4835 = vcmp.eq.s32.totalorder %v422, %v4824
        %vm4836 = vcmp.eq.s32.totalorder %v423, %v4824
        %vm4837 = vcmp.eq.s32.totalorder %v424, %v4824
        %vm4838 = vcmp.eq.s32.totalorder %v425, %v4824
        %vm4839 = vcmp.eq.s32.totalorder %v426, %v4824
        %vm4840 = vcmp.eq.s32.totalorder %v427, %v4824
        %v4841 = vld [vmem:[%s286 + $0x2c] sm:$0xf]
        %v4842 = vunpack.c.l.bf16 %v4841
        %v4843 = vld [vmem:[#allocation3] sm:$0xff]
        %v4844 = vld [vmem:[#allocation3 + $0x8] sm:$0xff]
        %v4845 = vsel %vm4825, 1, 0
        %v4846 = vsel %vm4826, 1, 0
        %v4847 = vsel %vm4827, 1, 0
        %v4848 = vsel %vm4828, 1, 0
        %v4849 = vsel %vm4829, 1, 0
        %v4850 = vsel %vm4830, 1, 0
        %v4851 = vsel %vm4831, 1, 0
        %v4852 = vsel %vm4832, 1, 0
        %v4853 = vsel %vm4833, 1, 0
        %v4854 = vsel %vm4834, 1, 0
        %v4855 = vsel %vm4835, 1, 0
        %v4856 = vsel %vm4836, 1, 0
        %v4857 = vsel %vm4837, 1, 0
        %v4858 = vsel %vm4838, 1, 0
        %v4859 = vsel %vm4839, 1, 0
        %v4860 = vsel %vm4840, 1, 0
        %4861 = vset.pattern.permute.xlu0 0
        %4862 = vperm.xlu0 %4861, %v4845
        %v4863 = vpop.permute.xlu0 %4862
        %4864 = vset.pattern.permute.xlu0 0
        %4865 = vperm.xlu0 %4864, %v4846
        %v4866 = vpop.permute.xlu0 %4865
        %4867 = vset.pattern.permute.xlu0 0
        %4868 = vperm.xlu0 %4867, %v4847
        %v4869 = vpop.permute.xlu0 %4868
        %4870 = vset.pattern.permute.xlu0 0
        %4871 = vperm.xlu0 %4870, %v4848
        %v4872 = vpop.permute.xlu0 %4871
        %4873 = vset.pattern.permute.xlu0 0
        %4874 = vperm.xlu0 %4873, %v4849
        %v4875 = vpop.permute.xlu0 %4874
        %4876 = vset.pattern.permute.xlu0 0
        %4877 = vperm.xlu0 %4876, %v4850
        %v4878 = vpop.permute.xlu0 %4877
        %4879 = vset.pattern.permute.xlu0 0
        %4880 = vperm.xlu0 %4879, %v4851
        %v4881 = vpop.permute.xlu0 %4880
        %4882 = vset.pattern.permute.xlu0 0
        %4883 = vperm.xlu0 %4882, %v4852
        %v4884 = vpop.permute.xlu0 %4883
        %4885 = vset.pattern.permute.xlu0 0
        %4886 = vperm.xlu0 %4885, %v4853
        %v4887 = vpop.permute.xlu0 %4886
        %4888 = vset.pattern.permute.xlu0 0
        %4889 = vperm.xlu0 %4888, %v4854
        %v4890 = vpop.permute.xlu0 %4889
        %4891 = vset.pattern.permute.xlu0 0
        %4892 = vperm.xlu0 %4891, %v4855
        %v4893 = vpop.permute.xlu0 %4892
        %4894 = vset.pattern.permute.xlu0 0
        %4895 = vperm.xlu0 %4894, %v4856
        %v4896 = vpop.permute.xlu0 %4895
        %4897 = vset.pattern.permute.xlu0 0
        %4898 = vperm.xlu0 %4897, %v4857
        %v4899 = vpop.permute.xlu0 %4898
        %4900 = vset.pattern.permute.xlu0 0
        %4901 = vperm.xlu0 %4900, %v4858
        %v4902 = vpop.permute.xlu0 %4901
        %4903 = vset.pattern.permute.xlu0 0
        %4904 = vperm.xlu0 %4903, %v4859
        %v4905 = vpop.permute.xlu0 %4904
        %4906 = vset.pattern.permute.xlu0 0
        %4907 = vperm.xlu0 %4906, %v4860
        %v4908 = vpop.permute.xlu0 %4907
        %vm4909 = vcmp.eq.s32.totalorder %v4863, 1
        %vm4910 = vcmp.eq.s32.totalorder %v4866, 1
        %vm4911 = vcmp.eq.s32.totalorder %v4869, 1
        %vm4912 = vcmp.eq.s32.totalorder %v4872, 1
        %vm4913 = vcmp.eq.s32.totalorder %v4875, 1
        %vm4914 = vcmp.eq.s32.totalorder %v4878, 1
        %vm4915 = vcmp.eq.s32.totalorder %v4881, 1
        %vm4916 = vcmp.eq.s32.totalorder %v4884, 1
        %vm4917 = vcmp.eq.s32.totalorder %v4887, 1
        %vm4918 = vcmp.eq.s32.totalorder %v4890, 1
        %vm4919 = vcmp.eq.s32.totalorder %v4893, 1
        %vm4920 = vcmp.eq.s32.totalorder %v4896, 1
        %vm4921 = vcmp.eq.s32.totalorder %v4899, 1
        %vm4922 = vcmp.eq.s32.totalorder %v4902, 1
        %vm4923 = vcmp.eq.s32.totalorder %v4905, 1
        %vm4924 = vcmp.eq.s32.totalorder %v4908, 1
        %v4925 = vsel %vm4909, %v4842, 3e+38
        %v4926 = vsel %vm4910, %v4842, 3e+38
        %v4927 = vsel %vm4911, %v4842, 3e+38
        %v4928 = vsel %vm4912, %v4842, 3e+38
        %v4929 = vsel %vm4913, %v4842, 3e+38
        %v4930 = vsel %vm4914, %v4842, 3e+38
        %v4931 = vsel %vm4915, %v4842, 3e+38
        %v4932 = vsel %vm4916, %v4842, 3e+38
        %v4933 = vsel %vm4917, %v4842, 3e+38
        %v4934 = vsel %vm4918, %v4842, 3e+38
        %v4935 = vsel %vm4919, %v4842, 3e+38
        %v4936 = vsel %vm4920, %v4842, 3e+38
        %v4937 = vsel %vm4921, %v4842, 3e+38
        %v4938 = vsel %vm4922, %v4842, 3e+38
        %v4939 = vsel %vm4923, %v4842, 3e+38
        %v4940 = vsel %vm4924, %v4842, 3e+38
        %v4941 = vrot.slane %v4925, 4
        %v4942 = vmin.f32 %v4925, %v4941
        %v4943 = vrot.slane %v4942, 2
        %v4944 = vmin.f32 %v4942, %v4943
        %v4945 = vrot.slane %v4944, 1
        %v4946 = vmin.f32 %v4944, %v4945
        %v4947 = vrot.slane %v4926, 4
        %v4948 = vmin.f32 %v4926, %v4947
        %v4949 = vrot.slane %v4948, 2
        %v4950 = vmin.f32 %v4948, %v4949
        %v4951 = vrot.slane %v4950, 1
        %v4952 = vmin.f32 %v4950, %v4951
        %v4953 = vrot.slane %v4927, 4
        %v4954 = vmin.f32 %v4927, %v4953
        %v4955 = vrot.slane %v4954, 2
        %v4956 = vmin.f32 %v4954, %v4955
        %v4957 = vrot.slane %v4956, 1
        %v4958 = vmin.f32 %v4956, %v4957
        %v4959 = vrot.slane %v4928, 4
        %v4960 = vmin.f32 %v4928, %v4959
        %v4961 = vrot.slane %v4960, 2
        %v4962 = vmin.f32 %v4960, %v4961
        %v4963 = vrot.slane %v4962, 1
        %v4964 = vmin.f32 %v4962, %v4963
        %v4965 = vrot.slane %v4929, 4
        %v4966 = vmin.f32 %v4929, %v4965
        %v4967 = vrot.slane %v4966, 2
        %v4968 = vmin.f32 %v4966, %v4967
        %v4969 = vrot.slane %v4968, 1
        %v4970 = vmin.f32 %v4968, %v4969
        %v4971 = vrot.slane %v4930, 4
        %v4972 = vmin.f32 %v4930, %v4971
        %v4973 = vrot.slane %v4972, 2
        %v4974 = vmin.f32 %v4972, %v4973
        %v4975 = vrot.slane %v4974, 1
        %v4976 = vmin.f32 %v4974, %v4975
        %v4977 = vrot.slane %v4931, 4
        %v4978 = vmin.f32 %v4931, %v4977
        %v4979 = vrot.slane %v4978, 2
        %v4980 = vmin.f32 %v4978, %v4979
        %v4981 = vrot.slane %v4980, 1
        %v4982 = vmin.f32 %v4980, %v4981
        %v4983 = vrot.slane %v4932, 4
        %v4984 = vmin.f32 %v4932, %v4983
        %v4985 = vrot.slane %v4984, 2
        %v4986 = vmin.f32 %v4984, %v4985
        %v4987 = vrot.slane %v4986, 1
        %v4988 = vmin.f32 %v4986, %v4987
        %v4989 = vrot.slane %v4933, 4
        %v4990 = vmin.f32 %v4933, %v4989
        %v4991 = vrot.slane %v4990, 2
        %v4992 = vmin.f32 %v4990, %v4991
        %v4993 = vrot.slane %v4992, 1
        %v4994 = vmin.f32 %v4992, %v4993
        %v4995 = vrot.slane %v4934, 4
        %v4996 = vmin.f32 %v4934, %v4995
        %v4997 = vrot.slane %v4996, 2
        %v4998 = vmin.f32 %v4996, %v4997
        %v4999 = vrot.slane %v4998, 1
        %v5000 = vmin.f32 %v4998, %v4999
        %v5001 = vrot.slane %v4935, 4
        %v5002 = vmin.f32 %v4935, %v5001
        %v5003 = vrot.slane %v5002, 2
        %v5004 = vmin.f32 %v5002, %v5003
        %v5005 = vrot.slane %v5004, 1
        %v5006 = vmin.f32 %v5004, %v5005
        %v5007 = vrot.slane %v4936, 4
        %v5008 = vmin.f32 %v4936, %v5007
        %v5009 = vrot.slane %v5008, 2
        %v5010 = vmin.f32 %v5008, %v5009
        %v5011 = vrot.slane %v5010, 1
        %v5012 = vmin.f32 %v5010, %v5011
        %v5013 = vrot.slane %v4937, 4
        %v5014 = vmin.f32 %v4937, %v5013
        %v5015 = vrot.slane %v5014, 2
        %v5016 = vmin.f32 %v5014, %v5015
        %v5017 = vrot.slane %v5016, 1
        %v5018 = vmin.f32 %v5016, %v5017
        %v5019 = vrot.slane %v4938, 4
        %v5020 = vmin.f32 %v4938, %v5019
        %v5021 = vrot.slane %v5020, 2
        %v5022 = vmin.f32 %v5020, %v5021
        %v5023 = vrot.slane %v5022, 1
        %v5024 = vmin.f32 %v5022, %v5023
        %v5025 = vrot.slane %v4939, 4
        %v5026 = vmin.f32 %v4939, %v5025
        %v5027 = vrot.slane %v5026, 2
        %v5028 = vmin.f32 %v5026, %v5027
        %v5029 = vrot.slane %v5028, 1
        %v5030 = vmin.f32 %v5028, %v5029
        %v5031 = vrot.slane %v4940, 4
        %v5032 = vmin.f32 %v4940, %v5031
        %v5033 = vrot.slane %v5032, 2
        %v5034 = vmin.f32 %v5032, %v5033
        %v5035 = vrot.slane %v5034, 1
        %v5036 = vmin.f32 %v5034, %v5035
        %v5053 = vsel %vm657, %v4952, %v4946
        %v5054 = vsel %vm659, %v4958, %v5053
        %v5055 = vsel %vm661, %v4964, %v5054
        %v5056 = vsel %vm663, %v4970, %v5055
        %v5057 = vsel %vm665, %v4976, %v5056
        %v5058 = vsel %vm667, %v4982, %v5057
        %v5059 = vsel %vm669, %v4988, %v5058
        %v5060 = vsel %vm657, %v5000, %v4994
        %v5061 = vsel %vm659, %v5006, %v5060
        %v5062 = vsel %vm661, %v5012, %v5061
        %v5063 = vsel %vm663, %v5018, %v5062
        %v5064 = vsel %vm665, %v5024, %v5063
        %v5065 = vsel %vm667, %v5030, %v5064
        %v5066 = vsel %vm669, %v5036, %v5065
        %v5069 = vmin.f32 %v4843, %v5059
        %v5070 = vmin.f32 %v4844, %v5066
        %5071 = vst [vmem:[#allocation3] sm:$0xff] %v5069
        %5072 = vst [vmem:[#allocation3 + $0x8] sm:$0xff] %v5070
        %v5073 = vld [vmem:[#allocation4] sm:$0xff]
        %v5074 = vld [vmem:[#allocation4 + $0x8] sm:$0xff]
        %v5075 = vsel %vm4909, %v4842, -3e+38
        %v5076 = vsel %vm4910, %v4842, -3e+38
        %v5077 = vsel %vm4911, %v4842, -3e+38
        %v5078 = vsel %vm4912, %v4842, -3e+38
        %v5079 = vsel %vm4913, %v4842, -3e+38
        %v5080 = vsel %vm4914, %v4842, -3e+38
        %v5081 = vsel %vm4915, %v4842, -3e+38
        %v5082 = vsel %vm4916, %v4842, -3e+38
        %v5083 = vsel %vm4917, %v4842, -3e+38
        %v5084 = vsel %vm4918, %v4842, -3e+38
        %v5085 = vsel %vm4919, %v4842, -3e+38
        %v5086 = vsel %vm4920, %v4842, -3e+38
        %v5087 = vsel %vm4921, %v4842, -3e+38
        %v5088 = vsel %vm4922, %v4842, -3e+38
        %v5089 = vsel %vm4923, %v4842, -3e+38
        %v5090 = vsel %vm4924, %v4842, -3e+38
        %v5091 = vrot.slane %v5075, 4
        %v5092 = vmax.f32 %v5075, %v5091
        %v5093 = vrot.slane %v5092, 2
        %v5094 = vmax.f32 %v5092, %v5093
        %v5095 = vrot.slane %v5094, 1
        %v5096 = vmax.f32 %v5094, %v5095
        %v5097 = vrot.slane %v5076, 4
        %v5098 = vmax.f32 %v5076, %v5097
        %v5099 = vrot.slane %v5098, 2
        %v5100 = vmax.f32 %v5098, %v5099
        %v5101 = vrot.slane %v5100, 1
        %v5102 = vmax.f32 %v5100, %v5101
        %v5103 = vrot.slane %v5077, 4
        %v5104 = vmax.f32 %v5077, %v5103
        %v5105 = vrot.slane %v5104, 2
        %v5106 = vmax.f32 %v5104, %v5105
        %v5107 = vrot.slane %v5106, 1
        %v5108 = vmax.f32 %v5106, %v5107
        %v5109 = vrot.slane %v5078, 4
        %v5110 = vmax.f32 %v5078, %v5109
        %v5111 = vrot.slane %v5110, 2
        %v5112 = vmax.f32 %v5110, %v5111
        %v5113 = vrot.slane %v5112, 1
        %v5114 = vmax.f32 %v5112, %v5113
        %v5115 = vrot.slane %v5079, 4
        %v5116 = vmax.f32 %v5079, %v5115
        %v5117 = vrot.slane %v5116, 2
        %v5118 = vmax.f32 %v5116, %v5117
        %v5119 = vrot.slane %v5118, 1
        %v5120 = vmax.f32 %v5118, %v5119
        %v5121 = vrot.slane %v5080, 4
        %v5122 = vmax.f32 %v5080, %v5121
        %v5123 = vrot.slane %v5122, 2
        %v5124 = vmax.f32 %v5122, %v5123
        %v5125 = vrot.slane %v5124, 1
        %v5126 = vmax.f32 %v5124, %v5125
        %v5127 = vrot.slane %v5081, 4
        %v5128 = vmax.f32 %v5081, %v5127
        %v5129 = vrot.slane %v5128, 2
        %v5130 = vmax.f32 %v5128, %v5129
        %v5131 = vrot.slane %v5130, 1
        %v5132 = vmax.f32 %v5130, %v5131
        %v5133 = vrot.slane %v5082, 4
        %v5134 = vmax.f32 %v5082, %v5133
        %v5135 = vrot.slane %v5134, 2
        %v5136 = vmax.f32 %v5134, %v5135
        %v5137 = vrot.slane %v5136, 1
        %v5138 = vmax.f32 %v5136, %v5137
        %v5139 = vrot.slane %v5083, 4
        %v5140 = vmax.f32 %v5083, %v5139
        %v5141 = vrot.slane %v5140, 2
        %v5142 = vmax.f32 %v5140, %v5141
        %v5143 = vrot.slane %v5142, 1
        %v5144 = vmax.f32 %v5142, %v5143
        %v5145 = vrot.slane %v5084, 4
        %v5146 = vmax.f32 %v5084, %v5145
        %v5147 = vrot.slane %v5146, 2
        %v5148 = vmax.f32 %v5146, %v5147
        %v5149 = vrot.slane %v5148, 1
        %v5150 = vmax.f32 %v5148, %v5149
        %v5151 = vrot.slane %v5085, 4
        %v5152 = vmax.f32 %v5085, %v5151
        %v5153 = vrot.slane %v5152, 2
        %v5154 = vmax.f32 %v5152, %v5153
        %v5155 = vrot.slane %v5154, 1
        %v5156 = vmax.f32 %v5154, %v5155
        %v5157 = vrot.slane %v5086, 4
        %v5158 = vmax.f32 %v5086, %v5157
        %v5159 = vrot.slane %v5158, 2
        %v5160 = vmax.f32 %v5158, %v5159
        %v5161 = vrot.slane %v5160, 1
        %v5162 = vmax.f32 %v5160, %v5161
        %v5163 = vrot.slane %v5087, 4
        %v5164 = vmax.f32 %v5087, %v5163
        %v5165 = vrot.slane %v5164, 2
        %v5166 = vmax.f32 %v5164, %v5165
        %v5167 = vrot.slane %v5166, 1
        %v5168 = vmax.f32 %v5166, %v5167
        %v5169 = vrot.slane %v5088, 4
        %v5170 = vmax.f32 %v5088, %v5169
        %v5171 = vrot.slane %v5170, 2
        %v5172 = vmax.f32 %v5170, %v5171
        %v5173 = vrot.slane %v5172, 1
        %v5174 = vmax.f32 %v5172, %v5173
        %v5175 = vrot.slane %v5089, 4
        %v5176 = vmax.f32 %v5089, %v5175
        %v5177 = vrot.slane %v5176, 2
        %v5178 = vmax.f32 %v5176, %v5177
        %v5179 = vrot.slane %v5178, 1
        %v5180 = vmax.f32 %v5178, %v5179
        %v5181 = vrot.slane %v5090, 4
        %v5182 = vmax.f32 %v5090, %v5181
        %v5183 = vrot.slane %v5182, 2
        %v5184 = vmax.f32 %v5182, %v5183
        %v5185 = vrot.slane %v5184, 1
        %v5186 = vmax.f32 %v5184, %v5185
        %v5203 = vsel %vm657, %v5102, %v5096
        %v5204 = vsel %vm659, %v5108, %v5203
        %v5205 = vsel %vm661, %v5114, %v5204
        %v5206 = vsel %vm663, %v5120, %v5205
        %v5207 = vsel %vm665, %v5126, %v5206
        %v5208 = vsel %vm667, %v5132, %v5207
        %v5209 = vsel %vm669, %v5138, %v5208
        %v5210 = vsel %vm657, %v5150, %v5144
        %v5211 = vsel %vm659, %v5156, %v5210
        %v5212 = vsel %vm661, %v5162, %v5211
        %v5213 = vsel %vm663, %v5168, %v5212
        %v5214 = vsel %vm665, %v5174, %v5213
        %v5215 = vsel %vm667, %v5180, %v5214
        %v5216 = vsel %vm669, %v5186, %v5215
        %v5219 = vmax.f32 %v5073, %v5209
        %v5220 = vmax.f32 %v5074, %v5216
        %5221 = vst [vmem:[#allocation4] sm:$0xff] %v5219
        %5222 = vst [vmem:[#allocation4 + $0x8] sm:$0xff] %v5220
        %v5223 = vld [vmem:[%s280 + $0x60] sm:$0xff]
        %vm5224 = vcmp.eq.s32.totalorder %v306, %v5223
        %vm5225 = vcmp.eq.s32.totalorder %v413, %v5223
        %vm5226 = vcmp.eq.s32.totalorder %v414, %v5223
        %vm5227 = vcmp.eq.s32.totalorder %v415, %v5223
        %vm5228 = vcmp.eq.s32.totalorder %v416, %v5223
        %vm5229 = vcmp.eq.s32.totalorder %v417, %v5223
        %vm5230 = vcmp.eq.s32.totalorder %v418, %v5223
        %vm5231 = vcmp.eq.s32.totalorder %v419, %v5223
        %vm5232 = vcmp.eq.s32.totalorder %v420, %v5223
        %vm5233 = vcmp.eq.s32.totalorder %v421, %v5223
        %vm5234 = vcmp.eq.s32.totalorder %v422, %v5223
        %vm5235 = vcmp.eq.s32.totalorder %v423, %v5223
        %vm5236 = vcmp.eq.s32.totalorder %v424, %v5223
        %vm5237 = vcmp.eq.s32.totalorder %v425, %v5223
        %vm5238 = vcmp.eq.s32.totalorder %v426, %v5223
        %vm5239 = vcmp.eq.s32.totalorder %v427, %v5223
        %v5240 = vld [vmem:[%s286 + $0x30] sm:$0xf]
        %v5241 = vunpack.c.l.bf16 %v5240
        %v5242 = vld [vmem:[#allocation3] sm:$0xff]
        %v5243 = vld [vmem:[#allocation3 + $0x8] sm:$0xff]
        %v5244 = vsel %vm5224, 1, 0
        %v5245 = vsel %vm5225, 1, 0
        %v5246 = vsel %vm5226, 1, 0
        %v5247 = vsel %vm5227, 1, 0
        %v5248 = vsel %vm5228, 1, 0
        %v5249 = vsel %vm5229, 1, 0
        %v5250 = vsel %vm5230, 1, 0
        %v5251 = vsel %vm5231, 1, 0
        %v5252 = vsel %vm5232, 1, 0
        %v5253 = vsel %vm5233, 1, 0
        %v5254 = vsel %vm5234, 1, 0
        %v5255 = vsel %vm5235, 1, 0
        %v5256 = vsel %vm5236, 1, 0
        %v5257 = vsel %vm5237, 1, 0
        %v5258 = vsel %vm5238, 1, 0
        %v5259 = vsel %vm5239, 1, 0
        %5260 = vset.pattern.permute.xlu0 0
        %5261 = vperm.xlu0 %5260, %v5244
        %v5262 = vpop.permute.xlu0 %5261
        %5263 = vset.pattern.permute.xlu0 0
        %5264 = vperm.xlu0 %5263, %v5245
        %v5265 = vpop.permute.xlu0 %5264
        %5266 = vset.pattern.permute.xlu0 0
        %5267 = vperm.xlu0 %5266, %v5246
        %v5268 = vpop.permute.xlu0 %5267
        %5269 = vset.pattern.permute.xlu0 0
        %5270 = vperm.xlu0 %5269, %v5247
        %v5271 = vpop.permute.xlu0 %5270
        %5272 = vset.pattern.permute.xlu0 0
        %5273 = vperm.xlu0 %5272, %v5248
        %v5274 = vpop.permute.xlu0 %5273
        %5275 = vset.pattern.permute.xlu0 0
        %5276 = vperm.xlu0 %5275, %v5249
        %v5277 = vpop.permute.xlu0 %5276
        %5278 = vset.pattern.permute.xlu0 0
        %5279 = vperm.xlu0 %5278, %v5250
        %v5280 = vpop.permute.xlu0 %5279
        %5281 = vset.pattern.permute.xlu0 0
        %5282 = vperm.xlu0 %5281, %v5251
        %v5283 = vpop.permute.xlu0 %5282
        %5284 = vset.pattern.permute.xlu0 0
        %5285 = vperm.xlu0 %5284, %v5252
        %v5286 = vpop.permute.xlu0 %5285
        %5287 = vset.pattern.permute.xlu0 0
        %5288 = vperm.xlu0 %5287, %v5253
        %v5289 = vpop.permute.xlu0 %5288
        %5290 = vset.pattern.permute.xlu0 0
        %5291 = vperm.xlu0 %5290, %v5254
        %v5292 = vpop.permute.xlu0 %5291
        %5293 = vset.pattern.permute.xlu0 0
        %5294 = vperm.xlu0 %5293, %v5255
        %v5295 = vpop.permute.xlu0 %5294
        %5296 = vset.pattern.permute.xlu0 0
        %5297 = vperm.xlu0 %5296, %v5256
        %v5298 = vpop.permute.xlu0 %5297
        %5299 = vset.pattern.permute.xlu0 0
        %5300 = vperm.xlu0 %5299, %v5257
        %v5301 = vpop.permute.xlu0 %5300
        %5302 = vset.pattern.permute.xlu0 0
        %5303 = vperm.xlu0 %5302, %v5258
        %v5304 = vpop.permute.xlu0 %5303
        %5305 = vset.pattern.permute.xlu0 0
        %5306 = vperm.xlu0 %5305, %v5259
        %v5307 = vpop.permute.xlu0 %5306
        %vm5308 = vcmp.eq.s32.totalorder %v5262, 1
        %vm5309 = vcmp.eq.s32.totalorder %v5265, 1
        %vm5310 = vcmp.eq.s32.totalorder %v5268, 1
        %vm5311 = vcmp.eq.s32.totalorder %v5271, 1
        %vm5312 = vcmp.eq.s32.totalorder %v5274, 1
        %vm5313 = vcmp.eq.s32.totalorder %v5277, 1
        %vm5314 = vcmp.eq.s32.totalorder %v5280, 1
        %vm5315 = vcmp.eq.s32.totalorder %v5283, 1
        %vm5316 = vcmp.eq.s32.totalorder %v5286, 1
        %vm5317 = vcmp.eq.s32.totalorder %v5289, 1
        %vm5318 = vcmp.eq.s32.totalorder %v5292, 1
        %vm5319 = vcmp.eq.s32.totalorder %v5295, 1
        %vm5320 = vcmp.eq.s32.totalorder %v5298, 1
        %vm5321 = vcmp.eq.s32.totalorder %v5301, 1
        %vm5322 = vcmp.eq.s32.totalorder %v5304, 1
        %vm5323 = vcmp.eq.s32.totalorder %v5307, 1
        %v5324 = vsel %vm5308, %v5241, 3e+38
        %v5325 = vsel %vm5309, %v5241, 3e+38
        %v5326 = vsel %vm5310, %v5241, 3e+38
        %v5327 = vsel %vm5311, %v5241, 3e+38
        %v5328 = vsel %vm5312, %v5241, 3e+38
        %v5329 = vsel %vm5313, %v5241, 3e+38
        %v5330 = vsel %vm5314, %v5241, 3e+38
        %v5331 = vsel %vm5315, %v5241, 3e+38
        %v5332 = vsel %vm5316, %v5241, 3e+38
        %v5333 = vsel %vm5317, %v5241, 3e+38
        %v5334 = vsel %vm5318, %v5241, 3e+38
        %v5335 = vsel %vm5319, %v5241, 3e+38
        %v5336 = vsel %vm5320, %v5241, 3e+38
        %v5337 = vsel %vm5321, %v5241, 3e+38
        %v5338 = vsel %vm5322, %v5241, 3e+38
        %v5339 = vsel %vm5323, %v5241, 3e+38
        %v5340 = vrot.slane %v5324, 4
        %v5341 = vmin.f32 %v5324, %v5340
        %v5342 = vrot.slane %v5341, 2
        %v5343 = vmin.f32 %v5341, %v5342
        %v5344 = vrot.slane %v5343, 1
        %v5345 = vmin.f32 %v5343, %v5344
        %v5346 = vrot.slane %v5325, 4
        %v5347 = vmin.f32 %v5325, %v5346
        %v5348 = vrot.slane %v5347, 2
        %v5349 = vmin.f32 %v5347, %v5348
        %v5350 = vrot.slane %v5349, 1
        %v5351 = vmin.f32 %v5349, %v5350
        %v5352 = vrot.slane %v5326, 4
        %v5353 = vmin.f32 %v5326, %v5352
        %v5354 = vrot.slane %v5353, 2
        %v5355 = vmin.f32 %v5353, %v5354
        %v5356 = vrot.slane %v5355, 1
        %v5357 = vmin.f32 %v5355, %v5356
        %v5358 = vrot.slane %v5327, 4
        %v5359 = vmin.f32 %v5327, %v5358
        %v5360 = vrot.slane %v5359, 2
        %v5361 = vmin.f32 %v5359, %v5360
        %v5362 = vrot.slane %v5361, 1
        %v5363 = vmin.f32 %v5361, %v5362
        %v5364 = vrot.slane %v5328, 4
        %v5365 = vmin.f32 %v5328, %v5364
        %v5366 = vrot.slane %v5365, 2
        %v5367 = vmin.f32 %v5365, %v5366
        %v5368 = vrot.slane %v5367, 1
        %v5369 = vmin.f32 %v5367, %v5368
        %v5370 = vrot.slane %v5329, 4
        %v5371 = vmin.f32 %v5329, %v5370
        %v5372 = vrot.slane %v5371, 2
        %v5373 = vmin.f32 %v5371, %v5372
        %v5374 = vrot.slane %v5373, 1
        %v5375 = vmin.f32 %v5373, %v5374
        %v5376 = vrot.slane %v5330, 4
        %v5377 = vmin.f32 %v5330, %v5376
        %v5378 = vrot.slane %v5377, 2
        %v5379 = vmin.f32 %v5377, %v5378
        %v5380 = vrot.slane %v5379, 1
        %v5381 = vmin.f32 %v5379, %v5380
        %v5382 = vrot.slane %v5331, 4
        %v5383 = vmin.f32 %v5331, %v5382
        %v5384 = vrot.slane %v5383, 2
        %v5385 = vmin.f32 %v5383, %v5384
        %v5386 = vrot.slane %v5385, 1
        %v5387 = vmin.f32 %v5385, %v5386
        %v5388 = vrot.slane %v5332, 4
        %v5389 = vmin.f32 %v5332, %v5388
        %v5390 = vrot.slane %v5389, 2
        %v5391 = vmin.f32 %v5389, %v5390
        %v5392 = vrot.slane %v5391, 1
        %v5393 = vmin.f32 %v5391, %v5392
        %v5394 = vrot.slane %v5333, 4
        %v5395 = vmin.f32 %v5333, %v5394
        %v5396 = vrot.slane %v5395, 2
        %v5397 = vmin.f32 %v5395, %v5396
        %v5398 = vrot.slane %v5397, 1
        %v5399 = vmin.f32 %v5397, %v5398
        %v5400 = vrot.slane %v5334, 4
        %v5401 = vmin.f32 %v5334, %v5400
        %v5402 = vrot.slane %v5401, 2
        %v5403 = vmin.f32 %v5401, %v5402
        %v5404 = vrot.slane %v5403, 1
        %v5405 = vmin.f32 %v5403, %v5404
        %v5406 = vrot.slane %v5335, 4
        %v5407 = vmin.f32 %v5335, %v5406
        %v5408 = vrot.slane %v5407, 2
        %v5409 = vmin.f32 %v5407, %v5408
        %v5410 = vrot.slane %v5409, 1
        %v5411 = vmin.f32 %v5409, %v5410
        %v5412 = vrot.slane %v5336, 4
        %v5413 = vmin.f32 %v5336, %v5412
        %v5414 = vrot.slane %v5413, 2
        %v5415 = vmin.f32 %v5413, %v5414
        %v5416 = vrot.slane %v5415, 1
        %v5417 = vmin.f32 %v5415, %v5416
        %v5418 = vrot.slane %v5337, 4
        %v5419 = vmin.f32 %v5337, %v5418
        %v5420 = vrot.slane %v5419, 2
        %v5421 = vmin.f32 %v5419, %v5420
        %v5422 = vrot.slane %v5421, 1
        %v5423 = vmin.f32 %v5421, %v5422
        %v5424 = vrot.slane %v5338, 4
        %v5425 = vmin.f32 %v5338, %v5424
        %v5426 = vrot.slane %v5425, 2
        %v5427 = vmin.f32 %v5425, %v5426
        %v5428 = vrot.slane %v5427, 1
        %v5429 = vmin.f32 %v5427, %v5428
        %v5430 = vrot.slane %v5339, 4
        %v5431 = vmin.f32 %v5339, %v5430
        %v5432 = vrot.slane %v5431, 2
        %v5433 = vmin.f32 %v5431, %v5432
        %v5434 = vrot.slane %v5433, 1
        %v5435 = vmin.f32 %v5433, %v5434
        %v5452 = vsel %vm657, %v5351, %v5345
        %v5453 = vsel %vm659, %v5357, %v5452
        %v5454 = vsel %vm661, %v5363, %v5453
        %v5455 = vsel %vm663, %v5369, %v5454
        %v5456 = vsel %vm665, %v5375, %v5455
        %v5457 = vsel %vm667, %v5381, %v5456
        %v5458 = vsel %vm669, %v5387, %v5457
        %v5459 = vsel %vm657, %v5399, %v5393
        %v5460 = vsel %vm659, %v5405, %v5459
        %v5461 = vsel %vm661, %v5411, %v5460
        %v5462 = vsel %vm663, %v5417, %v5461
        %v5463 = vsel %vm665, %v5423, %v5462
        %v5464 = vsel %vm667, %v5429, %v5463
        %v5465 = vsel %vm669, %v5435, %v5464
        %v5468 = vmin.f32 %v5242, %v5458
        %v5469 = vmin.f32 %v5243, %v5465
        %5470 = vst [vmem:[#allocation3] sm:$0xff] %v5468
        %5471 = vst [vmem:[#allocation3 + $0x8] sm:$0xff] %v5469
        %v5472 = vld [vmem:[#allocation4] sm:$0xff]
        %v5473 = vld [vmem:[#allocation4 + $0x8] sm:$0xff]
        %v5474 = vsel %vm5308, %v5241, -3e+38
        %v5475 = vsel %vm5309, %v5241, -3e+38
        %v5476 = vsel %vm5310, %v5241, -3e+38
        %v5477 = vsel %vm5311, %v5241, -3e+38
        %v5478 = vsel %vm5312, %v5241, -3e+38
        %v5479 = vsel %vm5313, %v5241, -3e+38
        %v5480 = vsel %vm5314, %v5241, -3e+38
        %v5481 = vsel %vm5315, %v5241, -3e+38
        %v5482 = vsel %vm5316, %v5241, -3e+38
        %v5483 = vsel %vm5317, %v5241, -3e+38
        %v5484 = vsel %vm5318, %v5241, -3e+38
        %v5485 = vsel %vm5319, %v5241, -3e+38
        %v5486 = vsel %vm5320, %v5241, -3e+38
        %v5487 = vsel %vm5321, %v5241, -3e+38
        %v5488 = vsel %vm5322, %v5241, -3e+38
        %v5489 = vsel %vm5323, %v5241, -3e+38
        %v5490 = vrot.slane %v5474, 4
        %v5491 = vmax.f32 %v5474, %v5490
        %v5492 = vrot.slane %v5491, 2
        %v5493 = vmax.f32 %v5491, %v5492
        %v5494 = vrot.slane %v5493, 1
        %v5495 = vmax.f32 %v5493, %v5494
        %v5496 = vrot.slane %v5475, 4
        %v5497 = vmax.f32 %v5475, %v5496
        %v5498 = vrot.slane %v5497, 2
        %v5499 = vmax.f32 %v5497, %v5498
        %v5500 = vrot.slane %v5499, 1
        %v5501 = vmax.f32 %v5499, %v5500
        %v5502 = vrot.slane %v5476, 4
        %v5503 = vmax.f32 %v5476, %v5502
        %v5504 = vrot.slane %v5503, 2
        %v5505 = vmax.f32 %v5503, %v5504
        %v5506 = vrot.slane %v5505, 1
        %v5507 = vmax.f32 %v5505, %v5506
        %v5508 = vrot.slane %v5477, 4
        %v5509 = vmax.f32 %v5477, %v5508
        %v5510 = vrot.slane %v5509, 2
        %v5511 = vmax.f32 %v5509, %v5510
        %v5512 = vrot.slane %v5511, 1
        %v5513 = vmax.f32 %v5511, %v5512
        %v5514 = vrot.slane %v5478, 4
        %v5515 = vmax.f32 %v5478, %v5514
        %v5516 = vrot.slane %v5515, 2
        %v5517 = vmax.f32 %v5515, %v5516
        %v5518 = vrot.slane %v5517, 1
        %v5519 = vmax.f32 %v5517, %v5518
        %v5520 = vrot.slane %v5479, 4
        %v5521 = vmax.f32 %v5479, %v5520
        %v5522 = vrot.slane %v5521, 2
        %v5523 = vmax.f32 %v5521, %v5522
        %v5524 = vrot.slane %v5523, 1
        %v5525 = vmax.f32 %v5523, %v5524
        %v5526 = vrot.slane %v5480, 4
        %v5527 = vmax.f32 %v5480, %v5526
        %v5528 = vrot.slane %v5527, 2
        %v5529 = vmax.f32 %v5527, %v5528
        %v5530 = vrot.slane %v5529, 1
        %v5531 = vmax.f32 %v5529, %v5530
        %v5532 = vrot.slane %v5481, 4
        %v5533 = vmax.f32 %v5481, %v5532
        %v5534 = vrot.slane %v5533, 2
        %v5535 = vmax.f32 %v5533, %v5534
        %v5536 = vrot.slane %v5535, 1
        %v5537 = vmax.f32 %v5535, %v5536
        %v5538 = vrot.slane %v5482, 4
        %v5539 = vmax.f32 %v5482, %v5538
        %v5540 = vrot.slane %v5539, 2
        %v5541 = vmax.f32 %v5539, %v5540
        %v5542 = vrot.slane %v5541, 1
        %v5543 = vmax.f32 %v5541, %v5542
        %v5544 = vrot.slane %v5483, 4
        %v5545 = vmax.f32 %v5483, %v5544
        %v5546 = vrot.slane %v5545, 2
        %v5547 = vmax.f32 %v5545, %v5546
        %v5548 = vrot.slane %v5547, 1
        %v5549 = vmax.f32 %v5547, %v5548
        %v5550 = vrot.slane %v5484, 4
        %v5551 = vmax.f32 %v5484, %v5550
        %v5552 = vrot.slane %v5551, 2
        %v5553 = vmax.f32 %v5551, %v5552
        %v5554 = vrot.slane %v5553, 1
        %v5555 = vmax.f32 %v5553, %v5554
        %v5556 = vrot.slane %v5485, 4
        %v5557 = vmax.f32 %v5485, %v5556
        %v5558 = vrot.slane %v5557, 2
        %v5559 = vmax.f32 %v5557, %v5558
        %v5560 = vrot.slane %v5559, 1
        %v5561 = vmax.f32 %v5559, %v5560
        %v5562 = vrot.slane %v5486, 4
        %v5563 = vmax.f32 %v5486, %v5562
        %v5564 = vrot.slane %v5563, 2
        %v5565 = vmax.f32 %v5563, %v5564
        %v5566 = vrot.slane %v5565, 1
        %v5567 = vmax.f32 %v5565, %v5566
        %v5568 = vrot.slane %v5487, 4
        %v5569 = vmax.f32 %v5487, %v5568
        %v5570 = vrot.slane %v5569, 2
        %v5571 = vmax.f32 %v5569, %v5570
        %v5572 = vrot.slane %v5571, 1
        %v5573 = vmax.f32 %v5571, %v5572
        %v5574 = vrot.slane %v5488, 4
        %v5575 = vmax.f32 %v5488, %v5574
        %v5576 = vrot.slane %v5575, 2
        %v5577 = vmax.f32 %v5575, %v5576
        %v5578 = vrot.slane %v5577, 1
        %v5579 = vmax.f32 %v5577, %v5578
        %v5580 = vrot.slane %v5489, 4
        %v5581 = vmax.f32 %v5489, %v5580
        %v5582 = vrot.slane %v5581, 2
        %v5583 = vmax.f32 %v5581, %v5582
        %v5584 = vrot.slane %v5583, 1
        %v5585 = vmax.f32 %v5583, %v5584
        %v5602 = vsel %vm657, %v5501, %v5495
        %v5603 = vsel %vm659, %v5507, %v5602
        %v5604 = vsel %vm661, %v5513, %v5603
        %v5605 = vsel %vm663, %v5519, %v5604
        %v5606 = vsel %vm665, %v5525, %v5605
        %v5607 = vsel %vm667, %v5531, %v5606
        %v5608 = vsel %vm669, %v5537, %v5607
        %v5609 = vsel %vm657, %v5549, %v5543
        %v5610 = vsel %vm659, %v5555, %v5609
        %v5611 = vsel %vm661, %v5561, %v5610
        %v5612 = vsel %vm663, %v5567, %v5611
        %v5613 = vsel %vm665, %v5573, %v5612
        %v5614 = vsel %vm667, %v5579, %v5613
        %v5615 = vsel %vm669, %v5585, %v5614
        %v5618 = vmax.f32 %v5472, %v5608
        %v5619 = vmax.f32 %v5473, %v5615
        %5620 = vst [vmem:[#allocation4] sm:$0xff] %v5618
        %5621 = vst [vmem:[#allocation4 + $0x8] sm:$0xff] %v5619
        %v5622 = vld [vmem:[%s280 + $0x68] sm:$0xff]
        %vm5623 = vcmp.eq.s32.totalorder %v306, %v5622
        %vm5624 = vcmp.eq.s32.totalorder %v413, %v5622
        %vm5625 = vcmp.eq.s32.totalorder %v414, %v5622
        %vm5626 = vcmp.eq.s32.totalorder %v415, %v5622
        %vm5627 = vcmp.eq.s32.totalorder %v416, %v5622
        %vm5628 = vcmp.eq.s32.totalorder %v417, %v5622
        %vm5629 = vcmp.eq.s32.totalorder %v418, %v5622
        %vm5630 = vcmp.eq.s32.totalorder %v419, %v5622
        %vm5631 = vcmp.eq.s32.totalorder %v420, %v5622
        %vm5632 = vcmp.eq.s32.totalorder %v421, %v5622
        %vm5633 = vcmp.eq.s32.totalorder %v422, %v5622
        %vm5634 = vcmp.eq.s32.totalorder %v423, %v5622
        %vm5635 = vcmp.eq.s32.totalorder %v424, %v5622
        %vm5636 = vcmp.eq.s32.totalorder %v425, %v5622
        %vm5637 = vcmp.eq.s32.totalorder %v426, %v5622
        %vm5638 = vcmp.eq.s32.totalorder %v427, %v5622
        %v5639 = vld [vmem:[%s286 + $0x34] sm:$0xf]
        %v5640 = vunpack.c.l.bf16 %v5639
        %v5641 = vld [vmem:[#allocation3] sm:$0xff]
        %v5642 = vld [vmem:[#allocation3 + $0x8] sm:$0xff]
        %v5643 = vsel %vm5623, 1, 0
        %v5644 = vsel %vm5624, 1, 0
        %v5645 = vsel %vm5625, 1, 0
        %v5646 = vsel %vm5626, 1, 0
        %v5647 = vsel %vm5627, 1, 0
        %v5648 = vsel %vm5628, 1, 0
        %v5649 = vsel %vm5629, 1, 0
        %v5650 = vsel %vm5630, 1, 0
        %v5651 = vsel %vm5631, 1, 0
        %v5652 = vsel %vm5632, 1, 0
        %v5653 = vsel %vm5633, 1, 0
        %v5654 = vsel %vm5634, 1, 0
        %v5655 = vsel %vm5635, 1, 0
        %v5656 = vsel %vm5636, 1, 0
        %v5657 = vsel %vm5637, 1, 0
        %v5658 = vsel %vm5638, 1, 0
        %5659 = vset.pattern.permute.xlu0 0
        %5660 = vperm.xlu0 %5659, %v5643
        %v5661 = vpop.permute.xlu0 %5660
        %5662 = vset.pattern.permute.xlu0 0
        %5663 = vperm.xlu0 %5662, %v5644
        %v5664 = vpop.permute.xlu0 %5663
        %5665 = vset.pattern.permute.xlu0 0
        %5666 = vperm.xlu0 %5665, %v5645
        %v5667 = vpop.permute.xlu0 %5666
        %5668 = vset.pattern.permute.xlu0 0
        %5669 = vperm.xlu0 %5668, %v5646
        %v5670 = vpop.permute.xlu0 %5669
        %5671 = vset.pattern.permute.xlu0 0
        %5672 = vperm.xlu0 %5671, %v5647
        %v5673 = vpop.permute.xlu0 %5672
        %5674 = vset.pattern.permute.xlu0 0
        %5675 = vperm.xlu0 %5674, %v5648
        %v5676 = vpop.permute.xlu0 %5675
        %5677 = vset.pattern.permute.xlu0 0
        %5678 = vperm.xlu0 %5677, %v5649
        %v5679 = vpop.permute.xlu0 %5678
        %5680 = vset.pattern.permute.xlu0 0
        %5681 = vperm.xlu0 %5680, %v5650
        %v5682 = vpop.permute.xlu0 %5681
        %5683 = vset.pattern.permute.xlu0 0
        %5684 = vperm.xlu0 %5683, %v5651
        %v5685 = vpop.permute.xlu0 %5684
        %5686 = vset.pattern.permute.xlu0 0
        %5687 = vperm.xlu0 %5686, %v5652
        %v5688 = vpop.permute.xlu0 %5687
        %5689 = vset.pattern.permute.xlu0 0
        %5690 = vperm.xlu0 %5689, %v5653
        %v5691 = vpop.permute.xlu0 %5690
        %5692 = vset.pattern.permute.xlu0 0
        %5693 = vperm.xlu0 %5692, %v5654
        %v5694 = vpop.permute.xlu0 %5693
        %5695 = vset.pattern.permute.xlu0 0
        %5696 = vperm.xlu0 %5695, %v5655
        %v5697 = vpop.permute.xlu0 %5696
        %5698 = vset.pattern.permute.xlu0 0
        %5699 = vperm.xlu0 %5698, %v5656
        %v5700 = vpop.permute.xlu0 %5699
        %5701 = vset.pattern.permute.xlu0 0
        %5702 = vperm.xlu0 %5701, %v5657
        %v5703 = vpop.permute.xlu0 %5702
        %5704 = vset.pattern.permute.xlu0 0
        %5705 = vperm.xlu0 %5704, %v5658
        %v5706 = vpop.permute.xlu0 %5705
        %vm5707 = vcmp.eq.s32.totalorder %v5661, 1
        %vm5708 = vcmp.eq.s32.totalorder %v5664, 1
        %vm5709 = vcmp.eq.s32.totalorder %v5667, 1
        %vm5710 = vcmp.eq.s32.totalorder %v5670, 1
        %vm5711 = vcmp.eq.s32.totalorder %v5673, 1
        %vm5712 = vcmp.eq.s32.totalorder %v5676, 1
        %vm5713 = vcmp.eq.s32.totalorder %v5679, 1
        %vm5714 = vcmp.eq.s32.totalorder %v5682, 1
        %vm5715 = vcmp.eq.s32.totalorder %v5685, 1
        %vm5716 = vcmp.eq.s32.totalorder %v5688, 1
        %vm5717 = vcmp.eq.s32.totalorder %v5691, 1
        %vm5718 = vcmp.eq.s32.totalorder %v5694, 1
        %vm5719 = vcmp.eq.s32.totalorder %v5697, 1
        %vm5720 = vcmp.eq.s32.totalorder %v5700, 1
        %vm5721 = vcmp.eq.s32.totalorder %v5703, 1
        %vm5722 = vcmp.eq.s32.totalorder %v5706, 1
        %v5723 = vsel %vm5707, %v5640, 3e+38
        %v5724 = vsel %vm5708, %v5640, 3e+38
        %v5725 = vsel %vm5709, %v5640, 3e+38
        %v5726 = vsel %vm5710, %v5640, 3e+38
        %v5727 = vsel %vm5711, %v5640, 3e+38
        %v5728 = vsel %vm5712, %v5640, 3e+38
        %v5729 = vsel %vm5713, %v5640, 3e+38
        %v5730 = vsel %vm5714, %v5640, 3e+38
        %v5731 = vsel %vm5715, %v5640, 3e+38
        %v5732 = vsel %vm5716, %v5640, 3e+38
        %v5733 = vsel %vm5717, %v5640, 3e+38
        %v5734 = vsel %vm5718, %v5640, 3e+38
        %v5735 = vsel %vm5719, %v5640, 3e+38
        %v5736 = vsel %vm5720, %v5640, 3e+38
        %v5737 = vsel %vm5721, %v5640, 3e+38
        %v5738 = vsel %vm5722, %v5640, 3e+38
        %v5739 = vrot.slane %v5723, 4
        %v5740 = vmin.f32 %v5723, %v5739
        %v5741 = vrot.slane %v5740, 2
        %v5742 = vmin.f32 %v5740, %v5741
        %v5743 = vrot.slane %v5742, 1
        %v5744 = vmin.f32 %v5742, %v5743
        %v5745 = vrot.slane %v5724, 4
        %v5746 = vmin.f32 %v5724, %v5745
        %v5747 = vrot.slane %v5746, 2
        %v5748 = vmin.f32 %v5746, %v5747
        %v5749 = vrot.slane %v5748, 1
        %v5750 = vmin.f32 %v5748, %v5749
        %v5751 = vrot.slane %v5725, 4
        %v5752 = vmin.f32 %v5725, %v5751
        %v5753 = vrot.slane %v5752, 2
        %v5754 = vmin.f32 %v5752, %v5753
        %v5755 = vrot.slane %v5754, 1
        %v5756 = vmin.f32 %v5754, %v5755
        %v5757 = vrot.slane %v5726, 4
        %v5758 = vmin.f32 %v5726, %v5757
        %v5759 = vrot.slane %v5758, 2
        %v5760 = vmin.f32 %v5758, %v5759
        %v5761 = vrot.slane %v5760, 1
        %v5762 = vmin.f32 %v5760, %v5761
        %v5763 = vrot.slane %v5727, 4
        %v5764 = vmin.f32 %v5727, %v5763
        %v5765 = vrot.slane %v5764, 2
        %v5766 = vmin.f32 %v5764, %v5765
        %v5767 = vrot.slane %v5766, 1
        %v5768 = vmin.f32 %v5766, %v5767
        %v5769 = vrot.slane %v5728, 4
        %v5770 = vmin.f32 %v5728, %v5769
        %v5771 = vrot.slane %v5770, 2
        %v5772 = vmin.f32 %v5770, %v5771
        %v5773 = vrot.slane %v5772, 1
        %v5774 = vmin.f32 %v5772, %v5773
        %v5775 = vrot.slane %v5729, 4
        %v5776 = vmin.f32 %v5729, %v5775
        %v5777 = vrot.slane %v5776, 2
        %v5778 = vmin.f32 %v5776, %v5777
        %v5779 = vrot.slane %v5778, 1
        %v5780 = vmin.f32 %v5778, %v5779
        %v5781 = vrot.slane %v5730, 4
        %v5782 = vmin.f32 %v5730, %v5781
        %v5783 = vrot.slane %v5782, 2
        %v5784 = vmin.f32 %v5782, %v5783
        %v5785 = vrot.slane %v5784, 1
        %v5786 = vmin.f32 %v5784, %v5785
        %v5787 = vrot.slane %v5731, 4
        %v5788 = vmin.f32 %v5731, %v5787
        %v5789 = vrot.slane %v5788, 2
        %v5790 = vmin.f32 %v5788, %v5789
        %v5791 = vrot.slane %v5790, 1
        %v5792 = vmin.f32 %v5790, %v5791
        %v5793 = vrot.slane %v5732, 4
        %v5794 = vmin.f32 %v5732, %v5793
        %v5795 = vrot.slane %v5794, 2
        %v5796 = vmin.f32 %v5794, %v5795
        %v5797 = vrot.slane %v5796, 1
        %v5798 = vmin.f32 %v5796, %v5797
        %v5799 = vrot.slane %v5733, 4
        %v5800 = vmin.f32 %v5733, %v5799
        %v5801 = vrot.slane %v5800, 2
        %v5802 = vmin.f32 %v5800, %v5801
        %v5803 = vrot.slane %v5802, 1
        %v5804 = vmin.f32 %v5802, %v5803
        %v5805 = vrot.slane %v5734, 4
        %v5806 = vmin.f32 %v5734, %v5805
        %v5807 = vrot.slane %v5806, 2
        %v5808 = vmin.f32 %v5806, %v5807
        %v5809 = vrot.slane %v5808, 1
        %v5810 = vmin.f32 %v5808, %v5809
        %v5811 = vrot.slane %v5735, 4
        %v5812 = vmin.f32 %v5735, %v5811
        %v5813 = vrot.slane %v5812, 2
        %v5814 = vmin.f32 %v5812, %v5813
        %v5815 = vrot.slane %v5814, 1
        %v5816 = vmin.f32 %v5814, %v5815
        %v5817 = vrot.slane %v5736, 4
        %v5818 = vmin.f32 %v5736, %v5817
        %v5819 = vrot.slane %v5818, 2
        %v5820 = vmin.f32 %v5818, %v5819
        %v5821 = vrot.slane %v5820, 1
        %v5822 = vmin.f32 %v5820, %v5821
        %v5823 = vrot.slane %v5737, 4
        %v5824 = vmin.f32 %v5737, %v5823
        %v5825 = vrot.slane %v5824, 2
        %v5826 = vmin.f32 %v5824, %v5825
        %v5827 = vrot.slane %v5826, 1
        %v5828 = vmin.f32 %v5826, %v5827
        %v5829 = vrot.slane %v5738, 4
        %v5830 = vmin.f32 %v5738, %v5829
        %v5831 = vrot.slane %v5830, 2
        %v5832 = vmin.f32 %v5830, %v5831
        %v5833 = vrot.slane %v5832, 1
        %v5834 = vmin.f32 %v5832, %v5833
        %v5851 = vsel %vm657, %v5750, %v5744
        %v5852 = vsel %vm659, %v5756, %v5851
        %v5853 = vsel %vm661, %v5762, %v5852
        %v5854 = vsel %vm663, %v5768, %v5853
        %v5855 = vsel %vm665, %v5774, %v5854
        %v5856 = vsel %vm667, %v5780, %v5855
        %v5857 = vsel %vm669, %v5786, %v5856
        %v5858 = vsel %vm657, %v5798, %v5792
        %v5859 = vsel %vm659, %v5804, %v5858
        %v5860 = vsel %vm661, %v5810, %v5859
        %v5861 = vsel %vm663, %v5816, %v5860
        %v5862 = vsel %vm665, %v5822, %v5861
        %v5863 = vsel %vm667, %v5828, %v5862
        %v5864 = vsel %vm669, %v5834, %v5863
        %v5867 = vmin.f32 %v5641, %v5857
        %v5868 = vmin.f32 %v5642, %v5864
        %5869 = vst [vmem:[#allocation3] sm:$0xff] %v5867
        %5870 = vst [vmem:[#allocation3 + $0x8] sm:$0xff] %v5868
        %v5871 = vld [vmem:[#allocation4] sm:$0xff]
        %v5872 = vld [vmem:[#allocation4 + $0x8] sm:$0xff]
        %v5873 = vsel %vm5707, %v5640, -3e+38
        %v5874 = vsel %vm5708, %v5640, -3e+38
        %v5875 = vsel %vm5709, %v5640, -3e+38
        %v5876 = vsel %vm5710, %v5640, -3e+38
        %v5877 = vsel %vm5711, %v5640, -3e+38
        %v5878 = vsel %vm5712, %v5640, -3e+38
        %v5879 = vsel %vm5713, %v5640, -3e+38
        %v5880 = vsel %vm5714, %v5640, -3e+38
        %v5881 = vsel %vm5715, %v5640, -3e+38
        %v5882 = vsel %vm5716, %v5640, -3e+38
        %v5883 = vsel %vm5717, %v5640, -3e+38
        %v5884 = vsel %vm5718, %v5640, -3e+38
        %v5885 = vsel %vm5719, %v5640, -3e+38
        %v5886 = vsel %vm5720, %v5640, -3e+38
        %v5887 = vsel %vm5721, %v5640, -3e+38
        %v5888 = vsel %vm5722, %v5640, -3e+38
        %v5889 = vrot.slane %v5873, 4
        %v5890 = vmax.f32 %v5873, %v5889
        %v5891 = vrot.slane %v5890, 2
        %v5892 = vmax.f32 %v5890, %v5891
        %v5893 = vrot.slane %v5892, 1
        %v5894 = vmax.f32 %v5892, %v5893
        %v5895 = vrot.slane %v5874, 4
        %v5896 = vmax.f32 %v5874, %v5895
        %v5897 = vrot.slane %v5896, 2
        %v5898 = vmax.f32 %v5896, %v5897
        %v5899 = vrot.slane %v5898, 1
        %v5900 = vmax.f32 %v5898, %v5899
        %v5901 = vrot.slane %v5875, 4
        %v5902 = vmax.f32 %v5875, %v5901
        %v5903 = vrot.slane %v5902, 2
        %v5904 = vmax.f32 %v5902, %v5903
        %v5905 = vrot.slane %v5904, 1
        %v5906 = vmax.f32 %v5904, %v5905
        %v5907 = vrot.slane %v5876, 4
        %v5908 = vmax.f32 %v5876, %v5907
        %v5909 = vrot.slane %v5908, 2
        %v5910 = vmax.f32 %v5908, %v5909
        %v5911 = vrot.slane %v5910, 1
        %v5912 = vmax.f32 %v5910, %v5911
        %v5913 = vrot.slane %v5877, 4
        %v5914 = vmax.f32 %v5877, %v5913
        %v5915 = vrot.slane %v5914, 2
        %v5916 = vmax.f32 %v5914, %v5915
        %v5917 = vrot.slane %v5916, 1
        %v5918 = vmax.f32 %v5916, %v5917
        %v5919 = vrot.slane %v5878, 4
        %v5920 = vmax.f32 %v5878, %v5919
        %v5921 = vrot.slane %v5920, 2
        %v5922 = vmax.f32 %v5920, %v5921
        %v5923 = vrot.slane %v5922, 1
        %v5924 = vmax.f32 %v5922, %v5923
        %v5925 = vrot.slane %v5879, 4
        %v5926 = vmax.f32 %v5879, %v5925
        %v5927 = vrot.slane %v5926, 2
        %v5928 = vmax.f32 %v5926, %v5927
        %v5929 = vrot.slane %v5928, 1
        %v5930 = vmax.f32 %v5928, %v5929
        %v5931 = vrot.slane %v5880, 4
        %v5932 = vmax.f32 %v5880, %v5931
        %v5933 = vrot.slane %v5932, 2
        %v5934 = vmax.f32 %v5932, %v5933
        %v5935 = vrot.slane %v5934, 1
        %v5936 = vmax.f32 %v5934, %v5935
        %v5937 = vrot.slane %v5881, 4
        %v5938 = vmax.f32 %v5881, %v5937
        %v5939 = vrot.slane %v5938, 2
        %v5940 = vmax.f32 %v5938, %v5939
        %v5941 = vrot.slane %v5940, 1
        %v5942 = vmax.f32 %v5940, %v5941
        %v5943 = vrot.slane %v5882, 4
        %v5944 = vmax.f32 %v5882, %v5943
        %v5945 = vrot.slane %v5944, 2
        %v5946 = vmax.f32 %v5944, %v5945
        %v5947 = vrot.slane %v5946, 1
        %v5948 = vmax.f32 %v5946, %v5947
        %v5949 = vrot.slane %v5883, 4
        %v5950 = vmax.f32 %v5883, %v5949
        %v5951 = vrot.slane %v5950, 2
        %v5952 = vmax.f32 %v5950, %v5951
        %v5953 = vrot.slane %v5952, 1
        %v5954 = vmax.f32 %v5952, %v5953
        %v5955 = vrot.slane %v5884, 4
        %v5956 = vmax.f32 %v5884, %v5955
        %v5957 = vrot.slane %v5956, 2
        %v5958 = vmax.f32 %v5956, %v5957
        %v5959 = vrot.slane %v5958, 1
        %v5960 = vmax.f32 %v5958, %v5959
        %v5961 = vrot.slane %v5885, 4
        %v5962 = vmax.f32 %v5885, %v5961
        %v5963 = vrot.slane %v5962, 2
        %v5964 = vmax.f32 %v5962, %v5963
        %v5965 = vrot.slane %v5964, 1
        %v5966 = vmax.f32 %v5964, %v5965
        %v5967 = vrot.slane %v5886, 4
        %v5968 = vmax.f32 %v5886, %v5967
        %v5969 = vrot.slane %v5968, 2
        %v5970 = vmax.f32 %v5968, %v5969
        %v5971 = vrot.slane %v5970, 1
        %v5972 = vmax.f32 %v5970, %v5971
        %v5973 = vrot.slane %v5887, 4
        %v5974 = vmax.f32 %v5887, %v5973
        %v5975 = vrot.slane %v5974, 2
        %v5976 = vmax.f32 %v5974, %v5975
        %v5977 = vrot.slane %v5976, 1
        %v5978 = vmax.f32 %v5976, %v5977
        %v5979 = vrot.slane %v5888, 4
        %v5980 = vmax.f32 %v5888, %v5979
        %v5981 = vrot.slane %v5980, 2
        %v5982 = vmax.f32 %v5980, %v5981
        %v5983 = vrot.slane %v5982, 1
        %v5984 = vmax.f32 %v5982, %v5983
        %v6001 = vsel %vm657, %v5900, %v5894
        %v6002 = vsel %vm659, %v5906, %v6001
        %v6003 = vsel %vm661, %v5912, %v6002
        %v6004 = vsel %vm663, %v5918, %v6003
        %v6005 = vsel %vm665, %v5924, %v6004
        %v6006 = vsel %vm667, %v5930, %v6005
        %v6007 = vsel %vm669, %v5936, %v6006
        %v6008 = vsel %vm657, %v5948, %v5942
        %v6009 = vsel %vm659, %v5954, %v6008
        %v6010 = vsel %vm661, %v5960, %v6009
        %v6011 = vsel %vm663, %v5966, %v6010
        %v6012 = vsel %vm665, %v5972, %v6011
        %v6013 = vsel %vm667, %v5978, %v6012
        %v6014 = vsel %vm669, %v5984, %v6013
        %v6017 = vmax.f32 %v5871, %v6007
        %v6018 = vmax.f32 %v5872, %v6014
        %6019 = vst [vmem:[#allocation4] sm:$0xff] %v6017
        %6020 = vst [vmem:[#allocation4 + $0x8] sm:$0xff] %v6018
        %v6021 = vld [vmem:[%s280 + $0x70] sm:$0xff]
        %vm6022 = vcmp.eq.s32.totalorder %v306, %v6021
        %vm6023 = vcmp.eq.s32.totalorder %v413, %v6021
        %vm6024 = vcmp.eq.s32.totalorder %v414, %v6021
        %vm6025 = vcmp.eq.s32.totalorder %v415, %v6021
        %vm6026 = vcmp.eq.s32.totalorder %v416, %v6021
        %vm6027 = vcmp.eq.s32.totalorder %v417, %v6021
        %vm6028 = vcmp.eq.s32.totalorder %v418, %v6021
        %vm6029 = vcmp.eq.s32.totalorder %v419, %v6021
        %vm6030 = vcmp.eq.s32.totalorder %v420, %v6021
        %vm6031 = vcmp.eq.s32.totalorder %v421, %v6021
        %vm6032 = vcmp.eq.s32.totalorder %v422, %v6021
        %vm6033 = vcmp.eq.s32.totalorder %v423, %v6021
        %vm6034 = vcmp.eq.s32.totalorder %v424, %v6021
        %vm6035 = vcmp.eq.s32.totalorder %v425, %v6021
        %vm6036 = vcmp.eq.s32.totalorder %v426, %v6021
        %vm6037 = vcmp.eq.s32.totalorder %v427, %v6021
        %v6038 = vld [vmem:[%s286 + $0x38] sm:$0xf]
        %v6039 = vunpack.c.l.bf16 %v6038
        %v6040 = vld [vmem:[#allocation3] sm:$0xff]
        %v6041 = vld [vmem:[#allocation3 + $0x8] sm:$0xff]
        %v6042 = vsel %vm6022, 1, 0
        %v6043 = vsel %vm6023, 1, 0
        %v6044 = vsel %vm6024, 1, 0
        %v6045 = vsel %vm6025, 1, 0
        %v6046 = vsel %vm6026, 1, 0
        %v6047 = vsel %vm6027, 1, 0
        %v6048 = vsel %vm6028, 1, 0
        %v6049 = vsel %vm6029, 1, 0
        %v6050 = vsel %vm6030, 1, 0
        %v6051 = vsel %vm6031, 1, 0
        %v6052 = vsel %vm6032, 1, 0
        %v6053 = vsel %vm6033, 1, 0
        %v6054 = vsel %vm6034, 1, 0
        %v6055 = vsel %vm6035, 1, 0
        %v6056 = vsel %vm6036, 1, 0
        %v6057 = vsel %vm6037, 1, 0
        %6058 = vset.pattern.permute.xlu0 0
        %6059 = vperm.xlu0 %6058, %v6042
        %v6060 = vpop.permute.xlu0 %6059
        %6061 = vset.pattern.permute.xlu0 0
        %6062 = vperm.xlu0 %6061, %v6043
        %v6063 = vpop.permute.xlu0 %6062
        %6064 = vset.pattern.permute.xlu0 0
        %6065 = vperm.xlu0 %6064, %v6044
        %v6066 = vpop.permute.xlu0 %6065
        %6067 = vset.pattern.permute.xlu0 0
        %6068 = vperm.xlu0 %6067, %v6045
        %v6069 = vpop.permute.xlu0 %6068
        %6070 = vset.pattern.permute.xlu0 0
        %6071 = vperm.xlu0 %6070, %v6046
        %v6072 = vpop.permute.xlu0 %6071
        %6073 = vset.pattern.permute.xlu0 0
        %6074 = vperm.xlu0 %6073, %v6047
        %v6075 = vpop.permute.xlu0 %6074
        %6076 = vset.pattern.permute.xlu0 0
        %6077 = vperm.xlu0 %6076, %v6048
        %v6078 = vpop.permute.xlu0 %6077
        %6079 = vset.pattern.permute.xlu0 0
        %6080 = vperm.xlu0 %6079, %v6049
        %v6081 = vpop.permute.xlu0 %6080
        %6082 = vset.pattern.permute.xlu0 0
        %6083 = vperm.xlu0 %6082, %v6050
        %v6084 = vpop.permute.xlu0 %6083
        %6085 = vset.pattern.permute.xlu0 0
        %6086 = vperm.xlu0 %6085, %v6051
        %v6087 = vpop.permute.xlu0 %6086
        %6088 = vset.pattern.permute.xlu0 0
        %6089 = vperm.xlu0 %6088, %v6052
        %v6090 = vpop.permute.xlu0 %6089
        %6091 = vset.pattern.permute.xlu0 0
        %6092 = vperm.xlu0 %6091, %v6053
        %v6093 = vpop.permute.xlu0 %6092
        %6094 = vset.pattern.permute.xlu0 0
        %6095 = vperm.xlu0 %6094, %v6054
        %v6096 = vpop.permute.xlu0 %6095
        %6097 = vset.pattern.permute.xlu0 0
        %6098 = vperm.xlu0 %6097, %v6055
        %v6099 = vpop.permute.xlu0 %6098
        %6100 = vset.pattern.permute.xlu0 0
        %6101 = vperm.xlu0 %6100, %v6056
        %v6102 = vpop.permute.xlu0 %6101
        %6103 = vset.pattern.permute.xlu0 0
        %6104 = vperm.xlu0 %6103, %v6057
        %v6105 = vpop.permute.xlu0 %6104
        %vm6106 = vcmp.eq.s32.totalorder %v6060, 1
        %vm6107 = vcmp.eq.s32.totalorder %v6063, 1
        %vm6108 = vcmp.eq.s32.totalorder %v6066, 1
        %vm6109 = vcmp.eq.s32.totalorder %v6069, 1
        %vm6110 = vcmp.eq.s32.totalorder %v6072, 1
        %vm6111 = vcmp.eq.s32.totalorder %v6075, 1
        %vm6112 = vcmp.eq.s32.totalorder %v6078, 1
        %vm6113 = vcmp.eq.s32.totalorder %v6081, 1
        %vm6114 = vcmp.eq.s32.totalorder %v6084, 1
        %vm6115 = vcmp.eq.s32.totalorder %v6087, 1
        %vm6116 = vcmp.eq.s32.totalorder %v6090, 1
        %vm6117 = vcmp.eq.s32.totalorder %v6093, 1
        %vm6118 = vcmp.eq.s32.totalorder %v6096, 1
        %vm6119 = vcmp.eq.s32.totalorder %v6099, 1
        %vm6120 = vcmp.eq.s32.totalorder %v6102, 1
        %vm6121 = vcmp.eq.s32.totalorder %v6105, 1
        %v6122 = vsel %vm6106, %v6039, 3e+38
        %v6123 = vsel %vm6107, %v6039, 3e+38
        %v6124 = vsel %vm6108, %v6039, 3e+38
        %v6125 = vsel %vm6109, %v6039, 3e+38
        %v6126 = vsel %vm6110, %v6039, 3e+38
        %v6127 = vsel %vm6111, %v6039, 3e+38
        %v6128 = vsel %vm6112, %v6039, 3e+38
        %v6129 = vsel %vm6113, %v6039, 3e+38
        %v6130 = vsel %vm6114, %v6039, 3e+38
        %v6131 = vsel %vm6115, %v6039, 3e+38
        %v6132 = vsel %vm6116, %v6039, 3e+38
        %v6133 = vsel %vm6117, %v6039, 3e+38
        %v6134 = vsel %vm6118, %v6039, 3e+38
        %v6135 = vsel %vm6119, %v6039, 3e+38
        %v6136 = vsel %vm6120, %v6039, 3e+38
        %v6137 = vsel %vm6121, %v6039, 3e+38
        %v6138 = vrot.slane %v6122, 4
        %v6139 = vmin.f32 %v6122, %v6138
        %v6140 = vrot.slane %v6139, 2
        %v6141 = vmin.f32 %v6139, %v6140
        %v6142 = vrot.slane %v6141, 1
        %v6143 = vmin.f32 %v6141, %v6142
        %v6144 = vrot.slane %v6123, 4
        %v6145 = vmin.f32 %v6123, %v6144
        %v6146 = vrot.slane %v6145, 2
        %v6147 = vmin.f32 %v6145, %v6146
        %v6148 = vrot.slane %v6147, 1
        %v6149 = vmin.f32 %v6147, %v6148
        %v6150 = vrot.slane %v6124, 4
        %v6151 = vmin.f32 %v6124, %v6150
        %v6152 = vrot.slane %v6151, 2
        %v6153 = vmin.f32 %v6151, %v6152
        %v6154 = vrot.slane %v6153, 1
        %v6155 = vmin.f32 %v6153, %v6154
        %v6156 = vrot.slane %v6125, 4
        %v6157 = vmin.f32 %v6125, %v6156
        %v6158 = vrot.slane %v6157, 2
        %v6159 = vmin.f32 %v6157, %v6158
        %v6160 = vrot.slane %v6159, 1
        %v6161 = vmin.f32 %v6159, %v6160
        %v6162 = vrot.slane %v6126, 4
        %v6163 = vmin.f32 %v6126, %v6162
        %v6164 = vrot.slane %v6163, 2
        %v6165 = vmin.f32 %v6163, %v6164
        %v6166 = vrot.slane %v6165, 1
        %v6167 = vmin.f32 %v6165, %v6166
        %v6168 = vrot.slane %v6127, 4
        %v6169 = vmin.f32 %v6127, %v6168
        %v6170 = vrot.slane %v6169, 2
        %v6171 = vmin.f32 %v6169, %v6170
        %v6172 = vrot.slane %v6171, 1
        %v6173 = vmin.f32 %v6171, %v6172
        %v6174 = vrot.slane %v6128, 4
        %v6175 = vmin.f32 %v6128, %v6174
        %v6176 = vrot.slane %v6175, 2
        %v6177 = vmin.f32 %v6175, %v6176
        %v6178 = vrot.slane %v6177, 1
        %v6179 = vmin.f32 %v6177, %v6178
        %v6180 = vrot.slane %v6129, 4
        %v6181 = vmin.f32 %v6129, %v6180
        %v6182 = vrot.slane %v6181, 2
        %v6183 = vmin.f32 %v6181, %v6182
        %v6184 = vrot.slane %v6183, 1
        %v6185 = vmin.f32 %v6183, %v6184
        %v6186 = vrot.slane %v6130, 4
        %v6187 = vmin.f32 %v6130, %v6186
        %v6188 = vrot.slane %v6187, 2
        %v6189 = vmin.f32 %v6187, %v6188
        %v6190 = vrot.slane %v6189, 1
        %v6191 = vmin.f32 %v6189, %v6190
        %v6192 = vrot.slane %v6131, 4
        %v6193 = vmin.f32 %v6131, %v6192
        %v6194 = vrot.slane %v6193, 2
        %v6195 = vmin.f32 %v6193, %v6194
        %v6196 = vrot.slane %v6195, 1
        %v6197 = vmin.f32 %v6195, %v6196
        %v6198 = vrot.slane %v6132, 4
        %v6199 = vmin.f32 %v6132, %v6198
        %v6200 = vrot.slane %v6199, 2
        %v6201 = vmin.f32 %v6199, %v6200
        %v6202 = vrot.slane %v6201, 1
        %v6203 = vmin.f32 %v6201, %v6202
        %v6204 = vrot.slane %v6133, 4
        %v6205 = vmin.f32 %v6133, %v6204
        %v6206 = vrot.slane %v6205, 2
        %v6207 = vmin.f32 %v6205, %v6206
        %v6208 = vrot.slane %v6207, 1
        %v6209 = vmin.f32 %v6207, %v6208
        %v6210 = vrot.slane %v6134, 4
        %v6211 = vmin.f32 %v6134, %v6210
        %v6212 = vrot.slane %v6211, 2
        %v6213 = vmin.f32 %v6211, %v6212
        %v6214 = vrot.slane %v6213, 1
        %v6215 = vmin.f32 %v6213, %v6214
        %v6216 = vrot.slane %v6135, 4
        %v6217 = vmin.f32 %v6135, %v6216
        %v6218 = vrot.slane %v6217, 2
        %v6219 = vmin.f32 %v6217, %v6218
        %v6220 = vrot.slane %v6219, 1
        %v6221 = vmin.f32 %v6219, %v6220
        %v6222 = vrot.slane %v6136, 4
        %v6223 = vmin.f32 %v6136, %v6222
        %v6224 = vrot.slane %v6223, 2
        %v6225 = vmin.f32 %v6223, %v6224
        %v6226 = vrot.slane %v6225, 1
        %v6227 = vmin.f32 %v6225, %v6226
        %v6228 = vrot.slane %v6137, 4
        %v6229 = vmin.f32 %v6137, %v6228
        %v6230 = vrot.slane %v6229, 2
        %v6231 = vmin.f32 %v6229, %v6230
        %v6232 = vrot.slane %v6231, 1
        %v6233 = vmin.f32 %v6231, %v6232
        %v6250 = vsel %vm657, %v6149, %v6143
        %v6251 = vsel %vm659, %v6155, %v6250
        %v6252 = vsel %vm661, %v6161, %v6251
        %v6253 = vsel %vm663, %v6167, %v6252
        %v6254 = vsel %vm665, %v6173, %v6253
        %v6255 = vsel %vm667, %v6179, %v6254
        %v6256 = vsel %vm669, %v6185, %v6255
        %v6257 = vsel %vm657, %v6197, %v6191
        %v6258 = vsel %vm659, %v6203, %v6257
        %v6259 = vsel %vm661, %v6209, %v6258
        %v6260 = vsel %vm663, %v6215, %v6259
        %v6261 = vsel %vm665, %v6221, %v6260
        %v6262 = vsel %vm667, %v6227, %v6261
        %v6263 = vsel %vm669, %v6233, %v6262
        %v6266 = vmin.f32 %v6040, %v6256
        %v6267 = vmin.f32 %v6041, %v6263
        %6268 = vst [vmem:[#allocation3] sm:$0xff] %v6266
        %6269 = vst [vmem:[#allocation3 + $0x8] sm:$0xff] %v6267
        %v6270 = vld [vmem:[#allocation4] sm:$0xff]
        %v6271 = vld [vmem:[#allocation4 + $0x8] sm:$0xff]
        %v6272 = vsel %vm6106, %v6039, -3e+38
        %v6273 = vsel %vm6107, %v6039, -3e+38
        %v6274 = vsel %vm6108, %v6039, -3e+38
        %v6275 = vsel %vm6109, %v6039, -3e+38
        %v6276 = vsel %vm6110, %v6039, -3e+38
        %v6277 = vsel %vm6111, %v6039, -3e+38
        %v6278 = vsel %vm6112, %v6039, -3e+38
        %v6279 = vsel %vm6113, %v6039, -3e+38
        %v6280 = vsel %vm6114, %v6039, -3e+38
        %v6281 = vsel %vm6115, %v6039, -3e+38
        %v6282 = vsel %vm6116, %v6039, -3e+38
        %v6283 = vsel %vm6117, %v6039, -3e+38
        %v6284 = vsel %vm6118, %v6039, -3e+38
        %v6285 = vsel %vm6119, %v6039, -3e+38
        %v6286 = vsel %vm6120, %v6039, -3e+38
        %v6287 = vsel %vm6121, %v6039, -3e+38
        %v6288 = vrot.slane %v6272, 4
        %v6289 = vmax.f32 %v6272, %v6288
        %v6290 = vrot.slane %v6289, 2
        %v6291 = vmax.f32 %v6289, %v6290
        %v6292 = vrot.slane %v6291, 1
        %v6293 = vmax.f32 %v6291, %v6292
        %v6294 = vrot.slane %v6273, 4
        %v6295 = vmax.f32 %v6273, %v6294
        %v6296 = vrot.slane %v6295, 2
        %v6297 = vmax.f32 %v6295, %v6296
        %v6298 = vrot.slane %v6297, 1
        %v6299 = vmax.f32 %v6297, %v6298
        %v6300 = vrot.slane %v6274, 4
        %v6301 = vmax.f32 %v6274, %v6300
        %v6302 = vrot.slane %v6301, 2
        %v6303 = vmax.f32 %v6301, %v6302
        %v6304 = vrot.slane %v6303, 1
        %v6305 = vmax.f32 %v6303, %v6304
        %v6306 = vrot.slane %v6275, 4
        %v6307 = vmax.f32 %v6275, %v6306
        %v6308 = vrot.slane %v6307, 2
        %v6309 = vmax.f32 %v6307, %v6308
        %v6310 = vrot.slane %v6309, 1
        %v6311 = vmax.f32 %v6309, %v6310
        %v6312 = vrot.slane %v6276, 4
        %v6313 = vmax.f32 %v6276, %v6312
        %v6314 = vrot.slane %v6313, 2
        %v6315 = vmax.f32 %v6313, %v6314
        %v6316 = vrot.slane %v6315, 1
        %v6317 = vmax.f32 %v6315, %v6316
        %v6318 = vrot.slane %v6277, 4
        %v6319 = vmax.f32 %v6277, %v6318
        %v6320 = vrot.slane %v6319, 2
        %v6321 = vmax.f32 %v6319, %v6320
        %v6322 = vrot.slane %v6321, 1
        %v6323 = vmax.f32 %v6321, %v6322
        %v6324 = vrot.slane %v6278, 4
        %v6325 = vmax.f32 %v6278, %v6324
        %v6326 = vrot.slane %v6325, 2
        %v6327 = vmax.f32 %v6325, %v6326
        %v6328 = vrot.slane %v6327, 1
        %v6329 = vmax.f32 %v6327, %v6328
        %v6330 = vrot.slane %v6279, 4
        %v6331 = vmax.f32 %v6279, %v6330
        %v6332 = vrot.slane %v6331, 2
        %v6333 = vmax.f32 %v6331, %v6332
        %v6334 = vrot.slane %v6333, 1
        %v6335 = vmax.f32 %v6333, %v6334
        %v6336 = vrot.slane %v6280, 4
        %v6337 = vmax.f32 %v6280, %v6336
        %v6338 = vrot.slane %v6337, 2
        %v6339 = vmax.f32 %v6337, %v6338
        %v6340 = vrot.slane %v6339, 1
        %v6341 = vmax.f32 %v6339, %v6340
        %v6342 = vrot.slane %v6281, 4
        %v6343 = vmax.f32 %v6281, %v6342
        %v6344 = vrot.slane %v6343, 2
        %v6345 = vmax.f32 %v6343, %v6344
        %v6346 = vrot.slane %v6345, 1
        %v6347 = vmax.f32 %v6345, %v6346
        %v6348 = vrot.slane %v6282, 4
        %v6349 = vmax.f32 %v6282, %v6348
        %v6350 = vrot.slane %v6349, 2
        %v6351 = vmax.f32 %v6349, %v6350
        %v6352 = vrot.slane %v6351, 1
        %v6353 = vmax.f32 %v6351, %v6352
        %v6354 = vrot.slane %v6283, 4
        %v6355 = vmax.f32 %v6283, %v6354
        %v6356 = vrot.slane %v6355, 2
        %v6357 = vmax.f32 %v6355, %v6356
        %v6358 = vrot.slane %v6357, 1
        %v6359 = vmax.f32 %v6357, %v6358
        %v6360 = vrot.slane %v6284, 4
        %v6361 = vmax.f32 %v6284, %v6360
        %v6362 = vrot.slane %v6361, 2
        %v6363 = vmax.f32 %v6361, %v6362
        %v6364 = vrot.slane %v6363, 1
        %v6365 = vmax.f32 %v6363, %v6364
        %v6366 = vrot.slane %v6285, 4
        %v6367 = vmax.f32 %v6285, %v6366
        %v6368 = vrot.slane %v6367, 2
        %v6369 = vmax.f32 %v6367, %v6368
        %v6370 = vrot.slane %v6369, 1
        %v6371 = vmax.f32 %v6369, %v6370
        %v6372 = vrot.slane %v6286, 4
        %v6373 = vmax.f32 %v6286, %v6372
        %v6374 = vrot.slane %v6373, 2
        %v6375 = vmax.f32 %v6373, %v6374
        %v6376 = vrot.slane %v6375, 1
        %v6377 = vmax.f32 %v6375, %v6376
        %v6378 = vrot.slane %v6287, 4
        %v6379 = vmax.f32 %v6287, %v6378
        %v6380 = vrot.slane %v6379, 2
        %v6381 = vmax.f32 %v6379, %v6380
        %v6382 = vrot.slane %v6381, 1
        %v6383 = vmax.f32 %v6381, %v6382
        %v6400 = vsel %vm657, %v6299, %v6293
        %v6401 = vsel %vm659, %v6305, %v6400
        %v6402 = vsel %vm661, %v6311, %v6401
        %v6403 = vsel %vm663, %v6317, %v6402
        %v6404 = vsel %vm665, %v6323, %v6403
        %v6405 = vsel %vm667, %v6329, %v6404
        %v6406 = vsel %vm669, %v6335, %v6405
        %v6407 = vsel %vm657, %v6347, %v6341
        %v6408 = vsel %vm659, %v6353, %v6407
        %v6409 = vsel %vm661, %v6359, %v6408
        %v6410 = vsel %vm663, %v6365, %v6409
        %v6411 = vsel %vm665, %v6371, %v6410
        %v6412 = vsel %vm667, %v6377, %v6411
        %v6413 = vsel %vm669, %v6383, %v6412
        %v6416 = vmax.f32 %v6270, %v6406
        %v6417 = vmax.f32 %v6271, %v6413
        %6418 = vst [vmem:[#allocation4] sm:$0xff] %v6416
        %6419 = vst [vmem:[#allocation4 + $0x8] sm:$0xff] %v6417
        %v6420 = vld [vmem:[%s280 + $0x78] sm:$0xff]
        %vm6421 = vcmp.eq.s32.totalorder %v306, %v6420
        %vm6422 = vcmp.eq.s32.totalorder %v413, %v6420
        %vm6423 = vcmp.eq.s32.totalorder %v414, %v6420
        %vm6424 = vcmp.eq.s32.totalorder %v415, %v6420
        %vm6425 = vcmp.eq.s32.totalorder %v416, %v6420
        %vm6426 = vcmp.eq.s32.totalorder %v417, %v6420
        %vm6427 = vcmp.eq.s32.totalorder %v418, %v6420
        %vm6428 = vcmp.eq.s32.totalorder %v419, %v6420
        %vm6429 = vcmp.eq.s32.totalorder %v420, %v6420
        %vm6430 = vcmp.eq.s32.totalorder %v421, %v6420
        %vm6431 = vcmp.eq.s32.totalorder %v422, %v6420
        %vm6432 = vcmp.eq.s32.totalorder %v423, %v6420
        %vm6433 = vcmp.eq.s32.totalorder %v424, %v6420
        %vm6434 = vcmp.eq.s32.totalorder %v425, %v6420
        %vm6435 = vcmp.eq.s32.totalorder %v426, %v6420
        %vm6436 = vcmp.eq.s32.totalorder %v427, %v6420
        %v6437 = vld [vmem:[%s286 + $0x3c] sm:$0xf]
        %v6438 = vunpack.c.l.bf16 %v6437
        %v6439 = vld [vmem:[#allocation3] sm:$0xff]
        %v6440 = vld [vmem:[#allocation3 + $0x8] sm:$0xff]
        %v6441 = vsel %vm6421, 1, 0
        %v6442 = vsel %vm6422, 1, 0
        %v6443 = vsel %vm6423, 1, 0
        %v6444 = vsel %vm6424, 1, 0
        %v6445 = vsel %vm6425, 1, 0
        %v6446 = vsel %vm6426, 1, 0
        %v6447 = vsel %vm6427, 1, 0
        %v6448 = vsel %vm6428, 1, 0
        %v6449 = vsel %vm6429, 1, 0
        %v6450 = vsel %vm6430, 1, 0
        %v6451 = vsel %vm6431, 1, 0
        %v6452 = vsel %vm6432, 1, 0
        %v6453 = vsel %vm6433, 1, 0
        %v6454 = vsel %vm6434, 1, 0
        %v6455 = vsel %vm6435, 1, 0
        %v6456 = vsel %vm6436, 1, 0
        %6457 = vset.pattern.permute.xlu0 0
        %6458 = vperm.xlu0 %6457, %v6441
        %v6459 = vpop.permute.xlu0 %6458
        %6460 = vset.pattern.permute.xlu0 0
        %6461 = vperm.xlu0 %6460, %v6442
        %v6462 = vpop.permute.xlu0 %6461
        %6463 = vset.pattern.permute.xlu0 0
        %6464 = vperm.xlu0 %6463, %v6443
        %v6465 = vpop.permute.xlu0 %6464
        %6466 = vset.pattern.permute.xlu0 0
        %6467 = vperm.xlu0 %6466, %v6444
        %v6468 = vpop.permute.xlu0 %6467
        %6469 = vset.pattern.permute.xlu0 0
        %6470 = vperm.xlu0 %6469, %v6445
        %v6471 = vpop.permute.xlu0 %6470
        %6472 = vset.pattern.permute.xlu0 0
        %6473 = vperm.xlu0 %6472, %v6446
        %v6474 = vpop.permute.xlu0 %6473
        %6475 = vset.pattern.permute.xlu0 0
        %6476 = vperm.xlu0 %6475, %v6447
        %v6477 = vpop.permute.xlu0 %6476
        %6478 = vset.pattern.permute.xlu0 0
        %6479 = vperm.xlu0 %6478, %v6448
        %v6480 = vpop.permute.xlu0 %6479
        %6481 = vset.pattern.permute.xlu0 0
        %6482 = vperm.xlu0 %6481, %v6449
        %v6483 = vpop.permute.xlu0 %6482
        %6484 = vset.pattern.permute.xlu0 0
        %6485 = vperm.xlu0 %6484, %v6450
        %v6486 = vpop.permute.xlu0 %6485
        %6487 = vset.pattern.permute.xlu0 0
        %6488 = vperm.xlu0 %6487, %v6451
        %v6489 = vpop.permute.xlu0 %6488
        %6490 = vset.pattern.permute.xlu0 0
        %6491 = vperm.xlu0 %6490, %v6452
        %v6492 = vpop.permute.xlu0 %6491
        %6493 = vset.pattern.permute.xlu0 0
        %6494 = vperm.xlu0 %6493, %v6453
        %v6495 = vpop.permute.xlu0 %6494
        %6496 = vset.pattern.permute.xlu0 0
        %6497 = vperm.xlu0 %6496, %v6454
        %v6498 = vpop.permute.xlu0 %6497
        %6499 = vset.pattern.permute.xlu0 0
        %6500 = vperm.xlu0 %6499, %v6455
        %v6501 = vpop.permute.xlu0 %6500
        %6502 = vset.pattern.permute.xlu0 0
        %6503 = vperm.xlu0 %6502, %v6456
        %v6504 = vpop.permute.xlu0 %6503
        %vm6505 = vcmp.eq.s32.totalorder %v6459, 1
        %vm6506 = vcmp.eq.s32.totalorder %v6462, 1
        %vm6507 = vcmp.eq.s32.totalorder %v6465, 1
        %vm6508 = vcmp.eq.s32.totalorder %v6468, 1
        %vm6509 = vcmp.eq.s32.totalorder %v6471, 1
        %vm6510 = vcmp.eq.s32.totalorder %v6474, 1
        %vm6511 = vcmp.eq.s32.totalorder %v6477, 1
        %vm6512 = vcmp.eq.s32.totalorder %v6480, 1
        %vm6513 = vcmp.eq.s32.totalorder %v6483, 1
        %vm6514 = vcmp.eq.s32.totalorder %v6486, 1
        %vm6515 = vcmp.eq.s32.totalorder %v6489, 1
        %vm6516 = vcmp.eq.s32.totalorder %v6492, 1
        %vm6517 = vcmp.eq.s32.totalorder %v6495, 1
        %vm6518 = vcmp.eq.s32.totalorder %v6498, 1
        %vm6519 = vcmp.eq.s32.totalorder %v6501, 1
        %vm6520 = vcmp.eq.s32.totalorder %v6504, 1
        %v6521 = vsel %vm6505, %v6438, 3e+38
        %v6522 = vsel %vm6506, %v6438, 3e+38
        %v6523 = vsel %vm6507, %v6438, 3e+38
        %v6524 = vsel %vm6508, %v6438, 3e+38
        %v6525 = vsel %vm6509, %v6438, 3e+38
        %v6526 = vsel %vm6510, %v6438, 3e+38
        %v6527 = vsel %vm6511, %v6438, 3e+38
        %v6528 = vsel %vm6512, %v6438, 3e+38
        %v6529 = vsel %vm6513, %v6438, 3e+38
        %v6530 = vsel %vm6514, %v6438, 3e+38
        %v6531 = vsel %vm6515, %v6438, 3e+38
        %v6532 = vsel %vm6516, %v6438, 3e+38
        %v6533 = vsel %vm6517, %v6438, 3e+38
        %v6534 = vsel %vm6518, %v6438, 3e+38
        %v6535 = vsel %vm6519, %v6438, 3e+38
        %v6536 = vsel %vm6520, %v6438, 3e+38
        %v6537 = vrot.slane %v6521, 4
        %v6538 = vmin.f32 %v6521, %v6537
        %v6539 = vrot.slane %v6538, 2
        %v6540 = vmin.f32 %v6538, %v6539
        %v6541 = vrot.slane %v6540, 1
        %v6542 = vmin.f32 %v6540, %v6541
        %v6543 = vrot.slane %v6522, 4
        %v6544 = vmin.f32 %v6522, %v6543
        %v6545 = vrot.slane %v6544, 2
        %v6546 = vmin.f32 %v6544, %v6545
        %v6547 = vrot.slane %v6546, 1
        %v6548 = vmin.f32 %v6546, %v6547
        %v6549 = vrot.slane %v6523, 4
        %v6550 = vmin.f32 %v6523, %v6549
        %v6551 = vrot.slane %v6550, 2
        %v6552 = vmin.f32 %v6550, %v6551
        %v6553 = vrot.slane %v6552, 1
        %v6554 = vmin.f32 %v6552, %v6553
        %v6555 = vrot.slane %v6524, 4
        %v6556 = vmin.f32 %v6524, %v6555
        %v6557 = vrot.slane %v6556, 2
        %v6558 = vmin.f32 %v6556, %v6557
        %v6559 = vrot.slane %v6558, 1
        %v6560 = vmin.f32 %v6558, %v6559
        %v6561 = vrot.slane %v6525, 4
        %v6562 = vmin.f32 %v6525, %v6561
        %v6563 = vrot.slane %v6562, 2
        %v6564 = vmin.f32 %v6562, %v6563
        %v6565 = vrot.slane %v6564, 1
        %v6566 = vmin.f32 %v6564, %v6565
        %v6567 = vrot.slane %v6526, 4
        %v6568 = vmin.f32 %v6526, %v6567
        %v6569 = vrot.slane %v6568, 2
        %v6570 = vmin.f32 %v6568, %v6569
        %v6571 = vrot.slane %v6570, 1
        %v6572 = vmin.f32 %v6570, %v6571
        %v6573 = vrot.slane %v6527, 4
        %v6574 = vmin.f32 %v6527, %v6573
        %v6575 = vrot.slane %v6574, 2
        %v6576 = vmin.f32 %v6574, %v6575
        %v6577 = vrot.slane %v6576, 1
        %v6578 = vmin.f32 %v6576, %v6577
        %v6579 = vrot.slane %v6528, 4
        %v6580 = vmin.f32 %v6528, %v6579
        %v6581 = vrot.slane %v6580, 2
        %v6582 = vmin.f32 %v6580, %v6581
        %v6583 = vrot.slane %v6582, 1
        %v6584 = vmin.f32 %v6582, %v6583
        %v6585 = vrot.slane %v6529, 4
        %v6586 = vmin.f32 %v6529, %v6585
        %v6587 = vrot.slane %v6586, 2
        %v6588 = vmin.f32 %v6586, %v6587
        %v6589 = vrot.slane %v6588, 1
        %v6590 = vmin.f32 %v6588, %v6589
        %v6591 = vrot.slane %v6530, 4
        %v6592 = vmin.f32 %v6530, %v6591
        %v6593 = vrot.slane %v6592, 2
        %v6594 = vmin.f32 %v6592, %v6593
        %v6595 = vrot.slane %v6594, 1
        %v6596 = vmin.f32 %v6594, %v6595
        %v6597 = vrot.slane %v6531, 4
        %v6598 = vmin.f32 %v6531, %v6597
        %v6599 = vrot.slane %v6598, 2
        %v6600 = vmin.f32 %v6598, %v6599
        %v6601 = vrot.slane %v6600, 1
        %v6602 = vmin.f32 %v6600, %v6601
        %v6603 = vrot.slane %v6532, 4
        %v6604 = vmin.f32 %v6532, %v6603
        %v6605 = vrot.slane %v6604, 2
        %v6606 = vmin.f32 %v6604, %v6605
        %v6607 = vrot.slane %v6606, 1
        %v6608 = vmin.f32 %v6606, %v6607
        %v6609 = vrot.slane %v6533, 4
        %v6610 = vmin.f32 %v6533, %v6609
        %v6611 = vrot.slane %v6610, 2
        %v6612 = vmin.f32 %v6610, %v6611
        %v6613 = vrot.slane %v6612, 1
        %v6614 = vmin.f32 %v6612, %v6613
        %v6615 = vrot.slane %v6534, 4
        %v6616 = vmin.f32 %v6534, %v6615
        %v6617 = vrot.slane %v6616, 2
        %v6618 = vmin.f32 %v6616, %v6617
        %v6619 = vrot.slane %v6618, 1
        %v6620 = vmin.f32 %v6618, %v6619
        %v6621 = vrot.slane %v6535, 4
        %v6622 = vmin.f32 %v6535, %v6621
        %v6623 = vrot.slane %v6622, 2
        %v6624 = vmin.f32 %v6622, %v6623
        %v6625 = vrot.slane %v6624, 1
        %v6626 = vmin.f32 %v6624, %v6625
        %v6627 = vrot.slane %v6536, 4
        %v6628 = vmin.f32 %v6536, %v6627
        %v6629 = vrot.slane %v6628, 2
        %v6630 = vmin.f32 %v6628, %v6629
        %v6631 = vrot.slane %v6630, 1
        %v6632 = vmin.f32 %v6630, %v6631
        %v6649 = vsel %vm657, %v6548, %v6542
        %v6650 = vsel %vm659, %v6554, %v6649
        %v6651 = vsel %vm661, %v6560, %v6650
        %v6652 = vsel %vm663, %v6566, %v6651
        %v6653 = vsel %vm665, %v6572, %v6652
        %v6654 = vsel %vm667, %v6578, %v6653
        %v6655 = vsel %vm669, %v6584, %v6654
        %v6656 = vsel %vm657, %v6596, %v6590
        %v6657 = vsel %vm659, %v6602, %v6656
        %v6658 = vsel %vm661, %v6608, %v6657
        %v6659 = vsel %vm663, %v6614, %v6658
        %v6660 = vsel %vm665, %v6620, %v6659
        %v6661 = vsel %vm667, %v6626, %v6660
        %v6662 = vsel %vm669, %v6632, %v6661
        %v6665 = vmin.f32 %v6439, %v6655
        %v6666 = vmin.f32 %v6440, %v6662
        %6667 = vst [vmem:[#allocation3] sm:$0xff] %v6665
        %6668 = vst [vmem:[#allocation3 + $0x8] sm:$0xff] %v6666
        %v6669 = vld [vmem:[#allocation4] sm:$0xff]
        %v6670 = vld [vmem:[#allocation4 + $0x8] sm:$0xff]
        %v6671 = vsel %vm6505, %v6438, -3e+38
        %v6672 = vsel %vm6506, %v6438, -3e+38
        %v6673 = vsel %vm6507, %v6438, -3e+38
        %v6674 = vsel %vm6508, %v6438, -3e+38
        %v6675 = vsel %vm6509, %v6438, -3e+38
        %v6676 = vsel %vm6510, %v6438, -3e+38
        %v6677 = vsel %vm6511, %v6438, -3e+38
        %v6678 = vsel %vm6512, %v6438, -3e+38
        %v6679 = vsel %vm6513, %v6438, -3e+38
        %v6680 = vsel %vm6514, %v6438, -3e+38
        %v6681 = vsel %vm6515, %v6438, -3e+38
        %v6682 = vsel %vm6516, %v6438, -3e+38
        %v6683 = vsel %vm6517, %v6438, -3e+38
        %v6684 = vsel %vm6518, %v6438, -3e+38
        %v6685 = vsel %vm6519, %v6438, -3e+38
        %v6686 = vsel %vm6520, %v6438, -3e+38
        %v6687 = vrot.slane %v6671, 4
        %v6688 = vmax.f32 %v6671, %v6687
        %v6689 = vrot.slane %v6688, 2
        %v6690 = vmax.f32 %v6688, %v6689
        %v6691 = vrot.slane %v6690, 1
        %v6692 = vmax.f32 %v6690, %v6691
        %v6693 = vrot.slane %v6672, 4
        %v6694 = vmax.f32 %v6672, %v6693
        %v6695 = vrot.slane %v6694, 2
        %v6696 = vmax.f32 %v6694, %v6695
        %v6697 = vrot.slane %v6696, 1
        %v6698 = vmax.f32 %v6696, %v6697
        %v6699 = vrot.slane %v6673, 4
        %v6700 = vmax.f32 %v6673, %v6699
        %v6701 = vrot.slane %v6700, 2
        %v6702 = vmax.f32 %v6700, %v6701
        %v6703 = vrot.slane %v6702, 1
        %v6704 = vmax.f32 %v6702, %v6703
        %v6705 = vrot.slane %v6674, 4
        %v6706 = vmax.f32 %v6674, %v6705
        %v6707 = vrot.slane %v6706, 2
        %v6708 = vmax.f32 %v6706, %v6707
        %v6709 = vrot.slane %v6708, 1
        %v6710 = vmax.f32 %v6708, %v6709
        %v6711 = vrot.slane %v6675, 4
        %v6712 = vmax.f32 %v6675, %v6711
        %v6713 = vrot.slane %v6712, 2
        %v6714 = vmax.f32 %v6712, %v6713
        %v6715 = vrot.slane %v6714, 1
        %v6716 = vmax.f32 %v6714, %v6715
        %v6717 = vrot.slane %v6676, 4
        %v6718 = vmax.f32 %v6676, %v6717
        %v6719 = vrot.slane %v6718, 2
        %v6720 = vmax.f32 %v6718, %v6719
        %v6721 = vrot.slane %v6720, 1
        %v6722 = vmax.f32 %v6720, %v6721
        %v6723 = vrot.slane %v6677, 4
        %v6724 = vmax.f32 %v6677, %v6723
        %v6725 = vrot.slane %v6724, 2
        %v6726 = vmax.f32 %v6724, %v6725
        %v6727 = vrot.slane %v6726, 1
        %v6728 = vmax.f32 %v6726, %v6727
        %v6729 = vrot.slane %v6678, 4
        %v6730 = vmax.f32 %v6678, %v6729
        %v6731 = vrot.slane %v6730, 2
        %v6732 = vmax.f32 %v6730, %v6731
        %v6733 = vrot.slane %v6732, 1
        %v6734 = vmax.f32 %v6732, %v6733
        %v6735 = vrot.slane %v6679, 4
        %v6736 = vmax.f32 %v6679, %v6735
        %v6737 = vrot.slane %v6736, 2
        %v6738 = vmax.f32 %v6736, %v6737
        %v6739 = vrot.slane %v6738, 1
        %v6740 = vmax.f32 %v6738, %v6739
        %v6741 = vrot.slane %v6680, 4
        %v6742 = vmax.f32 %v6680, %v6741
        %v6743 = vrot.slane %v6742, 2
        %v6744 = vmax.f32 %v6742, %v6743
        %v6745 = vrot.slane %v6744, 1
        %v6746 = vmax.f32 %v6744, %v6745
        %v6747 = vrot.slane %v6681, 4
        %v6748 = vmax.f32 %v6681, %v6747
        %v6749 = vrot.slane %v6748, 2
        %v6750 = vmax.f32 %v6748, %v6749
        %v6751 = vrot.slane %v6750, 1
        %v6752 = vmax.f32 %v6750, %v6751
        %v6753 = vrot.slane %v6682, 4
        %v6754 = vmax.f32 %v6682, %v6753
        %v6755 = vrot.slane %v6754, 2
        %v6756 = vmax.f32 %v6754, %v6755
        %v6757 = vrot.slane %v6756, 1
        %v6758 = vmax.f32 %v6756, %v6757
        %v6759 = vrot.slane %v6683, 4
        %v6760 = vmax.f32 %v6683, %v6759
        %v6761 = vrot.slane %v6760, 2
        %v6762 = vmax.f32 %v6760, %v6761
        %v6763 = vrot.slane %v6762, 1
        %v6764 = vmax.f32 %v6762, %v6763
        %v6765 = vrot.slane %v6684, 4
        %v6766 = vmax.f32 %v6684, %v6765
        %v6767 = vrot.slane %v6766, 2
        %v6768 = vmax.f32 %v6766, %v6767
        %v6769 = vrot.slane %v6768, 1
        %v6770 = vmax.f32 %v6768, %v6769
        %v6771 = vrot.slane %v6685, 4
        %v6772 = vmax.f32 %v6685, %v6771
        %v6773 = vrot.slane %v6772, 2
        %v6774 = vmax.f32 %v6772, %v6773
        %v6775 = vrot.slane %v6774, 1
        %v6776 = vmax.f32 %v6774, %v6775
        %v6777 = vrot.slane %v6686, 4
        %v6778 = vmax.f32 %v6686, %v6777
        %v6779 = vrot.slane %v6778, 2
        %v6780 = vmax.f32 %v6778, %v6779
        %v6781 = vrot.slane %v6780, 1
        %v6782 = vmax.f32 %v6780, %v6781
        %v6799 = vsel %vm657, %v6698, %v6692
        %v6800 = vsel %vm659, %v6704, %v6799
        %v6801 = vsel %vm661, %v6710, %v6800
        %v6802 = vsel %vm663, %v6716, %v6801
        %v6803 = vsel %vm665, %v6722, %v6802
        %v6804 = vsel %vm667, %v6728, %v6803
        %v6805 = vsel %vm669, %v6734, %v6804
        %v6806 = vsel %vm657, %v6746, %v6740
        %v6807 = vsel %vm659, %v6752, %v6806
        %v6808 = vsel %vm661, %v6758, %v6807
        %v6809 = vsel %vm663, %v6764, %v6808
        %v6810 = vsel %vm665, %v6770, %v6809
        %v6811 = vsel %vm667, %v6776, %v6810
        %v6812 = vsel %vm669, %v6782, %v6811
        %v6815 = vmax.f32 %v6669, %v6805
        %v6816 = vmax.f32 %v6670, %v6812
        %6817 = vst [vmem:[#allocation4] sm:$0xff] %v6815
        %6818 = vst [vmem:[#allocation4 + $0x8] sm:$0xff] %v6816
        %p6819 = scmp.eq.s32.totalorder %s26, 3
        // Predicated region
        $region49: #{tpu_custom_call.1} parent=39 // pred_check
          %p6820 = pneg %p6819
        $region50: #{tpu_custom_call.1} parent=39 // pred_check_branch
          %6822 = sbr.rel (%p6820) target = $region52
        $region51: #{tpu_custom_call.1} parent=39 // pred_region
          %v6823 = vld [vmem:[#allocation2] sm:$0xff]
          %v6824 = vld [vmem:[#allocation2 + $0x8] sm:$0xff]
          %v6825 = vld [vmem:[#allocation5] sm:$0xff]
          %v6826 = vld [vmem:[#allocation5 + $0x8] sm:$0xff]
          %vm6827 = vcmp.gt.f32.partialorder %v6825, 0.0
          %vm6828 = vcmp.gt.f32.partialorder %v6826, 0.0
          %v6829 = vmax.f32 %v6825, 1.0
          %v6830 = vmax.f32 %v6826, 1.0
          %v6831 = vrcp.pop %v6829
          %v6832 = vrcp.pop %v6830
          %v6833 = vld [vmem:[#allocation3] sm:$0xff]
          %v6834 = vld [vmem:[#allocation3 + $0x8] sm:$0xff]
          %v6835 = vsel %vm6827, 1, 0
          %v6836 = vsel %vm6828, 1, 0
          %6837 = vset.pattern.permute.xlu0 0
          %6838 = vperm.xlu0 %6837, %v6835
          %v6839 = vpop.permute.xlu0 %6838
          %6840 = vset.pattern.permute.xlu0 0
          %6841 = vperm.xlu0 %6840, %v6836
          %v6842 = vpop.permute.xlu0 %6841
          %vm6843 = vcmp.eq.s32.totalorder %v6839, 1
          %vm6844 = vcmp.eq.s32.totalorder %v6842, 1
          %v6845 = vsel %vm6843, %v6833, 0.0
          %v6846 = vsel %vm6844, %v6834, 0.0
          %v6847 = vld [vmem:[#allocation4] sm:$0xff]
          %v6848 = vld [vmem:[#allocation4 + $0x8] sm:$0xff]
          %v6849 = vsel %vm6843, %v6847, 0.0
          %v6850 = vsel %vm6844, %v6848, 0.0
          %s6851 = sld [smem:[#allocation7]]
          %s6852 = sld [smem:[#allocation7 + $0x1]]
          %s6853 = sld [smem:[#allocation7 + $0x2]]
          %s6854 = sld [smem:[#allocation7 + $0x3]]
          %v6855 = vstv %s6854
          %v6856 = vmul.f32 %v6855, %v6831
          %v6857 = vmul.f32 %v6855, %v6832
          %v6858 = vstv %s6851
          %v6859 = vadd.f32 %v6858, %v6856
          %v6860 = vadd.f32 %v6858, %v6857
          %6862 = vset.pattern.permute.xlu0 0
          %6863 = vperm.xlu0 %6862, %v6859
          %v6864 = vpop.permute.xlu0 %6863
          %6867 = vset.pattern.permute.xlu0 0
          %6868 = vperm.xlu0 %6867, %v6860
          %v6869 = vpop.permute.xlu0 %6868
          %v6871 = vmul.f32 %v6823, %v6864
          %v6872 = vmul.f32 %v6824, %v6869
          %v6873 = vstv %s6852
          %v6874 = vmul.f32 %v6873, %v6845
          %v6875 = vmul.f32 %v6873, %v6846
          %v6876 = vadd.f32 %v6871, %v6874
          %v6877 = vadd.f32 %v6872, %v6875
          %v6878 = vstv %s6853
          %v6879 = vmul.f32 %v6878, %v6849
          %v6880 = vmul.f32 %v6878, %v6850
          %v6881 = vadd.f32 %v6876, %v6879
          %v6882 = vadd.f32 %v6877, %v6880
          %s6883 = sld [smem:[#allocation6]]
          %v6884 = vstv %s6883
          %v6885 = vadd.f32 %v6881, %v6884
          %v6886 = vadd.f32 %v6882, %v6884
          %6887 = vst [vmem:[%s272] sm:$0xff] %v6885
          %6888 = vst [vmem:[%s272 + $0x8] sm:$0xff] %v6886
        $region52: #{tpu_custom_call.1} parent=39 // pred_fallthru
          _
        %s6889 = sand.u32 %s161, 1
        %s6890 = scalar_lea.sflag [#allocation8], %s6889
        %s6891 = sand.u32 %s161, 1
        %s6892 = smul.addr %s6891, 16
        %s6893 = scalar_lea.vmem [#allocation10], %s6892
        // Predicated region
        $region53: #{tpu_custom_call.1} parent=39 // pred_check
          %p6894 = pneg %p171
        $region54: #{tpu_custom_call.1} parent=39 // pred_check_branch
          %6896 = sbr.rel (%p6894) target = $region56
        $region55: #{tpu_custom_call.1} parent=39 // pred_region
          %s6897 = smul.u32 2, %s25
          %6899 = vsyncadd %s6890, 0
          %s6900 = smul.addr %s6897, 8
          %s6901 = scalar_lea.hbm %s5, %s6900
          %s6902 = sshll.u32 %s6893, 4
          %s6903 = int_to_ptr.vmem [resolvable:$true] %s6902
          %s6904 = sshll.u32 %s6901, 4
          %s6905 = int_to_ptr.hbm [resolvable:$true] %s6904
          %6910 = dma.vmem_to_hbm [thread:$0]  %s6903, 256, %s6905, %s6890, 128, 128, 8
        $region56: #{tpu_custom_call.1} parent=39 // pred_fallthru
          _
      $region40: #{tpu_custom_call.1} parent=5 // pred_fallthru
        _
      %p6911 = scmp.le.s32.totalorder 2, %s16
      // Predicated region
      $region57: #{tpu_custom_call.1} parent=5 // pred_check
        %p6912 = pneg %p6911
      $region58: #{tpu_custom_call.1} parent=5 // pred_check_branch
        %6914 = sbr.rel (%p6912) target = $region60
      $region59: #{tpu_custom_call.1} parent=5 // pred_region
        %s6915 = ssub.s32 %s16, 2
        // Predicated region
        $region61: #{tpu_custom_call.1} parent=59 // pred_check
          %p6916 = pneg %p177
        $region62: #{tpu_custom_call.1} parent=59 // pred_check_branch
          %6918 = sbr.rel (%p6916) target = $region64
        $region63: #{tpu_custom_call.1} parent=59 // pred_region
          %s6919 = sand.u32 %s162, 1
          %s6920 = scalar_lea.sflag [#allocation8], %s6919
          %s6921 = sand.u32 %s162, 1
          %s6922 = smul.addr %s6921, 16
          %s6923 = scalar_lea.vmem [#allocation10], %s6922
          %6925 = dma.done %s6920, 256
        $region64: #{tpu_custom_call.1} parent=59 // pred_fallthru
          _
      $region60: #{tpu_custom_call.1} parent=5 // pred_fallthru
        _
    $region6: #{tpu_custom_call.1} parent=1 // loop_footer
      %s20 = sadd.s32 1, %s16
    $region7: #{tpu_custom_call.1} parent=1 // loop_footer_branch
      %15 = sbr.rel target = $region3
    $region8: #{tpu_custom_call.1} parent=1 // loop_exit
      _
    %6926 = vsyncpa [#allocation8], 1
    %s6927 = scalar_lea.sflag [#allocation8], 1
    %6928 = vsyncpa %s6927, 1
    %6929 = vsyncpa [#allocation9], 1
    %s6930 = scalar_lea.sflag [#allocation9], 1
    %6931 = vsyncpa %s6930, 1

</llo_original>
